<compile_context>
chip_gen: v6e
topology: v6e:2x2x1
jax: 0.10.0
libtpu: 0.0.40
codegen_flags: <defaults>
</compile_context>

<pallas_src>
import numpy as np
import jax
import jax.numpy as jnp
from jax import lax
from jax.experimental import pallas as pl
from jax.experimental.pallas import tpu as pltpu


# ---------------------------------------------------------------------------
# Fused kernel factory: (3x3 grouped conv + BN shift + ReLU) x 2 on T
# independent depth slices (kernel depth is 1, so every depth slice is an
# independent 2-D problem).
# ---------------------------------------------------------------------------
def _make_fused_kernel(T, H, W, Cin, Cmid, Cout):
    Hp = H + 2          # one halo row above / below the interior
    Wp = W + 9          # interior starts at the 8-aligned sublane column 8;
                        # taps read columns 7 .. W+8 only (columns 0..6 are
                        # never read - they only exist for alignment).

    def zero_halo(ref, C):
        # Only the halo cells the 3x3 taps actually read need to be zero:
        #   rows {0, H+1} over columns [7, W+9), and columns {7, W+8} over
        #   rows [1, H].  Re-zeroed every grid step (cheap border-only stores)
        #   instead of a one-time program_id==0 init, which would miss the
        #   second TensorCore under megacore partitioning of the parallel axis.
        zr = jnp.zeros((T, 1, W + 2, C), jnp.bfloat16)
        ref[:, 0:1, 7:Wp, :] = zr
        ref[:, H + 1:H + 2, 7:Wp, :] = zr
        zc = jnp.zeros((T, H, 1, C), jnp.bfloat16)
        ref[:, 1:1 + H, 7:8, :] = zc
        ref[:, 1:1 + H, W + 8:W + 9, :] = zc

    def conv_stage(xp_ref, w_ref, s_ref, C, Co):
        # 9 accumulating MXU matmuls instead of a lane-axis im2col concat.
        # The kw = 0 / 2 taps start at sublane offsets 7 / 9; their sublane
        # rotation rides the XLU inside the per-tap copy the matmul needs
        # anyway (an explicit pltpu.roll would add two extra full-scratch
        # copies for no benefit).
        acc = None
        for kh in range(3):
            for kw in range(3):
                tap = xp_ref[:, kh:kh + H, 7 + kw:7 + kw + W, :]
                prod = jnp.dot(tap.reshape(T * H * W, C), w_ref[kh * 3 + kw],
                               preferred_element_type=jnp.float32)
                acc = prod if acc is None else acc + prod
        return jnp.maximum(acc + s_ref[...], 0.0)

    def kernel(x_ref, w1_ref, s1_ref, w2_ref, s2_ref, o_ref, xp1_ref, xp2_ref):
        zero_halo(xp1_ref, Cin)
        zero_halo(xp2_ref, Cmid)

        # ---- stage 1: input block -> halo-scratch interior (8-aligned
        # sublane offset) -> grouped conv (block-diag weights) + shift + ReLU.
        xp1_ref[:, 1:1 + H, 8:8 + W, :] = x_ref[...]
        h = conv_stage(xp1_ref, w1_ref, s1_ref, Cin, Cmid)

        # ---- stage 2, fused in-VMEM: the bf16 activation goes straight into
        # the stage-2 scratch interior (no extra full-activation relayout).
        xp2_ref[:, 1:1 + H, 8:8 + W, :] = (
            h.astype(jnp.bfloat16).reshape(T, H, W, Cmid))
        y = conv_stage(xp2_ref, w2_ref, s2_ref, Cmid, Cout)

        # bf16 output: halves HBM writeback and the output double buffer.
        # TODO(synk): for Cout < 128 a (T, H, W*Cout) lane-dense output block
        # would avoid masked stores but needs an in-kernel sublane->lane
        # relayout; kept 4-D here for robustness.
        o_ref[...] = y.astype(o_ref.dtype).reshape(T, H, W, Cout)

    return kernel


# ---------------------------------------------------------------------------
# Generation-aware VMEM planning and depth-tile selection.
# ---------------------------------------------------------------------------
def _vmem_plan():
    try:
        cap = int(pltpu.get_tpu_info().vmem_capacity_bytes)
        if cap <= 0:
            raise ValueError
    except Exception:
        cap = 64 << 20                       # assume v7x-like worst case
    budget = int(cap * 0.35)                 # per-step working-set target
    vmem_limit = min(int(cap * 0.5), 96 << 20)
    return budget, vmem_limit


def _pick_tile(S, H, W, Cin, Cmid, Cout, budget_bytes):
    """Largest divisor of S whose per-step VMEM footprint fits the budget,
    preferring an even grid-step count so the `parallel` axis shards evenly
    across 2 TensorCores (v7x)."""
    def rup(v, m):
        return -(-v // m) * m

    def vm(shape, itemsize):
        *lead, s2, s1 = shape
        n = 1
        for d in lead:
            n *= d
        return n * rup(s2, 8) * rup(s1, 128) * itemsize

    Hp, Wp = H + 2, W + 9
    Cmax = max(Cin, Cmid)

    fixed = 2 * (vm((9, Cin, Cmid), 2) + vm((9, Cmid, Cout), 2))   # weights
    fixed += 2 * (vm((1, Cmid), 4) + vm((1, Cout), 4))             # shifts

    def per_step(T):
        b = 2 * vm((T, H, W, Cin), 2)                 # input block (2x buf)
        b += 2 * vm((T, H, W, Cout), 2)               # output block (2x buf, bf16)
        b += vm((T, Hp, Wp, Cin), 2)                  # stage-1 halo scratch
        b += vm((T, Hp, Wp, Cmid), 2)                 # stage-2 halo scratch
        b += 2 * vm((T * H * W, max(Cmid, Cout)), 4)  # f32 acc + live MXU result
        b += 2 * vm((T * H * W, Cmax), 2)             # live bf16 tap copies
        b += vm((T, H, W, Cmid), 2)                   # stage-1 -> stage-2 temp
        return b

    best, best_even = 1, None
    for t in range(1, S + 1):
        if S % t:
            continue
        if t > 1 and fixed + per_step(t) > budget_bytes:
            continue
        best = t
        if (S // t) % 2 == 0:
            best_even = t
    if best_even is not None and best <= 2 * best_even:
        return best_even
    return best


def _fused_conv_call(x, w1, shift1, w2, shift2):
    """x: (S, H, W, Cin) bf16 -> (S, H, W, Cout) bf16, both conv stages fused.
    w1: (3,3,Cin,Cmid) bf16 (BN scale folded), w2: (3,3,Cmid,Cout) bf16."""
    S, H, W, Cin = x.shape
    Cmid = w1.shape[-1]
    Cout = w2.shape[-1]
    budget, vmem_limit = _vmem_plan()
    T = _pick_tile(S, H, W, Cin, Cmid, Cout, budget)
    Hp, Wp = H + 2, W + 9

    kernel = _make_fused_kernel(T, H, W, Cin, Cmid, Cout)
    return pl.pallas_call(
        kernel,
        out_shape=jax.ShapeDtypeStruct((S, H, W, Cout), jnp.bfloat16),
        grid_spec=pltpu.PrefetchScalarGridSpec(
            num_scalar_prefetch=0,
            grid=(S // T,),
            in_specs=[
                pl.BlockSpec((T, H, W, Cin), lambda i: (i, 0, 0, 0)),
                pl.BlockSpec((9, Cin, Cmid), lambda i: (0, 0, 0)),
                pl.BlockSpec((1, Cmid), lambda i: (0, 0)),
                pl.BlockSpec((9, Cmid, Cout), lambda i: (0, 0, 0)),
                pl.BlockSpec((1, Cout), lambda i: (0, 0)),
            ],
            out_specs=pl.BlockSpec((T, H, W, Cout), lambda i: (i, 0, 0, 0)),
            scratch_shapes=[
                pltpu.VMEM((T, Hp, Wp, Cin), jnp.bfloat16),
                pltpu.VMEM((T, Hp, Wp, Cmid), jnp.bfloat16),
            ],
        ),
        compiler_params=pltpu.CompilerParams(
            dimension_semantics=("parallel",),
            vmem_limit_bytes=vmem_limit,
        ),
    )(x, w1.reshape(9, Cin, Cmid), shift1.reshape(1, Cmid),
      w2.reshape(9, Cmid, Cout), shift2.reshape(1, Cout))


# ---------------------------------------------------------------------------
# Wrapper-side weight prep and depth-edge handling.
# ---------------------------------------------------------------------------
def _prep_conv_weights(w_grouped, scale):
    """(groups,3,3,cin_g,cout_g) f32 -> dense block-diagonal (3,3,Cin,Cout)
    with the BN scale folded in, cast to bf16."""
    g, _, _, cin_g, cout_g = w_grouped.shape
    Cin, Cout = g * cin_g, g * cout_g
    w = jnp.zeros((3, 3, Cin, Cout), jnp.float32)
    for gi in range(g):
        w = w.at[:, :, gi * cin_g:(gi + 1) * cin_g,
                 gi * cout_g:(gi + 1) * cout_g].set(w_grouped[gi])
    w = w * scale.reshape(1, 1, 1, Cout)
    return w.astype(jnp.bfloat16)


def _const_slice_conv(c_bf16, w_dense_bf16, shift, H, W):
    """3x3 conv of a spatially-constant (H,W,C) image (zero pad 1) + shift +
    ReLU.  Used only for the two depth-edge output slices; tiny, plain-jnp."""
    C = c_bf16.shape[0]
    img = jnp.broadcast_to(c_bf16.astype(jnp.float32), (H, W, C))
    imgp = jnp.pad(img, ((1, 1), (1, 1), (0, 0)))
    w = w_dense_bf16.astype(jnp.float32)
    acc = jnp.zeros((H, W, w.shape[-1]), jnp.float32)
    for kh in range(3):
        for kw in range(3):
            acc = acc + jnp.tensordot(imgp[kh:kh + H, kw:kw + W, :],
                                      w[kh, kw], axes=1)
    return jnp.maximum(acc + shift.reshape(1, 1, -1), 0.0)


def conv_block_group3d_forward(params, x_ncdhw):
    """PyTorch-equivalent forward: NCDHW in, NCDHW out (depth grows by 4).
    Output is bf16 (the fused kernel writes bf16 to HBM)."""
    w1g, scale1, shift1, w2g, scale2, shift2 = params
    N, Cin, D, H, W = x_ncdhw.shape

    w1 = _prep_conv_weights(w1g, scale1)                  # (3,3,Cin,Cmid) bf16
    w2 = _prep_conv_weights(w2g, scale2)                  # (3,3,Cmid,Cout) bf16
    Cmid, Cout = w1.shape[-1], w2.shape[-1]

    # NCDHW -> NDHWC, bf16, fuse (N, D) into one slice axis (kernel depth is 1,
    # so every padded depth slice is an independent 2-D problem).
    x = jnp.transpose(x_ncdhw, (0, 2, 3, 4, 1)).astype(jnp.bfloat16)
    x = x.reshape(N * D, H, W, Cin)

    interior = _fused_conv_call(x, w1, shift1, w2, shift2)     # (N*D,H,W,Cout) bf16
    interior = interior.reshape(N, D, H, W, Cout)

    # Depth-edge output slices (never sent through the Pallas conv):
    #  depth 0 / D+3: stage 2 sees an all-zero slice           -> relu(shift2)
    #  depth 1 / D+2: stage 2 sees the constant relu(shift1) slice produced by
    #                 stage 1's depth padding -> one tiny constant 2-D conv.
    c1 = jnp.maximum(shift1, 0.0).astype(jnp.bfloat16).reshape(Cmid)
    e1 = _const_slice_conv(c1, w2, shift2, H, W).astype(jnp.bfloat16)
    e0 = jnp.broadcast_to(
        jnp.maximum(shift2, 0.0).astype(jnp.bfloat16).reshape(1, 1, 1, 1, Cout),
        (N, 1, H, W, Cout))
    e1 = jnp.broadcast_to(e1.reshape(1, 1, H, W, Cout), (N, 1, H, W, Cout))

    y = jnp.concatenate([e0, e1, interior, e1, e0], axis=1)  # (N, D+4, H, W, C)
    return jnp.transpose(y, (0, 4, 1, 2, 3))                 # -> NCDHW


# ---------------------------------------------------------------------------
# Parameter init (PyTorch-like grouped conv weights + eval-mode BN folded).
# ---------------------------------------------------------------------------
def init_params(key, ch_in, ch_out, group_num=2):
    assert ch_in % group_num == 0 and ch_out % group_num == 0
    cin_g1 = ch_in // group_num
    cin_g2 = ch_out // group_num
    cout_g = ch_out // group_num
    ks = jax.random.split(key, 4)

    def conv_w(k, cin_g):
        fan_in = cin_g * 3 * 3
        bound = (1.0 / fan_in) ** 0.5
        return jax.random.uniform(k, (group_num, 3, 3, cin_g, cout_g),
                                  jnp.float32, -bound, bound)

    def bn(k):
        kg, kb, km, kv = jax.random.split(k, 4)
        gamma = jax.random.uniform(kg, (ch_out,), jnp.float32, 0.5, 1.5)
        beta = jax.random.uniform(kb, (ch_out,), jnp.float32, -0.5, 0.5)
        mean = jax.random.uniform(km, (ch_out,), jnp.float32, -0.5, 0.5)
        var = jax.random.uniform(kv, (ch_out,), jnp.float32, 0.5, 1.5)
        eps = 1e-5
        scale = gamma / jnp.sqrt(var + eps)
        shift = beta - mean * scale
        return scale, shift

    w1 = conv_w(ks[0], cin_g1)
    s1, b1 = bn(ks[1])
    w2 = conv_w(ks[2], cin_g2)
    s2, b2 = bn(ks[3])
    return (w1, s1, b1, w2, s2, b2)


# ---------------------------------------------------------------------------
# Pure-JAX (XLA) reference with matching bf16/f32 precision, for validation.
# ---------------------------------------------------------------------------
def _reference_forward(params, x_ncdhw, group_num):
    w1g, scale1, shift1, w2g, scale2, shift2 = params

    def to_oidhw(w_grouped, scale):
        g, _, _, cin_g, cout_g = w_grouped.shape
        w = w_grouped * scale.reshape(g, 1, 1, 1, cout_g)   # fold BN scale
        w = jnp.transpose(w, (0, 4, 3, 1, 2)).reshape(g * cout_g, cin_g, 3, 3)
        return w[:, :, None, :, :].astype(jnp.bfloat16)     # (O, I/g, 1, 3, 3)

    def block(x, wg, scale, shift):
        y = lax.conv_general_dilated(
            x.astype(jnp.bfloat16), to_oidhw(wg, scale),
            window_strides=(1, 1, 1), padding=((1, 1), (1, 1), (1, 1)),
            dimension_numbers=('NCDHW', 'OIDHW', 'NCDHW'),
            feature_group_count=group_num,
            preferred_element_type=jnp.float32)
        return jnp.maximum(y + shift.reshape(1, -1, 1, 1, 1), 0.0)

    h = block(x_ncdhw, w1g, scale1, shift1).astype(jnp.bfloat16)
    return block(h, w2g, scale2, shift2)


if __name__ == "__main__":
    def run_case(key, N, ch_in, ch_out, D, H, W, group_num, tol):
        kx, kp = jax.random.split(key)
        x = jax.random.normal(kx, (N, ch_in, D, H, W), jnp.float32)
        params = init_params(kp, ch_in, ch_out, group_num)
        out = jax.block_until_ready(conv_block_group3d_forward(params, x))
        assert out.shape == (N, ch_out, D + 4, H, W), out.shape
        ref = jax.block_until_ready(_reference_forward(params, x, group_num))
        np.testing.assert_allclose(np.asarray(out, dtype=np.float32),
                                   np.asarray(ref, dtype=np.float32),
                                   atol=tol, rtol=tol)

    key = jax.random.PRNGKey(0)
    k1, k2 = jax.random.split(key)
    # Small-channel config (first Encoder3d stage regime).
    run_case(k1, N=2, ch_in=4, ch_out=8, D=3, H=8, W=8, group_num=2, tol=2e-2)
    # 128-channel config (lane-dense regime of the later Encoder3d stages).
    run_case(k2, N=1, ch_in=128, ch_out=128, D=2, H=8, W=8, group_num=2, tol=2e-2)
    print("KERNEL_OK")
</pallas_src>

<mosaic_0001>
module attributes {stable_mosaic.version = 11 : i64} {
  func.func @kernel(%arg0: i32, %arg1: memref<3x8x8x4xbf16, #tpu.memory_space<vmem>>, %arg2: memref<9x4x8xbf16, #tpu.memory_space<vmem>>, %arg3: memref<1x8xf32, #tpu.memory_space<vmem>>, %arg4: memref<9x8x8xbf16, #tpu.memory_space<vmem>>, %arg5: memref<1x8xf32, #tpu.memory_space<vmem>>, %arg6: memref<3x8x8x8xbf16, #tpu.memory_space<vmem>>, %arg7: memref<3x10x17x4xbf16, #tpu.memory_space<vmem>>, %arg8: memref<3x10x17x8xbf16, #tpu.memory_space<vmem>>) attributes {dimension_semantics = [#tpu.dimension_semantics<parallel>], iteration_bounds = array<i64: 2>, scalar_prefetch = 0 : i64, scratch_operands = 2 : i64, tpu.core_type = #tpu.core_type<tc>, window_params = [{transform_indices = @transform_0, window_bounds = array<i64: 3, 8, 8, 4>}, {pipeline_mode = #tpu.pipeline_mode<synchronous>, transform_indices = @transform_1, window_bounds = array<i64: 9, 4, 8>}, {pipeline_mode = #tpu.pipeline_mode<synchronous>, transform_indices = @transform_2, window_bounds = array<i64: 1, 8>}, {pipeline_mode = #tpu.pipeline_mode<synchronous>, transform_indices = @transform_3, window_bounds = array<i64: 9, 8, 8>}, {pipeline_mode = #tpu.pipeline_mode<synchronous>, transform_indices = @transform_4, window_bounds = array<i64: 1, 8>}, {transform_indices = @transform_5, window_bounds = array<i64: 3, 8, 8, 8>}]} {
    %cst = arith.constant 0.000000e+00 : bf16
    %0 = vector.broadcast %cst : bf16 to vector<3x1x10x4xbf16>
    %c0 = arith.constant 0 : index
    %c0_0 = arith.constant 0 : index
    %c7 = arith.constant 7 : index
    %c0_1 = arith.constant 0 : index
    %1 = vector.load %arg7[%c0, %c0_0, %c7, %c0_1] : memref<3x10x17x4xbf16, #tpu.memory_space<vmem>>, vector<3x1x10x4xbf16>
    tpu.vector_store %arg7[%c0, %c0_0, %c7, %c0_1], %0 {strides = array<i32>} : memref<3x10x17x4xbf16, #tpu.memory_space<vmem>>, vector<3x1x10x4xbf16>,
    %c0_2 = arith.constant 0 : index
    %c9 = arith.constant 9 : index
    %c7_3 = arith.constant 7 : index
    %c0_4 = arith.constant 0 : index
    %2 = vector.load %arg7[%c0_2, %c9, %c7_3, %c0_4] : memref<3x10x17x4xbf16, #tpu.memory_space<vmem>>, vector<3x1x10x4xbf16>
    tpu.vector_store %arg7[%c0_2, %c9, %c7_3, %c0_4], %0 {strides = array<i32>} : memref<3x10x17x4xbf16, #tpu.memory_space<vmem>>, vector<3x1x10x4xbf16>,
    %cst_5 = arith.constant 0.000000e+00 : bf16
    %3 = vector.broadcast %cst_5 : bf16 to vector<3x8x1x4xbf16>
    %c0_6 = arith.constant 0 : index
    %c1 = arith.constant 1 : index
    %c7_7 = arith.constant 7 : index
    %c0_8 = arith.constant 0 : index
    %4 = vector.load %arg7[%c0_6, %c1, %c7_7, %c0_8] : memref<3x10x17x4xbf16, #tpu.memory_space<vmem>>, vector<3x8x1x4xbf16>
    tpu.vector_store %arg7[%c0_6, %c1, %c7_7, %c0_8], %3 {strides = array<i32>} : memref<3x10x17x4xbf16, #tpu.memory_space<vmem>>, vector<3x8x1x4xbf16>,
    %c0_9 = arith.constant 0 : index
    %c1_10 = arith.constant 1 : index
    %c16 = arith.constant 16 : index
    %c0_11 = arith.constant 0 : index
    %5 = vector.load %arg7[%c0_9, %c1_10, %c16, %c0_11] : memref<3x10x17x4xbf16, #tpu.memory_space<vmem>>, vector<3x8x1x4xbf16>
    tpu.vector_store %arg7[%c0_9, %c1_10, %c16, %c0_11], %3 {strides = array<i32>} : memref<3x10x17x4xbf16, #tpu.memory_space<vmem>>, vector<3x8x1x4xbf16>,
    %cst_12 = arith.constant 0.000000e+00 : bf16
    %6 = vector.broadcast %cst_12 : bf16 to vector<3x1x10x8xbf16>
    %c0_13 = arith.constant 0 : index
    %c0_14 = arith.constant 0 : index
    %c7_15 = arith.constant 7 : index
    %c0_16 = arith.constant 0 : index
    %7 = vector.load %arg8[%c0_13, %c0_14, %c7_15, %c0_16] : memref<3x10x17x8xbf16, #tpu.memory_space<vmem>>, vector<3x1x10x8xbf16>
    tpu.vector_store %arg8[%c0_13, %c0_14, %c7_15, %c0_16], %6 {strides = array<i32>} : memref<3x10x17x8xbf16, #tpu.memory_space<vmem>>, vector<3x1x10x8xbf16>,
    %c0_17 = arith.constant 0 : index
    %c9_18 = arith.constant 9 : index
    %c7_19 = arith.constant 7 : index
    %c0_20 = arith.constant 0 : index
    %8 = vector.load %arg8[%c0_17, %c9_18, %c7_19, %c0_20] : memref<3x10x17x8xbf16, #tpu.memory_space<vmem>>, vector<3x1x10x8xbf16>
    tpu.vector_store %arg8[%c0_17, %c9_18, %c7_19, %c0_20], %6 {strides = array<i32>} : memref<3x10x17x8xbf16, #tpu.memory_space<vmem>>, vector<3x1x10x8xbf16>,
    %cst_21 = arith.constant 0.000000e+00 : bf16
    %9 = vector.broadcast %cst_21 : bf16 to vector<3x8x1x8xbf16>
    %c0_22 = arith.constant 0 : index
    %c1_23 = arith.constant 1 : index
    %c7_24 = arith.constant 7 : index
    %c0_25 = arith.constant 0 : index
    %10 = vector.load %arg8[%c0_22, %c1_23, %c7_24, %c0_25] : memref<3x10x17x8xbf16, #tpu.memory_space<vmem>>, vector<3x8x1x8xbf16>
    tpu.vector_store %arg8[%c0_22, %c1_23, %c7_24, %c0_25], %9 {strides = array<i32>} : memref<3x10x17x8xbf16, #tpu.memory_space<vmem>>, vector<3x8x1x8xbf16>,
    %c0_26 = arith.constant 0 : index
    %c1_27 = arith.constant 1 : index
    %c16_28 = arith.constant 16 : index
    %c0_29 = arith.constant 0 : index
    %11 = vector.load %arg8[%c0_26, %c1_27, %c16_28, %c0_29] : memref<3x10x17x8xbf16, #tpu.memory_space<vmem>>, vector<3x8x1x8xbf16>
    tpu.vector_store %arg8[%c0_26, %c1_27, %c16_28, %c0_29], %9 {strides = array<i32>} : memref<3x10x17x8xbf16, #tpu.memory_space<vmem>>, vector<3x8x1x8xbf16>,
    %c0_30 = arith.constant 0 : index
    %c0_31 = arith.constant 0 : index
    %c0_32 = arith.constant 0 : index
    %c0_33 = arith.constant 0 : index
    %12 = vector.load %arg1[%c0_30, %c0_31, %c0_32, %c0_33] : memref<3x8x8x4xbf16, #tpu.memory_space<vmem>>, vector<3x8x8x4xbf16>
    %c0_34 = arith.constant 0 : index
    %c1_35 = arith.constant 1 : index
    %c8 = arith.constant 8 : index
    %c0_36 = arith.constant 0 : index
    %13 = vector.load %arg7[%c0_34, %c1_35, %c8, %c0_36] : memref<3x10x17x4xbf16, #tpu.memory_space<vmem>>, vector<3x8x8x4xbf16>
    tpu.vector_store %arg7[%c0_34, %c1_35, %c8, %c0_36], %12 {strides = array<i32>} : memref<3x10x17x4xbf16, #tpu.memory_space<vmem>>, vector<3x8x8x4xbf16>,
    %c0_37 = arith.constant 0 : index
    %c0_38 = arith.constant 0 : index
    %c7_39 = arith.constant 7 : index
    %c0_40 = arith.constant 0 : index
    %14 = vector.load %arg7[%c0_37, %c0_38, %c7_39, %c0_40] : memref<3x10x17x4xbf16, #tpu.memory_space<vmem>>, vector<3x8x8x4xbf16>
    %15 = vector.shape_cast %14 : vector<3x8x8x4xbf16> to vector<192x4xbf16>
    %c0_41 = arith.constant 0 : index
    %c0_42 = arith.constant 0 : index
    %c0_43 = arith.constant 0 : index
    %16 = vector.load %arg2[%c0_41, %c0_42, %c0_43] : memref<9x4x8xbf16, #tpu.memory_space<vmem>>, vector<1x4x8xbf16>
    %17 = vector.shape_cast %16 : vector<1x4x8xbf16> to vector<4x8xbf16>
    %cst_44 = arith.constant dense<0.000000e+00> : vector<192x8xf32>
    %18 = tpu.matmul %15, %17, %cst_44 {dimension_numbers = #tpu.dot_dimension_numbers<[1], [0], [0], [1], [0, 0, 1, 1], [], []>} : vector<192x4xbf16>, vector<4x8xbf16>, vector<192x8xf32> -> vector<192x8xf32>
    %c0_45 = arith.constant 0 : index
    %c0_46 = arith.constant 0 : index
    %c8_47 = arith.constant 8 : index
    %c0_48 = arith.constant 0 : index
    %19 = vector.load %arg7[%c0_45, %c0_46, %c8_47, %c0_48] : memref<3x10x17x4xbf16, #tpu.memory_space<vmem>>, vector<3x8x8x4xbf16>
    %20 = vector.shape_cast %19 : vector<3x8x8x4xbf16> to vector<192x4xbf16>
    %c1_49 = arith.constant 1 : index
    %c0_50 = arith.constant 0 : index
    %c0_51 = arith.constant 0 : index
    %21 = vector.load %arg2[%c1_49, %c0_50, %c0_51] : memref<9x4x8xbf16, #tpu.memory_space<vmem>>, vector<1x4x8xbf16>
    %22 = vector.shape_cast %21 : vector<1x4x8xbf16> to vector<4x8xbf16>
    %cst_52 = arith.constant dense<0.000000e+00> : vector<192x8xf32>
    %23 = tpu.matmul %20, %22, %cst_52 {dimension_numbers = #tpu.dot_dimension_numbers<[1], [0], [0], [1], [0, 0, 1, 1], [], []>} : vector<192x4xbf16>, vector<4x8xbf16>, vector<192x8xf32> -> vector<192x8xf32>
    %24 = arith.addf %18, %23 : vector<192x8xf32>
    %c0_53 = arith.constant 0 : index
    %c0_54 = arith.constant 0 : index
    %c9_55 = arith.constant 9 : index
    %c0_56 = arith.constant 0 : index
    %25 = vector.load %arg7[%c0_53, %c0_54, %c9_55, %c0_56] : memref<3x10x17x4xbf16, #tpu.memory_space<vmem>>, vector<3x8x8x4xbf16>
    %26 = vector.shape_cast %25 : vector<3x8x8x4xbf16> to vector<192x4xbf16>
    %c2 = arith.constant 2 : index
    %c0_57 = arith.constant 0 : index
    %c0_58 = arith.constant 0 : index
    %27 = vector.load %arg2[%c2, %c0_57, %c0_58] : memref<9x4x8xbf16, #tpu.memory_space<vmem>>, vector<1x4x8xbf16>
    %28 = vector.shape_cast %27 : vector<1x4x8xbf16> to vector<4x8xbf16>
    %cst_59 = arith.constant dense<0.000000e+00> : vector<192x8xf32>
    %29 = tpu.matmul %26, %28, %cst_59 {dimension_numbers = #tpu.dot_dimension_numbers<[1], [0], [0], [1], [0, 0, 1, 1], [], []>} : vector<192x4xbf16>, vector<4x8xbf16>, vector<192x8xf32> -> vector<192x8xf32>
    %30 = arith.addf %24, %29 : vector<192x8xf32>
    %c0_60 = arith.constant 0 : index
    %c1_61 = arith.constant 1 : index
    %c7_62 = arith.constant 7 : index
    %c0_63 = arith.constant 0 : index
    %31 = vector.load %arg7[%c0_60, %c1_61, %c7_62, %c0_63] : memref<3x10x17x4xbf16, #tpu.memory_space<vmem>>, vector<3x8x8x4xbf16>
    %32 = vector.shape_cast %31 : vector<3x8x8x4xbf16> to vector<192x4xbf16>
    %c3 = arith.constant 3 : index
    %c0_64 = arith.constant 0 : index
    %c0_65 = arith.constant 0 : index
    %33 = vector.load %arg2[%c3, %c0_64, %c0_65] : memref<9x4x8xbf16, #tpu.memory_space<vmem>>, vector<1x4x8xbf16>
    %34 = vector.shape_cast %33 : vector<1x4x8xbf16> to vector<4x8xbf16>
    %cst_66 = arith.constant dense<0.000000e+00> : vector<192x8xf32>
    %35 = tpu.matmul %32, %34, %cst_66 {dimension_numbers = #tpu.dot_dimension_numbers<[1], [0], [0], [1], [0, 0, 1, 1], [], []>} : vector<192x4xbf16>, vector<4x8xbf16>, vector<192x8xf32> -> vector<192x8xf32>
    %36 = arith.addf %30, %35 : vector<192x8xf32>
    %c0_67 = arith.constant 0 : index
    %c1_68 = arith.constant 1 : index
    %c8_69 = arith.constant 8 : index
    %c0_70 = arith.constant 0 : index
    %37 = vector.load %arg7[%c0_67, %c1_68, %c8_69, %c0_70] : memref<3x10x17x4xbf16, #tpu.memory_space<vmem>>, vector<3x8x8x4xbf16>
    %38 = vector.shape_cast %37 : vector<3x8x8x4xbf16> to vector<192x4xbf16>
    %c4 = arith.constant 4 : index
    %c0_71 = arith.constant 0 : index
    %c0_72 = arith.constant 0 : index
    %39 = vector.load %arg2[%c4, %c0_71, %c0_72] : memref<9x4x8xbf16, #tpu.memory_space<vmem>>, vector<1x4x8xbf16>
    %40 = vector.shape_cast %39 : vector<1x4x8xbf16> to vector<4x8xbf16>
    %cst_73 = arith.constant dense<0.000000e+00> : vector<192x8xf32>
    %41 = tpu.matmul %38, %40, %cst_73 {dimension_numbers = #tpu.dot_dimension_numbers<[1], [0], [0], [1], [0, 0, 1, 1], [], []>} : vector<192x4xbf16>, vector<4x8xbf16>, vector<192x8xf32> -> vector<192x8xf32>
    %42 = arith.addf %36, %41 : vector<192x8xf32>
    %c0_74 = arith.constant 0 : index
    %c1_75 = arith.constant 1 : index
    %c9_76 = arith.constant 9 : index
    %c0_77 = arith.constant 0 : index
    %43 = vector.load %arg7[%c0_74, %c1_75, %c9_76, %c0_77] : memref<3x10x17x4xbf16, #tpu.memory_space<vmem>>, vector<3x8x8x4xbf16>
    %44 = vector.shape_cast %43 : vector<3x8x8x4xbf16> to vector<192x4xbf16>
    %c5 = arith.constant 5 : index
    %c0_78 = arith.constant 0 : index
    %c0_79 = arith.constant 0 : index
    %45 = vector.load %arg2[%c5, %c0_78, %c0_79] : memref<9x4x8xbf16, #tpu.memory_space<vmem>>, vector<1x4x8xbf16>
    %46 = vector.shape_cast %45 : vector<1x4x8xbf16> to vector<4x8xbf16>
    %cst_80 = arith.constant dense<0.000000e+00> : vector<192x8xf32>
    %47 = tpu.matmul %44, %46, %cst_80 {dimension_numbers = #tpu.dot_dimension_numbers<[1], [0], [0], [1], [0, 0, 1, 1], [], []>} : vector<192x4xbf16>, vector<4x8xbf16>, vector<192x8xf32> -> vector<192x8xf32>
    %48 = arith.addf %42, %47 : vector<192x8xf32>
    %c0_81 = arith.constant 0 : index
    %c2_82 = arith.constant 2 : index
    %c7_83 = arith.constant 7 : index
    %c0_84 = arith.constant 0 : index
    %49 = vector.load %arg7[%c0_81, %c2_82, %c7_83, %c0_84] : memref<3x10x17x4xbf16, #tpu.memory_space<vmem>>, vector<3x8x8x4xbf16>
    %50 = vector.shape_cast %49 : vector<3x8x8x4xbf16> to vector<192x4xbf16>
    %c6 = arith.constant 6 : index
    %c0_85 = arith.constant 0 : index
    %c0_86 = arith.constant 0 : index
    %51 = vector.load %arg2[%c6, %c0_85, %c0_86] : memref<9x4x8xbf16, #tpu.memory_space<vmem>>, vector<1x4x8xbf16>
    %52 = vector.shape_cast %51 : vector<1x4x8xbf16> to vector<4x8xbf16>
    %cst_87 = arith.constant dense<0.000000e+00> : vector<192x8xf32>
    %53 = tpu.matmul %50, %52, %cst_87 {dimension_numbers = #tpu.dot_dimension_numbers<[1], [0], [0], [1], [0, 0, 1, 1], [], []>} : vector<192x4xbf16>, vector<4x8xbf16>, vector<192x8xf32> -> vector<192x8xf32>
    %54 = arith.addf %48, %53 : vector<192x8xf32>
    %c0_88 = arith.constant 0 : index
    %c2_89 = arith.constant 2 : index
    %c8_90 = arith.constant 8 : index
    %c0_91 = arith.constant 0 : index
    %55 = vector.load %arg7[%c0_88, %c2_89, %c8_90, %c0_91] : memref<3x10x17x4xbf16, #tpu.memory_space<vmem>>, vector<3x8x8x4xbf16>
    %56 = vector.shape_cast %55 : vector<3x8x8x4xbf16> to vector<192x4xbf16>
    %c7_92 = arith.constant 7 : index
    %c0_93 = arith.constant 0 : index
    %c0_94 = arith.constant 0 : index
    %57 = vector.load %arg2[%c7_92, %c0_93, %c0_94] : memref<9x4x8xbf16, #tpu.memory_space<vmem>>, vector<1x4x8xbf16>
    %58 = vector.shape_cast %57 : vector<1x4x8xbf16> to vector<4x8xbf16>
    %cst_95 = arith.constant dense<0.000000e+00> : vector<192x8xf32>
    %59 = tpu.matmul %56, %58, %cst_95 {dimension_numbers = #tpu.dot_dimension_numbers<[1], [0], [0], [1], [0, 0, 1, 1], [], []>} : vector<192x4xbf16>, vector<4x8xbf16>, vector<192x8xf32> -> vector<192x8xf32>
    %60 = arith.addf %54, %59 : vector<192x8xf32>
    %c0_96 = arith.constant 0 : index
    %c2_97 = arith.constant 2 : index
    %c9_98 = arith.constant 9 : index
    %c0_99 = arith.constant 0 : index
    %61 = vector.load %arg7[%c0_96, %c2_97, %c9_98, %c0_99] : memref<3x10x17x4xbf16, #tpu.memory_space<vmem>>, vector<3x8x8x4xbf16>
    %62 = vector.shape_cast %61 : vector<3x8x8x4xbf16> to vector<192x4xbf16>
    %c8_100 = arith.constant 8 : index
    %c0_101 = arith.constant 0 : index
    %c0_102 = arith.constant 0 : index
    %63 = vector.load %arg2[%c8_100, %c0_101, %c0_102] : memref<9x4x8xbf16, #tpu.memory_space<vmem>>, vector<1x4x8xbf16>
    %64 = vector.shape_cast %63 : vector<1x4x8xbf16> to vector<4x8xbf16>
    %cst_103 = arith.constant dense<0.000000e+00> : vector<192x8xf32>
    %65 = tpu.matmul %62, %64, %cst_103 {dimension_numbers = #tpu.dot_dimension_numbers<[1], [0], [0], [1], [0, 0, 1, 1], [], []>} : vector<192x4xbf16>, vector<4x8xbf16>, vector<192x8xf32> -> vector<192x8xf32>
    %66 = arith.addf %60, %65 : vector<192x8xf32>
    %c0_104 = arith.constant 0 : index
    %c0_105 = arith.constant 0 : index
    %67 = vector.load %arg3[%c0_104, %c0_105] : memref<1x8xf32, #tpu.memory_space<vmem>>, vector<1x8xf32>
    %68 = vector.broadcast %67 : vector<1x8xf32> to vector<192x8xf32>
    %69 = arith.addf %66, %68 : vector<192x8xf32>
    %cst_106 = arith.constant 0.000000e+00 : f32
    %70 = vector.broadcast %cst_106 : f32 to vector<192x8xf32>
    %71 = arith.maximumf %69, %70 : vector<192x8xf32>
    %72 = arith.truncf %71 : vector<192x8xf32> to vector<192x8xbf16>
    %73 = vector.shape_cast %72 : vector<192x8xbf16> to vector<3x8x8x8xbf16>
    %c0_107 = arith.constant 0 : index
    %c1_108 = arith.constant 1 : index
    %c8_109 = arith.constant 8 : index
    %c0_110 = arith.constant 0 : index
    %74 = vector.load %arg8[%c0_107, %c1_108, %c8_109, %c0_110] : memref<3x10x17x8xbf16, #tpu.memory_space<vmem>>, vector<3x8x8x8xbf16>
    tpu.vector_store %arg8[%c0_107, %c1_108, %c8_109, %c0_110], %73 {strides = array<i32>} : memref<3x10x17x8xbf16, #tpu.memory_space<vmem>>, vector<3x8x8x8xbf16>,
    %c0_111 = arith.constant 0 : index
    %c0_112 = arith.constant 0 : index
    %c7_113 = arith.constant 7 : index
    %c0_114 = arith.constant 0 : index
    %75 = vector.load %arg8[%c0_111, %c0_112, %c7_113, %c0_114] : memref<3x10x17x8xbf16, #tpu.memory_space<vmem>>, vector<3x8x8x8xbf16>
    %76 = vector.shape_cast %75 : vector<3x8x8x8xbf16> to vector<192x8xbf16>
    %c0_115 = arith.constant 0 : index
    %c0_116 = arith.constant 0 : index
    %c0_117 = arith.constant 0 : index
    %77 = vector.load %arg4[%c0_115, %c0_116, %c0_117] : memref<9x8x8xbf16, #tpu.memory_space<vmem>>, vector<1x8x8xbf16>
    %78 = vector.shape_cast %77 : vector<1x8x8xbf16> to vector<8x8xbf16>
    %cst_118 = arith.constant dense<0.000000e+00> : vector<192x8xf32>
    %79 = tpu.matmul %76, %78, %cst_118 {dimension_numbers = #tpu.dot_dimension_numbers<[1], [0], [0], [1], [0, 0, 1, 1], [], []>} : vector<192x8xbf16>, vector<8x8xbf16>, vector<192x8xf32> -> vector<192x8xf32>
    %c0_119 = arith.constant 0 : index
    %c0_120 = arith.constant 0 : index
    %c8_121 = arith.constant 8 : index
    %c0_122 = arith.constant 0 : index
    %80 = vector.load %arg8[%c0_119, %c0_120, %c8_121, %c0_122] : memref<3x10x17x8xbf16, #tpu.memory_space<vmem>>, vector<3x8x8x8xbf16>
    %81 = vector.shape_cast %80 : vector<3x8x8x8xbf16> to vector<192x8xbf16>
    %c1_123 = arith.constant 1 : index
    %c0_124 = arith.constant 0 : index
    %c0_125 = arith.constant 0 : index
    %82 = vector.load %arg4[%c1_123, %c0_124, %c0_125] : memref<9x8x8xbf16, #tpu.memory_space<vmem>>, vector<1x8x8xbf16>
    %83 = vector.shape_cast %82 : vector<1x8x8xbf16> to vector<8x8xbf16>
    %cst_126 = arith.constant dense<0.000000e+00> : vector<192x8xf32>
    %84 = tpu.matmul %81, %83, %cst_126 {dimension_numbers = #tpu.dot_dimension_numbers<[1], [0], [0], [1], [0, 0, 1, 1], [], []>} : vector<192x8xbf16>, vector<8x8xbf16>, vector<192x8xf32> -> vector<192x8xf32>
    %85 = arith.addf %79, %84 : vector<192x8xf32>
    %c0_127 = arith.constant 0 : index
    %c0_128 = arith.constant 0 : index
    %c9_129 = arith.constant 9 : index
    %c0_130 = arith.constant 0 : index
    %86 = vector.load %arg8[%c0_127, %c0_128, %c9_129, %c0_130] : memref<3x10x17x8xbf16, #tpu.memory_space<vmem>>, vector<3x8x8x8xbf16>
    %87 = vector.shape_cast %86 : vector<3x8x8x8xbf16> to vector<192x8xbf16>
    %c2_131 = arith.constant 2 : index
    %c0_132 = arith.constant 0 : index
    %c0_133 = arith.constant 0 : index
    %88 = vector.load %arg4[%c2_131, %c0_132, %c0_133] : memref<9x8x8xbf16, #tpu.memory_space<vmem>>, vector<1x8x8xbf16>
    %89 = vector.shape_cast %88 : vector<1x8x8xbf16> to vector<8x8xbf16>
    %cst_134 = arith.constant dense<0.000000e+00> : vector<192x8xf32>
    %90 = tpu.matmul %87, %89, %cst_134 {dimension_numbers = #tpu.dot_dimension_numbers<[1], [0], [0], [1], [0, 0, 1, 1], [], []>} : vector<192x8xbf16>, vector<8x8xbf16>, vector<192x8xf32> -> vector<192x8xf32>
    %91 = arith.addf %85, %90 : vector<192x8xf32>
    %c0_135 = arith.constant 0 : index
    %c1_136 = arith.constant 1 : index
    %c7_137 = arith.constant 7 : index
    %c0_138 = arith.constant 0 : index
    %92 = vector.load %arg8[%c0_135, %c1_136, %c7_137, %c0_138] : memref<3x10x17x8xbf16, #tpu.memory_space<vmem>>, vector<3x8x8x8xbf16>
    %93 = vector.shape_cast %92 : vector<3x8x8x8xbf16> to vector<192x8xbf16>
    %c3_139 = arith.constant 3 : index
    %c0_140 = arith.constant 0 : index
    %c0_141 = arith.constant 0 : index
    %94 = vector.load %arg4[%c3_139, %c0_140, %c0_141] : memref<9x8x8xbf16, #tpu.memory_space<vmem>>, vector<1x8x8xbf16>
    %95 = vector.shape_cast %94 : vector<1x8x8xbf16> to vector<8x8xbf16>
    %cst_142 = arith.constant dense<0.000000e+00> : vector<192x8xf32>
    %96 = tpu.matmul %93, %95, %cst_142 {dimension_numbers = #tpu.dot_dimension_numbers<[1], [0], [0], [1], [0, 0, 1, 1], [], []>} : vector<192x8xbf16>, vector<8x8xbf16>, vector<192x8xf32> -> vector<192x8xf32>
    %97 = arith.addf %91, %96 : vector<192x8xf32>
    %c0_143 = arith.constant 0 : index
    %c1_144 = arith.constant 1 : index
    %c8_145 = arith.constant 8 : index
    %c0_146 = arith.constant 0 : index
    %98 = vector.load %arg8[%c0_143, %c1_144, %c8_145, %c0_146] : memref<3x10x17x8xbf16, #tpu.memory_space<vmem>>, vector<3x8x8x8xbf16>
    %99 = vector.shape_cast %98 : vector<3x8x8x8xbf16> to vector<192x8xbf16>
    %c4_147 = arith.constant 4 : index
    %c0_148 = arith.constant 0 : index
    %c0_149 = arith.constant 0 : index
    %100 = vector.load %arg4[%c4_147, %c0_148, %c0_149] : memref<9x8x8xbf16, #tpu.memory_space<vmem>>, vector<1x8x8xbf16>
    %101 = vector.shape_cast %100 : vector<1x8x8xbf16> to vector<8x8xbf16>
    %cst_150 = arith.constant dense<0.000000e+00> : vector<192x8xf32>
    %102 = tpu.matmul %99, %101, %cst_150 {dimension_numbers = #tpu.dot_dimension_numbers<[1], [0], [0], [1], [0, 0, 1, 1], [], []>} : vector<192x8xbf16>, vector<8x8xbf16>, vector<192x8xf32> -> vector<192x8xf32>
    %103 = arith.addf %97, %102 : vector<192x8xf32>
    %c0_151 = arith.constant 0 : index
    %c1_152 = arith.constant 1 : index
    %c9_153 = arith.constant 9 : index
    %c0_154 = arith.constant 0 : index
    %104 = vector.load %arg8[%c0_151, %c1_152, %c9_153, %c0_154] : memref<3x10x17x8xbf16, #tpu.memory_space<vmem>>, vector<3x8x8x8xbf16>
    %105 = vector.shape_cast %104 : vector<3x8x8x8xbf16> to vector<192x8xbf16>
    %c5_155 = arith.constant 5 : index
    %c0_156 = arith.constant 0 : index
    %c0_157 = arith.constant 0 : index
    %106 = vector.load %arg4[%c5_155, %c0_156, %c0_157] : memref<9x8x8xbf16, #tpu.memory_space<vmem>>, vector<1x8x8xbf16>
    %107 = vector.shape_cast %106 : vector<1x8x8xbf16> to vector<8x8xbf16>
    %cst_158 = arith.constant dense<0.000000e+00> : vector<192x8xf32>
    %108 = tpu.matmul %105, %107, %cst_158 {dimension_numbers = #tpu.dot_dimension_numbers<[1], [0], [0], [1], [0, 0, 1, 1], [], []>} : vector<192x8xbf16>, vector<8x8xbf16>, vector<192x8xf32> -> vector<192x8xf32>
    %109 = arith.addf %103, %108 : vector<192x8xf32>
    %c0_159 = arith.constant 0 : index
    %c2_160 = arith.constant 2 : index
    %c7_161 = arith.constant 7 : index
    %c0_162 = arith.constant 0 : index
    %110 = vector.load %arg8[%c0_159, %c2_160, %c7_161, %c0_162] : memref<3x10x17x8xbf16, #tpu.memory_space<vmem>>, vector<3x8x8x8xbf16>
    %111 = vector.shape_cast %110 : vector<3x8x8x8xbf16> to vector<192x8xbf16>
    %c6_163 = arith.constant 6 : index
    %c0_164 = arith.constant 0 : index
    %c0_165 = arith.constant 0 : index
    %112 = vector.load %arg4[%c6_163, %c0_164, %c0_165] : memref<9x8x8xbf16, #tpu.memory_space<vmem>>, vector<1x8x8xbf16>
    %113 = vector.shape_cast %112 : vector<1x8x8xbf16> to vector<8x8xbf16>
    %cst_166 = arith.constant dense<0.000000e+00> : vector<192x8xf32>
    %114 = tpu.matmul %111, %113, %cst_166 {dimension_numbers = #tpu.dot_dimension_numbers<[1], [0], [0], [1], [0, 0, 1, 1], [], []>} : vector<192x8xbf16>, vector<8x8xbf16>, vector<192x8xf32> -> vector<192x8xf32>
    %115 = arith.addf %109, %114 : vector<192x8xf32>
    %c0_167 = arith.constant 0 : index
    %c2_168 = arith.constant 2 : index
    %c8_169 = arith.constant 8 : index
    %c0_170 = arith.constant 0 : index
    %116 = vector.load %arg8[%c0_167, %c2_168, %c8_169, %c0_170] : memref<3x10x17x8xbf16, #tpu.memory_space<vmem>>, vector<3x8x8x8xbf16>
    %117 = vector.shape_cast %116 : vector<3x8x8x8xbf16> to vector<192x8xbf16>
    %c7_171 = arith.constant 7 : index
    %c0_172 = arith.constant 0 : index
    %c0_173 = arith.constant 0 : index
    %118 = vector.load %arg4[%c7_171, %c0_172, %c0_173] : memref<9x8x8xbf16, #tpu.memory_space<vmem>>, vector<1x8x8xbf16>
    %119 = vector.shape_cast %118 : vector<1x8x8xbf16> to vector<8x8xbf16>
    %cst_174 = arith.constant dense<0.000000e+00> : vector<192x8xf32>
    %120 = tpu.matmul %117, %119, %cst_174 {dimension_numbers = #tpu.dot_dimension_numbers<[1], [0], [0], [1], [0, 0, 1, 1], [], []>} : vector<192x8xbf16>, vector<8x8xbf16>, vector<192x8xf32> -> vector<192x8xf32>
    %121 = arith.addf %115, %120 : vector<192x8xf32>
    %c0_175 = arith.constant 0 : index
    %c2_176 = arith.constant 2 : index
    %c9_177 = arith.constant 9 : index
    %c0_178 = arith.constant 0 : index
    %122 = vector.load %arg8[%c0_175, %c2_176, %c9_177, %c0_178] : memref<3x10x17x8xbf16, #tpu.memory_space<vmem>>, vector<3x8x8x8xbf16>
    %123 = vector.shape_cast %122 : vector<3x8x8x8xbf16> to vector<192x8xbf16>
    %c8_179 = arith.constant 8 : index
    %c0_180 = arith.constant 0 : index
    %c0_181 = arith.constant 0 : index
    %124 = vector.load %arg4[%c8_179, %c0_180, %c0_181] : memref<9x8x8xbf16, #tpu.memory_space<vmem>>, vector<1x8x8xbf16>
    %125 = vector.shape_cast %124 : vector<1x8x8xbf16> to vector<8x8xbf16>
    %cst_182 = arith.constant dense<0.000000e+00> : vector<192x8xf32>
    %126 = tpu.matmul %123, %125, %cst_182 {dimension_numbers = #tpu.dot_dimension_numbers<[1], [0], [0], [1], [0, 0, 1, 1], [], []>} : vector<192x8xbf16>, vector<8x8xbf16>, vector<192x8xf32> -> vector<192x8xf32>
    %127 = arith.addf %121, %126 : vector<192x8xf32>
    %c0_183 = arith.constant 0 : index
    %c0_184 = arith.constant 0 : index
    %128 = vector.load %arg5[%c0_183, %c0_184] : memref<1x8xf32, #tpu.memory_space<vmem>>, vector<1x8xf32>
    %129 = vector.broadcast %128 : vector<1x8xf32> to vector<192x8xf32>
    %130 = arith.addf %127, %129 : vector<192x8xf32>
    %cst_185 = arith.constant 0.000000e+00 : f32
    %131 = vector.broadcast %cst_185 : f32 to vector<192x8xf32>
    %132 = arith.maximumf %130, %131 : vector<192x8xf32>
    %133 = arith.truncf %132 : vector<192x8xf32> to vector<192x8xbf16>
    %134 = vector.shape_cast %133 : vector<192x8xbf16> to vector<3x8x8x8xbf16>
    %c0_186 = arith.constant 0 : index
    %c0_187 = arith.constant 0 : index
    %c0_188 = arith.constant 0 : index
    %c0_189 = arith.constant 0 : index
    %135 = vector.load %arg6[%c0_186, %c0_187, %c0_188, %c0_189] : memref<3x8x8x8xbf16, #tpu.memory_space<vmem>>, vector<3x8x8x8xbf16>
    tpu.vector_store %arg6[%c0_186, %c0_187, %c0_188, %c0_189], %134 {strides = array<i32>} : memref<3x8x8x8xbf16, #tpu.memory_space<vmem>>, vector<3x8x8x8xbf16>,
    return
  }
  func.func @transform_0(%arg0: i32) -> (i32, i32, i32, i32) {
    %c0_i32 = arith.constant 0 : i32
    %c0_i32_0 = arith.constant 0 : i32
    %c0_i32_1 = arith.constant 0 : i32
    %c0_i32_2 = arith.constant 0 : i32
    return %arg0, %c0_i32, %c0_i32_0, %c0_i32_1 : i32, i32, i32, i32
  }
  func.func @transform_1(%arg0: i32) -> (i32, i32, i32) {
    %c0_i32 = arith.constant 0 : i32
    %c0_i32_0 = arith.constant 0 : i32
    %c0_i32_1 = arith.constant 0 : i32
    %c0_i32_2 = arith.constant 0 : i32
    return %c0_i32, %c0_i32_0, %c0_i32_1 : i32, i32, i32
  }
  func.func @transform_2(%arg0: i32) -> (i32, i32) {
    %c0_i32 = arith.constant 0 : i32
    %c0_i32_0 = arith.constant 0 : i32
    %c0_i32_1 = arith.constant 0 : i32
    return %c0_i32, %c0_i32_0 : i32, i32
  }
  func.func @transform_3(%arg0: i32) -> (i32, i32, i32) {
    %c0_i32 = arith.constant 0 : i32
    %c0_i32_0 = arith.constant 0 : i32
    %c0_i32_1 = arith.constant 0 : i32
    %c0_i32_2 = arith.constant 0 : i32
    return %c0_i32, %c0_i32_0, %c0_i32_1 : i32, i32, i32
  }
  func.func @transform_4(%arg0: i32) -> (i32, i32) {
    %c0_i32 = arith.constant 0 : i32
    %c0_i32_0 = arith.constant 0 : i32
    %c0_i32_1 = arith.constant 0 : i32
    return %c0_i32, %c0_i32_0 : i32, i32
  }
  func.func @transform_5(%arg0: i32) -> (i32, i32, i32, i32) {
    %c0_i32 = arith.constant 0 : i32
    %c0_i32_0 = arith.constant 0 : i32
    %c0_i32_1 = arith.constant 0 : i32
    %c0_i32_2 = arith.constant 0 : i32
    return %arg0, %c0_i32, %c0_i32_0, %c0_i32_1 : i32, i32, i32, i32
  }
}

</mosaic_0001>

<llo_original>
// kernel: tpu_custom_call.1
$region0: #{tpu_custom_call.1}
  #allocation0 [shape = 'u32[]', space=smem, size = 0x4, offset = 0x4, fixed_abs, tag = 'smem constant byte address 0x4 - core index']
  #allocation1 [shape = 'u32[144,128]{1,0:T(1,128)}', space=vmem, size = 0x12000, scoped, tag = 'internal scratch']
  #allocation2 [shape = 'bf16[3,10,17,4]{3,2,1,0:T(8,128)(2,1)}', space=vmem, size = 0x2d000, scoped, tag = 'scratch operand']
  #allocation3 [shape = 'bf16[3,10,17,8]{3,2,1,0:T(8,128)(2,1)}', space=vmem, size = 0x2d000, scoped, tag = 'scratch operand']
  %s0 = inlined_call_operand.vmem [shape: bf16[6,8,8,4], index: 0, kind: input, shape index: {}]
  %s1 = inlined_call_operand.vmem [shape: bf16[9,4,8], index: 1, kind: input, shape index: {}]
  %s2 = inlined_call_operand.vmem [shape: f32[1,8], index: 2, kind: input, shape index: {}]
  %s3 = inlined_call_operand.vmem [shape: bf16[9,8,8], index: 3, kind: input, shape index: {}]
  %s4 = inlined_call_operand.vmem [shape: f32[1,8], index: 4, kind: input, shape index: {}]
  %s5 = inlined_call_operand.hbm [shape: bf16[6,8,8,8], index: 5, kind: output, shape index: {}]
  %s6 = sld [smem:[#allocation0]]
  $region53: #{tpu_custom_call.1} parent=0
    _
  %s8 = ssub.s32 1, %s6
  %s9 = scalar_select 0, %s8, %s6
  $region1: #{tpu_custom_call.1} parent=0
    #allocation4 [shape = 'u8[98304]{0}', space=vmem, size = 0x18000, scoped, tag = 'output window, operand 0']
    #allocation5 [shape = 's32[2]{0}', space=sflag, size = 0x8, scoped, tag = 'scoped memory for tpu_custom_call.1']
    %10 = vsyncpa [#allocation5], 0
    %s11 = scalar_lea.sflag [#allocation5], 1
    %12 = vsyncpa %s11, 0
    loop: start=0, step=1, limit=4
    $region2: #{tpu_custom_call.1} parent=1 // loop_pre_header
      _
    $region3: #{tpu_custom_call.1} parent=1 // loop_header
      %s14 = sphi 0, %s18
      %p15 = scmp.ge.s32.totalorder %s14, 4
      %s24 = sphi 0, %s26
      %s27 = sphi 0, %s24
      %s28 = sphi 0, %s27
      %s44 = sphi 0, %s28
      %s48 = sphi 0, %s48
      %s50 = sphi 0, %s48
      %s51 = sphi 0, %s50
      %s65 = sphi 0, %s51
      %s69 = sphi 0, %s69
      %s71 = sphi 0, %s69
      %s72 = sphi 0, %s71
      %s86 = sphi 0, %s72
      %s90 = sphi 0, %s90
      %s92 = sphi 0, %s90
      %s93 = sphi 0, %s92
      %s107 = sphi 0, %s93
      %s111 = sphi 0, %s111
      %s113 = sphi 0, %s111
      %s114 = sphi 0, %s113
      %s128 = sphi 0, %s114
      %s134 = sphi 0, %s136
      %s137 = sphi 0, %s134
      %s138 = sphi 0, %s137
      %s154 = sphi 0, %s138
    $region4: #{tpu_custom_call.1} parent=1 // loop_header_branch
      %17 = sbr.rel (%p15) target = $region8
    $region5: #{tpu_custom_call.1} parent=1 // loop_body
      %s19 = ssub.s32 %s14, 1
      %s20 = ssub.s32 %s14, 2
      %s21 = sadd.s32 %s14, 1
      %s22 = ssub.s32 %s14, %s21
      %p23 = scmp.eq.s32.totalorder %s22, 0
      %s25 = sadd.s32 %s24, 1
      %s26 = scalar_select %p23, %s24, %s25
      %p29 = pneg %p23
      %p30 = scmp.eq.s32.totalorder %s14, 1
      %p31 = por %p29, %p30
      %p32 = scmp.ne.s32.totalorder %s24, %s27
      %p33 = scmp.eq.s32.totalorder %s14, 0
      %p34 = por %p32, %p33
      %p35 = scmp.ne.s32.totalorder %s24, %s27
      %p36 = scmp.eq.s32.totalorder %s19, 1
      %p37 = por %p35, %p36
      %p38 = scmp.ne.s32.totalorder %s27, %s28
      %p39 = scmp.eq.s32.totalorder %s19, 0
      %p40 = por %p38, %p39
      %p41 = scmp.ne.s32.totalorder %s27, %s28
      %p42 = scmp.eq.s32.totalorder %s20, 1
      %p43 = por %p41, %p42
      %p45 = scmp.ne.s32.totalorder %s28, %s44
      %p46 = scmp.eq.s32.totalorder %s20, 0
      %p47 = por %p45, %p46
      %s49 = sadd.s32 %s48, 1
      %p52 = scmp.eq.s32.totalorder %s14, 1
      %p53 = scmp.ne.s32.totalorder %s48, %s50
      %p54 = scmp.eq.s32.totalorder %s14, 0
      %p55 = por %p53, %p54
      %p56 = scmp.ne.s32.totalorder %s48, %s50
      %p57 = scmp.eq.s32.totalorder %s19, 1
      %p58 = por %p56, %p57
      %p59 = scmp.ne.s32.totalorder %s50, %s51
      %p60 = scmp.eq.s32.totalorder %s19, 0
      %p61 = por %p59, %p60
      %p62 = scmp.ne.s32.totalorder %s50, %s51
      %p63 = scmp.eq.s32.totalorder %s20, 1
      %p64 = por %p62, %p63
      %p66 = scmp.ne.s32.totalorder %s51, %s65
      %p67 = scmp.eq.s32.totalorder %s20, 0
      %p68 = por %p66, %p67
      %s70 = sadd.s32 %s69, 1
      %p73 = scmp.eq.s32.totalorder %s14, 1
      %p74 = scmp.ne.s32.totalorder %s69, %s71
      %p75 = scmp.eq.s32.totalorder %s14, 0
      %p76 = por %p74, %p75
      %p77 = scmp.ne.s32.totalorder %s69, %s71
      %p78 = scmp.eq.s32.totalorder %s19, 1
      %p79 = por %p77, %p78
      %p80 = scmp.ne.s32.totalorder %s71, %s72
      %p81 = scmp.eq.s32.totalorder %s19, 0
      %p82 = por %p80, %p81
      %p83 = scmp.ne.s32.totalorder %s71, %s72
      %p84 = scmp.eq.s32.totalorder %s20, 1
      %p85 = por %p83, %p84
      %p87 = scmp.ne.s32.totalorder %s72, %s86
      %p88 = scmp.eq.s32.totalorder %s20, 0
      %p89 = por %p87, %p88
      %s91 = sadd.s32 %s90, 1
      %p94 = scmp.eq.s32.totalorder %s14, 1
      %p95 = scmp.ne.s32.totalorder %s90, %s92
      %p96 = scmp.eq.s32.totalorder %s14, 0
      %p97 = por %p95, %p96
      %p98 = scmp.ne.s32.totalorder %s90, %s92
      %p99 = scmp.eq.s32.totalorder %s19, 1
      %p100 = por %p98, %p99
      %p101 = scmp.ne.s32.totalorder %s92, %s93
      %p102 = scmp.eq.s32.totalorder %s19, 0
      %p103 = por %p101, %p102
      %p104 = scmp.ne.s32.totalorder %s92, %s93
      %p105 = scmp.eq.s32.totalorder %s20, 1
      %p106 = por %p104, %p105
      %p108 = scmp.ne.s32.totalorder %s93, %s107
      %p109 = scmp.eq.s32.totalorder %s20, 0
      %p110 = por %p108, %p109
      %s112 = sadd.s32 %s111, 1
      %p115 = scmp.eq.s32.totalorder %s14, 1
      %p116 = scmp.ne.s32.totalorder %s111, %s113
      %p117 = scmp.eq.s32.totalorder %s14, 0
      %p118 = por %p116, %p117
      %p119 = scmp.ne.s32.totalorder %s111, %s113
      %p120 = scmp.eq.s32.totalorder %s19, 1
      %p121 = por %p119, %p120
      %p122 = scmp.ne.s32.totalorder %s113, %s114
      %p123 = scmp.eq.s32.totalorder %s19, 0
      %p124 = por %p122, %p123
      %p125 = scmp.ne.s32.totalorder %s113, %s114
      %p126 = scmp.eq.s32.totalorder %s20, 1
      %p127 = por %p125, %p126
      %p129 = scmp.ne.s32.totalorder %s114, %s128
      %p130 = scmp.eq.s32.totalorder %s20, 0
      %p131 = por %p129, %p130
      %s132 = ssub.s32 %s14, %s21
      %p133 = scmp.eq.s32.totalorder %s132, 0
      %s135 = sadd.s32 %s134, 1
      %s136 = scalar_select %p133, %s134, %s135
      %p139 = pneg %p133
      %p140 = scmp.eq.s32.totalorder %s14, 1
      %p141 = por %p139, %p140
      %p142 = scmp.ne.s32.totalorder %s134, %s137
      %p143 = scmp.eq.s32.totalorder %s14, 0
      %p144 = por %p142, %p143
      %p145 = scmp.ne.s32.totalorder %s134, %s137
      %p146 = scmp.eq.s32.totalorder %s19, 1
      %p147 = por %p145, %p146
      %p148 = scmp.ne.s32.totalorder %s137, %s138
      %p149 = scmp.eq.s32.totalorder %s19, 0
      %p150 = por %p148, %p149
      %p151 = scmp.ne.s32.totalorder %s137, %s138
      %p152 = scmp.eq.s32.totalorder %s20, 1
      %p153 = por %p151, %p152
      %p155 = scmp.ne.s32.totalorder %s138, %s154
      %p156 = scmp.eq.s32.totalorder %s20, 0
      %p157 = por %p155, %p156
      %p158 = scmp.le.s32.totalorder 1, %s14
      %p159 = scmp.lt.s32.totalorder %s14, 3
      %p160 = pnand %p158, %p159
      %p161 = pneg %p160
      // Predicated region
      $region9: #{tpu_custom_call.1} parent=5 // pred_check
        _
      $region10: #{tpu_custom_call.1} parent=5 // pred_check_branch
        %163 = sbr.rel (%p160) target = $region12
      $region11: #{tpu_custom_call.1} parent=5 // pred_region
        %s164 = ssub.s32 %s14, 1
        // Predicated region
        $region13: #{tpu_custom_call.1} parent=11 // pred_check
          %p165 = pneg %p61
        $region14: #{tpu_custom_call.1} parent=11 // pred_check_branch
          %167 = sbr.rel (%p165) target = $region16
        $region15: #{tpu_custom_call.1} parent=11 // pred_region
          _
        $region16: #{tpu_custom_call.1} parent=11 // pred_fallthru
          _
        // Predicated region
        $region17: #{tpu_custom_call.1} parent=11 // pred_check
          %p168 = pneg %p82
        $region18: #{tpu_custom_call.1} parent=11 // pred_check_branch
          %170 = sbr.rel (%p168) target = $region20
        $region19: #{tpu_custom_call.1} parent=11 // pred_region
          _
        $region20: #{tpu_custom_call.1} parent=11 // pred_fallthru
          _
        // Predicated region
        $region21: #{tpu_custom_call.1} parent=11 // pred_check
          %p171 = pneg %p103
        $region22: #{tpu_custom_call.1} parent=11 // pred_check_branch
          %173 = sbr.rel (%p171) target = $region24
        $region23: #{tpu_custom_call.1} parent=11 // pred_region
          _
        $region24: #{tpu_custom_call.1} parent=11 // pred_fallthru
          _
        // Predicated region
        $region25: #{tpu_custom_call.1} parent=11 // pred_check
          %p174 = pneg %p124
        $region26: #{tpu_custom_call.1} parent=11 // pred_check_branch
          %176 = sbr.rel (%p174) target = $region28
        $region27: #{tpu_custom_call.1} parent=11 // pred_region
          _
        $region28: #{tpu_custom_call.1} parent=11 // pred_fallthru
          _
      $region12: #{tpu_custom_call.1} parent=5 // pred_fallthru
        _
      %p177 = scmp.lt.s32.totalorder %s14, 2
      // Predicated region
      $region29: #{tpu_custom_call.1} parent=5 // pred_check
        %p178 = pneg %p177
      $region30: #{tpu_custom_call.1} parent=5 // pred_check_branch
        %180 = sbr.rel (%p178) target = $region32
      $region31: #{tpu_custom_call.1} parent=5 // pred_region
        // Predicated region
        $region33: #{tpu_custom_call.1} parent=31 // pred_check
          %p181 = pneg %p34
        $region34: #{tpu_custom_call.1} parent=31 // pred_check_branch
          %183 = sbr.rel (%p181) target = $region36
        $region35: #{tpu_custom_call.1} parent=31 // pred_region
          %s184 = smul.u32 3, %s14
          %p185 = scmp.lt.s32.totalorder %s184, 5
          %s186 = scalar_select %p185, %s184, 5
          %s187 = smul.addr %s186, 8
          %s188 = smul.addr %s187, 4
          %s189 = scalar_lea.vmem %s0, %s188
          %s190 = smul.u32 3, %s14
        $region36: #{tpu_custom_call.1} parent=31 // pred_fallthru
          _
      $region32: #{tpu_custom_call.1} parent=5 // pred_fallthru
        _
      %p191 = scmp.le.s32.totalorder 1, %s14
      %p192 = scmp.lt.s32.totalorder %s14, 3
      %p193 = pnand %p191, %p192
      %p194 = pneg %p193
      // Predicated region
      $region37: #{tpu_custom_call.1} parent=5 // pred_check
        _
      $region38: #{tpu_custom_call.1} parent=5 // pred_check_branch
        %196 = sbr.rel (%p193) target = $region40
      $region39: #{tpu_custom_call.1} parent=5 // pred_region
        %s197 = ssub.s32 %s14, 1
        %s198 = smul.u32 3, %s19
        %p199 = scmp.lt.s32.totalorder %s198, 5
        %s200 = scalar_select %p199, %s198, 5
        %s201 = smul.addr %s200, 8
        %s202 = smul.addr %s201, 4
        %s203 = scalar_lea.vmem %s0, %s202
        %p204 = pneg %p40
        %p205 = pneg %p37
        %p206 = pneg %p61
        %p207 = pneg %p58
        %p208 = pneg %p82
        %p209 = pneg %p79
        %p210 = pneg %p103
        %p211 = pneg %p100
        %p212 = pneg %p124
        %p213 = pneg %p121
        %p214 = pneg %p150
        %p215 = pneg %p147
        %s216 = sand.u32 %s137, 1
        %s217 = scalar_lea.sflag [#allocation5], %s216
        %s218 = sand.u32 %s137, 1
        %s219 = smul.addr %s218, 96
        %s220 = scalar_lea.vmem [#allocation4], %s219
        %s221 = smul.u32 3, %s19
        %p222 = scmp.lt.s32.totalorder %s221, 5
        %s223 = scalar_select %p222, %s221, 5
        %s224 = smul.addr %s223, 8
        %s225 = smul.addr %s224, 4
        %s226 = scalar_lea.vmem %s0, %s225
        %s227 = smul.u32 3, %s19
        %s228 = smul.u32 3, %s19
        %vm230 = vcmask 27651
        %vm231 = vsmask.f32 7950
        %vm232 = vmand %vm230, %vm231
        %v233 = vld [vmem:[#allocation2] sm:$0x8]
        %v234 = vsel %vm232, 0, %v233
        %235 = vst [vmem:[#allocation2] sm:$0x8] %v234
        %vm236 = vcmask 27648
        %237 = vst.msk [vmem:[#allocation2 + $0x4] sm:$0xf] %vm236, 0
        %vm238 = vcmask 24576
        %vm239 = vsmask.f32 256
        %vm240 = vmand %vm238, %vm239
        %v241 = vld [vmem:[#allocation2 + $0x8] sm:$0x1]
        %v242 = vsel %vm240, 0, %v241
        %243 = vst [vmem:[#allocation2 + $0x8] sm:$0x1] %v242
        %v244 = vld [vmem:[#allocation2 + $0x78] sm:$0x8]
        %v245 = vsel %vm232, 0, %v244
        %246 = vst [vmem:[#allocation2 + $0x78] sm:$0x8] %v245
        %247 = vst.msk [vmem:[#allocation2 + $0x7c] sm:$0xf] %vm236, 0
        %v248 = vld [vmem:[#allocation2 + $0x80] sm:$0x1]
        %v249 = vsel %vm240, 0, %v248
        %250 = vst [vmem:[#allocation2 + $0x80] sm:$0x1] %v249
        %v251 = vld [vmem:[#allocation2 + $0xf0] sm:$0x8]
        %v252 = vsel %vm232, 0, %v251
        %253 = vst [vmem:[#allocation2 + $0xf0] sm:$0x8] %v252
        %254 = vst.msk [vmem:[#allocation2 + $0xf4] sm:$0xf] %vm236, 0
        %v255 = vld [vmem:[#allocation2 + $0xf8] sm:$0x1]
        %v256 = vsel %vm240, 0, %v255
        %257 = vst [vmem:[#allocation2 + $0xf8] sm:$0x1] %v256
        %s258 = scalar_lea.vmem [#allocation2], 108
        %v259 = vld [vmem:[%s258] sm:$0x8]
        %v260 = vsel %vm232, 0, %v259
        %261 = vst [vmem:[%s258] sm:$0x8] %v260
        %262 = vst.msk [vmem:[%s258 + $0x4] sm:$0xf] %vm236, 0
        %v263 = vld [vmem:[%s258 + $0x8] sm:$0x1]
        %v264 = vsel %vm240, 0, %v263
        %265 = vst [vmem:[%s258 + $0x8] sm:$0x1] %v264
        %v266 = vld [vmem:[%s258 + $0x78] sm:$0x8]
        %v267 = vsel %vm232, 0, %v266
        %268 = vst [vmem:[%s258 + $0x78] sm:$0x8] %v267
        %269 = vst.msk [vmem:[%s258 + $0x7c] sm:$0xf] %vm236, 0
        %v270 = vld [vmem:[%s258 + $0x80] sm:$0x1]
        %v271 = vsel %vm240, 0, %v270
        %272 = vst [vmem:[%s258 + $0x80] sm:$0x1] %v271
        %v273 = vld [vmem:[%s258 + $0xf0] sm:$0x8]
        %v274 = vsel %vm232, 0, %v273
        %275 = vst [vmem:[%s258 + $0xf0] sm:$0x8] %v274
        %276 = vst.msk [vmem:[%s258 + $0xf4] sm:$0xf] %vm236, 0
        %v277 = vld [vmem:[%s258 + $0xf8] sm:$0x1]
        %v278 = vsel %vm240, 0, %v277
        %279 = vst [vmem:[%s258 + $0xf8] sm:$0x1] %v278
        %s280 = scalar_lea.vmem [#allocation2], 12
        %v281 = vld [vmem:[%s280] sm:$0x8]
        %v282 = vsel %vm232, 0, %v281
        %283 = vst [vmem:[%s280] sm:$0x8] %v282
        %v284 = vld [vmem:[%s280 + $0xc] sm:$0x8]
        %v285 = vsel %vm232, 0, %v284
        %286 = vst [vmem:[%s280 + $0xc] sm:$0x8] %v285
        %v287 = vld [vmem:[%s280 + $0x18] sm:$0x8]
        %v288 = vsel %vm232, 0, %v287
        %289 = vst [vmem:[%s280 + $0x18] sm:$0x8] %v288
        %v290 = vld [vmem:[%s280 + $0x24] sm:$0x8]
        %v291 = vsel %vm232, 0, %v290
        %292 = vst [vmem:[%s280 + $0x24] sm:$0x8] %v291
        %v293 = vld [vmem:[%s280 + $0x30] sm:$0x8]
        %v294 = vsel %vm232, 0, %v293
        %295 = vst [vmem:[%s280 + $0x30] sm:$0x8] %v294
        %v296 = vld [vmem:[%s280 + $0x3c] sm:$0x8]
        %v297 = vsel %vm232, 0, %v296
        %298 = vst [vmem:[%s280 + $0x3c] sm:$0x8] %v297
        %v299 = vld [vmem:[%s280 + $0x48] sm:$0x8]
        %v300 = vsel %vm232, 0, %v299
        %301 = vst [vmem:[%s280 + $0x48] sm:$0x8] %v300
        %v302 = vld [vmem:[%s280 + $0x54] sm:$0x8]
        %v303 = vsel %vm232, 0, %v302
        %304 = vst [vmem:[%s280 + $0x54] sm:$0x8] %v303
        %v305 = vld [vmem:[%s280 + $0x78] sm:$0x8]
        %v306 = vsel %vm232, 0, %v305
        %307 = vst [vmem:[%s280 + $0x78] sm:$0x8] %v306
        %v308 = vld [vmem:[%s280 + $0x84] sm:$0x8]
        %v309 = vsel %vm232, 0, %v308
        %310 = vst [vmem:[%s280 + $0x84] sm:$0x8] %v309
        %v311 = vld [vmem:[%s280 + $0x90] sm:$0x8]
        %v312 = vsel %vm232, 0, %v311
        %313 = vst [vmem:[%s280 + $0x90] sm:$0x8] %v312
        %v314 = vld [vmem:[%s280 + $0x9c] sm:$0x8]
        %v315 = vsel %vm232, 0, %v314
        %316 = vst [vmem:[%s280 + $0x9c] sm:$0x8] %v315
        %v317 = vld [vmem:[%s280 + $0xa8] sm:$0x8]
        %v318 = vsel %vm232, 0, %v317
        %319 = vst [vmem:[%s280 + $0xa8] sm:$0x8] %v318
        %v320 = vld [vmem:[%s280 + $0xb4] sm:$0x8]
        %v321 = vsel %vm232, 0, %v320
        %322 = vst [vmem:[%s280 + $0xb4] sm:$0x8] %v321
        %v323 = vld [vmem:[%s280 + $0xc0] sm:$0x8]
        %v324 = vsel %vm232, 0, %v323
        %325 = vst [vmem:[%s280 + $0xc0] sm:$0x8] %v324
        %v326 = vld [vmem:[%s280 + $0xcc] sm:$0x8]
        %v327 = vsel %vm232, 0, %v326
        %328 = vst [vmem:[%s280 + $0xcc] sm:$0x8] %v327
        %v329 = vld [vmem:[%s280 + $0xf0] sm:$0x8]
        %v330 = vsel %vm232, 0, %v329
        %331 = vst [vmem:[%s280 + $0xf0] sm:$0x8] %v330
        %v332 = vld [vmem:[%s280 + $0xfc] sm:$0x8]
        %v333 = vsel %vm232, 0, %v332
        %334 = vst [vmem:[%s280 + $0xfc] sm:$0x8] %v333
        %v335 = vld [vmem:[%s280 + $0x108] sm:$0x8]
        %v336 = vsel %vm232, 0, %v335
        %337 = vst [vmem:[%s280 + $0x108] sm:$0x8] %v336
        %v338 = vld [vmem:[%s280 + $0x114] sm:$0x8]
        %v339 = vsel %vm232, 0, %v338
        %340 = vst [vmem:[%s280 + $0x114] sm:$0x8] %v339
        %v341 = vld [vmem:[%s280 + $0x120] sm:$0x8]
        %v342 = vsel %vm232, 0, %v341
        %343 = vst [vmem:[%s280 + $0x120] sm:$0x8] %v342
        %v344 = vld [vmem:[%s280 + $0x12c] sm:$0x8]
        %v345 = vsel %vm232, 0, %v344
        %346 = vst [vmem:[%s280 + $0x12c] sm:$0x8] %v345
        %v347 = vld [vmem:[%s280 + $0x138] sm:$0x8]
        %v348 = vsel %vm232, 0, %v347
        %349 = vst [vmem:[%s280 + $0x138] sm:$0x8] %v348
        %v350 = vld [vmem:[%s280 + $0x144] sm:$0x8]
        %v351 = vsel %vm232, 0, %v350
        %352 = vst [vmem:[%s280 + $0x144] sm:$0x8] %v351
        %v353 = vld [vmem:[%s280 + $0x8] sm:$0x1]
        %v354 = vsel %vm240, 0, %v353
        %355 = vst [vmem:[%s280 + $0x8] sm:$0x1] %v354
        %v356 = vld [vmem:[%s280 + $0x14] sm:$0x1]
        %v357 = vsel %vm240, 0, %v356
        %358 = vst [vmem:[%s280 + $0x14] sm:$0x1] %v357
        %v359 = vld [vmem:[%s280 + $0x20] sm:$0x1]
        %v360 = vsel %vm240, 0, %v359
        %361 = vst [vmem:[%s280 + $0x20] sm:$0x1] %v360
        %v362 = vld [vmem:[%s280 + $0x2c] sm:$0x1]
        %v363 = vsel %vm240, 0, %v362
        %364 = vst [vmem:[%s280 + $0x2c] sm:$0x1] %v363
        %v365 = vld [vmem:[%s280 + $0x38] sm:$0x1]
        %v366 = vsel %vm240, 0, %v365
        %367 = vst [vmem:[%s280 + $0x38] sm:$0x1] %v366
        %v368 = vld [vmem:[%s280 + $0x44] sm:$0x1]
        %v369 = vsel %vm240, 0, %v368
        %370 = vst [vmem:[%s280 + $0x44] sm:$0x1] %v369
        %v371 = vld [vmem:[%s280 + $0x50] sm:$0x1]
        %v372 = vsel %vm240, 0, %v371
        %373 = vst [vmem:[%s280 + $0x50] sm:$0x1] %v372
        %v374 = vld [vmem:[%s280 + $0x5c] sm:$0x1]
        %v375 = vsel %vm240, 0, %v374
        %376 = vst [vmem:[%s280 + $0x5c] sm:$0x1] %v375
        %v377 = vld [vmem:[%s280 + $0x80] sm:$0x1]
        %v378 = vsel %vm240, 0, %v377
        %379 = vst [vmem:[%s280 + $0x80] sm:$0x1] %v378
        %v380 = vld [vmem:[%s280 + $0x8c] sm:$0x1]
        %v381 = vsel %vm240, 0, %v380
        %382 = vst [vmem:[%s280 + $0x8c] sm:$0x1] %v381
        %v383 = vld [vmem:[%s280 + $0x98] sm:$0x1]
        %v384 = vsel %vm240, 0, %v383
        %385 = vst [vmem:[%s280 + $0x98] sm:$0x1] %v384
        %v386 = vld [vmem:[%s280 + $0xa4] sm:$0x1]
        %v387 = vsel %vm240, 0, %v386
        %388 = vst [vmem:[%s280 + $0xa4] sm:$0x1] %v387
        %v389 = vld [vmem:[%s280 + $0xb0] sm:$0x1]
        %v390 = vsel %vm240, 0, %v389
        %391 = vst [vmem:[%s280 + $0xb0] sm:$0x1] %v390
        %v392 = vld [vmem:[%s280 + $0xbc] sm:$0x1]
        %v393 = vsel %vm240, 0, %v392
        %394 = vst [vmem:[%s280 + $0xbc] sm:$0x1] %v393
        %v395 = vld [vmem:[%s280 + $0xc8] sm:$0x1]
        %v396 = vsel %vm240, 0, %v395
        %397 = vst [vmem:[%s280 + $0xc8] sm:$0x1] %v396
        %v398 = vld [vmem:[%s280 + $0xd4] sm:$0x1]
        %v399 = vsel %vm240, 0, %v398
        %400 = vst [vmem:[%s280 + $0xd4] sm:$0x1] %v399
        %v401 = vld [vmem:[%s280 + $0xf8] sm:$0x1]
        %v402 = vsel %vm240, 0, %v401
        %403 = vst [vmem:[%s280 + $0xf8] sm:$0x1] %v402
        %v404 = vld [vmem:[%s280 + $0x104] sm:$0x1]
        %v405 = vsel %vm240, 0, %v404
        %406 = vst [vmem:[%s280 + $0x104] sm:$0x1] %v405
        %v407 = vld [vmem:[%s280 + $0x110] sm:$0x1]
        %v408 = vsel %vm240, 0, %v407
        %409 = vst [vmem:[%s280 + $0x110] sm:$0x1] %v408
        %v410 = vld [vmem:[%s280 + $0x11c] sm:$0x1]
        %v411 = vsel %vm240, 0, %v410
        %412 = vst [vmem:[%s280 + $0x11c] sm:$0x1] %v411
        %v413 = vld [vmem:[%s280 + $0x128] sm:$0x1]
        %v414 = vsel %vm240, 0, %v413
        %415 = vst [vmem:[%s280 + $0x128] sm:$0x1] %v414
        %v416 = vld [vmem:[%s280 + $0x134] sm:$0x1]
        %v417 = vsel %vm240, 0, %v416
        %418 = vst [vmem:[%s280 + $0x134] sm:$0x1] %v417
        %v419 = vld [vmem:[%s280 + $0x140] sm:$0x1]
        %v420 = vsel %vm240, 0, %v419
        %421 = vst [vmem:[%s280 + $0x140] sm:$0x1] %v420
        %v422 = vld [vmem:[%s280 + $0x14c] sm:$0x1]
        %v423 = vsel %vm240, 0, %v422
        %424 = vst [vmem:[%s280 + $0x14c] sm:$0x1] %v423
        %vm425 = vcmask 60419
        %vm426 = vmand %vm425, %vm231
        %v427 = vld [vmem:[#allocation3] sm:$0x8]
        %v428 = vsel %vm426, 0, %v427
        %429 = vst [vmem:[#allocation3] sm:$0x8] %v428
        %vm430 = vcmask 60416
        %431 = vst.msk [vmem:[#allocation3 + $0x4] sm:$0xf] %vm430, 0
        %vm432 = vcmask 57344
        %vm433 = vmand %vm432, %vm239
        %v434 = vld [vmem:[#allocation3 + $0x8] sm:$0x1]
        %v435 = vsel %vm433, 0, %v434
        %436 = vst [vmem:[#allocation3 + $0x8] sm:$0x1] %v435
        %v437 = vld [vmem:[#allocation3 + $0x78] sm:$0x8]
        %v438 = vsel %vm426, 0, %v437
        %439 = vst [vmem:[#allocation3 + $0x78] sm:$0x8] %v438
        %440 = vst.msk [vmem:[#allocation3 + $0x7c] sm:$0xf] %vm430, 0
        %v441 = vld [vmem:[#allocation3 + $0x80] sm:$0x1]
        %v442 = vsel %vm433, 0, %v441
        %443 = vst [vmem:[#allocation3 + $0x80] sm:$0x1] %v442
        %v444 = vld [vmem:[#allocation3 + $0xf0] sm:$0x8]
        %v445 = vsel %vm426, 0, %v444
        %446 = vst [vmem:[#allocation3 + $0xf0] sm:$0x8] %v445
        %447 = vst.msk [vmem:[#allocation3 + $0xf4] sm:$0xf] %vm430, 0
        %v448 = vld [vmem:[#allocation3 + $0xf8] sm:$0x1]
        %v449 = vsel %vm433, 0, %v448
        %450 = vst [vmem:[#allocation3 + $0xf8] sm:$0x1] %v449
        %s451 = scalar_lea.vmem [#allocation3], 108
        %v452 = vld [vmem:[%s451] sm:$0x8]
        %v453 = vsel %vm426, 0, %v452
        %454 = vst [vmem:[%s451] sm:$0x8] %v453
        %455 = vst.msk [vmem:[%s451 + $0x4] sm:$0xf] %vm430, 0
        %v456 = vld [vmem:[%s451 + $0x8] sm:$0x1]
        %v457 = vsel %vm433, 0, %v456
        %458 = vst [vmem:[%s451 + $0x8] sm:$0x1] %v457
        %v459 = vld [vmem:[%s451 + $0x78] sm:$0x8]
        %v460 = vsel %vm426, 0, %v459
        %461 = vst [vmem:[%s451 + $0x78] sm:$0x8] %v460
        %462 = vst.msk [vmem:[%s451 + $0x7c] sm:$0xf] %vm430, 0
        %v463 = vld [vmem:[%s451 + $0x80] sm:$0x1]
        %v464 = vsel %vm433, 0, %v463
        %465 = vst [vmem:[%s451 + $0x80] sm:$0x1] %v464
        %v466 = vld [vmem:[%s451 + $0xf0] sm:$0x8]
        %v467 = vsel %vm426, 0, %v466
        %468 = vst [vmem:[%s451 + $0xf0] sm:$0x8] %v467
        %469 = vst.msk [vmem:[%s451 + $0xf4] sm:$0xf] %vm430, 0
        %v470 = vld [vmem:[%s451 + $0xf8] sm:$0x1]
        %v471 = vsel %vm433, 0, %v470
        %472 = vst [vmem:[%s451 + $0xf8] sm:$0x1] %v471
        %s473 = scalar_lea.vmem [#allocation3], 12
        %v474 = vld [vmem:[%s473] sm:$0x8]
        %v475 = vsel %vm426, 0, %v474
        %476 = vst [vmem:[%s473] sm:$0x8] %v475
        %v477 = vld [vmem:[%s473 + $0xc] sm:$0x8]
        %v478 = vsel %vm426, 0, %v477
        %479 = vst [vmem:[%s473 + $0xc] sm:$0x8] %v478
        %v480 = vld [vmem:[%s473 + $0x18] sm:$0x8]
        %v481 = vsel %vm426, 0, %v480
        %482 = vst [vmem:[%s473 + $0x18] sm:$0x8] %v481
        %v483 = vld [vmem:[%s473 + $0x24] sm:$0x8]
        %v484 = vsel %vm426, 0, %v483
        %485 = vst [vmem:[%s473 + $0x24] sm:$0x8] %v484
        %v486 = vld [vmem:[%s473 + $0x30] sm:$0x8]
        %v487 = vsel %vm426, 0, %v486
        %488 = vst [vmem:[%s473 + $0x30] sm:$0x8] %v487
        %v489 = vld [vmem:[%s473 + $0x3c] sm:$0x8]
        %v490 = vsel %vm426, 0, %v489
        %491 = vst [vmem:[%s473 + $0x3c] sm:$0x8] %v490
        %v492 = vld [vmem:[%s473 + $0x48] sm:$0x8]
        %v493 = vsel %vm426, 0, %v492
        %494 = vst [vmem:[%s473 + $0x48] sm:$0x8] %v493
        %v495 = vld [vmem:[%s473 + $0x54] sm:$0x8]
        %v496 = vsel %vm426, 0, %v495
        %497 = vst [vmem:[%s473 + $0x54] sm:$0x8] %v496
        %v498 = vld [vmem:[%s473 + $0x78] sm:$0x8]
        %v499 = vsel %vm426, 0, %v498
        %500 = vst [vmem:[%s473 + $0x78] sm:$0x8] %v499
        %v501 = vld [vmem:[%s473 + $0x84] sm:$0x8]
        %v502 = vsel %vm426, 0, %v501
        %503 = vst [vmem:[%s473 + $0x84] sm:$0x8] %v502
        %v504 = vld [vmem:[%s473 + $0x90] sm:$0x8]
        %v505 = vsel %vm426, 0, %v504
        %506 = vst [vmem:[%s473 + $0x90] sm:$0x8] %v505
        %v507 = vld [vmem:[%s473 + $0x9c] sm:$0x8]
        %v508 = vsel %vm426, 0, %v507
        %509 = vst [vmem:[%s473 + $0x9c] sm:$0x8] %v508
        %v510 = vld [vmem:[%s473 + $0xa8] sm:$0x8]
        %v511 = vsel %vm426, 0, %v510
        %512 = vst [vmem:[%s473 + $0xa8] sm:$0x8] %v511
        %v513 = vld [vmem:[%s473 + $0xb4] sm:$0x8]
        %v514 = vsel %vm426, 0, %v513
        %515 = vst [vmem:[%s473 + $0xb4] sm:$0x8] %v514
        %v516 = vld [vmem:[%s473 + $0xc0] sm:$0x8]
        %v517 = vsel %vm426, 0, %v516
        %518 = vst [vmem:[%s473 + $0xc0] sm:$0x8] %v517
        %v519 = vld [vmem:[%s473 + $0xcc] sm:$0x8]
        %v520 = vsel %vm426, 0, %v519
        %521 = vst [vmem:[%s473 + $0xcc] sm:$0x8] %v520
        %v522 = vld [vmem:[%s473 + $0xf0] sm:$0x8]
        %v523 = vsel %vm426, 0, %v522
        %524 = vst [vmem:[%s473 + $0xf0] sm:$0x8] %v523
        %v525 = vld [vmem:[%s473 + $0xfc] sm:$0x8]
        %v526 = vsel %vm426, 0, %v525
        %527 = vst [vmem:[%s473 + $0xfc] sm:$0x8] %v526
        %v528 = vld [vmem:[%s473 + $0x108] sm:$0x8]
        %v529 = vsel %vm426, 0, %v528
        %530 = vst [vmem:[%s473 + $0x108] sm:$0x8] %v529
        %v531 = vld [vmem:[%s473 + $0x114] sm:$0x8]
        %v532 = vsel %vm426, 0, %v531
        %533 = vst [vmem:[%s473 + $0x114] sm:$0x8] %v532
        %v534 = vld [vmem:[%s473 + $0x120] sm:$0x8]
        %v535 = vsel %vm426, 0, %v534
        %536 = vst [vmem:[%s473 + $0x120] sm:$0x8] %v535
        %v537 = vld [vmem:[%s473 + $0x12c] sm:$0x8]
        %v538 = vsel %vm426, 0, %v537
        %539 = vst [vmem:[%s473 + $0x12c] sm:$0x8] %v538
        %v540 = vld [vmem:[%s473 + $0x138] sm:$0x8]
        %v541 = vsel %vm426, 0, %v540
        %542 = vst [vmem:[%s473 + $0x138] sm:$0x8] %v541
        %v543 = vld [vmem:[%s473 + $0x144] sm:$0x8]
        %v544 = vsel %vm426, 0, %v543
        %545 = vst [vmem:[%s473 + $0x144] sm:$0x8] %v544
        %v546 = vld [vmem:[%s473 + $0x8] sm:$0x1]
        %v547 = vsel %vm433, 0, %v546
        %548 = vst [vmem:[%s473 + $0x8] sm:$0x1] %v547
        %v549 = vld [vmem:[%s473 + $0x14] sm:$0x1]
        %v550 = vsel %vm433, 0, %v549
        %551 = vst [vmem:[%s473 + $0x14] sm:$0x1] %v550
        %v552 = vld [vmem:[%s473 + $0x20] sm:$0x1]
        %v553 = vsel %vm433, 0, %v552
        %554 = vst [vmem:[%s473 + $0x20] sm:$0x1] %v553
        %v555 = vld [vmem:[%s473 + $0x2c] sm:$0x1]
        %v556 = vsel %vm433, 0, %v555
        %557 = vst [vmem:[%s473 + $0x2c] sm:$0x1] %v556
        %v558 = vld [vmem:[%s473 + $0x38] sm:$0x1]
        %v559 = vsel %vm433, 0, %v558
        %560 = vst [vmem:[%s473 + $0x38] sm:$0x1] %v559
        %v561 = vld [vmem:[%s473 + $0x44] sm:$0x1]
        %v562 = vsel %vm433, 0, %v561
        %563 = vst [vmem:[%s473 + $0x44] sm:$0x1] %v562
        %v564 = vld [vmem:[%s473 + $0x50] sm:$0x1]
        %v565 = vsel %vm433, 0, %v564
        %566 = vst [vmem:[%s473 + $0x50] sm:$0x1] %v565
        %v567 = vld [vmem:[%s473 + $0x5c] sm:$0x1]
        %v568 = vsel %vm433, 0, %v567
        %569 = vst [vmem:[%s473 + $0x5c] sm:$0x1] %v568
        %v570 = vld [vmem:[%s473 + $0x80] sm:$0x1]
        %v571 = vsel %vm433, 0, %v570
        %572 = vst [vmem:[%s473 + $0x80] sm:$0x1] %v571
        %v573 = vld [vmem:[%s473 + $0x8c] sm:$0x1]
        %v574 = vsel %vm433, 0, %v573
        %575 = vst [vmem:[%s473 + $0x8c] sm:$0x1] %v574
        %v576 = vld [vmem:[%s473 + $0x98] sm:$0x1]
        %v577 = vsel %vm433, 0, %v576
        %578 = vst [vmem:[%s473 + $0x98] sm:$0x1] %v577
        %v579 = vld [vmem:[%s473 + $0xa4] sm:$0x1]
        %v580 = vsel %vm433, 0, %v579
        %581 = vst [vmem:[%s473 + $0xa4] sm:$0x1] %v580
        %v582 = vld [vmem:[%s473 + $0xb0] sm:$0x1]
        %v583 = vsel %vm433, 0, %v582
        %584 = vst [vmem:[%s473 + $0xb0] sm:$0x1] %v583
        %v585 = vld [vmem:[%s473 + $0xbc] sm:$0x1]
        %v586 = vsel %vm433, 0, %v585
        %587 = vst [vmem:[%s473 + $0xbc] sm:$0x1] %v586
        %v588 = vld [vmem:[%s473 + $0xc8] sm:$0x1]
        %v589 = vsel %vm433, 0, %v588
        %590 = vst [vmem:[%s473 + $0xc8] sm:$0x1] %v589
        %v591 = vld [vmem:[%s473 + $0xd4] sm:$0x1]
        %v592 = vsel %vm433, 0, %v591
        %593 = vst [vmem:[%s473 + $0xd4] sm:$0x1] %v592
        %v594 = vld [vmem:[%s473 + $0xf8] sm:$0x1]
        %v595 = vsel %vm433, 0, %v594
        %596 = vst [vmem:[%s473 + $0xf8] sm:$0x1] %v595
        %v597 = vld [vmem:[%s473 + $0x104] sm:$0x1]
        %v598 = vsel %vm433, 0, %v597
        %599 = vst [vmem:[%s473 + $0x104] sm:$0x1] %v598
        %v600 = vld [vmem:[%s473 + $0x110] sm:$0x1]
        %v601 = vsel %vm433, 0, %v600
        %602 = vst [vmem:[%s473 + $0x110] sm:$0x1] %v601
        %v603 = vld [vmem:[%s473 + $0x11c] sm:$0x1]
        %v604 = vsel %vm433, 0, %v603
        %605 = vst [vmem:[%s473 + $0x11c] sm:$0x1] %v604
        %v606 = vld [vmem:[%s473 + $0x128] sm:$0x1]
        %v607 = vsel %vm433, 0, %v606
        %608 = vst [vmem:[%s473 + $0x128] sm:$0x1] %v607
        %v609 = vld [vmem:[%s473 + $0x134] sm:$0x1]
        %v610 = vsel %vm433, 0, %v609
        %611 = vst [vmem:[%s473 + $0x134] sm:$0x1] %v610
        %v612 = vld [vmem:[%s473 + $0x140] sm:$0x1]
        %v613 = vsel %vm433, 0, %v612
        %614 = vst [vmem:[%s473 + $0x140] sm:$0x1] %v613
        %v615 = vld [vmem:[%s473 + $0x14c] sm:$0x1]
        %v616 = vsel %vm433, 0, %v615
        %617 = vst [vmem:[%s473 + $0x14c] sm:$0x1] %v616
        %v618 = vld [vmem:[%s226] sm:$0xf]
        %v619 = vld [vmem:[%s226 + $0x4] sm:$0xf]
        %v620 = vld [vmem:[%s226 + $0x8] sm:$0xf]
        %v621 = vld [vmem:[%s226 + $0xc] sm:$0xf]
        %v622 = vld [vmem:[%s226 + $0x10] sm:$0xf]
        %v623 = vld [vmem:[%s226 + $0x14] sm:$0xf]
        %v624 = vld [vmem:[%s226 + $0x18] sm:$0xf]
        %v625 = vld [vmem:[%s226 + $0x1c] sm:$0xf]
        %v626 = vld [vmem:[%s226 + $0x20] sm:$0xf]
        %v627 = vld [vmem:[%s226 + $0x24] sm:$0xf]
        %v628 = vld [vmem:[%s226 + $0x28] sm:$0xf]
        %v629 = vld [vmem:[%s226 + $0x2c] sm:$0xf]
        %v630 = vld [vmem:[%s226 + $0x30] sm:$0xf]
        %v631 = vld [vmem:[%s226 + $0x34] sm:$0xf]
        %v632 = vld [vmem:[%s226 + $0x38] sm:$0xf]
        %v633 = vld [vmem:[%s226 + $0x3c] sm:$0xf]
        %v634 = vld [vmem:[%s226 + $0x40] sm:$0xf]
        %v635 = vld [vmem:[%s226 + $0x44] sm:$0xf]
        %v636 = vld [vmem:[%s226 + $0x48] sm:$0xf]
        %v637 = vld [vmem:[%s226 + $0x4c] sm:$0xf]
        %v638 = vld [vmem:[%s226 + $0x50] sm:$0xf]
        %v639 = vld [vmem:[%s226 + $0x54] sm:$0xf]
        %v640 = vld [vmem:[%s226 + $0x58] sm:$0xf]
        %v641 = vld [vmem:[%s226 + $0x5c] sm:$0xf]
        %642 = vst.msk [vmem:[%s280 + $0x4] sm:$0xf] %vm236, %v618
        %643 = vst.msk [vmem:[%s280 + $0x10] sm:$0xf] %vm236, %v619
        %644 = vst.msk [vmem:[%s280 + $0x1c] sm:$0xf] %vm236, %v620
        %645 = vst.msk [vmem:[%s280 + $0x28] sm:$0xf] %vm236, %v621
        %646 = vst.msk [vmem:[%s280 + $0x34] sm:$0xf] %vm236, %v622
        %647 = vst.msk [vmem:[%s280 + $0x40] sm:$0xf] %vm236, %v623
        %648 = vst.msk [vmem:[%s280 + $0x4c] sm:$0xf] %vm236, %v624
        %649 = vst.msk [vmem:[%s280 + $0x58] sm:$0xf] %vm236, %v625
        %650 = vst.msk [vmem:[%s280 + $0x7c] sm:$0xf] %vm236, %v626
        %651 = vst.msk [vmem:[%s280 + $0x88] sm:$0xf] %vm236, %v627
        %652 = vst.msk [vmem:[%s280 + $0x94] sm:$0xf] %vm236, %v628
        %653 = vst.msk [vmem:[%s280 + $0xa0] sm:$0xf] %vm236, %v629
        %654 = vst.msk [vmem:[%s280 + $0xac] sm:$0xf] %vm236, %v630
        %655 = vst.msk [vmem:[%s280 + $0xb8] sm:$0xf] %vm236, %v631
        %656 = vst.msk [vmem:[%s280 + $0xc4] sm:$0xf] %vm236, %v632
        %657 = vst.msk [vmem:[%s280 + $0xd0] sm:$0xf] %vm236, %v633
        %658 = vst.msk [vmem:[%s280 + $0xf4] sm:$0xf] %vm236, %v634
        %659 = vst.msk [vmem:[%s280 + $0x100] sm:$0xf] %vm236, %v635
        %660 = vst.msk [vmem:[%s280 + $0x10c] sm:$0xf] %vm236, %v636
        %661 = vst.msk [vmem:[%s280 + $0x118] sm:$0xf] %vm236, %v637
        %662 = vst.msk [vmem:[%s280 + $0x124] sm:$0xf] %vm236, %v638
        %663 = vst.msk [vmem:[%s280 + $0x130] sm:$0xf] %vm236, %v639
        %664 = vst.msk [vmem:[%s280 + $0x13c] sm:$0xf] %vm236, %v640
        %665 = vst.msk [vmem:[%s280 + $0x148] sm:$0xf] %vm236, %v641
        %v666 = vld [vmem:[#allocation2] sm:$0x8]
        %v667 = vld [vmem:[#allocation2 + $0x4] sm:$0xf]
        %v668 = vld [vmem:[#allocation2 + $0xc] sm:$0x8]
        %v669 = vld [vmem:[#allocation2 + $0x10] sm:$0xf]
        %v670 = vld [vmem:[#allocation2 + $0x18] sm:$0x8]
        %v671 = vld [vmem:[#allocation2 + $0x1c] sm:$0xf]
        %v672 = vld [vmem:[#allocation2 + $0x24] sm:$0x8]
        %v673 = vld [vmem:[#allocation2 + $0x28] sm:$0xf]
        %v674 = vld [vmem:[#allocation2 + $0x30] sm:$0x8]
        %v675 = vld [vmem:[#allocation2 + $0x34] sm:$0xf]
        %v676 = vld [vmem:[#allocation2 + $0x3c] sm:$0x8]
        %v677 = vld [vmem:[#allocation2 + $0x40] sm:$0xf]
        %v678 = vld [vmem:[#allocation2 + $0x48] sm:$0x8]
        %v679 = vld [vmem:[#allocation2 + $0x4c] sm:$0xf]
        %v680 = vld [vmem:[#allocation2 + $0x54] sm:$0x8]
        %v681 = vld [vmem:[#allocation2 + $0x58] sm:$0xf]
        %v682 = vld [vmem:[#allocation2 + $0x78] sm:$0x8]
        %v683 = vld [vmem:[#allocation2 + $0x7c] sm:$0xf]
        %v684 = vld [vmem:[#allocation2 + $0x84] sm:$0x8]
        %v685 = vld [vmem:[#allocation2 + $0x88] sm:$0xf]
        %v686 = vld [vmem:[#allocation2 + $0x90] sm:$0x8]
        %v687 = vld [vmem:[#allocation2 + $0x94] sm:$0xf]
        %v688 = vld [vmem:[#allocation2 + $0x9c] sm:$0x8]
        %v689 = vld [vmem:[#allocation2 + $0xa0] sm:$0xf]
        %v690 = vld [vmem:[#allocation2 + $0xa8] sm:$0x8]
        %v691 = vld [vmem:[#allocation2 + $0xac] sm:$0xf]
        %v692 = vld [vmem:[#allocation2 + $0xb4] sm:$0x8]
        %v693 = vld [vmem:[#allocation2 + $0xb8] sm:$0xf]
        %v694 = vld [vmem:[#allocation2 + $0xc0] sm:$0x8]
        %v695 = vld [vmem:[#allocation2 + $0xc4] sm:$0xf]
        %v696 = vld [vmem:[#allocation2 + $0xcc] sm:$0x8]
        %v697 = vld [vmem:[#allocation2 + $0xd0] sm:$0xf]
        %v698 = vld [vmem:[#allocation2 + $0xf0] sm:$0x8]
        %v699 = vld [vmem:[#allocation2 + $0xf4] sm:$0xf]
        %v700 = vld [vmem:[#allocation2 + $0xfc] sm:$0x8]
        %v701 = vld [vmem:[#allocation2 + $0x100] sm:$0xf]
        %v702 = vld [vmem:[#allocation2 + $0x108] sm:$0x8]
        %v703 = vld [vmem:[#allocation2 + $0x10c] sm:$0xf]
        %v704 = vld [vmem:[#allocation2 + $0x114] sm:$0x8]
        %v705 = vld [vmem:[#allocation2 + $0x118] sm:$0xf]
        %v706 = vld [vmem:[#allocation2 + $0x120] sm:$0x8]
        %v707 = vld [vmem:[#allocation2 + $0x124] sm:$0xf]
        %v708 = vld [vmem:[#allocation2 + $0x12c] sm:$0x8]
        %v709 = vld [vmem:[#allocation2 + $0x130] sm:$0xf]
        %v710 = vld [vmem:[#allocation2 + $0x138] sm:$0x8]
        %v711 = vld [vmem:[#allocation2 + $0x13c] sm:$0xf]
        %v712 = vld [vmem:[#allocation2 + $0x144] sm:$0x8]
        %v713 = vld [vmem:[#allocation2 + $0x148] sm:$0xf]
        %vm714 = vsmask.f32 4368
        %vm715 = vmor %vm239, %vm714
        %v717 = vshrl.u32 %v666, 16
        %v719 = vrot.slane %v717, 7
        %v720 = vrot.slane %v719, 4
        %v722 = vshrl.u32 %v667, 16
        %v724 = vrot.slane %v722, 7
        %v725 = vshll.u32 %v667, 16
        %v727 = vor.u32 %v724, %v725
        %v728 = vsel %vm715, %v720, %v727
        %v730 = vshrl.u32 %v668, 16
        %v732 = vrot.slane %v730, 7
        %v733 = vrot.slane %v732, 4
        %v735 = vshrl.u32 %v669, 16
        %v737 = vrot.slane %v735, 7
        %v738 = vshll.u32 %v669, 16
        %v740 = vor.u32 %v737, %v738
        %v741 = vsel %vm715, %v733, %v740
        %v743 = vshrl.u32 %v670, 16
        %v745 = vrot.slane %v743, 7
        %v746 = vrot.slane %v745, 4
        %v748 = vshrl.u32 %v671, 16
        %v750 = vrot.slane %v748, 7
        %v751 = vshll.u32 %v671, 16
        %v753 = vor.u32 %v750, %v751
        %v754 = vsel %vm715, %v746, %v753
        %v756 = vshrl.u32 %v672, 16
        %v758 = vrot.slane %v756, 7
        %v759 = vrot.slane %v758, 4
        %v761 = vshrl.u32 %v673, 16
        %v763 = vrot.slane %v761, 7
        %v764 = vshll.u32 %v673, 16
        %v766 = vor.u32 %v763, %v764
        %v767 = vsel %vm715, %v759, %v766
        %v769 = vshrl.u32 %v674, 16
        %v771 = vrot.slane %v769, 7
        %v772 = vrot.slane %v771, 4
        %v774 = vshrl.u32 %v675, 16
        %v776 = vrot.slane %v774, 7
        %v777 = vshll.u32 %v675, 16
        %v779 = vor.u32 %v776, %v777
        %v780 = vsel %vm715, %v772, %v779
        %v782 = vshrl.u32 %v676, 16
        %v784 = vrot.slane %v782, 7
        %v785 = vrot.slane %v784, 4
        %v787 = vshrl.u32 %v677, 16
        %v789 = vrot.slane %v787, 7
        %v790 = vshll.u32 %v677, 16
        %v792 = vor.u32 %v789, %v790
        %v793 = vsel %vm715, %v785, %v792
        %v795 = vshrl.u32 %v678, 16
        %v797 = vrot.slane %v795, 7
        %v798 = vrot.slane %v797, 4
        %v800 = vshrl.u32 %v679, 16
        %v802 = vrot.slane %v800, 7
        %v803 = vshll.u32 %v679, 16
        %v805 = vor.u32 %v802, %v803
        %v806 = vsel %vm715, %v798, %v805
        %v808 = vshrl.u32 %v680, 16
        %v810 = vrot.slane %v808, 7
        %v811 = vrot.slane %v810, 4
        %v813 = vshrl.u32 %v681, 16
        %v815 = vrot.slane %v813, 7
        %v816 = vshll.u32 %v681, 16
        %v818 = vor.u32 %v815, %v816
        %v819 = vsel %vm715, %v811, %v818
        %v821 = vshrl.u32 %v682, 16
        %v823 = vrot.slane %v821, 7
        %v824 = vrot.slane %v823, 4
        %v826 = vshrl.u32 %v683, 16
        %v828 = vrot.slane %v826, 7
        %v829 = vshll.u32 %v683, 16
        %v831 = vor.u32 %v828, %v829
        %v832 = vsel %vm715, %v824, %v831
        %v834 = vshrl.u32 %v684, 16
        %v836 = vrot.slane %v834, 7
        %v837 = vrot.slane %v836, 4
        %v839 = vshrl.u32 %v685, 16
        %v841 = vrot.slane %v839, 7
        %v842 = vshll.u32 %v685, 16
        %v844 = vor.u32 %v841, %v842
        %v845 = vsel %vm715, %v837, %v844
        %v847 = vshrl.u32 %v686, 16
        %v849 = vrot.slane %v847, 7
        %v850 = vrot.slane %v849, 4
        %v852 = vshrl.u32 %v687, 16
        %v854 = vrot.slane %v852, 7
        %v855 = vshll.u32 %v687, 16
        %v857 = vor.u32 %v854, %v855
        %v858 = vsel %vm715, %v850, %v857
        %v860 = vshrl.u32 %v688, 16
        %v862 = vrot.slane %v860, 7
        %v863 = vrot.slane %v862, 4
        %v865 = vshrl.u32 %v689, 16
        %v867 = vrot.slane %v865, 7
        %v868 = vshll.u32 %v689, 16
        %v870 = vor.u32 %v867, %v868
        %v871 = vsel %vm715, %v863, %v870
        %v873 = vshrl.u32 %v690, 16
        %v875 = vrot.slane %v873, 7
        %v876 = vrot.slane %v875, 4
        %v878 = vshrl.u32 %v691, 16
        %v880 = vrot.slane %v878, 7
        %v881 = vshll.u32 %v691, 16
        %v883 = vor.u32 %v880, %v881
        %v884 = vsel %vm715, %v876, %v883
        %v886 = vshrl.u32 %v692, 16
        %v888 = vrot.slane %v886, 7
        %v889 = vrot.slane %v888, 4
        %v891 = vshrl.u32 %v693, 16
        %v893 = vrot.slane %v891, 7
        %v894 = vshll.u32 %v693, 16
        %v896 = vor.u32 %v893, %v894
        %v897 = vsel %vm715, %v889, %v896
        %v899 = vshrl.u32 %v694, 16
        %v901 = vrot.slane %v899, 7
        %v902 = vrot.slane %v901, 4
        %v904 = vshrl.u32 %v695, 16
        %v906 = vrot.slane %v904, 7
        %v907 = vshll.u32 %v695, 16
        %v909 = vor.u32 %v906, %v907
        %v910 = vsel %vm715, %v902, %v909
        %v912 = vshrl.u32 %v696, 16
        %v914 = vrot.slane %v912, 7
        %v915 = vrot.slane %v914, 4
        %v917 = vshrl.u32 %v697, 16
        %v919 = vrot.slane %v917, 7
        %v920 = vshll.u32 %v697, 16
        %v922 = vor.u32 %v919, %v920
        %v923 = vsel %vm715, %v915, %v922
        %v925 = vshrl.u32 %v698, 16
        %v927 = vrot.slane %v925, 7
        %v928 = vrot.slane %v927, 4
        %v930 = vshrl.u32 %v699, 16
        %v932 = vrot.slane %v930, 7
        %v933 = vshll.u32 %v699, 16
        %v935 = vor.u32 %v932, %v933
        %v936 = vsel %vm715, %v928, %v935
        %v938 = vshrl.u32 %v700, 16
        %v940 = vrot.slane %v938, 7
        %v941 = vrot.slane %v940, 4
        %v943 = vshrl.u32 %v701, 16
        %v945 = vrot.slane %v943, 7
        %v946 = vshll.u32 %v701, 16
        %v948 = vor.u32 %v945, %v946
        %v949 = vsel %vm715, %v941, %v948
        %v951 = vshrl.u32 %v702, 16
        %v953 = vrot.slane %v951, 7
        %v954 = vrot.slane %v953, 4
        %v956 = vshrl.u32 %v703, 16
        %v958 = vrot.slane %v956, 7
        %v959 = vshll.u32 %v703, 16
        %v961 = vor.u32 %v958, %v959
        %v962 = vsel %vm715, %v954, %v961
        %v964 = vshrl.u32 %v704, 16
        %v966 = vrot.slane %v964, 7
        %v967 = vrot.slane %v966, 4
        %v969 = vshrl.u32 %v705, 16
        %v971 = vrot.slane %v969, 7
        %v972 = vshll.u32 %v705, 16
        %v974 = vor.u32 %v971, %v972
        %v975 = vsel %vm715, %v967, %v974
        %v977 = vshrl.u32 %v706, 16
        %v979 = vrot.slane %v977, 7
        %v980 = vrot.slane %v979, 4
        %v982 = vshrl.u32 %v707, 16
        %v984 = vrot.slane %v982, 7
        %v985 = vshll.u32 %v707, 16
        %v987 = vor.u32 %v984, %v985
        %v988 = vsel %vm715, %v980, %v987
        %v990 = vshrl.u32 %v708, 16
        %v992 = vrot.slane %v990, 7
        %v993 = vrot.slane %v992, 4
        %v995 = vshrl.u32 %v709, 16
        %v997 = vrot.slane %v995, 7
        %v998 = vshll.u32 %v709, 16
        %v1000 = vor.u32 %v997, %v998
        %v1001 = vsel %vm715, %v993, %v1000
        %v1003 = vshrl.u32 %v710, 16
        %v1005 = vrot.slane %v1003, 7
        %v1006 = vrot.slane %v1005, 4
        %v1008 = vshrl.u32 %v711, 16
        %v1010 = vrot.slane %v1008, 7
        %v1011 = vshll.u32 %v711, 16
        %v1013 = vor.u32 %v1010, %v1011
        %v1014 = vsel %vm715, %v1006, %v1013
        %v1016 = vshrl.u32 %v712, 16
        %v1018 = vrot.slane %v1016, 7
        %v1019 = vrot.slane %v1018, 4
        %v1021 = vshrl.u32 %v713, 16
        %v1023 = vrot.slane %v1021, 7
        %v1024 = vshll.u32 %v713, 16
        %v1026 = vor.u32 %v1023, %v1024
        %v1027 = vsel %vm715, %v1019, %v1026
        %v1028 = vld [vmem:[%s1] sm:$0x3]
        %s1029 = scalar_lea.vmem %s1, 2
        %v1030 = vld [vmem:[%s1029] sm:$0x3]
        %v1055 = vunpack.c.l.b16 %v667
        %v1056 = vunpack.c.l.b16 %v669
        %v1057 = vunpack.c.l.b16 %v671
        %v1058 = vunpack.c.l.b16 %v673
        %v1059 = vunpack.c.l.b16 %v675
        %v1060 = vunpack.c.l.b16 %v677
        %v1061 = vunpack.c.l.b16 %v679
        %v1062 = vunpack.c.l.b16 %v681
        %v1063 = vunpack.c.l.b16 %v683
        %v1064 = vunpack.c.l.b16 %v685
        %v1065 = vunpack.c.l.b16 %v687
        %v1066 = vunpack.c.l.b16 %v689
        %v1067 = vunpack.c.l.b16 %v691
        %v1068 = vunpack.c.l.b16 %v693
        %v1069 = vunpack.c.l.b16 %v695
        %v1070 = vunpack.c.l.b16 %v697
        %v1071 = vunpack.c.l.b16 %v699
        %v1072 = vunpack.c.l.b16 %v701
        %v1073 = vunpack.c.l.b16 %v703
        %v1074 = vunpack.c.l.b16 %v705
        %v1075 = vunpack.c.l.b16 %v707
        %v1076 = vunpack.c.l.b16 %v709
        %v1077 = vunpack.c.l.b16 %v711
        %v1078 = vunpack.c.l.b16 %v713
        %v1079 = vpack.c.b16 %v1056, %v1055
        %v1080 = vpack.c.b16 %v1058, %v1057
        %v1081 = vpack.c.b16 %v1060, %v1059
        %v1082 = vpack.c.b16 %v1062, %v1061
        %v1083 = vpack.c.b16 %v1064, %v1063
        %v1084 = vpack.c.b16 %v1066, %v1065
        %v1085 = vpack.c.b16 %v1068, %v1067
        %v1086 = vpack.c.b16 %v1070, %v1069
        %v1087 = vpack.c.b16 %v1072, %v1071
        %v1088 = vpack.c.b16 %v1074, %v1073
        %v1089 = vpack.c.b16 %v1076, %v1075
        %v1090 = vpack.c.b16 %v1078, %v1077
        %vm1091 = vcmask 31744
        %v1093 = vsel %vm1091, %v1079, 0
        %v1096 = vsel %vm1091, %v1080, 0
        %v1099 = vsel %vm1091, %v1081, 0
        %v1102 = vsel %vm1091, %v1082, 0
        %v1105 = vsel %vm1091, %v1083, 0
        %v1108 = vsel %vm1091, %v1084, 0
        %v1111 = vsel %vm1091, %v1085, 0
        %v1114 = vsel %vm1091, %v1086, 0
        %v1117 = vsel %vm1091, %v1087, 0
        %v1120 = vsel %vm1091, %v1088, 0
        %v1123 = vsel %vm1091, %v1089, 0
        %v1126 = vsel %vm1091, %v1090, 0
        %vm1128 = vcmask 1041408
        %v1130 = vsel %vm1128, %v1030, 0
        %1132 = vmatprep.subr.bf16.mxu0 0
        %1133 = vmatpush1.bf16.msra.mxu0 0
        %1134 = vmatprep.subr.bf16.mxu0 0
        %1135 = vmatpush1.bf16.msra.mxu0 0
        %1136 = vmatprep.subr.bf16.mxu0 0
        %1137 = vmatpush1.bf16.msra.mxu0 0
        %1138 = vmatprep.subr.bf16.mxu0 0
        %1139 = vmatpush1.bf16.msra.mxu0 0
        %1140 = vmatprep.subr.bf16.mxu0 0
        %1141 = vmatpush1.bf16.msra.mxu0 0
        %1142 = vmatprep.subr.bf16.mxu0 0
        %1143 = vmatpush1.bf16.msra.mxu0 0
        %1144 = vmatprep.subr.bf16.mxu0 0
        %1145 = vmatpush1.bf16.msra.mxu0 0
        %1146 = vmatprep.subr.bf16.mxu0 0
        %1147 = vmatpush1.bf16.msra.mxu0 %v1130
        %1148 = vmatprep.subr.bf16.mxu0 0
        %1149 = vmatpush2.bf16.msra.mxu0 0
        %1150 = vmatprep.subr.bf16.mxu0 0
        %1151 = vmatpush2.bf16.msra.mxu0 0
        %1152 = vmatprep.subr.bf16.mxu0 0
        %1153 = vmatpush2.bf16.msra.mxu0 0
        %1154 = vmatprep.subr.bf16.mxu0 0
        %1155 = vmatpush2.bf16.msra.mxu0 0
        %1156 = vmatprep.subr.bf16.mxu0 0
        %1157 = vmatpush2.bf16.msra.mxu0 0
        %1158 = vmatprep.subr.bf16.mxu0 0
        %1159 = vmatpush2.bf16.msra.mxu0 0
        %1160 = vmatprep.subr.bf16.mxu0 0
        %1161 = vmatpush2.bf16.msra.mxu0 0
        %1162 = vmatprep.subr.bf16.mxu0 0
        %1163 = vmatpush2.bf16.msra.mxu0 0
        %1164 = vmatprep.mubr.bf16.mxu0 0
        %1165 = vmatmul.mubr.bf16.gmra.mxu0 %v1093
        %v1166 = vpop.f32.mrf.mxu0
        %v1167 = vadd.f32 0.0, %v1166
        %v1168 = vpop.f32.mrf.mxu0
        %v1169 = vpop.f32.mrf.mxu0
        %v1170 = vadd.f32 0.0, %v1169
        %v1171 = vpop.f32.mrf.mxu0
        %1172 = vmatprep.mubr.bf16.mxu0 0
        %1173 = vmatmul.mubr.bf16.gmra.mxu0 %v1096
        %v1174 = vpop.f32.mrf.mxu0
        %v1175 = vadd.f32 0.0, %v1174
        %v1176 = vpop.f32.mrf.mxu0
        %v1177 = vpop.f32.mrf.mxu0
        %v1178 = vadd.f32 0.0, %v1177
        %v1179 = vpop.f32.mrf.mxu0
        %1180 = vmatprep.mubr.bf16.mxu0 0
        %1181 = vmatmul.mubr.bf16.gmra.mxu0 %v1099
        %v1182 = vpop.f32.mrf.mxu0
        %v1183 = vadd.f32 0.0, %v1182
        %v1184 = vpop.f32.mrf.mxu0
        %v1185 = vpop.f32.mrf.mxu0
        %v1186 = vadd.f32 0.0, %v1185
        %v1187 = vpop.f32.mrf.mxu0
        %1188 = vmatprep.mubr.bf16.mxu0 0
        %1189 = vmatmul.mubr.bf16.gmra.mxu0 %v1102
        %v1190 = vpop.f32.mrf.mxu0
        %v1191 = vadd.f32 0.0, %v1190
        %v1192 = vpop.f32.mrf.mxu0
        %v1193 = vpop.f32.mrf.mxu0
        %v1194 = vadd.f32 0.0, %v1193
        %v1195 = vpop.f32.mrf.mxu0
        %1196 = vmatprep.mubr.bf16.mxu0 0
        %1197 = vmatmul.mubr.bf16.gmra.mxu0 %v1105
        %v1198 = vpop.f32.mrf.mxu0
        %v1199 = vadd.f32 0.0, %v1198
        %v1200 = vpop.f32.mrf.mxu0
        %v1201 = vpop.f32.mrf.mxu0
        %v1202 = vadd.f32 0.0, %v1201
        %v1203 = vpop.f32.mrf.mxu0
        %1204 = vmatprep.mubr.bf16.mxu0 0
        %1205 = vmatmul.mubr.bf16.gmra.mxu0 %v1108
        %v1206 = vpop.f32.mrf.mxu0
        %v1207 = vadd.f32 0.0, %v1206
        %v1208 = vpop.f32.mrf.mxu0
        %v1209 = vpop.f32.mrf.mxu0
        %v1210 = vadd.f32 0.0, %v1209
        %v1211 = vpop.f32.mrf.mxu0
        %1212 = vmatprep.mubr.bf16.mxu0 0
        %1213 = vmatmul.mubr.bf16.gmra.mxu0 %v1111
        %v1214 = vpop.f32.mrf.mxu0
        %v1215 = vadd.f32 0.0, %v1214
        %v1216 = vpop.f32.mrf.mxu0
        %v1217 = vpop.f32.mrf.mxu0
        %v1218 = vadd.f32 0.0, %v1217
        %v1219 = vpop.f32.mrf.mxu0
        %1220 = vmatprep.mubr.bf16.mxu0 0
        %1221 = vmatmul.mubr.bf16.gmra.mxu0 %v1114
        %v1222 = vpop.f32.mrf.mxu0
        %v1223 = vadd.f32 0.0, %v1222
        %v1224 = vpop.f32.mrf.mxu0
        %v1225 = vpop.f32.mrf.mxu0
        %v1226 = vadd.f32 0.0, %v1225
        %v1227 = vpop.f32.mrf.mxu0
        %1228 = vmatprep.mubr.bf16.mxu0 0
        %1229 = vmatmul.mubr.bf16.gmra.mxu0 %v1117
        %v1230 = vpop.f32.mrf.mxu0
        %v1231 = vadd.f32 0.0, %v1230
        %v1232 = vpop.f32.mrf.mxu0
        %v1233 = vpop.f32.mrf.mxu0
        %v1234 = vadd.f32 0.0, %v1233
        %v1235 = vpop.f32.mrf.mxu0
        %1236 = vmatprep.mubr.bf16.mxu0 0
        %1237 = vmatmul.mubr.bf16.gmra.mxu0 %v1120
        %v1238 = vpop.f32.mrf.mxu0
        %v1239 = vadd.f32 0.0, %v1238
        %v1240 = vpop.f32.mrf.mxu0
        %v1241 = vpop.f32.mrf.mxu0
        %v1242 = vadd.f32 0.0, %v1241
        %v1243 = vpop.f32.mrf.mxu0
        %1244 = vmatprep.mubr.bf16.mxu0 0
        %1245 = vmatmul.mubr.bf16.gmra.mxu0 %v1123
        %v1246 = vpop.f32.mrf.mxu0
        %v1247 = vadd.f32 0.0, %v1246
        %v1248 = vpop.f32.mrf.mxu0
        %v1249 = vpop.f32.mrf.mxu0
        %v1250 = vadd.f32 0.0, %v1249
        %v1251 = vpop.f32.mrf.mxu0
        %1252 = vmatprep.mubr.bf16.mxu0 0
        %1253 = vmatmul.mubr.bf16.gmra.mxu0 %v1126
        %v1254 = vpop.f32.mrf.mxu0
        %v1255 = vadd.f32 0.0, %v1254
        %v1256 = vpop.f32.mrf.mxu0
        %v1257 = vpop.f32.mrf.mxu0
        %v1258 = vadd.f32 0.0, %v1257
        %v1259 = vpop.f32.mrf.mxu0
        %1260 = vdwg.mxu0
        %v1261 = vunpack.c.l.b16 %v728
        %v1262 = vunpack.c.l.b16 %v741
        %v1263 = vunpack.c.l.b16 %v754
        %v1264 = vunpack.c.l.b16 %v767
        %v1265 = vunpack.c.l.b16 %v780
        %v1266 = vunpack.c.l.b16 %v793
        %v1267 = vunpack.c.l.b16 %v806
        %v1268 = vunpack.c.l.b16 %v819
        %v1269 = vunpack.c.l.b16 %v832
        %v1270 = vunpack.c.l.b16 %v845
        %v1271 = vunpack.c.l.b16 %v858
        %v1272 = vunpack.c.l.b16 %v871
        %v1273 = vunpack.c.l.b16 %v884
        %v1274 = vunpack.c.l.b16 %v897
        %v1275 = vunpack.c.l.b16 %v910
        %v1276 = vunpack.c.l.b16 %v923
        %v1277 = vunpack.c.l.b16 %v936
        %v1278 = vunpack.c.l.b16 %v949
        %v1279 = vunpack.c.l.b16 %v962
        %v1280 = vunpack.c.l.b16 %v975
        %v1281 = vunpack.c.l.b16 %v988
        %v1282 = vunpack.c.l.b16 %v1001
        %v1283 = vunpack.c.l.b16 %v1014
        %v1284 = vunpack.c.l.b16 %v1027
        %v1285 = vpack.c.b16 %v1262, %v1261
        %v1286 = vpack.c.b16 %v1264, %v1263
        %v1287 = vpack.c.b16 %v1266, %v1265
        %v1288 = vpack.c.b16 %v1268, %v1267
        %v1289 = vpack.c.b16 %v1270, %v1269
        %v1290 = vpack.c.b16 %v1272, %v1271
        %v1291 = vpack.c.b16 %v1274, %v1273
        %v1292 = vpack.c.b16 %v1276, %v1275
        %v1293 = vpack.c.b16 %v1278, %v1277
        %v1294 = vpack.c.b16 %v1280, %v1279
        %v1295 = vpack.c.b16 %v1282, %v1281
        %v1296 = vpack.c.b16 %v1284, %v1283
        %v1298 = vsel %vm1091, %v1285, 0
        %v1301 = vsel %vm1091, %v1286, 0
        %v1304 = vsel %vm1091, %v1287, 0
        %v1307 = vsel %vm1091, %v1288, 0
        %v1310 = vsel %vm1091, %v1289, 0
        %v1313 = vsel %vm1091, %v1290, 0
        %v1316 = vsel %vm1091, %v1291, 0
        %v1319 = vsel %vm1091, %v1292, 0
        %v1322 = vsel %vm1091, %v1293, 0
        %v1325 = vsel %vm1091, %v1294, 0
        %v1328 = vsel %vm1091, %v1295, 0
        %v1331 = vsel %vm1091, %v1296, 0
        %v1334 = vsel %vm1128, %v1028, 0
        %1336 = vmatprep.subr.bf16.mxu0 0
        %1337 = vmatpush1.bf16.msra.mxu0 0
        %1338 = vmatprep.subr.bf16.mxu0 0
        %1339 = vmatpush1.bf16.msra.mxu0 0
        %1340 = vmatprep.subr.bf16.mxu0 0
        %1341 = vmatpush1.bf16.msra.mxu0 0
        %1342 = vmatprep.subr.bf16.mxu0 0
        %1343 = vmatpush1.bf16.msra.mxu0 0
        %1344 = vmatprep.subr.bf16.mxu0 0
        %1345 = vmatpush1.bf16.msra.mxu0 0
        %1346 = vmatprep.subr.bf16.mxu0 0
        %1347 = vmatpush1.bf16.msra.mxu0 0
        %1348 = vmatprep.subr.bf16.mxu0 0
        %1349 = vmatpush1.bf16.msra.mxu0 0
        %1350 = vmatprep.subr.bf16.mxu0 0
        %1351 = vmatpush1.bf16.msra.mxu0 %v1334
        %1352 = vmatprep.subr.bf16.mxu0 0
        %1353 = vmatpush2.bf16.msra.mxu0 0
        %1354 = vmatprep.subr.bf16.mxu0 0
        %1355 = vmatpush2.bf16.msra.mxu0 0
        %1356 = vmatprep.subr.bf16.mxu0 0
        %1357 = vmatpush2.bf16.msra.mxu0 0
        %1358 = vmatprep.subr.bf16.mxu0 0
        %1359 = vmatpush2.bf16.msra.mxu0 0
        %1360 = vmatprep.subr.bf16.mxu0 0
        %1361 = vmatpush2.bf16.msra.mxu0 0
        %1362 = vmatprep.subr.bf16.mxu0 0
        %1363 = vmatpush2.bf16.msra.mxu0 0
        %1364 = vmatprep.subr.bf16.mxu0 0
        %1365 = vmatpush2.bf16.msra.mxu0 0
        %1366 = vmatprep.subr.bf16.mxu0 0
        %1367 = vmatpush2.bf16.msra.mxu0 0
        %1368 = vmatprep.mubr.bf16.mxu0 0
        %1369 = vmatmul.mubr.bf16.gmra.mxu0 %v1298
        %v1370 = vpop.f32.mrf.mxu0
        %v1371 = vadd.f32 %v1167, %v1370
        %v1372 = vpop.f32.mrf.mxu0
        %v1373 = vpop.f32.mrf.mxu0
        %v1374 = vadd.f32 %v1170, %v1373
        %v1375 = vpop.f32.mrf.mxu0
        %1376 = vmatprep.mubr.bf16.mxu0 0
        %1377 = vmatmul.mubr.bf16.gmra.mxu0 %v1301
        %v1378 = vpop.f32.mrf.mxu0
        %v1379 = vadd.f32 %v1175, %v1378
        %v1380 = vpop.f32.mrf.mxu0
        %v1381 = vpop.f32.mrf.mxu0
        %v1382 = vadd.f32 %v1178, %v1381
        %v1383 = vpop.f32.mrf.mxu0
        %1384 = vmatprep.mubr.bf16.mxu0 0
        %1385 = vmatmul.mubr.bf16.gmra.mxu0 %v1304
        %v1386 = vpop.f32.mrf.mxu0
        %v1387 = vadd.f32 %v1183, %v1386
        %v1388 = vpop.f32.mrf.mxu0
        %v1389 = vpop.f32.mrf.mxu0
        %v1390 = vadd.f32 %v1186, %v1389
        %v1391 = vpop.f32.mrf.mxu0
        %1392 = vmatprep.mubr.bf16.mxu0 0
        %1393 = vmatmul.mubr.bf16.gmra.mxu0 %v1307
        %v1394 = vpop.f32.mrf.mxu0
        %v1395 = vadd.f32 %v1191, %v1394
        %v1396 = vpop.f32.mrf.mxu0
        %v1397 = vpop.f32.mrf.mxu0
        %v1398 = vadd.f32 %v1194, %v1397
        %v1399 = vpop.f32.mrf.mxu0
        %1400 = vmatprep.mubr.bf16.mxu0 0
        %1401 = vmatmul.mubr.bf16.gmra.mxu0 %v1310
        %v1402 = vpop.f32.mrf.mxu0
        %v1403 = vadd.f32 %v1199, %v1402
        %v1404 = vpop.f32.mrf.mxu0
        %v1405 = vpop.f32.mrf.mxu0
        %v1406 = vadd.f32 %v1202, %v1405
        %v1407 = vpop.f32.mrf.mxu0
        %1408 = vmatprep.mubr.bf16.mxu0 0
        %1409 = vmatmul.mubr.bf16.gmra.mxu0 %v1313
        %v1410 = vpop.f32.mrf.mxu0
        %v1411 = vadd.f32 %v1207, %v1410
        %v1412 = vpop.f32.mrf.mxu0
        %v1413 = vpop.f32.mrf.mxu0
        %v1414 = vadd.f32 %v1210, %v1413
        %v1415 = vpop.f32.mrf.mxu0
        %1416 = vmatprep.mubr.bf16.mxu0 0
        %1417 = vmatmul.mubr.bf16.gmra.mxu0 %v1316
        %v1418 = vpop.f32.mrf.mxu0
        %v1419 = vadd.f32 %v1215, %v1418
        %v1420 = vpop.f32.mrf.mxu0
        %v1421 = vpop.f32.mrf.mxu0
        %v1422 = vadd.f32 %v1218, %v1421
        %v1423 = vpop.f32.mrf.mxu0
        %1424 = vmatprep.mubr.bf16.mxu0 0
        %1425 = vmatmul.mubr.bf16.gmra.mxu0 %v1319
        %v1426 = vpop.f32.mrf.mxu0
        %v1427 = vadd.f32 %v1223, %v1426
        %v1428 = vpop.f32.mrf.mxu0
        %v1429 = vpop.f32.mrf.mxu0
        %v1430 = vadd.f32 %v1226, %v1429
        %v1431 = vpop.f32.mrf.mxu0
        %1432 = vmatprep.mubr.bf16.mxu0 0
        %1433 = vmatmul.mubr.bf16.gmra.mxu0 %v1322
        %v1434 = vpop.f32.mrf.mxu0
        %v1435 = vadd.f32 %v1231, %v1434
        %v1436 = vpop.f32.mrf.mxu0
        %v1437 = vpop.f32.mrf.mxu0
        %v1438 = vadd.f32 %v1234, %v1437
        %v1439 = vpop.f32.mrf.mxu0
        %1440 = vmatprep.mubr.bf16.mxu0 0
        %1441 = vmatmul.mubr.bf16.gmra.mxu0 %v1325
        %v1442 = vpop.f32.mrf.mxu0
        %v1443 = vadd.f32 %v1239, %v1442
        %v1444 = vpop.f32.mrf.mxu0
        %v1445 = vpop.f32.mrf.mxu0
        %v1446 = vadd.f32 %v1242, %v1445
        %v1447 = vpop.f32.mrf.mxu0
        %1448 = vmatprep.mubr.bf16.mxu0 0
        %1449 = vmatmul.mubr.bf16.gmra.mxu0 %v1328
        %v1450 = vpop.f32.mrf.mxu0
        %v1451 = vadd.f32 %v1247, %v1450
        %v1452 = vpop.f32.mrf.mxu0
        %v1453 = vpop.f32.mrf.mxu0
        %v1454 = vadd.f32 %v1250, %v1453
        %v1455 = vpop.f32.mrf.mxu0
        %1456 = vmatprep.mubr.bf16.mxu0 0
        %1457 = vmatmul.mubr.bf16.gmra.mxu0 %v1331
        %v1458 = vpop.f32.mrf.mxu0
        %v1459 = vadd.f32 %v1255, %v1458
        %v1460 = vpop.f32.mrf.mxu0
        %v1461 = vpop.f32.mrf.mxu0
        %v1462 = vadd.f32 %v1258, %v1461
        %v1463 = vpop.f32.mrf.mxu0
        %1464 = vdwg.mxu0
        %v1465 = vld [vmem:[#allocation2 + $0x4] sm:$0xf]
        %v1466 = vld [vmem:[#allocation2 + $0x8] sm:$0x1]
        %v1467 = vld [vmem:[#allocation2 + $0x10] sm:$0xf]
        %v1468 = vld [vmem:[#allocation2 + $0x14] sm:$0x1]
        %v1469 = vld [vmem:[#allocation2 + $0x1c] sm:$0xf]
        %v1470 = vld [vmem:[#allocation2 + $0x20] sm:$0x1]
        %v1471 = vld [vmem:[#allocation2 + $0x28] sm:$0xf]
        %v1472 = vld [vmem:[#allocation2 + $0x2c] sm:$0x1]
        %v1473 = vld [vmem:[#allocation2 + $0x34] sm:$0xf]
        %v1474 = vld [vmem:[#allocation2 + $0x38] sm:$0x1]
        %v1475 = vld [vmem:[#allocation2 + $0x40] sm:$0xf]
        %v1476 = vld [vmem:[#allocation2 + $0x44] sm:$0x1]
        %v1477 = vld [vmem:[#allocation2 + $0x4c] sm:$0xf]
        %v1478 = vld [vmem:[#allocation2 + $0x50] sm:$0x1]
        %v1479 = vld [vmem:[#allocation2 + $0x58] sm:$0xf]
        %v1480 = vld [vmem:[#allocation2 + $0x5c] sm:$0x1]
        %v1481 = vld [vmem:[#allocation2 + $0x7c] sm:$0xf]
        %v1482 = vld [vmem:[#allocation2 + $0x80] sm:$0x1]
        %v1483 = vld [vmem:[#allocation2 + $0x88] sm:$0xf]
        %v1484 = vld [vmem:[#allocation2 + $0x8c] sm:$0x1]
        %v1485 = vld [vmem:[#allocation2 + $0x94] sm:$0xf]
        %v1486 = vld [vmem:[#allocation2 + $0x98] sm:$0x1]
        %v1487 = vld [vmem:[#allocation2 + $0xa0] sm:$0xf]
        %v1488 = vld [vmem:[#allocation2 + $0xa4] sm:$0x1]
        %v1489 = vld [vmem:[#allocation2 + $0xac] sm:$0xf]
        %v1490 = vld [vmem:[#allocation2 + $0xb0] sm:$0x1]
        %v1491 = vld [vmem:[#allocation2 + $0xb8] sm:$0xf]
        %v1492 = vld [vmem:[#allocation2 + $0xbc] sm:$0x1]
        %v1493 = vld [vmem:[#allocation2 + $0xc4] sm:$0xf]
        %v1494 = vld [vmem:[#allocation2 + $0xc8] sm:$0x1]
        %v1495 = vld [vmem:[#allocation2 + $0xd0] sm:$0xf]
        %v1496 = vld [vmem:[#allocation2 + $0xd4] sm:$0x1]
        %v1497 = vld [vmem:[#allocation2 + $0xf4] sm:$0xf]
        %v1498 = vld [vmem:[#allocation2 + $0xf8] sm:$0x1]
        %v1499 = vld [vmem:[#allocation2 + $0x100] sm:$0xf]
        %v1500 = vld [vmem:[#allocation2 + $0x104] sm:$0x1]
        %v1501 = vld [vmem:[#allocation2 + $0x10c] sm:$0xf]
        %v1502 = vld [vmem:[#allocation2 + $0x110] sm:$0x1]
        %v1503 = vld [vmem:[#allocation2 + $0x118] sm:$0xf]
        %v1504 = vld [vmem:[#allocation2 + $0x11c] sm:$0x1]
        %v1505 = vld [vmem:[#allocation2 + $0x124] sm:$0xf]
        %v1506 = vld [vmem:[#allocation2 + $0x128] sm:$0x1]
        %v1507 = vld [vmem:[#allocation2 + $0x130] sm:$0xf]
        %v1508 = vld [vmem:[#allocation2 + $0x134] sm:$0x1]
        %v1509 = vld [vmem:[#allocation2 + $0x13c] sm:$0xf]
        %v1510 = vld [vmem:[#allocation2 + $0x140] sm:$0x1]
        %v1511 = vld [vmem:[#allocation2 + $0x148] sm:$0xf]
        %v1512 = vld [vmem:[#allocation2 + $0x14c] sm:$0x1]
        %vm1513 = vsmask.f32 3328
        %vm1514 = vsmask.f32 7440
        %vm1515 = vmor %vm1513, %vm1514
        %v1517 = vshrl.u32 %v1465, 16
        %v1519 = vrot.slane %v1517, 4
        %v1520 = vshll.u32 %v1465, 16
        %v1522 = vrot.slane %v1520, 5
        %v1523 = vor.u32 %v1519, %v1522
        %v1524 = vrot.slane %v1523, 4
        %v1526 = vshll.u32 %v1466, 16
        %v1528 = vrot.slane %v1526, 5
        %v1529 = vsel %vm1515, %v1524, %v1528
        %v1531 = vshrl.u32 %v1467, 16
        %v1533 = vrot.slane %v1531, 4
        %v1534 = vshll.u32 %v1467, 16
        %v1536 = vrot.slane %v1534, 5
        %v1537 = vor.u32 %v1533, %v1536
        %v1538 = vrot.slane %v1537, 4
        %v1540 = vshll.u32 %v1468, 16
        %v1542 = vrot.slane %v1540, 5
        %v1543 = vsel %vm1515, %v1538, %v1542
        %v1545 = vshrl.u32 %v1469, 16
        %v1547 = vrot.slane %v1545, 4
        %v1548 = vshll.u32 %v1469, 16
        %v1550 = vrot.slane %v1548, 5
        %v1551 = vor.u32 %v1547, %v1550
        %v1552 = vrot.slane %v1551, 4
        %v1554 = vshll.u32 %v1470, 16
        %v1556 = vrot.slane %v1554, 5
        %v1557 = vsel %vm1515, %v1552, %v1556
        %v1559 = vshrl.u32 %v1471, 16
        %v1561 = vrot.slane %v1559, 4
        %v1562 = vshll.u32 %v1471, 16
        %v1564 = vrot.slane %v1562, 5
        %v1565 = vor.u32 %v1561, %v1564
        %v1566 = vrot.slane %v1565, 4
        %v1568 = vshll.u32 %v1472, 16
        %v1570 = vrot.slane %v1568, 5
        %v1571 = vsel %vm1515, %v1566, %v1570
        %v1573 = vshrl.u32 %v1473, 16
        %v1575 = vrot.slane %v1573, 4
        %v1576 = vshll.u32 %v1473, 16
        %v1578 = vrot.slane %v1576, 5
        %v1579 = vor.u32 %v1575, %v1578
        %v1580 = vrot.slane %v1579, 4
        %v1582 = vshll.u32 %v1474, 16
        %v1584 = vrot.slane %v1582, 5
        %v1585 = vsel %vm1515, %v1580, %v1584
        %v1587 = vshrl.u32 %v1475, 16
        %v1589 = vrot.slane %v1587, 4
        %v1590 = vshll.u32 %v1475, 16
        %v1592 = vrot.slane %v1590, 5
        %v1593 = vor.u32 %v1589, %v1592
        %v1594 = vrot.slane %v1593, 4
        %v1596 = vshll.u32 %v1476, 16
        %v1598 = vrot.slane %v1596, 5
        %v1599 = vsel %vm1515, %v1594, %v1598
        %v1601 = vshrl.u32 %v1477, 16
        %v1603 = vrot.slane %v1601, 4
        %v1604 = vshll.u32 %v1477, 16
        %v1606 = vrot.slane %v1604, 5
        %v1607 = vor.u32 %v1603, %v1606
        %v1608 = vrot.slane %v1607, 4
        %v1610 = vshll.u32 %v1478, 16
        %v1612 = vrot.slane %v1610, 5
        %v1613 = vsel %vm1515, %v1608, %v1612
        %v1615 = vshrl.u32 %v1479, 16
        %v1617 = vrot.slane %v1615, 4
        %v1618 = vshll.u32 %v1479, 16
        %v1620 = vrot.slane %v1618, 5
        %v1621 = vor.u32 %v1617, %v1620
        %v1622 = vrot.slane %v1621, 4
        %v1624 = vshll.u32 %v1480, 16
        %v1626 = vrot.slane %v1624, 5
        %v1627 = vsel %vm1515, %v1622, %v1626
        %v1629 = vshrl.u32 %v1481, 16
        %v1631 = vrot.slane %v1629, 4
        %v1632 = vshll.u32 %v1481, 16
        %v1634 = vrot.slane %v1632, 5
        %v1635 = vor.u32 %v1631, %v1634
        %v1636 = vrot.slane %v1635, 4
        %v1638 = vshll.u32 %v1482, 16
        %v1640 = vrot.slane %v1638, 5
        %v1641 = vsel %vm1515, %v1636, %v1640
        %v1643 = vshrl.u32 %v1483, 16
        %v1645 = vrot.slane %v1643, 4
        %v1646 = vshll.u32 %v1483, 16
        %v1648 = vrot.slane %v1646, 5
        %v1649 = vor.u32 %v1645, %v1648
        %v1650 = vrot.slane %v1649, 4
        %v1652 = vshll.u32 %v1484, 16
        %v1654 = vrot.slane %v1652, 5
        %v1655 = vsel %vm1515, %v1650, %v1654
        %v1657 = vshrl.u32 %v1485, 16
        %v1659 = vrot.slane %v1657, 4
        %v1660 = vshll.u32 %v1485, 16
        %v1662 = vrot.slane %v1660, 5
        %v1663 = vor.u32 %v1659, %v1662
        %v1664 = vrot.slane %v1663, 4
        %v1666 = vshll.u32 %v1486, 16
        %v1668 = vrot.slane %v1666, 5
        %v1669 = vsel %vm1515, %v1664, %v1668
        %v1671 = vshrl.u32 %v1487, 16
        %v1673 = vrot.slane %v1671, 4
        %v1674 = vshll.u32 %v1487, 16
        %v1676 = vrot.slane %v1674, 5
        %v1677 = vor.u32 %v1673, %v1676
        %v1678 = vrot.slane %v1677, 4
        %v1680 = vshll.u32 %v1488, 16
        %v1682 = vrot.slane %v1680, 5
        %v1683 = vsel %vm1515, %v1678, %v1682
        %v1685 = vshrl.u32 %v1489, 16
        %v1687 = vrot.slane %v1685, 4
        %v1688 = vshll.u32 %v1489, 16
        %v1690 = vrot.slane %v1688, 5
        %v1691 = vor.u32 %v1687, %v1690
        %v1692 = vrot.slane %v1691, 4
        %v1694 = vshll.u32 %v1490, 16
        %v1696 = vrot.slane %v1694, 5
        %v1697 = vsel %vm1515, %v1692, %v1696
        %v1699 = vshrl.u32 %v1491, 16
        %v1701 = vrot.slane %v1699, 4
        %v1702 = vshll.u32 %v1491, 16
        %v1704 = vrot.slane %v1702, 5
        %v1705 = vor.u32 %v1701, %v1704
        %v1706 = vrot.slane %v1705, 4
        %v1708 = vshll.u32 %v1492, 16
        %v1710 = vrot.slane %v1708, 5
        %v1711 = vsel %vm1515, %v1706, %v1710
        %v1713 = vshrl.u32 %v1493, 16
        %v1715 = vrot.slane %v1713, 4
        %v1716 = vshll.u32 %v1493, 16
        %v1718 = vrot.slane %v1716, 5
        %v1719 = vor.u32 %v1715, %v1718
        %v1720 = vrot.slane %v1719, 4
        %v1722 = vshll.u32 %v1494, 16
        %v1724 = vrot.slane %v1722, 5
        %v1725 = vsel %vm1515, %v1720, %v1724
        %v1727 = vshrl.u32 %v1495, 16
        %v1729 = vrot.slane %v1727, 4
        %v1730 = vshll.u32 %v1495, 16
        %v1732 = vrot.slane %v1730, 5
        %v1733 = vor.u32 %v1729, %v1732
        %v1734 = vrot.slane %v1733, 4
        %v1736 = vshll.u32 %v1496, 16
        %v1738 = vrot.slane %v1736, 5
        %v1739 = vsel %vm1515, %v1734, %v1738
        %v1741 = vshrl.u32 %v1497, 16
        %v1743 = vrot.slane %v1741, 4
        %v1744 = vshll.u32 %v1497, 16
        %v1746 = vrot.slane %v1744, 5
        %v1747 = vor.u32 %v1743, %v1746
        %v1748 = vrot.slane %v1747, 4
        %v1750 = vshll.u32 %v1498, 16
        %v1752 = vrot.slane %v1750, 5
        %v1753 = vsel %vm1515, %v1748, %v1752
        %v1755 = vshrl.u32 %v1499, 16
        %v1757 = vrot.slane %v1755, 4
        %v1758 = vshll.u32 %v1499, 16
        %v1760 = vrot.slane %v1758, 5
        %v1761 = vor.u32 %v1757, %v1760
        %v1762 = vrot.slane %v1761, 4
        %v1764 = vshll.u32 %v1500, 16
        %v1766 = vrot.slane %v1764, 5
        %v1767 = vsel %vm1515, %v1762, %v1766
        %v1769 = vshrl.u32 %v1501, 16
        %v1771 = vrot.slane %v1769, 4
        %v1772 = vshll.u32 %v1501, 16
        %v1774 = vrot.slane %v1772, 5
        %v1775 = vor.u32 %v1771, %v1774
        %v1776 = vrot.slane %v1775, 4
        %v1778 = vshll.u32 %v1502, 16
        %v1780 = vrot.slane %v1778, 5
        %v1781 = vsel %vm1515, %v1776, %v1780
        %v1783 = vshrl.u32 %v1503, 16
        %v1785 = vrot.slane %v1783, 4
        %v1786 = vshll.u32 %v1503, 16
        %v1788 = vrot.slane %v1786, 5
        %v1789 = vor.u32 %v1785, %v1788
        %v1790 = vrot.slane %v1789, 4
        %v1792 = vshll.u32 %v1504, 16
        %v1794 = vrot.slane %v1792, 5
        %v1795 = vsel %vm1515, %v1790, %v1794
        %v1797 = vshrl.u32 %v1505, 16
        %v1799 = vrot.slane %v1797, 4
        %v1800 = vshll.u32 %v1505, 16
        %v1802 = vrot.slane %v1800, 5
        %v1803 = vor.u32 %v1799, %v1802
        %v1804 = vrot.slane %v1803, 4
        %v1806 = vshll.u32 %v1506, 16
        %v1808 = vrot.slane %v1806, 5
        %v1809 = vsel %vm1515, %v1804, %v1808
        %v1811 = vshrl.u32 %v1507, 16
        %v1813 = vrot.slane %v1811, 4
        %v1814 = vshll.u32 %v1507, 16
        %v1816 = vrot.slane %v1814, 5
        %v1817 = vor.u32 %v1813, %v1816
        %v1818 = vrot.slane %v1817, 4
        %v1820 = vshll.u32 %v1508, 16
        %v1822 = vrot.slane %v1820, 5
        %v1823 = vsel %vm1515, %v1818, %v1822
        %v1825 = vshrl.u32 %v1509, 16
        %v1827 = vrot.slane %v1825, 4
        %v1828 = vshll.u32 %v1509, 16
        %v1830 = vrot.slane %v1828, 5
        %v1831 = vor.u32 %v1827, %v1830
        %v1832 = vrot.slane %v1831, 4
        %v1834 = vshll.u32 %v1510, 16
        %v1836 = vrot.slane %v1834, 5
        %v1837 = vsel %vm1515, %v1832, %v1836
        %v1839 = vshrl.u32 %v1511, 16
        %v1841 = vrot.slane %v1839, 4
        %v1842 = vshll.u32 %v1511, 16
        %v1844 = vrot.slane %v1842, 5
        %v1845 = vor.u32 %v1841, %v1844
        %v1846 = vrot.slane %v1845, 4
        %v1848 = vshll.u32 %v1512, 16
        %v1850 = vrot.slane %v1848, 5
        %v1851 = vsel %vm1515, %v1846, %v1850
        %s1852 = scalar_lea.vmem %s1, 4
        %v1853 = vld [vmem:[%s1852] sm:$0x3]
        %v1854 = vunpack.c.l.b16 %v1529
        %v1855 = vunpack.c.l.b16 %v1543
        %v1856 = vunpack.c.l.b16 %v1557
        %v1857 = vunpack.c.l.b16 %v1571
        %v1858 = vunpack.c.l.b16 %v1585
        %v1859 = vunpack.c.l.b16 %v1599
        %v1860 = vunpack.c.l.b16 %v1613
        %v1861 = vunpack.c.l.b16 %v1627
        %v1862 = vunpack.c.l.b16 %v1641
        %v1863 = vunpack.c.l.b16 %v1655
        %v1864 = vunpack.c.l.b16 %v1669
        %v1865 = vunpack.c.l.b16 %v1683
        %v1866 = vunpack.c.l.b16 %v1697
        %v1867 = vunpack.c.l.b16 %v1711
        %v1868 = vunpack.c.l.b16 %v1725
        %v1869 = vunpack.c.l.b16 %v1739
        %v1870 = vunpack.c.l.b16 %v1753
        %v1871 = vunpack.c.l.b16 %v1767
        %v1872 = vunpack.c.l.b16 %v1781
        %v1873 = vunpack.c.l.b16 %v1795
        %v1874 = vunpack.c.l.b16 %v1809
        %v1875 = vunpack.c.l.b16 %v1823
        %v1876 = vunpack.c.l.b16 %v1837
        %v1877 = vunpack.c.l.b16 %v1851
        %v1878 = vpack.c.b16 %v1855, %v1854
        %v1879 = vpack.c.b16 %v1857, %v1856
        %v1880 = vpack.c.b16 %v1859, %v1858
        %v1881 = vpack.c.b16 %v1861, %v1860
        %v1882 = vpack.c.b16 %v1863, %v1862
        %v1883 = vpack.c.b16 %v1865, %v1864
        %v1884 = vpack.c.b16 %v1867, %v1866
        %v1885 = vpack.c.b16 %v1869, %v1868
        %v1886 = vpack.c.b16 %v1871, %v1870
        %v1887 = vpack.c.b16 %v1873, %v1872
        %v1888 = vpack.c.b16 %v1875, %v1874
        %v1889 = vpack.c.b16 %v1877, %v1876
        %v1891 = vsel %vm1091, %v1878, 0
        %v1894 = vsel %vm1091, %v1879, 0
        %v1897 = vsel %vm1091, %v1880, 0
        %v1900 = vsel %vm1091, %v1881, 0
        %v1903 = vsel %vm1091, %v1882, 0
        %v1906 = vsel %vm1091, %v1883, 0
        %v1909 = vsel %vm1091, %v1884, 0
        %v1912 = vsel %vm1091, %v1885, 0
        %v1915 = vsel %vm1091, %v1886, 0
        %v1918 = vsel %vm1091, %v1887, 0
        %v1921 = vsel %vm1091, %v1888, 0
        %v1924 = vsel %vm1091, %v1889, 0
        %v1927 = vsel %vm1128, %v1853, 0
        %1929 = vmatprep.subr.bf16.mxu0 0
        %1930 = vmatpush1.bf16.msra.mxu0 0
        %1931 = vmatprep.subr.bf16.mxu0 0
        %1932 = vmatpush1.bf16.msra.mxu0 0
        %1933 = vmatprep.subr.bf16.mxu0 0
        %1934 = vmatpush1.bf16.msra.mxu0 0
        %1935 = vmatprep.subr.bf16.mxu0 0
        %1936 = vmatpush1.bf16.msra.mxu0 0
        %1937 = vmatprep.subr.bf16.mxu0 0
        %1938 = vmatpush1.bf16.msra.mxu0 0
        %1939 = vmatprep.subr.bf16.mxu0 0
        %1940 = vmatpush1.bf16.msra.mxu0 0
        %1941 = vmatprep.subr.bf16.mxu0 0
        %1942 = vmatpush1.bf16.msra.mxu0 0
        %1943 = vmatprep.subr.bf16.mxu0 0
        %1944 = vmatpush1.bf16.msra.mxu0 %v1927
        %1945 = vmatprep.subr.bf16.mxu0 0
        %1946 = vmatpush2.bf16.msra.mxu0 0
        %1947 = vmatprep.subr.bf16.mxu0 0
        %1948 = vmatpush2.bf16.msra.mxu0 0
        %1949 = vmatprep.subr.bf16.mxu0 0
        %1950 = vmatpush2.bf16.msra.mxu0 0
        %1951 = vmatprep.subr.bf16.mxu0 0
        %1952 = vmatpush2.bf16.msra.mxu0 0
        %1953 = vmatprep.subr.bf16.mxu0 0
        %1954 = vmatpush2.bf16.msra.mxu0 0
        %1955 = vmatprep.subr.bf16.mxu0 0
        %1956 = vmatpush2.bf16.msra.mxu0 0
        %1957 = vmatprep.subr.bf16.mxu0 0
        %1958 = vmatpush2.bf16.msra.mxu0 0
        %1959 = vmatprep.subr.bf16.mxu0 0
        %1960 = vmatpush2.bf16.msra.mxu0 0
        %1961 = vmatprep.mubr.bf16.mxu0 0
        %1962 = vmatmul.mubr.bf16.gmra.mxu0 %v1891
        %v1963 = vpop.f32.mrf.mxu0
        %v1964 = vadd.f32 0.0, %v1963
        %v1965 = vpop.f32.mrf.mxu0
        %v1966 = vpop.f32.mrf.mxu0
        %v1967 = vadd.f32 0.0, %v1966
        %v1968 = vpop.f32.mrf.mxu0
        %1969 = vmatprep.mubr.bf16.mxu0 0
        %1970 = vmatmul.mubr.bf16.gmra.mxu0 %v1894
        %v1971 = vpop.f32.mrf.mxu0
        %v1972 = vadd.f32 0.0, %v1971
        %v1973 = vpop.f32.mrf.mxu0
        %v1974 = vpop.f32.mrf.mxu0
        %v1975 = vadd.f32 0.0, %v1974
        %v1976 = vpop.f32.mrf.mxu0
        %1977 = vmatprep.mubr.bf16.mxu0 0
        %1978 = vmatmul.mubr.bf16.gmra.mxu0 %v1897
        %v1979 = vpop.f32.mrf.mxu0
        %v1980 = vadd.f32 0.0, %v1979
        %v1981 = vpop.f32.mrf.mxu0
        %v1982 = vpop.f32.mrf.mxu0
        %v1983 = vadd.f32 0.0, %v1982
        %v1984 = vpop.f32.mrf.mxu0
        %1985 = vmatprep.mubr.bf16.mxu0 0
        %1986 = vmatmul.mubr.bf16.gmra.mxu0 %v1900
        %v1987 = vpop.f32.mrf.mxu0
        %v1988 = vadd.f32 0.0, %v1987
        %v1989 = vpop.f32.mrf.mxu0
        %v1990 = vpop.f32.mrf.mxu0
        %v1991 = vadd.f32 0.0, %v1990
        %v1992 = vpop.f32.mrf.mxu0
        %1993 = vmatprep.mubr.bf16.mxu0 0
        %1994 = vmatmul.mubr.bf16.gmra.mxu0 %v1903
        %v1995 = vpop.f32.mrf.mxu0
        %v1996 = vadd.f32 0.0, %v1995
        %v1997 = vpop.f32.mrf.mxu0
        %v1998 = vpop.f32.mrf.mxu0
        %v1999 = vadd.f32 0.0, %v1998
        %v2000 = vpop.f32.mrf.mxu0
        %2001 = vmatprep.mubr.bf16.mxu0 0
        %2002 = vmatmul.mubr.bf16.gmra.mxu0 %v1906
        %v2003 = vpop.f32.mrf.mxu0
        %v2004 = vadd.f32 0.0, %v2003
        %v2005 = vpop.f32.mrf.mxu0
        %v2006 = vpop.f32.mrf.mxu0
        %v2007 = vadd.f32 0.0, %v2006
        %v2008 = vpop.f32.mrf.mxu0
        %2009 = vmatprep.mubr.bf16.mxu0 0
        %2010 = vmatmul.mubr.bf16.gmra.mxu0 %v1909
        %v2011 = vpop.f32.mrf.mxu0
        %v2012 = vadd.f32 0.0, %v2011
        %v2013 = vpop.f32.mrf.mxu0
        %v2014 = vpop.f32.mrf.mxu0
        %v2015 = vadd.f32 0.0, %v2014
        %v2016 = vpop.f32.mrf.mxu0
        %2017 = vmatprep.mubr.bf16.mxu0 0
        %2018 = vmatmul.mubr.bf16.gmra.mxu0 %v1912
        %v2019 = vpop.f32.mrf.mxu0
        %v2020 = vadd.f32 0.0, %v2019
        %v2021 = vpop.f32.mrf.mxu0
        %v2022 = vpop.f32.mrf.mxu0
        %v2023 = vadd.f32 0.0, %v2022
        %v2024 = vpop.f32.mrf.mxu0
        %2025 = vmatprep.mubr.bf16.mxu0 0
        %2026 = vmatmul.mubr.bf16.gmra.mxu0 %v1915
        %v2027 = vpop.f32.mrf.mxu0
        %v2028 = vadd.f32 0.0, %v2027
        %v2029 = vpop.f32.mrf.mxu0
        %v2030 = vpop.f32.mrf.mxu0
        %v2031 = vadd.f32 0.0, %v2030
        %v2032 = vpop.f32.mrf.mxu0
        %2033 = vmatprep.mubr.bf16.mxu0 0
        %2034 = vmatmul.mubr.bf16.gmra.mxu0 %v1918
        %v2035 = vpop.f32.mrf.mxu0
        %v2036 = vadd.f32 0.0, %v2035
        %v2037 = vpop.f32.mrf.mxu0
        %v2038 = vpop.f32.mrf.mxu0
        %v2039 = vadd.f32 0.0, %v2038
        %v2040 = vpop.f32.mrf.mxu0
        %2041 = vmatprep.mubr.bf16.mxu0 0
        %2042 = vmatmul.mubr.bf16.gmra.mxu0 %v1921
        %v2043 = vpop.f32.mrf.mxu0
        %v2044 = vadd.f32 0.0, %v2043
        %v2045 = vpop.f32.mrf.mxu0
        %v2046 = vpop.f32.mrf.mxu0
        %v2047 = vadd.f32 0.0, %v2046
        %v2048 = vpop.f32.mrf.mxu0
        %2049 = vmatprep.mubr.bf16.mxu0 0
        %2050 = vmatmul.mubr.bf16.gmra.mxu0 %v1924
        %v2051 = vpop.f32.mrf.mxu0
        %v2052 = vadd.f32 0.0, %v2051
        %v2053 = vpop.f32.mrf.mxu0
        %v2054 = vpop.f32.mrf.mxu0
        %v2055 = vadd.f32 0.0, %v2054
        %v2056 = vpop.f32.mrf.mxu0
        %2057 = vdwg.mxu0
        %v2058 = vadd.f32 %v1371, %v1964
        %v2059 = vadd.f32 %v1374, %v1967
        %v2060 = vadd.f32 %v1379, %v1972
        %v2061 = vadd.f32 %v1382, %v1975
        %v2062 = vadd.f32 %v1387, %v1980
        %v2063 = vadd.f32 %v1390, %v1983
        %v2064 = vadd.f32 %v1395, %v1988
        %v2065 = vadd.f32 %v1398, %v1991
        %v2066 = vadd.f32 %v1403, %v1996
        %v2067 = vadd.f32 %v1406, %v1999
        %v2068 = vadd.f32 %v1411, %v2004
        %v2069 = vadd.f32 %v1414, %v2007
        %v2070 = vadd.f32 %v1419, %v2012
        %v2071 = vadd.f32 %v1422, %v2015
        %v2072 = vadd.f32 %v1427, %v2020
        %v2073 = vadd.f32 %v1430, %v2023
        %v2074 = vadd.f32 %v1435, %v2028
        %v2075 = vadd.f32 %v1438, %v2031
        %v2076 = vadd.f32 %v1443, %v2036
        %v2077 = vadd.f32 %v1446, %v2039
        %v2078 = vadd.f32 %v1451, %v2044
        %v2079 = vadd.f32 %v1454, %v2047
        %v2080 = vadd.f32 %v1459, %v2052
        %v2081 = vadd.f32 %v1462, %v2055
        %v2082 = vld [vmem:[%s280] sm:$0x8]
        %v2083 = vld [vmem:[%s280 + $0x4] sm:$0xf]
        %v2084 = vld [vmem:[%s280 + $0xc] sm:$0x8]
        %v2085 = vld [vmem:[%s280 + $0x10] sm:$0xf]
        %v2086 = vld [vmem:[%s280 + $0x18] sm:$0x8]
        %v2087 = vld [vmem:[%s280 + $0x1c] sm:$0xf]
        %v2088 = vld [vmem:[%s280 + $0x24] sm:$0x8]
        %v2089 = vld [vmem:[%s280 + $0x28] sm:$0xf]
        %v2090 = vld [vmem:[%s280 + $0x30] sm:$0x8]
        %v2091 = vld [vmem:[%s280 + $0x34] sm:$0xf]
        %v2092 = vld [vmem:[%s280 + $0x3c] sm:$0x8]
        %v2093 = vld [vmem:[%s280 + $0x40] sm:$0xf]
        %v2094 = vld [vmem:[%s280 + $0x48] sm:$0x8]
        %v2095 = vld [vmem:[%s280 + $0x4c] sm:$0xf]
        %v2096 = vld [vmem:[%s280 + $0x54] sm:$0x8]
        %v2097 = vld [vmem:[%s280 + $0x58] sm:$0xf]
        %v2098 = vld [vmem:[%s280 + $0x78] sm:$0x8]
        %v2099 = vld [vmem:[%s280 + $0x7c] sm:$0xf]
        %v2100 = vld [vmem:[%s280 + $0x84] sm:$0x8]
        %v2101 = vld [vmem:[%s280 + $0x88] sm:$0xf]
        %v2102 = vld [vmem:[%s280 + $0x90] sm:$0x8]
        %v2103 = vld [vmem:[%s280 + $0x94] sm:$0xf]
        %v2104 = vld [vmem:[%s280 + $0x9c] sm:$0x8]
        %v2105 = vld [vmem:[%s280 + $0xa0] sm:$0xf]
        %v2106 = vld [vmem:[%s280 + $0xa8] sm:$0x8]
        %v2107 = vld [vmem:[%s280 + $0xac] sm:$0xf]
        %v2108 = vld [vmem:[%s280 + $0xb4] sm:$0x8]
        %v2109 = vld [vmem:[%s280 + $0xb8] sm:$0xf]
        %v2110 = vld [vmem:[%s280 + $0xc0] sm:$0x8]
        %v2111 = vld [vmem:[%s280 + $0xc4] sm:$0xf]
        %v2112 = vld [vmem:[%s280 + $0xcc] sm:$0x8]
        %v2113 = vld [vmem:[%s280 + $0xd0] sm:$0xf]
        %v2114 = vld [vmem:[%s280 + $0xf0] sm:$0x8]
        %v2115 = vld [vmem:[%s280 + $0xf4] sm:$0xf]
        %v2116 = vld [vmem:[%s280 + $0xfc] sm:$0x8]
        %v2117 = vld [vmem:[%s280 + $0x100] sm:$0xf]
        %v2118 = vld [vmem:[%s280 + $0x108] sm:$0x8]
        %v2119 = vld [vmem:[%s280 + $0x10c] sm:$0xf]
        %v2120 = vld [vmem:[%s280 + $0x114] sm:$0x8]
        %v2121 = vld [vmem:[%s280 + $0x118] sm:$0xf]
        %v2122 = vld [vmem:[%s280 + $0x120] sm:$0x8]
        %v2123 = vld [vmem:[%s280 + $0x124] sm:$0xf]
        %v2124 = vld [vmem:[%s280 + $0x12c] sm:$0x8]
        %v2125 = vld [vmem:[%s280 + $0x130] sm:$0xf]
        %v2126 = vld [vmem:[%s280 + $0x138] sm:$0x8]
        %v2127 = vld [vmem:[%s280 + $0x13c] sm:$0xf]
        %v2128 = vld [vmem:[%s280 + $0x144] sm:$0x8]
        %v2129 = vld [vmem:[%s280 + $0x148] sm:$0xf]
        %v2131 = vshrl.u32 %v2082, 16
        %v2133 = vrot.slane %v2131, 7
        %v2134 = vrot.slane %v2133, 4
        %v2136 = vshrl.u32 %v2083, 16
        %v2138 = vrot.slane %v2136, 7
        %v2139 = vshll.u32 %v2083, 16
        %v2141 = vor.u32 %v2138, %v2139
        %v2142 = vsel %vm715, %v2134, %v2141
        %v2144 = vshrl.u32 %v2084, 16
        %v2146 = vrot.slane %v2144, 7
        %v2147 = vrot.slane %v2146, 4
        %v2149 = vshrl.u32 %v2085, 16
        %v2151 = vrot.slane %v2149, 7
        %v2152 = vshll.u32 %v2085, 16
        %v2154 = vor.u32 %v2151, %v2152
        %v2155 = vsel %vm715, %v2147, %v2154
        %v2157 = vshrl.u32 %v2086, 16
        %v2159 = vrot.slane %v2157, 7
        %v2160 = vrot.slane %v2159, 4
        %v2162 = vshrl.u32 %v2087, 16
        %v2164 = vrot.slane %v2162, 7
        %v2165 = vshll.u32 %v2087, 16
        %v2167 = vor.u32 %v2164, %v2165
        %v2168 = vsel %vm715, %v2160, %v2167
        %v2170 = vshrl.u32 %v2088, 16
        %v2172 = vrot.slane %v2170, 7
        %v2173 = vrot.slane %v2172, 4
        %v2175 = vshrl.u32 %v2089, 16
        %v2177 = vrot.slane %v2175, 7
        %v2178 = vshll.u32 %v2089, 16
        %v2180 = vor.u32 %v2177, %v2178
        %v2181 = vsel %vm715, %v2173, %v2180
        %v2183 = vshrl.u32 %v2090, 16
        %v2185 = vrot.slane %v2183, 7
        %v2186 = vrot.slane %v2185, 4
        %v2188 = vshrl.u32 %v2091, 16
        %v2190 = vrot.slane %v2188, 7
        %v2191 = vshll.u32 %v2091, 16
        %v2193 = vor.u32 %v2190, %v2191
        %v2194 = vsel %vm715, %v2186, %v2193
        %v2196 = vshrl.u32 %v2092, 16
        %v2198 = vrot.slane %v2196, 7
        %v2199 = vrot.slane %v2198, 4
        %v2201 = vshrl.u32 %v2093, 16
        %v2203 = vrot.slane %v2201, 7
        %v2204 = vshll.u32 %v2093, 16
        %v2206 = vor.u32 %v2203, %v2204
        %v2207 = vsel %vm715, %v2199, %v2206
        %v2209 = vshrl.u32 %v2094, 16
        %v2211 = vrot.slane %v2209, 7
        %v2212 = vrot.slane %v2211, 4
        %v2214 = vshrl.u32 %v2095, 16
        %v2216 = vrot.slane %v2214, 7
        %v2217 = vshll.u32 %v2095, 16
        %v2219 = vor.u32 %v2216, %v2217
        %v2220 = vsel %vm715, %v2212, %v2219
        %v2222 = vshrl.u32 %v2096, 16
        %v2224 = vrot.slane %v2222, 7
        %v2225 = vrot.slane %v2224, 4
        %v2227 = vshrl.u32 %v2097, 16
        %v2229 = vrot.slane %v2227, 7
        %v2230 = vshll.u32 %v2097, 16
        %v2232 = vor.u32 %v2229, %v2230
        %v2233 = vsel %vm715, %v2225, %v2232
        %v2235 = vshrl.u32 %v2098, 16
        %v2237 = vrot.slane %v2235, 7
        %v2238 = vrot.slane %v2237, 4
        %v2240 = vshrl.u32 %v2099, 16
        %v2242 = vrot.slane %v2240, 7
        %v2243 = vshll.u32 %v2099, 16
        %v2245 = vor.u32 %v2242, %v2243
        %v2246 = vsel %vm715, %v2238, %v2245
        %v2248 = vshrl.u32 %v2100, 16
        %v2250 = vrot.slane %v2248, 7
        %v2251 = vrot.slane %v2250, 4
        %v2253 = vshrl.u32 %v2101, 16
        %v2255 = vrot.slane %v2253, 7
        %v2256 = vshll.u32 %v2101, 16
        %v2258 = vor.u32 %v2255, %v2256
        %v2259 = vsel %vm715, %v2251, %v2258
        %v2261 = vshrl.u32 %v2102, 16
        %v2263 = vrot.slane %v2261, 7
        %v2264 = vrot.slane %v2263, 4
        %v2266 = vshrl.u32 %v2103, 16
        %v2268 = vrot.slane %v2266, 7
        %v2269 = vshll.u32 %v2103, 16
        %v2271 = vor.u32 %v2268, %v2269
        %v2272 = vsel %vm715, %v2264, %v2271
        %v2274 = vshrl.u32 %v2104, 16
        %v2276 = vrot.slane %v2274, 7
        %v2277 = vrot.slane %v2276, 4
        %v2279 = vshrl.u32 %v2105, 16
        %v2281 = vrot.slane %v2279, 7
        %v2282 = vshll.u32 %v2105, 16
        %v2284 = vor.u32 %v2281, %v2282
        %v2285 = vsel %vm715, %v2277, %v2284
        %v2287 = vshrl.u32 %v2106, 16
        %v2289 = vrot.slane %v2287, 7
        %v2290 = vrot.slane %v2289, 4
        %v2292 = vshrl.u32 %v2107, 16
        %v2294 = vrot.slane %v2292, 7
        %v2295 = vshll.u32 %v2107, 16
        %v2297 = vor.u32 %v2294, %v2295
        %v2298 = vsel %vm715, %v2290, %v2297
        %v2300 = vshrl.u32 %v2108, 16
        %v2302 = vrot.slane %v2300, 7
        %v2303 = vrot.slane %v2302, 4
        %v2305 = vshrl.u32 %v2109, 16
        %v2307 = vrot.slane %v2305, 7
        %v2308 = vshll.u32 %v2109, 16
        %v2310 = vor.u32 %v2307, %v2308
        %v2311 = vsel %vm715, %v2303, %v2310
        %v2313 = vshrl.u32 %v2110, 16
        %v2315 = vrot.slane %v2313, 7
        %v2316 = vrot.slane %v2315, 4
        %v2318 = vshrl.u32 %v2111, 16
        %v2320 = vrot.slane %v2318, 7
        %v2321 = vshll.u32 %v2111, 16
        %v2323 = vor.u32 %v2320, %v2321
        %v2324 = vsel %vm715, %v2316, %v2323
        %v2326 = vshrl.u32 %v2112, 16
        %v2328 = vrot.slane %v2326, 7
        %v2329 = vrot.slane %v2328, 4
        %v2331 = vshrl.u32 %v2113, 16
        %v2333 = vrot.slane %v2331, 7
        %v2334 = vshll.u32 %v2113, 16
        %v2336 = vor.u32 %v2333, %v2334
        %v2337 = vsel %vm715, %v2329, %v2336
        %v2339 = vshrl.u32 %v2114, 16
        %v2341 = vrot.slane %v2339, 7
        %v2342 = vrot.slane %v2341, 4
        %v2344 = vshrl.u32 %v2115, 16
        %v2346 = vrot.slane %v2344, 7
        %v2347 = vshll.u32 %v2115, 16
        %v2349 = vor.u32 %v2346, %v2347
        %v2350 = vsel %vm715, %v2342, %v2349
        %v2352 = vshrl.u32 %v2116, 16
        %v2354 = vrot.slane %v2352, 7
        %v2355 = vrot.slane %v2354, 4
        %v2357 = vshrl.u32 %v2117, 16
        %v2359 = vrot.slane %v2357, 7
        %v2360 = vshll.u32 %v2117, 16
        %v2362 = vor.u32 %v2359, %v2360
        %v2363 = vsel %vm715, %v2355, %v2362
        %v2365 = vshrl.u32 %v2118, 16
        %v2367 = vrot.slane %v2365, 7
        %v2368 = vrot.slane %v2367, 4
        %v2370 = vshrl.u32 %v2119, 16
        %v2372 = vrot.slane %v2370, 7
        %v2373 = vshll.u32 %v2119, 16
        %v2375 = vor.u32 %v2372, %v2373
        %v2376 = vsel %vm715, %v2368, %v2375
        %v2378 = vshrl.u32 %v2120, 16
        %v2380 = vrot.slane %v2378, 7
        %v2381 = vrot.slane %v2380, 4
        %v2383 = vshrl.u32 %v2121, 16
        %v2385 = vrot.slane %v2383, 7
        %v2386 = vshll.u32 %v2121, 16
        %v2388 = vor.u32 %v2385, %v2386
        %v2389 = vsel %vm715, %v2381, %v2388
        %v2391 = vshrl.u32 %v2122, 16
        %v2393 = vrot.slane %v2391, 7
        %v2394 = vrot.slane %v2393, 4
        %v2396 = vshrl.u32 %v2123, 16
        %v2398 = vrot.slane %v2396, 7
        %v2399 = vshll.u32 %v2123, 16
        %v2401 = vor.u32 %v2398, %v2399
        %v2402 = vsel %vm715, %v2394, %v2401
        %v2404 = vshrl.u32 %v2124, 16
        %v2406 = vrot.slane %v2404, 7
        %v2407 = vrot.slane %v2406, 4
        %v2409 = vshrl.u32 %v2125, 16
        %v2411 = vrot.slane %v2409, 7
        %v2412 = vshll.u32 %v2125, 16
        %v2414 = vor.u32 %v2411, %v2412
        %v2415 = vsel %vm715, %v2407, %v2414
        %v2417 = vshrl.u32 %v2126, 16
        %v2419 = vrot.slane %v2417, 7
        %v2420 = vrot.slane %v2419, 4
        %v2422 = vshrl.u32 %v2127, 16
        %v2424 = vrot.slane %v2422, 7
        %v2425 = vshll.u32 %v2127, 16
        %v2427 = vor.u32 %v2424, %v2425
        %v2428 = vsel %vm715, %v2420, %v2427
        %v2430 = vshrl.u32 %v2128, 16
        %v2432 = vrot.slane %v2430, 7
        %v2433 = vrot.slane %v2432, 4
        %v2435 = vshrl.u32 %v2129, 16
        %v2437 = vrot.slane %v2435, 7
        %v2438 = vshll.u32 %v2129, 16
        %v2440 = vor.u32 %v2437, %v2438
        %v2441 = vsel %vm715, %v2433, %v2440
        %s2442 = scalar_lea.vmem %s1, 6
        %v2443 = vld [vmem:[%s2442] sm:$0x3]
        %v2444 = vunpack.c.l.b16 %v2142
        %v2445 = vunpack.c.l.b16 %v2155
        %v2446 = vunpack.c.l.b16 %v2168
        %v2447 = vunpack.c.l.b16 %v2181
        %v2448 = vunpack.c.l.b16 %v2194
        %v2449 = vunpack.c.l.b16 %v2207
        %v2450 = vunpack.c.l.b16 %v2220
        %v2451 = vunpack.c.l.b16 %v2233
        %v2452 = vunpack.c.l.b16 %v2246
        %v2453 = vunpack.c.l.b16 %v2259
        %v2454 = vunpack.c.l.b16 %v2272
        %v2455 = vunpack.c.l.b16 %v2285
        %v2456 = vunpack.c.l.b16 %v2298
        %v2457 = vunpack.c.l.b16 %v2311
        %v2458 = vunpack.c.l.b16 %v2324
        %v2459 = vunpack.c.l.b16 %v2337
        %v2460 = vunpack.c.l.b16 %v2350
        %v2461 = vunpack.c.l.b16 %v2363
        %v2462 = vunpack.c.l.b16 %v2376
        %v2463 = vunpack.c.l.b16 %v2389
        %v2464 = vunpack.c.l.b16 %v2402
        %v2465 = vunpack.c.l.b16 %v2415
        %v2466 = vunpack.c.l.b16 %v2428
        %v2467 = vunpack.c.l.b16 %v2441
        %v2468 = vpack.c.b16 %v2445, %v2444
        %v2469 = vpack.c.b16 %v2447, %v2446
        %v2470 = vpack.c.b16 %v2449, %v2448
        %v2471 = vpack.c.b16 %v2451, %v2450
        %v2472 = vpack.c.b16 %v2453, %v2452
        %v2473 = vpack.c.b16 %v2455, %v2454
        %v2474 = vpack.c.b16 %v2457, %v2456
        %v2475 = vpack.c.b16 %v2459, %v2458
        %v2476 = vpack.c.b16 %v2461, %v2460
        %v2477 = vpack.c.b16 %v2463, %v2462
        %v2478 = vpack.c.b16 %v2465, %v2464
        %v2479 = vpack.c.b16 %v2467, %v2466
        %v2481 = vsel %vm1091, %v2468, 0
        %v2484 = vsel %vm1091, %v2469, 0
        %v2487 = vsel %vm1091, %v2470, 0
        %v2490 = vsel %vm1091, %v2471, 0
        %v2493 = vsel %vm1091, %v2472, 0
        %v2496 = vsel %vm1091, %v2473, 0
        %v2499 = vsel %vm1091, %v2474, 0
        %v2502 = vsel %vm1091, %v2475, 0
        %v2505 = vsel %vm1091, %v2476, 0
        %v2508 = vsel %vm1091, %v2477, 0
        %v2511 = vsel %vm1091, %v2478, 0
        %v2514 = vsel %vm1091, %v2479, 0
        %v2517 = vsel %vm1128, %v2443, 0
        %2519 = vmatprep.subr.bf16.mxu0 0
        %2520 = vmatpush1.bf16.msra.mxu0 0
        %2521 = vmatprep.subr.bf16.mxu0 0
        %2522 = vmatpush1.bf16.msra.mxu0 0
        %2523 = vmatprep.subr.bf16.mxu0 0
        %2524 = vmatpush1.bf16.msra.mxu0 0
        %2525 = vmatprep.subr.bf16.mxu0 0
        %2526 = vmatpush1.bf16.msra.mxu0 0
        %2527 = vmatprep.subr.bf16.mxu0 0
        %2528 = vmatpush1.bf16.msra.mxu0 0
        %2529 = vmatprep.subr.bf16.mxu0 0
        %2530 = vmatpush1.bf16.msra.mxu0 0
        %2531 = vmatprep.subr.bf16.mxu0 0
        %2532 = vmatpush1.bf16.msra.mxu0 0
        %2533 = vmatprep.subr.bf16.mxu0 0
        %2534 = vmatpush1.bf16.msra.mxu0 %v2517
        %2535 = vmatprep.subr.bf16.mxu0 0
        %2536 = vmatpush2.bf16.msra.mxu0 0
        %2537 = vmatprep.subr.bf16.mxu0 0
        %2538 = vmatpush2.bf16.msra.mxu0 0
        %2539 = vmatprep.subr.bf16.mxu0 0
        %2540 = vmatpush2.bf16.msra.mxu0 0
        %2541 = vmatprep.subr.bf16.mxu0 0
        %2542 = vmatpush2.bf16.msra.mxu0 0
        %2543 = vmatprep.subr.bf16.mxu0 0
        %2544 = vmatpush2.bf16.msra.mxu0 0
        %2545 = vmatprep.subr.bf16.mxu0 0
        %2546 = vmatpush2.bf16.msra.mxu0 0
        %2547 = vmatprep.subr.bf16.mxu0 0
        %2548 = vmatpush2.bf16.msra.mxu0 0
        %2549 = vmatprep.subr.bf16.mxu0 0
        %2550 = vmatpush2.bf16.msra.mxu0 0
        %2551 = vmatprep.mubr.bf16.mxu0 0
        %2552 = vmatmul.mubr.bf16.gmra.mxu0 %v2481
        %v2553 = vpop.f32.mrf.mxu0
        %v2554 = vadd.f32 0.0, %v2553
        %v2555 = vpop.f32.mrf.mxu0
        %v2556 = vpop.f32.mrf.mxu0
        %v2557 = vadd.f32 0.0, %v2556
        %v2558 = vpop.f32.mrf.mxu0
        %2559 = vmatprep.mubr.bf16.mxu0 0
        %2560 = vmatmul.mubr.bf16.gmra.mxu0 %v2484
        %v2561 = vpop.f32.mrf.mxu0
        %v2562 = vadd.f32 0.0, %v2561
        %v2563 = vpop.f32.mrf.mxu0
        %v2564 = vpop.f32.mrf.mxu0
        %v2565 = vadd.f32 0.0, %v2564
        %v2566 = vpop.f32.mrf.mxu0
        %2567 = vmatprep.mubr.bf16.mxu0 0
        %2568 = vmatmul.mubr.bf16.gmra.mxu0 %v2487
        %v2569 = vpop.f32.mrf.mxu0
        %v2570 = vadd.f32 0.0, %v2569
        %v2571 = vpop.f32.mrf.mxu0
        %v2572 = vpop.f32.mrf.mxu0
        %v2573 = vadd.f32 0.0, %v2572
        %v2574 = vpop.f32.mrf.mxu0
        %2575 = vmatprep.mubr.bf16.mxu0 0
        %2576 = vmatmul.mubr.bf16.gmra.mxu0 %v2490
        %v2577 = vpop.f32.mrf.mxu0
        %v2578 = vadd.f32 0.0, %v2577
        %v2579 = vpop.f32.mrf.mxu0
        %v2580 = vpop.f32.mrf.mxu0
        %v2581 = vadd.f32 0.0, %v2580
        %v2582 = vpop.f32.mrf.mxu0
        %2583 = vmatprep.mubr.bf16.mxu0 0
        %2584 = vmatmul.mubr.bf16.gmra.mxu0 %v2493
        %v2585 = vpop.f32.mrf.mxu0
        %v2586 = vadd.f32 0.0, %v2585
        %v2587 = vpop.f32.mrf.mxu0
        %v2588 = vpop.f32.mrf.mxu0
        %v2589 = vadd.f32 0.0, %v2588
        %v2590 = vpop.f32.mrf.mxu0
        %2591 = vmatprep.mubr.bf16.mxu0 0
        %2592 = vmatmul.mubr.bf16.gmra.mxu0 %v2496
        %v2593 = vpop.f32.mrf.mxu0
        %v2594 = vadd.f32 0.0, %v2593
        %v2595 = vpop.f32.mrf.mxu0
        %v2596 = vpop.f32.mrf.mxu0
        %v2597 = vadd.f32 0.0, %v2596
        %v2598 = vpop.f32.mrf.mxu0
        %2599 = vmatprep.mubr.bf16.mxu0 0
        %2600 = vmatmul.mubr.bf16.gmra.mxu0 %v2499
        %v2601 = vpop.f32.mrf.mxu0
        %v2602 = vadd.f32 0.0, %v2601
        %v2603 = vpop.f32.mrf.mxu0
        %v2604 = vpop.f32.mrf.mxu0
        %v2605 = vadd.f32 0.0, %v2604
        %v2606 = vpop.f32.mrf.mxu0
        %2607 = vmatprep.mubr.bf16.mxu0 0
        %2608 = vmatmul.mubr.bf16.gmra.mxu0 %v2502
        %v2609 = vpop.f32.mrf.mxu0
        %v2610 = vadd.f32 0.0, %v2609
        %v2611 = vpop.f32.mrf.mxu0
        %v2612 = vpop.f32.mrf.mxu0
        %v2613 = vadd.f32 0.0, %v2612
        %v2614 = vpop.f32.mrf.mxu0
        %2615 = vmatprep.mubr.bf16.mxu0 0
        %2616 = vmatmul.mubr.bf16.gmra.mxu0 %v2505
        %v2617 = vpop.f32.mrf.mxu0
        %v2618 = vadd.f32 0.0, %v2617
        %v2619 = vpop.f32.mrf.mxu0
        %v2620 = vpop.f32.mrf.mxu0
        %v2621 = vadd.f32 0.0, %v2620
        %v2622 = vpop.f32.mrf.mxu0
        %2623 = vmatprep.mubr.bf16.mxu0 0
        %2624 = vmatmul.mubr.bf16.gmra.mxu0 %v2508
        %v2625 = vpop.f32.mrf.mxu0
        %v2626 = vadd.f32 0.0, %v2625
        %v2627 = vpop.f32.mrf.mxu0
        %v2628 = vpop.f32.mrf.mxu0
        %v2629 = vadd.f32 0.0, %v2628
        %v2630 = vpop.f32.mrf.mxu0
        %2631 = vmatprep.mubr.bf16.mxu0 0
        %2632 = vmatmul.mubr.bf16.gmra.mxu0 %v2511
        %v2633 = vpop.f32.mrf.mxu0
        %v2634 = vadd.f32 0.0, %v2633
        %v2635 = vpop.f32.mrf.mxu0
        %v2636 = vpop.f32.mrf.mxu0
        %v2637 = vadd.f32 0.0, %v2636
        %v2638 = vpop.f32.mrf.mxu0
        %2639 = vmatprep.mubr.bf16.mxu0 0
        %2640 = vmatmul.mubr.bf16.gmra.mxu0 %v2514
        %v2641 = vpop.f32.mrf.mxu0
        %v2642 = vadd.f32 0.0, %v2641
        %v2643 = vpop.f32.mrf.mxu0
        %v2644 = vpop.f32.mrf.mxu0
        %v2645 = vadd.f32 0.0, %v2644
        %v2646 = vpop.f32.mrf.mxu0
        %2647 = vdwg.mxu0
        %v2648 = vadd.f32 %v2058, %v2554
        %v2649 = vadd.f32 %v2059, %v2557
        %v2650 = vadd.f32 %v2060, %v2562
        %v2651 = vadd.f32 %v2061, %v2565
        %v2652 = vadd.f32 %v2062, %v2570
        %v2653 = vadd.f32 %v2063, %v2573
        %v2654 = vadd.f32 %v2064, %v2578
        %v2655 = vadd.f32 %v2065, %v2581
        %v2656 = vadd.f32 %v2066, %v2586
        %v2657 = vadd.f32 %v2067, %v2589
        %v2658 = vadd.f32 %v2068, %v2594
        %v2659 = vadd.f32 %v2069, %v2597
        %v2660 = vadd.f32 %v2070, %v2602
        %v2661 = vadd.f32 %v2071, %v2605
        %v2662 = vadd.f32 %v2072, %v2610
        %v2663 = vadd.f32 %v2073, %v2613
        %v2664 = vadd.f32 %v2074, %v2618
        %v2665 = vadd.f32 %v2075, %v2621
        %v2666 = vadd.f32 %v2076, %v2626
        %v2667 = vadd.f32 %v2077, %v2629
        %v2668 = vadd.f32 %v2078, %v2634
        %v2669 = vadd.f32 %v2079, %v2637
        %v2670 = vadd.f32 %v2080, %v2642
        %v2671 = vadd.f32 %v2081, %v2645
        %s2672 = scalar_lea.vmem %s1, 8
        %v2673 = vld [vmem:[%s2672] sm:$0x3]
        %v2698 = vunpack.c.l.b16 %v2083
        %v2699 = vunpack.c.l.b16 %v2085
        %v2700 = vunpack.c.l.b16 %v2087
        %v2701 = vunpack.c.l.b16 %v2089
        %v2702 = vunpack.c.l.b16 %v2091
        %v2703 = vunpack.c.l.b16 %v2093
        %v2704 = vunpack.c.l.b16 %v2095
        %v2705 = vunpack.c.l.b16 %v2097
        %v2706 = vunpack.c.l.b16 %v2099
        %v2707 = vunpack.c.l.b16 %v2101
        %v2708 = vunpack.c.l.b16 %v2103
        %v2709 = vunpack.c.l.b16 %v2105
        %v2710 = vunpack.c.l.b16 %v2107
        %v2711 = vunpack.c.l.b16 %v2109
        %v2712 = vunpack.c.l.b16 %v2111
        %v2713 = vunpack.c.l.b16 %v2113
        %v2714 = vunpack.c.l.b16 %v2115
        %v2715 = vunpack.c.l.b16 %v2117
        %v2716 = vunpack.c.l.b16 %v2119
        %v2717 = vunpack.c.l.b16 %v2121
        %v2718 = vunpack.c.l.b16 %v2123
        %v2719 = vunpack.c.l.b16 %v2125
        %v2720 = vunpack.c.l.b16 %v2127
        %v2721 = vunpack.c.l.b16 %v2129
        %v2722 = vpack.c.b16 %v2699, %v2698
        %v2723 = vpack.c.b16 %v2701, %v2700
        %v2724 = vpack.c.b16 %v2703, %v2702
        %v2725 = vpack.c.b16 %v2705, %v2704
        %v2726 = vpack.c.b16 %v2707, %v2706
        %v2727 = vpack.c.b16 %v2709, %v2708
        %v2728 = vpack.c.b16 %v2711, %v2710
        %v2729 = vpack.c.b16 %v2713, %v2712
        %v2730 = vpack.c.b16 %v2715, %v2714
        %v2731 = vpack.c.b16 %v2717, %v2716
        %v2732 = vpack.c.b16 %v2719, %v2718
        %v2733 = vpack.c.b16 %v2721, %v2720
        %v2735 = vsel %vm1091, %v2722, 0
        %v2738 = vsel %vm1091, %v2723, 0
        %v2741 = vsel %vm1091, %v2724, 0
        %v2744 = vsel %vm1091, %v2725, 0
        %v2747 = vsel %vm1091, %v2726, 0
        %v2750 = vsel %vm1091, %v2727, 0
        %v2753 = vsel %vm1091, %v2728, 0
        %v2756 = vsel %vm1091, %v2729, 0
        %v2759 = vsel %vm1091, %v2730, 0
        %v2762 = vsel %vm1091, %v2731, 0
        %v2765 = vsel %vm1091, %v2732, 0
        %v2768 = vsel %vm1091, %v2733, 0
        %v2771 = vsel %vm1128, %v2673, 0
        %2773 = vmatprep.subr.bf16.mxu0 0
        %2774 = vmatpush1.bf16.msra.mxu0 0
        %2775 = vmatprep.subr.bf16.mxu0 0
        %2776 = vmatpush1.bf16.msra.mxu0 0
        %2777 = vmatprep.subr.bf16.mxu0 0
        %2778 = vmatpush1.bf16.msra.mxu0 0
        %2779 = vmatprep.subr.bf16.mxu0 0
        %2780 = vmatpush1.bf16.msra.mxu0 0
        %2781 = vmatprep.subr.bf16.mxu0 0
        %2782 = vmatpush1.bf16.msra.mxu0 0
        %2783 = vmatprep.subr.bf16.mxu0 0
        %2784 = vmatpush1.bf16.msra.mxu0 0
        %2785 = vmatprep.subr.bf16.mxu0 0
        %2786 = vmatpush1.bf16.msra.mxu0 0
        %2787 = vmatprep.subr.bf16.mxu0 0
        %2788 = vmatpush1.bf16.msra.mxu0 %v2771
        %2789 = vmatprep.subr.bf16.mxu0 0
        %2790 = vmatpush2.bf16.msra.mxu0 0
        %2791 = vmatprep.subr.bf16.mxu0 0
        %2792 = vmatpush2.bf16.msra.mxu0 0
        %2793 = vmatprep.subr.bf16.mxu0 0
        %2794 = vmatpush2.bf16.msra.mxu0 0
        %2795 = vmatprep.subr.bf16.mxu0 0
        %2796 = vmatpush2.bf16.msra.mxu0 0
        %2797 = vmatprep.subr.bf16.mxu0 0
        %2798 = vmatpush2.bf16.msra.mxu0 0
        %2799 = vmatprep.subr.bf16.mxu0 0
        %2800 = vmatpush2.bf16.msra.mxu0 0
        %2801 = vmatprep.subr.bf16.mxu0 0
        %2802 = vmatpush2.bf16.msra.mxu0 0
        %2803 = vmatprep.subr.bf16.mxu0 0
        %2804 = vmatpush2.bf16.msra.mxu0 0
        %2805 = vmatprep.mubr.bf16.mxu0 0
        %2806 = vmatmul.mubr.bf16.gmra.mxu0 %v2735
        %v2807 = vpop.f32.mrf.mxu0
        %v2808 = vadd.f32 0.0, %v2807
        %v2809 = vpop.f32.mrf.mxu0
        %v2810 = vpop.f32.mrf.mxu0
        %v2811 = vadd.f32 0.0, %v2810
        %v2812 = vpop.f32.mrf.mxu0
        %2813 = vmatprep.mubr.bf16.mxu0 0
        %2814 = vmatmul.mubr.bf16.gmra.mxu0 %v2738
        %v2815 = vpop.f32.mrf.mxu0
        %v2816 = vadd.f32 0.0, %v2815
        %v2817 = vpop.f32.mrf.mxu0
        %v2818 = vpop.f32.mrf.mxu0
        %v2819 = vadd.f32 0.0, %v2818
        %v2820 = vpop.f32.mrf.mxu0
        %2821 = vmatprep.mubr.bf16.mxu0 0
        %2822 = vmatmul.mubr.bf16.gmra.mxu0 %v2741
        %v2823 = vpop.f32.mrf.mxu0
        %v2824 = vadd.f32 0.0, %v2823
        %v2825 = vpop.f32.mrf.mxu0
        %v2826 = vpop.f32.mrf.mxu0
        %v2827 = vadd.f32 0.0, %v2826
        %v2828 = vpop.f32.mrf.mxu0
        %2829 = vmatprep.mubr.bf16.mxu0 0
        %2830 = vmatmul.mubr.bf16.gmra.mxu0 %v2744
        %v2831 = vpop.f32.mrf.mxu0
        %v2832 = vadd.f32 0.0, %v2831
        %v2833 = vpop.f32.mrf.mxu0
        %v2834 = vpop.f32.mrf.mxu0
        %v2835 = vadd.f32 0.0, %v2834
        %v2836 = vpop.f32.mrf.mxu0
        %2837 = vmatprep.mubr.bf16.mxu0 0
        %2838 = vmatmul.mubr.bf16.gmra.mxu0 %v2747
        %v2839 = vpop.f32.mrf.mxu0
        %v2840 = vadd.f32 0.0, %v2839
        %v2841 = vpop.f32.mrf.mxu0
        %v2842 = vpop.f32.mrf.mxu0
        %v2843 = vadd.f32 0.0, %v2842
        %v2844 = vpop.f32.mrf.mxu0
        %2845 = vmatprep.mubr.bf16.mxu0 0
        %2846 = vmatmul.mubr.bf16.gmra.mxu0 %v2750
        %v2847 = vpop.f32.mrf.mxu0
        %v2848 = vadd.f32 0.0, %v2847
        %v2849 = vpop.f32.mrf.mxu0
        %v2850 = vpop.f32.mrf.mxu0
        %v2851 = vadd.f32 0.0, %v2850
        %v2852 = vpop.f32.mrf.mxu0
        %2853 = vmatprep.mubr.bf16.mxu0 0
        %2854 = vmatmul.mubr.bf16.gmra.mxu0 %v2753
        %v2855 = vpop.f32.mrf.mxu0
        %v2856 = vadd.f32 0.0, %v2855
        %v2857 = vpop.f32.mrf.mxu0
        %v2858 = vpop.f32.mrf.mxu0
        %v2859 = vadd.f32 0.0, %v2858
        %v2860 = vpop.f32.mrf.mxu0
        %2861 = vmatprep.mubr.bf16.mxu0 0
        %2862 = vmatmul.mubr.bf16.gmra.mxu0 %v2756
        %v2863 = vpop.f32.mrf.mxu0
        %v2864 = vadd.f32 0.0, %v2863
        %v2865 = vpop.f32.mrf.mxu0
        %v2866 = vpop.f32.mrf.mxu0
        %v2867 = vadd.f32 0.0, %v2866
        %v2868 = vpop.f32.mrf.mxu0
        %2869 = vmatprep.mubr.bf16.mxu0 0
        %2870 = vmatmul.mubr.bf16.gmra.mxu0 %v2759
        %v2871 = vpop.f32.mrf.mxu0
        %v2872 = vadd.f32 0.0, %v2871
        %v2873 = vpop.f32.mrf.mxu0
        %v2874 = vpop.f32.mrf.mxu0
        %v2875 = vadd.f32 0.0, %v2874
        %v2876 = vpop.f32.mrf.mxu0
        %2877 = vmatprep.mubr.bf16.mxu0 0
        %2878 = vmatmul.mubr.bf16.gmra.mxu0 %v2762
        %v2879 = vpop.f32.mrf.mxu0
        %v2880 = vadd.f32 0.0, %v2879
        %v2881 = vpop.f32.mrf.mxu0
        %v2882 = vpop.f32.mrf.mxu0
        %v2883 = vadd.f32 0.0, %v2882
        %v2884 = vpop.f32.mrf.mxu0
        %2885 = vmatprep.mubr.bf16.mxu0 0
        %2886 = vmatmul.mubr.bf16.gmra.mxu0 %v2765
        %v2887 = vpop.f32.mrf.mxu0
        %v2888 = vadd.f32 0.0, %v2887
        %v2889 = vpop.f32.mrf.mxu0
        %v2890 = vpop.f32.mrf.mxu0
        %v2891 = vadd.f32 0.0, %v2890
        %v2892 = vpop.f32.mrf.mxu0
        %2893 = vmatprep.mubr.bf16.mxu0 0
        %2894 = vmatmul.mubr.bf16.gmra.mxu0 %v2768
        %v2895 = vpop.f32.mrf.mxu0
        %v2896 = vadd.f32 0.0, %v2895
        %v2897 = vpop.f32.mrf.mxu0
        %v2898 = vpop.f32.mrf.mxu0
        %v2899 = vadd.f32 0.0, %v2898
        %v2900 = vpop.f32.mrf.mxu0
        %2901 = vdwg.mxu0
        %v2902 = vadd.f32 %v2648, %v2808
        %v2903 = vadd.f32 %v2649, %v2811
        %v2904 = vadd.f32 %v2650, %v2816
        %v2905 = vadd.f32 %v2651, %v2819
        %v2906 = vadd.f32 %v2652, %v2824
        %v2907 = vadd.f32 %v2653, %v2827
        %v2908 = vadd.f32 %v2654, %v2832
        %v2909 = vadd.f32 %v2655, %v2835
        %v2910 = vadd.f32 %v2656, %v2840
        %v2911 = vadd.f32 %v2657, %v2843
        %v2912 = vadd.f32 %v2658, %v2848
        %v2913 = vadd.f32 %v2659, %v2851
        %v2914 = vadd.f32 %v2660, %v2856
        %v2915 = vadd.f32 %v2661, %v2859
        %v2916 = vadd.f32 %v2662, %v2864
        %v2917 = vadd.f32 %v2663, %v2867
        %v2918 = vadd.f32 %v2664, %v2872
        %v2919 = vadd.f32 %v2665, %v2875
        %v2920 = vadd.f32 %v2666, %v2880
        %v2921 = vadd.f32 %v2667, %v2883
        %v2922 = vadd.f32 %v2668, %v2888
        %v2923 = vadd.f32 %v2669, %v2891
        %v2924 = vadd.f32 %v2670, %v2896
        %v2925 = vadd.f32 %v2671, %v2899
        %v2926 = vld [vmem:[%s280 + $0x4] sm:$0xf]
        %v2927 = vld [vmem:[%s280 + $0x8] sm:$0x1]
        %v2928 = vld [vmem:[%s280 + $0x10] sm:$0xf]
        %v2929 = vld [vmem:[%s280 + $0x14] sm:$0x1]
        %v2930 = vld [vmem:[%s280 + $0x1c] sm:$0xf]
        %v2931 = vld [vmem:[%s280 + $0x20] sm:$0x1]
        %v2932 = vld [vmem:[%s280 + $0x28] sm:$0xf]
        %v2933 = vld [vmem:[%s280 + $0x2c] sm:$0x1]
        %v2934 = vld [vmem:[%s280 + $0x34] sm:$0xf]
        %v2935 = vld [vmem:[%s280 + $0x38] sm:$0x1]
        %v2936 = vld [vmem:[%s280 + $0x40] sm:$0xf]
        %v2937 = vld [vmem:[%s280 + $0x44] sm:$0x1]
        %v2938 = vld [vmem:[%s280 + $0x4c] sm:$0xf]
        %v2939 = vld [vmem:[%s280 + $0x50] sm:$0x1]
        %v2940 = vld [vmem:[%s280 + $0x58] sm:$0xf]
        %v2941 = vld [vmem:[%s280 + $0x5c] sm:$0x1]
        %v2942 = vld [vmem:[%s280 + $0x7c] sm:$0xf]
        %v2943 = vld [vmem:[%s280 + $0x80] sm:$0x1]
        %v2944 = vld [vmem:[%s280 + $0x88] sm:$0xf]
        %v2945 = vld [vmem:[%s280 + $0x8c] sm:$0x1]
        %v2946 = vld [vmem:[%s280 + $0x94] sm:$0xf]
        %v2947 = vld [vmem:[%s280 + $0x98] sm:$0x1]
        %v2948 = vld [vmem:[%s280 + $0xa0] sm:$0xf]
        %v2949 = vld [vmem:[%s280 + $0xa4] sm:$0x1]
        %v2950 = vld [vmem:[%s280 + $0xac] sm:$0xf]
        %v2951 = vld [vmem:[%s280 + $0xb0] sm:$0x1]
        %v2952 = vld [vmem:[%s280 + $0xb8] sm:$0xf]
        %v2953 = vld [vmem:[%s280 + $0xbc] sm:$0x1]
        %v2954 = vld [vmem:[%s280 + $0xc4] sm:$0xf]
        %v2955 = vld [vmem:[%s280 + $0xc8] sm:$0x1]
        %v2956 = vld [vmem:[%s280 + $0xd0] sm:$0xf]
        %v2957 = vld [vmem:[%s280 + $0xd4] sm:$0x1]
        %v2958 = vld [vmem:[%s280 + $0xf4] sm:$0xf]
        %v2959 = vld [vmem:[%s280 + $0xf8] sm:$0x1]
        %v2960 = vld [vmem:[%s280 + $0x100] sm:$0xf]
        %v2961 = vld [vmem:[%s280 + $0x104] sm:$0x1]
        %v2962 = vld [vmem:[%s280 + $0x10c] sm:$0xf]
        %v2963 = vld [vmem:[%s280 + $0x110] sm:$0x1]
        %v2964 = vld [vmem:[%s280 + $0x118] sm:$0xf]
        %v2965 = vld [vmem:[%s280 + $0x11c] sm:$0x1]
        %v2966 = vld [vmem:[%s280 + $0x124] sm:$0xf]
        %v2967 = vld [vmem:[%s280 + $0x128] sm:$0x1]
        %v2968 = vld [vmem:[%s280 + $0x130] sm:$0xf]
        %v2969 = vld [vmem:[%s280 + $0x134] sm:$0x1]
        %v2970 = vld [vmem:[%s280 + $0x13c] sm:$0xf]
        %v2971 = vld [vmem:[%s280 + $0x140] sm:$0x1]
        %v2972 = vld [vmem:[%s280 + $0x148] sm:$0xf]
        %v2973 = vld [vmem:[%s280 + $0x14c] sm:$0x1]
        %v2975 = vshrl.u32 %v2926, 16
        %v2977 = vrot.slane %v2975, 4
        %v2978 = vshll.u32 %v2926, 16
        %v2980 = vrot.slane %v2978, 5
        %v2981 = vor.u32 %v2977, %v2980
        %v2982 = vrot.slane %v2981, 4
        %v2984 = vshll.u32 %v2927, 16
        %v2986 = vrot.slane %v2984, 5
        %v2987 = vsel %vm1515, %v2982, %v2986
        %v2989 = vshrl.u32 %v2928, 16
        %v2991 = vrot.slane %v2989, 4
        %v2992 = vshll.u32 %v2928, 16
        %v2994 = vrot.slane %v2992, 5
        %v2995 = vor.u32 %v2991, %v2994
        %v2996 = vrot.slane %v2995, 4
        %v2998 = vshll.u32 %v2929, 16
        %v3000 = vrot.slane %v2998, 5
        %v3001 = vsel %vm1515, %v2996, %v3000
        %v3003 = vshrl.u32 %v2930, 16
        %v3005 = vrot.slane %v3003, 4
        %v3006 = vshll.u32 %v2930, 16
        %v3008 = vrot.slane %v3006, 5
        %v3009 = vor.u32 %v3005, %v3008
        %v3010 = vrot.slane %v3009, 4
        %v3012 = vshll.u32 %v2931, 16
        %v3014 = vrot.slane %v3012, 5
        %v3015 = vsel %vm1515, %v3010, %v3014
        %v3017 = vshrl.u32 %v2932, 16
        %v3019 = vrot.slane %v3017, 4
        %v3020 = vshll.u32 %v2932, 16
        %v3022 = vrot.slane %v3020, 5
        %v3023 = vor.u32 %v3019, %v3022
        %v3024 = vrot.slane %v3023, 4
        %v3026 = vshll.u32 %v2933, 16
        %v3028 = vrot.slane %v3026, 5
        %v3029 = vsel %vm1515, %v3024, %v3028
        %v3031 = vshrl.u32 %v2934, 16
        %v3033 = vrot.slane %v3031, 4
        %v3034 = vshll.u32 %v2934, 16
        %v3036 = vrot.slane %v3034, 5
        %v3037 = vor.u32 %v3033, %v3036
        %v3038 = vrot.slane %v3037, 4
        %v3040 = vshll.u32 %v2935, 16
        %v3042 = vrot.slane %v3040, 5
        %v3043 = vsel %vm1515, %v3038, %v3042
        %v3045 = vshrl.u32 %v2936, 16
        %v3047 = vrot.slane %v3045, 4
        %v3048 = vshll.u32 %v2936, 16
        %v3050 = vrot.slane %v3048, 5
        %v3051 = vor.u32 %v3047, %v3050
        %v3052 = vrot.slane %v3051, 4
        %v3054 = vshll.u32 %v2937, 16
        %v3056 = vrot.slane %v3054, 5
        %v3057 = vsel %vm1515, %v3052, %v3056
        %v3059 = vshrl.u32 %v2938, 16
        %v3061 = vrot.slane %v3059, 4
        %v3062 = vshll.u32 %v2938, 16
        %v3064 = vrot.slane %v3062, 5
        %v3065 = vor.u32 %v3061, %v3064
        %v3066 = vrot.slane %v3065, 4
        %v3068 = vshll.u32 %v2939, 16
        %v3070 = vrot.slane %v3068, 5
        %v3071 = vsel %vm1515, %v3066, %v3070
        %v3073 = vshrl.u32 %v2940, 16
        %v3075 = vrot.slane %v3073, 4
        %v3076 = vshll.u32 %v2940, 16
        %v3078 = vrot.slane %v3076, 5
        %v3079 = vor.u32 %v3075, %v3078
        %v3080 = vrot.slane %v3079, 4
        %v3082 = vshll.u32 %v2941, 16
        %v3084 = vrot.slane %v3082, 5
        %v3085 = vsel %vm1515, %v3080, %v3084
        %v3087 = vshrl.u32 %v2942, 16
        %v3089 = vrot.slane %v3087, 4
        %v3090 = vshll.u32 %v2942, 16
        %v3092 = vrot.slane %v3090, 5
        %v3093 = vor.u32 %v3089, %v3092
        %v3094 = vrot.slane %v3093, 4
        %v3096 = vshll.u32 %v2943, 16
        %v3098 = vrot.slane %v3096, 5
        %v3099 = vsel %vm1515, %v3094, %v3098
        %v3101 = vshrl.u32 %v2944, 16
        %v3103 = vrot.slane %v3101, 4
        %v3104 = vshll.u32 %v2944, 16
        %v3106 = vrot.slane %v3104, 5
        %v3107 = vor.u32 %v3103, %v3106
        %v3108 = vrot.slane %v3107, 4
        %v3110 = vshll.u32 %v2945, 16
        %v3112 = vrot.slane %v3110, 5
        %v3113 = vsel %vm1515, %v3108, %v3112
        %v3115 = vshrl.u32 %v2946, 16
        %v3117 = vrot.slane %v3115, 4
        %v3118 = vshll.u32 %v2946, 16
        %v3120 = vrot.slane %v3118, 5
        %v3121 = vor.u32 %v3117, %v3120
        %v3122 = vrot.slane %v3121, 4
        %v3124 = vshll.u32 %v2947, 16
        %v3126 = vrot.slane %v3124, 5
        %v3127 = vsel %vm1515, %v3122, %v3126
        %v3129 = vshrl.u32 %v2948, 16
        %v3131 = vrot.slane %v3129, 4
        %v3132 = vshll.u32 %v2948, 16
        %v3134 = vrot.slane %v3132, 5
        %v3135 = vor.u32 %v3131, %v3134
        %v3136 = vrot.slane %v3135, 4
        %v3138 = vshll.u32 %v2949, 16
        %v3140 = vrot.slane %v3138, 5
        %v3141 = vsel %vm1515, %v3136, %v3140
        %v3143 = vshrl.u32 %v2950, 16
        %v3145 = vrot.slane %v3143, 4
        %v3146 = vshll.u32 %v2950, 16
        %v3148 = vrot.slane %v3146, 5
        %v3149 = vor.u32 %v3145, %v3148
        %v3150 = vrot.slane %v3149, 4
        %v3152 = vshll.u32 %v2951, 16
        %v3154 = vrot.slane %v3152, 5
        %v3155 = vsel %vm1515, %v3150, %v3154
        %v3157 = vshrl.u32 %v2952, 16
        %v3159 = vrot.slane %v3157, 4
        %v3160 = vshll.u32 %v2952, 16
        %v3162 = vrot.slane %v3160, 5
        %v3163 = vor.u32 %v3159, %v3162
        %v3164 = vrot.slane %v3163, 4
        %v3166 = vshll.u32 %v2953, 16
        %v3168 = vrot.slane %v3166, 5
        %v3169 = vsel %vm1515, %v3164, %v3168
        %v3171 = vshrl.u32 %v2954, 16
        %v3173 = vrot.slane %v3171, 4
        %v3174 = vshll.u32 %v2954, 16
        %v3176 = vrot.slane %v3174, 5
        %v3177 = vor.u32 %v3173, %v3176
        %v3178 = vrot.slane %v3177, 4
        %v3180 = vshll.u32 %v2955, 16
        %v3182 = vrot.slane %v3180, 5
        %v3183 = vsel %vm1515, %v3178, %v3182
        %v3185 = vshrl.u32 %v2956, 16
        %v3187 = vrot.slane %v3185, 4
        %v3188 = vshll.u32 %v2956, 16
        %v3190 = vrot.slane %v3188, 5
        %v3191 = vor.u32 %v3187, %v3190
        %v3192 = vrot.slane %v3191, 4
        %v3194 = vshll.u32 %v2957, 16
        %v3196 = vrot.slane %v3194, 5
        %v3197 = vsel %vm1515, %v3192, %v3196
        %v3199 = vshrl.u32 %v2958, 16
        %v3201 = vrot.slane %v3199, 4
        %v3202 = vshll.u32 %v2958, 16
        %v3204 = vrot.slane %v3202, 5
        %v3205 = vor.u32 %v3201, %v3204
        %v3206 = vrot.slane %v3205, 4
        %v3208 = vshll.u32 %v2959, 16
        %v3210 = vrot.slane %v3208, 5
        %v3211 = vsel %vm1515, %v3206, %v3210
        %v3213 = vshrl.u32 %v2960, 16
        %v3215 = vrot.slane %v3213, 4
        %v3216 = vshll.u32 %v2960, 16
        %v3218 = vrot.slane %v3216, 5
        %v3219 = vor.u32 %v3215, %v3218
        %v3220 = vrot.slane %v3219, 4
        %v3222 = vshll.u32 %v2961, 16
        %v3224 = vrot.slane %v3222, 5
        %v3225 = vsel %vm1515, %v3220, %v3224
        %v3227 = vshrl.u32 %v2962, 16
        %v3229 = vrot.slane %v3227, 4
        %v3230 = vshll.u32 %v2962, 16
        %v3232 = vrot.slane %v3230, 5
        %v3233 = vor.u32 %v3229, %v3232
        %v3234 = vrot.slane %v3233, 4
        %v3236 = vshll.u32 %v2963, 16
        %v3238 = vrot.slane %v3236, 5
        %v3239 = vsel %vm1515, %v3234, %v3238
        %v3241 = vshrl.u32 %v2964, 16
        %v3243 = vrot.slane %v3241, 4
        %v3244 = vshll.u32 %v2964, 16
        %v3246 = vrot.slane %v3244, 5
        %v3247 = vor.u32 %v3243, %v3246
        %v3248 = vrot.slane %v3247, 4
        %v3250 = vshll.u32 %v2965, 16
        %v3252 = vrot.slane %v3250, 5
        %v3253 = vsel %vm1515, %v3248, %v3252
        %v3255 = vshrl.u32 %v2966, 16
        %v3257 = vrot.slane %v3255, 4
        %v3258 = vshll.u32 %v2966, 16
        %v3260 = vrot.slane %v3258, 5
        %v3261 = vor.u32 %v3257, %v3260
        %v3262 = vrot.slane %v3261, 4
        %v3264 = vshll.u32 %v2967, 16
        %v3266 = vrot.slane %v3264, 5
        %v3267 = vsel %vm1515, %v3262, %v3266
        %v3269 = vshrl.u32 %v2968, 16
        %v3271 = vrot.slane %v3269, 4
        %v3272 = vshll.u32 %v2968, 16
        %v3274 = vrot.slane %v3272, 5
        %v3275 = vor.u32 %v3271, %v3274
        %v3276 = vrot.slane %v3275, 4
        %v3278 = vshll.u32 %v2969, 16
        %v3280 = vrot.slane %v3278, 5
        %v3281 = vsel %vm1515, %v3276, %v3280
        %v3283 = vshrl.u32 %v2970, 16
        %v3285 = vrot.slane %v3283, 4
        %v3286 = vshll.u32 %v2970, 16
        %v3288 = vrot.slane %v3286, 5
        %v3289 = vor.u32 %v3285, %v3288
        %v3290 = vrot.slane %v3289, 4
        %v3292 = vshll.u32 %v2971, 16
        %v3294 = vrot.slane %v3292, 5
        %v3295 = vsel %vm1515, %v3290, %v3294
        %v3297 = vshrl.u32 %v2972, 16
        %v3299 = vrot.slane %v3297, 4
        %v3300 = vshll.u32 %v2972, 16
        %v3302 = vrot.slane %v3300, 5
        %v3303 = vor.u32 %v3299, %v3302
        %v3304 = vrot.slane %v3303, 4
        %v3306 = vshll.u32 %v2973, 16
        %v3308 = vrot.slane %v3306, 5
        %v3309 = vsel %vm1515, %v3304, %v3308
        %s3310 = scalar_lea.vmem %s1, 10
        %v3311 = vld [vmem:[%s3310] sm:$0x3]
        %v3312 = vunpack.c.l.b16 %v2987
        %v3313 = vunpack.c.l.b16 %v3001
        %v3314 = vunpack.c.l.b16 %v3015
        %v3315 = vunpack.c.l.b16 %v3029
        %v3316 = vunpack.c.l.b16 %v3043
        %v3317 = vunpack.c.l.b16 %v3057
        %v3318 = vunpack.c.l.b16 %v3071
        %v3319 = vunpack.c.l.b16 %v3085
        %v3320 = vunpack.c.l.b16 %v3099
        %v3321 = vunpack.c.l.b16 %v3113
        %v3322 = vunpack.c.l.b16 %v3127
        %v3323 = vunpack.c.l.b16 %v3141
        %v3324 = vunpack.c.l.b16 %v3155
        %v3325 = vunpack.c.l.b16 %v3169
        %v3326 = vunpack.c.l.b16 %v3183
        %v3327 = vunpack.c.l.b16 %v3197
        %v3328 = vunpack.c.l.b16 %v3211
        %v3329 = vunpack.c.l.b16 %v3225
        %v3330 = vunpack.c.l.b16 %v3239
        %v3331 = vunpack.c.l.b16 %v3253
        %v3332 = vunpack.c.l.b16 %v3267
        %v3333 = vunpack.c.l.b16 %v3281
        %v3334 = vunpack.c.l.b16 %v3295
        %v3335 = vunpack.c.l.b16 %v3309
        %v3336 = vpack.c.b16 %v3313, %v3312
        %v3337 = vpack.c.b16 %v3315, %v3314
        %v3338 = vpack.c.b16 %v3317, %v3316
        %v3339 = vpack.c.b16 %v3319, %v3318
        %v3340 = vpack.c.b16 %v3321, %v3320
        %v3341 = vpack.c.b16 %v3323, %v3322
        %v3342 = vpack.c.b16 %v3325, %v3324
        %v3343 = vpack.c.b16 %v3327, %v3326
        %v3344 = vpack.c.b16 %v3329, %v3328
        %v3345 = vpack.c.b16 %v3331, %v3330
        %v3346 = vpack.c.b16 %v3333, %v3332
        %v3347 = vpack.c.b16 %v3335, %v3334
        %v3349 = vsel %vm1091, %v3336, 0
        %v3352 = vsel %vm1091, %v3337, 0
        %v3355 = vsel %vm1091, %v3338, 0
        %v3358 = vsel %vm1091, %v3339, 0
        %v3361 = vsel %vm1091, %v3340, 0
        %v3364 = vsel %vm1091, %v3341, 0
        %v3367 = vsel %vm1091, %v3342, 0
        %v3370 = vsel %vm1091, %v3343, 0
        %v3373 = vsel %vm1091, %v3344, 0
        %v3376 = vsel %vm1091, %v3345, 0
        %v3379 = vsel %vm1091, %v3346, 0
        %v3382 = vsel %vm1091, %v3347, 0
        %v3385 = vsel %vm1128, %v3311, 0
        %3387 = vmatprep.subr.bf16.mxu0 0
        %3388 = vmatpush1.bf16.msra.mxu0 0
        %3389 = vmatprep.subr.bf16.mxu0 0
        %3390 = vmatpush1.bf16.msra.mxu0 0
        %3391 = vmatprep.subr.bf16.mxu0 0
        %3392 = vmatpush1.bf16.msra.mxu0 0
        %3393 = vmatprep.subr.bf16.mxu0 0
        %3394 = vmatpush1.bf16.msra.mxu0 0
        %3395 = vmatprep.subr.bf16.mxu0 0
        %3396 = vmatpush1.bf16.msra.mxu0 0
        %3397 = vmatprep.subr.bf16.mxu0 0
        %3398 = vmatpush1.bf16.msra.mxu0 0
        %3399 = vmatprep.subr.bf16.mxu0 0
        %3400 = vmatpush1.bf16.msra.mxu0 0
        %3401 = vmatprep.subr.bf16.mxu0 0
        %3402 = vmatpush1.bf16.msra.mxu0 %v3385
        %3403 = vmatprep.subr.bf16.mxu0 0
        %3404 = vmatpush2.bf16.msra.mxu0 0
        %3405 = vmatprep.subr.bf16.mxu0 0
        %3406 = vmatpush2.bf16.msra.mxu0 0
        %3407 = vmatprep.subr.bf16.mxu0 0
        %3408 = vmatpush2.bf16.msra.mxu0 0
        %3409 = vmatprep.subr.bf16.mxu0 0
        %3410 = vmatpush2.bf16.msra.mxu0 0
        %3411 = vmatprep.subr.bf16.mxu0 0
        %3412 = vmatpush2.bf16.msra.mxu0 0
        %3413 = vmatprep.subr.bf16.mxu0 0
        %3414 = vmatpush2.bf16.msra.mxu0 0
        %3415 = vmatprep.subr.bf16.mxu0 0
        %3416 = vmatpush2.bf16.msra.mxu0 0
        %3417 = vmatprep.subr.bf16.mxu0 0
        %3418 = vmatpush2.bf16.msra.mxu0 0
        %3419 = vmatprep.mubr.bf16.mxu0 0
        %3420 = vmatmul.mubr.bf16.gmra.mxu0 %v3349
        %v3421 = vpop.f32.mrf.mxu0
        %v3422 = vadd.f32 0.0, %v3421
        %v3423 = vpop.f32.mrf.mxu0
        %v3424 = vpop.f32.mrf.mxu0
        %v3425 = vadd.f32 0.0, %v3424
        %v3426 = vpop.f32.mrf.mxu0
        %3427 = vmatprep.mubr.bf16.mxu0 0
        %3428 = vmatmul.mubr.bf16.gmra.mxu0 %v3352
        %v3429 = vpop.f32.mrf.mxu0
        %v3430 = vadd.f32 0.0, %v3429
        %v3431 = vpop.f32.mrf.mxu0
        %v3432 = vpop.f32.mrf.mxu0
        %v3433 = vadd.f32 0.0, %v3432
        %v3434 = vpop.f32.mrf.mxu0
        %3435 = vmatprep.mubr.bf16.mxu0 0
        %3436 = vmatmul.mubr.bf16.gmra.mxu0 %v3355
        %v3437 = vpop.f32.mrf.mxu0
        %v3438 = vadd.f32 0.0, %v3437
        %v3439 = vpop.f32.mrf.mxu0
        %v3440 = vpop.f32.mrf.mxu0
        %v3441 = vadd.f32 0.0, %v3440
        %v3442 = vpop.f32.mrf.mxu0
        %3443 = vmatprep.mubr.bf16.mxu0 0
        %3444 = vmatmul.mubr.bf16.gmra.mxu0 %v3358
        %v3445 = vpop.f32.mrf.mxu0
        %v3446 = vadd.f32 0.0, %v3445
        %v3447 = vpop.f32.mrf.mxu0
        %v3448 = vpop.f32.mrf.mxu0
        %v3449 = vadd.f32 0.0, %v3448
        %v3450 = vpop.f32.mrf.mxu0
        %3451 = vmatprep.mubr.bf16.mxu0 0
        %3452 = vmatmul.mubr.bf16.gmra.mxu0 %v3361
        %v3453 = vpop.f32.mrf.mxu0
        %v3454 = vadd.f32 0.0, %v3453
        %v3455 = vpop.f32.mrf.mxu0
        %v3456 = vpop.f32.mrf.mxu0
        %v3457 = vadd.f32 0.0, %v3456
        %v3458 = vpop.f32.mrf.mxu0
        %3459 = vmatprep.mubr.bf16.mxu0 0
        %3460 = vmatmul.mubr.bf16.gmra.mxu0 %v3364
        %v3461 = vpop.f32.mrf.mxu0
        %v3462 = vadd.f32 0.0, %v3461
        %v3463 = vpop.f32.mrf.mxu0
        %v3464 = vpop.f32.mrf.mxu0
        %v3465 = vadd.f32 0.0, %v3464
        %v3466 = vpop.f32.mrf.mxu0
        %3467 = vmatprep.mubr.bf16.mxu0 0
        %3468 = vmatmul.mubr.bf16.gmra.mxu0 %v3367
        %v3469 = vpop.f32.mrf.mxu0
        %v3470 = vadd.f32 0.0, %v3469
        %v3471 = vpop.f32.mrf.mxu0
        %v3472 = vpop.f32.mrf.mxu0
        %v3473 = vadd.f32 0.0, %v3472
        %v3474 = vpop.f32.mrf.mxu0
        %3475 = vmatprep.mubr.bf16.mxu0 0
        %3476 = vmatmul.mubr.bf16.gmra.mxu0 %v3370
        %v3477 = vpop.f32.mrf.mxu0
        %v3478 = vadd.f32 0.0, %v3477
        %v3479 = vpop.f32.mrf.mxu0
        %v3480 = vpop.f32.mrf.mxu0
        %v3481 = vadd.f32 0.0, %v3480
        %v3482 = vpop.f32.mrf.mxu0
        %3483 = vmatprep.mubr.bf16.mxu0 0
        %3484 = vmatmul.mubr.bf16.gmra.mxu0 %v3373
        %v3485 = vpop.f32.mrf.mxu0
        %v3486 = vadd.f32 0.0, %v3485
        %v3487 = vpop.f32.mrf.mxu0
        %v3488 = vpop.f32.mrf.mxu0
        %v3489 = vadd.f32 0.0, %v3488
        %v3490 = vpop.f32.mrf.mxu0
        %3491 = vmatprep.mubr.bf16.mxu0 0
        %3492 = vmatmul.mubr.bf16.gmra.mxu0 %v3376
        %v3493 = vpop.f32.mrf.mxu0
        %v3494 = vadd.f32 0.0, %v3493
        %v3495 = vpop.f32.mrf.mxu0
        %v3496 = vpop.f32.mrf.mxu0
        %v3497 = vadd.f32 0.0, %v3496
        %v3498 = vpop.f32.mrf.mxu0
        %3499 = vmatprep.mubr.bf16.mxu0 0
        %3500 = vmatmul.mubr.bf16.gmra.mxu0 %v3379
        %v3501 = vpop.f32.mrf.mxu0
        %v3502 = vadd.f32 0.0, %v3501
        %v3503 = vpop.f32.mrf.mxu0
        %v3504 = vpop.f32.mrf.mxu0
        %v3505 = vadd.f32 0.0, %v3504
        %v3506 = vpop.f32.mrf.mxu0
        %3507 = vmatprep.mubr.bf16.mxu0 0
        %3508 = vmatmul.mubr.bf16.gmra.mxu0 %v3382
        %v3509 = vpop.f32.mrf.mxu0
        %v3510 = vadd.f32 0.0, %v3509
        %v3511 = vpop.f32.mrf.mxu0
        %v3512 = vpop.f32.mrf.mxu0
        %v3513 = vadd.f32 0.0, %v3512
        %v3514 = vpop.f32.mrf.mxu0
        %3515 = vdwg.mxu0
        %v3516 = vadd.f32 %v2902, %v3422
        %v3517 = vadd.f32 %v2903, %v3425
        %v3518 = vadd.f32 %v2904, %v3430
        %v3519 = vadd.f32 %v2905, %v3433
        %v3520 = vadd.f32 %v2906, %v3438
        %v3521 = vadd.f32 %v2907, %v3441
        %v3522 = vadd.f32 %v2908, %v3446
        %v3523 = vadd.f32 %v2909, %v3449
        %v3524 = vadd.f32 %v2910, %v3454
        %v3525 = vadd.f32 %v2911, %v3457
        %v3526 = vadd.f32 %v2912, %v3462
        %v3527 = vadd.f32 %v2913, %v3465
        %v3528 = vadd.f32 %v2914, %v3470
        %v3529 = vadd.f32 %v2915, %v3473
        %v3530 = vadd.f32 %v2916, %v3478
        %v3531 = vadd.f32 %v2917, %v3481
        %v3532 = vadd.f32 %v2918, %v3486
        %v3533 = vadd.f32 %v2919, %v3489
        %v3534 = vadd.f32 %v2920, %v3494
        %v3535 = vadd.f32 %v2921, %v3497
        %v3536 = vadd.f32 %v2922, %v3502
        %v3537 = vadd.f32 %v2923, %v3505
        %v3538 = vadd.f32 %v2924, %v3510
        %v3539 = vadd.f32 %v2925, %v3513
        %s3540 = scalar_lea.vmem [#allocation2], 24
        %v3541 = vld [vmem:[%s3540] sm:$0x8]
        %v3542 = vld [vmem:[%s3540 + $0x4] sm:$0xf]
        %v3543 = vld [vmem:[%s3540 + $0xc] sm:$0x8]
        %v3544 = vld [vmem:[%s3540 + $0x10] sm:$0xf]
        %v3545 = vld [vmem:[%s3540 + $0x18] sm:$0x8]
        %v3546 = vld [vmem:[%s3540 + $0x1c] sm:$0xf]
        %v3547 = vld [vmem:[%s3540 + $0x24] sm:$0x8]
        %v3548 = vld [vmem:[%s3540 + $0x28] sm:$0xf]
        %v3549 = vld [vmem:[%s3540 + $0x30] sm:$0x8]
        %v3550 = vld [vmem:[%s3540 + $0x34] sm:$0xf]
        %v3551 = vld [vmem:[%s3540 + $0x3c] sm:$0x8]
        %v3552 = vld [vmem:[%s3540 + $0x40] sm:$0xf]
        %v3553 = vld [vmem:[%s3540 + $0x48] sm:$0x8]
        %v3554 = vld [vmem:[%s3540 + $0x4c] sm:$0xf]
        %v3555 = vld [vmem:[%s3540 + $0x54] sm:$0x8]
        %v3556 = vld [vmem:[%s3540 + $0x58] sm:$0xf]
        %v3557 = vld [vmem:[%s3540 + $0x78] sm:$0x8]
        %v3558 = vld [vmem:[%s3540 + $0x7c] sm:$0xf]
        %v3559 = vld [vmem:[%s3540 + $0x84] sm:$0x8]
        %v3560 = vld [vmem:[%s3540 + $0x88] sm:$0xf]
        %v3561 = vld [vmem:[%s3540 + $0x90] sm:$0x8]
        %v3562 = vld [vmem:[%s3540 + $0x94] sm:$0xf]
        %v3563 = vld [vmem:[%s3540 + $0x9c] sm:$0x8]
        %v3564 = vld [vmem:[%s3540 + $0xa0] sm:$0xf]
        %v3565 = vld [vmem:[%s3540 + $0xa8] sm:$0x8]
        %v3566 = vld [vmem:[%s3540 + $0xac] sm:$0xf]
        %v3567 = vld [vmem:[%s3540 + $0xb4] sm:$0x8]
        %v3568 = vld [vmem:[%s3540 + $0xb8] sm:$0xf]
        %v3569 = vld [vmem:[%s3540 + $0xc0] sm:$0x8]
        %v3570 = vld [vmem:[%s3540 + $0xc4] sm:$0xf]
        %v3571 = vld [vmem:[%s3540 + $0xcc] sm:$0x8]
        %v3572 = vld [vmem:[%s3540 + $0xd0] sm:$0xf]
        %v3573 = vld [vmem:[%s3540 + $0xf0] sm:$0x8]
        %v3574 = vld [vmem:[%s3540 + $0xf4] sm:$0xf]
        %v3575 = vld [vmem:[%s3540 + $0xfc] sm:$0x8]
        %v3576 = vld [vmem:[%s3540 + $0x100] sm:$0xf]
        %v3577 = vld [vmem:[%s3540 + $0x108] sm:$0x8]
        %v3578 = vld [vmem:[%s3540 + $0x10c] sm:$0xf]
        %v3579 = vld [vmem:[%s3540 + $0x114] sm:$0x8]
        %v3580 = vld [vmem:[%s3540 + $0x118] sm:$0xf]
        %v3581 = vld [vmem:[%s3540 + $0x120] sm:$0x8]
        %v3582 = vld [vmem:[%s3540 + $0x124] sm:$0xf]
        %v3583 = vld [vmem:[%s3540 + $0x12c] sm:$0x8]
        %v3584 = vld [vmem:[%s3540 + $0x130] sm:$0xf]
        %v3585 = vld [vmem:[%s3540 + $0x138] sm:$0x8]
        %v3586 = vld [vmem:[%s3540 + $0x13c] sm:$0xf]
        %v3587 = vld [vmem:[%s3540 + $0x144] sm:$0x8]
        %v3588 = vld [vmem:[%s3540 + $0x148] sm:$0xf]
        %v3590 = vshrl.u32 %v3541, 16
        %v3592 = vrot.slane %v3590, 7
        %v3593 = vrot.slane %v3592, 4
        %v3595 = vshrl.u32 %v3542, 16
        %v3597 = vrot.slane %v3595, 7
        %v3598 = vshll.u32 %v3542, 16
        %v3600 = vor.u32 %v3597, %v3598
        %v3601 = vsel %vm715, %v3593, %v3600
        %v3603 = vshrl.u32 %v3543, 16
        %v3605 = vrot.slane %v3603, 7
        %v3606 = vrot.slane %v3605, 4
        %v3608 = vshrl.u32 %v3544, 16
        %v3610 = vrot.slane %v3608, 7
        %v3611 = vshll.u32 %v3544, 16
        %v3613 = vor.u32 %v3610, %v3611
        %v3614 = vsel %vm715, %v3606, %v3613
        %v3616 = vshrl.u32 %v3545, 16
        %v3618 = vrot.slane %v3616, 7
        %v3619 = vrot.slane %v3618, 4
        %v3621 = vshrl.u32 %v3546, 16
        %v3623 = vrot.slane %v3621, 7
        %v3624 = vshll.u32 %v3546, 16
        %v3626 = vor.u32 %v3623, %v3624
        %v3627 = vsel %vm715, %v3619, %v3626
        %v3629 = vshrl.u32 %v3547, 16
        %v3631 = vrot.slane %v3629, 7
        %v3632 = vrot.slane %v3631, 4
        %v3634 = vshrl.u32 %v3548, 16
        %v3636 = vrot.slane %v3634, 7
        %v3637 = vshll.u32 %v3548, 16
        %v3639 = vor.u32 %v3636, %v3637
        %v3640 = vsel %vm715, %v3632, %v3639
        %v3642 = vshrl.u32 %v3549, 16
        %v3644 = vrot.slane %v3642, 7
        %v3645 = vrot.slane %v3644, 4
        %v3647 = vshrl.u32 %v3550, 16
        %v3649 = vrot.slane %v3647, 7
        %v3650 = vshll.u32 %v3550, 16
        %v3652 = vor.u32 %v3649, %v3650
        %v3653 = vsel %vm715, %v3645, %v3652
        %v3655 = vshrl.u32 %v3551, 16
        %v3657 = vrot.slane %v3655, 7
        %v3658 = vrot.slane %v3657, 4
        %v3660 = vshrl.u32 %v3552, 16
        %v3662 = vrot.slane %v3660, 7
        %v3663 = vshll.u32 %v3552, 16
        %v3665 = vor.u32 %v3662, %v3663
        %v3666 = vsel %vm715, %v3658, %v3665
        %v3668 = vshrl.u32 %v3553, 16
        %v3670 = vrot.slane %v3668, 7
        %v3671 = vrot.slane %v3670, 4
        %v3673 = vshrl.u32 %v3554, 16
        %v3675 = vrot.slane %v3673, 7
        %v3676 = vshll.u32 %v3554, 16
        %v3678 = vor.u32 %v3675, %v3676
        %v3679 = vsel %vm715, %v3671, %v3678
        %v3681 = vshrl.u32 %v3555, 16
        %v3683 = vrot.slane %v3681, 7
        %v3684 = vrot.slane %v3683, 4
        %v3686 = vshrl.u32 %v3556, 16
        %v3688 = vrot.slane %v3686, 7
        %v3689 = vshll.u32 %v3556, 16
        %v3691 = vor.u32 %v3688, %v3689
        %v3692 = vsel %vm715, %v3684, %v3691
        %v3694 = vshrl.u32 %v3557, 16
        %v3696 = vrot.slane %v3694, 7
        %v3697 = vrot.slane %v3696, 4
        %v3699 = vshrl.u32 %v3558, 16
        %v3701 = vrot.slane %v3699, 7
        %v3702 = vshll.u32 %v3558, 16
        %v3704 = vor.u32 %v3701, %v3702
        %v3705 = vsel %vm715, %v3697, %v3704
        %v3707 = vshrl.u32 %v3559, 16
        %v3709 = vrot.slane %v3707, 7
        %v3710 = vrot.slane %v3709, 4
        %v3712 = vshrl.u32 %v3560, 16
        %v3714 = vrot.slane %v3712, 7
        %v3715 = vshll.u32 %v3560, 16
        %v3717 = vor.u32 %v3714, %v3715
        %v3718 = vsel %vm715, %v3710, %v3717
        %v3720 = vshrl.u32 %v3561, 16
        %v3722 = vrot.slane %v3720, 7
        %v3723 = vrot.slane %v3722, 4
        %v3725 = vshrl.u32 %v3562, 16
        %v3727 = vrot.slane %v3725, 7
        %v3728 = vshll.u32 %v3562, 16
        %v3730 = vor.u32 %v3727, %v3728
        %v3731 = vsel %vm715, %v3723, %v3730
        %v3733 = vshrl.u32 %v3563, 16
        %v3735 = vrot.slane %v3733, 7
        %v3736 = vrot.slane %v3735, 4
        %v3738 = vshrl.u32 %v3564, 16
        %v3740 = vrot.slane %v3738, 7
        %v3741 = vshll.u32 %v3564, 16
        %v3743 = vor.u32 %v3740, %v3741
        %v3744 = vsel %vm715, %v3736, %v3743
        %v3746 = vshrl.u32 %v3565, 16
        %v3748 = vrot.slane %v3746, 7
        %v3749 = vrot.slane %v3748, 4
        %v3751 = vshrl.u32 %v3566, 16
        %v3753 = vrot.slane %v3751, 7
        %v3754 = vshll.u32 %v3566, 16
        %v3756 = vor.u32 %v3753, %v3754
        %v3757 = vsel %vm715, %v3749, %v3756
        %v3759 = vshrl.u32 %v3567, 16
        %v3761 = vrot.slane %v3759, 7
        %v3762 = vrot.slane %v3761, 4
        %v3764 = vshrl.u32 %v3568, 16
        %v3766 = vrot.slane %v3764, 7
        %v3767 = vshll.u32 %v3568, 16
        %v3769 = vor.u32 %v3766, %v3767
        %v3770 = vsel %vm715, %v3762, %v3769
        %v3772 = vshrl.u32 %v3569, 16
        %v3774 = vrot.slane %v3772, 7
        %v3775 = vrot.slane %v3774, 4
        %v3777 = vshrl.u32 %v3570, 16
        %v3779 = vrot.slane %v3777, 7
        %v3780 = vshll.u32 %v3570, 16
        %v3782 = vor.u32 %v3779, %v3780
        %v3783 = vsel %vm715, %v3775, %v3782
        %v3785 = vshrl.u32 %v3571, 16
        %v3787 = vrot.slane %v3785, 7
        %v3788 = vrot.slane %v3787, 4
        %v3790 = vshrl.u32 %v3572, 16
        %v3792 = vrot.slane %v3790, 7
        %v3793 = vshll.u32 %v3572, 16
        %v3795 = vor.u32 %v3792, %v3793
        %v3796 = vsel %vm715, %v3788, %v3795
        %v3798 = vshrl.u32 %v3573, 16
        %v3800 = vrot.slane %v3798, 7
        %v3801 = vrot.slane %v3800, 4
        %v3803 = vshrl.u32 %v3574, 16
        %v3805 = vrot.slane %v3803, 7
        %v3806 = vshll.u32 %v3574, 16
        %v3808 = vor.u32 %v3805, %v3806
        %v3809 = vsel %vm715, %v3801, %v3808
        %v3811 = vshrl.u32 %v3575, 16
        %v3813 = vrot.slane %v3811, 7
        %v3814 = vrot.slane %v3813, 4
        %v3816 = vshrl.u32 %v3576, 16
        %v3818 = vrot.slane %v3816, 7
        %v3819 = vshll.u32 %v3576, 16
        %v3821 = vor.u32 %v3818, %v3819
        %v3822 = vsel %vm715, %v3814, %v3821
        %v3824 = vshrl.u32 %v3577, 16
        %v3826 = vrot.slane %v3824, 7
        %v3827 = vrot.slane %v3826, 4
        %v3829 = vshrl.u32 %v3578, 16
        %v3831 = vrot.slane %v3829, 7
        %v3832 = vshll.u32 %v3578, 16
        %v3834 = vor.u32 %v3831, %v3832
        %v3835 = vsel %vm715, %v3827, %v3834
        %v3837 = vshrl.u32 %v3579, 16
        %v3839 = vrot.slane %v3837, 7
        %v3840 = vrot.slane %v3839, 4
        %v3842 = vshrl.u32 %v3580, 16
        %v3844 = vrot.slane %v3842, 7
        %v3845 = vshll.u32 %v3580, 16
        %v3847 = vor.u32 %v3844, %v3845
        %v3848 = vsel %vm715, %v3840, %v3847
        %v3850 = vshrl.u32 %v3581, 16
        %v3852 = vrot.slane %v3850, 7
        %v3853 = vrot.slane %v3852, 4
        %v3855 = vshrl.u32 %v3582, 16
        %v3857 = vrot.slane %v3855, 7
        %v3858 = vshll.u32 %v3582, 16
        %v3860 = vor.u32 %v3857, %v3858
        %v3861 = vsel %vm715, %v3853, %v3860
        %v3863 = vshrl.u32 %v3583, 16
        %v3865 = vrot.slane %v3863, 7
        %v3866 = vrot.slane %v3865, 4
        %v3868 = vshrl.u32 %v3584, 16
        %v3870 = vrot.slane %v3868, 7
        %v3871 = vshll.u32 %v3584, 16
        %v3873 = vor.u32 %v3870, %v3871
        %v3874 = vsel %vm715, %v3866, %v3873
        %v3876 = vshrl.u32 %v3585, 16
        %v3878 = vrot.slane %v3876, 7
        %v3879 = vrot.slane %v3878, 4
        %v3881 = vshrl.u32 %v3586, 16
        %v3883 = vrot.slane %v3881, 7
        %v3884 = vshll.u32 %v3586, 16
        %v3886 = vor.u32 %v3883, %v3884
        %v3887 = vsel %vm715, %v3879, %v3886
        %v3889 = vshrl.u32 %v3587, 16
        %v3891 = vrot.slane %v3889, 7
        %v3892 = vrot.slane %v3891, 4
        %v3894 = vshrl.u32 %v3588, 16
        %v3896 = vrot.slane %v3894, 7
        %v3897 = vshll.u32 %v3588, 16
        %v3899 = vor.u32 %v3896, %v3897
        %v3900 = vsel %vm715, %v3892, %v3899
        %s3901 = scalar_lea.vmem %s1, 12
        %v3902 = vld [vmem:[%s3901] sm:$0x3]
        %v3903 = vunpack.c.l.b16 %v3601
        %v3904 = vunpack.c.l.b16 %v3614
        %v3905 = vunpack.c.l.b16 %v3627
        %v3906 = vunpack.c.l.b16 %v3640
        %v3907 = vunpack.c.l.b16 %v3653
        %v3908 = vunpack.c.l.b16 %v3666
        %v3909 = vunpack.c.l.b16 %v3679
        %v3910 = vunpack.c.l.b16 %v3692
        %v3911 = vunpack.c.l.b16 %v3705
        %v3912 = vunpack.c.l.b16 %v3718
        %v3913 = vunpack.c.l.b16 %v3731
        %v3914 = vunpack.c.l.b16 %v3744
        %v3915 = vunpack.c.l.b16 %v3757
        %v3916 = vunpack.c.l.b16 %v3770
        %v3917 = vunpack.c.l.b16 %v3783
        %v3918 = vunpack.c.l.b16 %v3796
        %v3919 = vunpack.c.l.b16 %v3809
        %v3920 = vunpack.c.l.b16 %v3822
        %v3921 = vunpack.c.l.b16 %v3835
        %v3922 = vunpack.c.l.b16 %v3848
        %v3923 = vunpack.c.l.b16 %v3861
        %v3924 = vunpack.c.l.b16 %v3874
        %v3925 = vunpack.c.l.b16 %v3887
        %v3926 = vunpack.c.l.b16 %v3900
        %v3927 = vpack.c.b16 %v3904, %v3903
        %v3928 = vpack.c.b16 %v3906, %v3905
        %v3929 = vpack.c.b16 %v3908, %v3907
        %v3930 = vpack.c.b16 %v3910, %v3909
        %v3931 = vpack.c.b16 %v3912, %v3911
        %v3932 = vpack.c.b16 %v3914, %v3913
        %v3933 = vpack.c.b16 %v3916, %v3915
        %v3934 = vpack.c.b16 %v3918, %v3917
        %v3935 = vpack.c.b16 %v3920, %v3919
        %v3936 = vpack.c.b16 %v3922, %v3921
        %v3937 = vpack.c.b16 %v3924, %v3923
        %v3938 = vpack.c.b16 %v3926, %v3925
        %v3940 = vsel %vm1091, %v3927, 0
        %v3943 = vsel %vm1091, %v3928, 0
        %v3946 = vsel %vm1091, %v3929, 0
        %v3949 = vsel %vm1091, %v3930, 0
        %v3952 = vsel %vm1091, %v3931, 0
        %v3955 = vsel %vm1091, %v3932, 0
        %v3958 = vsel %vm1091, %v3933, 0
        %v3961 = vsel %vm1091, %v3934, 0
        %v3964 = vsel %vm1091, %v3935, 0
        %v3967 = vsel %vm1091, %v3936, 0
        %v3970 = vsel %vm1091, %v3937, 0
        %v3973 = vsel %vm1091, %v3938, 0
        %v3976 = vsel %vm1128, %v3902, 0
        %3978 = vmatprep.subr.bf16.mxu0 0
        %3979 = vmatpush1.bf16.msra.mxu0 0
        %3980 = vmatprep.subr.bf16.mxu0 0
        %3981 = vmatpush1.bf16.msra.mxu0 0
        %3982 = vmatprep.subr.bf16.mxu0 0
        %3983 = vmatpush1.bf16.msra.mxu0 0
        %3984 = vmatprep.subr.bf16.mxu0 0
        %3985 = vmatpush1.bf16.msra.mxu0 0
        %3986 = vmatprep.subr.bf16.mxu0 0
        %3987 = vmatpush1.bf16.msra.mxu0 0
        %3988 = vmatprep.subr.bf16.mxu0 0
        %3989 = vmatpush1.bf16.msra.mxu0 0
        %3990 = vmatprep.subr.bf16.mxu0 0
        %3991 = vmatpush1.bf16.msra.mxu0 0
        %3992 = vmatprep.subr.bf16.mxu0 0
        %3993 = vmatpush1.bf16.msra.mxu0 %v3976
        %3994 = vmatprep.subr.bf16.mxu0 0
        %3995 = vmatpush2.bf16.msra.mxu0 0
        %3996 = vmatprep.subr.bf16.mxu0 0
        %3997 = vmatpush2.bf16.msra.mxu0 0
        %3998 = vmatprep.subr.bf16.mxu0 0
        %3999 = vmatpush2.bf16.msra.mxu0 0
        %4000 = vmatprep.subr.bf16.mxu0 0
        %4001 = vmatpush2.bf16.msra.mxu0 0
        %4002 = vmatprep.subr.bf16.mxu0 0
        %4003 = vmatpush2.bf16.msra.mxu0 0
        %4004 = vmatprep.subr.bf16.mxu0 0
        %4005 = vmatpush2.bf16.msra.mxu0 0
        %4006 = vmatprep.subr.bf16.mxu0 0
        %4007 = vmatpush2.bf16.msra.mxu0 0
        %4008 = vmatprep.subr.bf16.mxu0 0
        %4009 = vmatpush2.bf16.msra.mxu0 0
        %4010 = vmatprep.mubr.bf16.mxu0 0
        %4011 = vmatmul.mubr.bf16.gmra.mxu0 %v3940
        %v4012 = vpop.f32.mrf.mxu0
        %v4013 = vadd.f32 0.0, %v4012
        %v4014 = vpop.f32.mrf.mxu0
        %v4015 = vpop.f32.mrf.mxu0
        %v4016 = vadd.f32 0.0, %v4015
        %v4017 = vpop.f32.mrf.mxu0
        %4018 = vmatprep.mubr.bf16.mxu0 0
        %4019 = vmatmul.mubr.bf16.gmra.mxu0 %v3943
        %v4020 = vpop.f32.mrf.mxu0
        %v4021 = vadd.f32 0.0, %v4020
        %v4022 = vpop.f32.mrf.mxu0
        %v4023 = vpop.f32.mrf.mxu0
        %v4024 = vadd.f32 0.0, %v4023
        %v4025 = vpop.f32.mrf.mxu0
        %4026 = vmatprep.mubr.bf16.mxu0 0
        %4027 = vmatmul.mubr.bf16.gmra.mxu0 %v3946
        %v4028 = vpop.f32.mrf.mxu0
        %v4029 = vadd.f32 0.0, %v4028
        %v4030 = vpop.f32.mrf.mxu0
        %v4031 = vpop.f32.mrf.mxu0
        %v4032 = vadd.f32 0.0, %v4031
        %v4033 = vpop.f32.mrf.mxu0
        %4034 = vmatprep.mubr.bf16.mxu0 0
        %4035 = vmatmul.mubr.bf16.gmra.mxu0 %v3949
        %v4036 = vpop.f32.mrf.mxu0
        %v4037 = vadd.f32 0.0, %v4036
        %v4038 = vpop.f32.mrf.mxu0
        %v4039 = vpop.f32.mrf.mxu0
        %v4040 = vadd.f32 0.0, %v4039
        %v4041 = vpop.f32.mrf.mxu0
        %4042 = vmatprep.mubr.bf16.mxu0 0
        %4043 = vmatmul.mubr.bf16.gmra.mxu0 %v3952
        %v4044 = vpop.f32.mrf.mxu0
        %v4045 = vadd.f32 0.0, %v4044
        %v4046 = vpop.f32.mrf.mxu0
        %v4047 = vpop.f32.mrf.mxu0
        %v4048 = vadd.f32 0.0, %v4047
        %v4049 = vpop.f32.mrf.mxu0
        %4050 = vmatprep.mubr.bf16.mxu0 0
        %4051 = vmatmul.mubr.bf16.gmra.mxu0 %v3955
        %v4052 = vpop.f32.mrf.mxu0
        %v4053 = vadd.f32 0.0, %v4052
        %v4054 = vpop.f32.mrf.mxu0
        %v4055 = vpop.f32.mrf.mxu0
        %v4056 = vadd.f32 0.0, %v4055
        %v4057 = vpop.f32.mrf.mxu0
        %4058 = vmatprep.mubr.bf16.mxu0 0
        %4059 = vmatmul.mubr.bf16.gmra.mxu0 %v3958
        %v4060 = vpop.f32.mrf.mxu0
        %v4061 = vadd.f32 0.0, %v4060
        %v4062 = vpop.f32.mrf.mxu0
        %v4063 = vpop.f32.mrf.mxu0
        %v4064 = vadd.f32 0.0, %v4063
        %v4065 = vpop.f32.mrf.mxu0
        %4066 = vmatprep.mubr.bf16.mxu0 0
        %4067 = vmatmul.mubr.bf16.gmra.mxu0 %v3961
        %v4068 = vpop.f32.mrf.mxu0
        %v4069 = vadd.f32 0.0, %v4068
        %v4070 = vpop.f32.mrf.mxu0
        %v4071 = vpop.f32.mrf.mxu0
        %v4072 = vadd.f32 0.0, %v4071
        %v4073 = vpop.f32.mrf.mxu0
        %4074 = vmatprep.mubr.bf16.mxu0 0
        %4075 = vmatmul.mubr.bf16.gmra.mxu0 %v3964
        %v4076 = vpop.f32.mrf.mxu0
        %v4077 = vadd.f32 0.0, %v4076
        %v4078 = vpop.f32.mrf.mxu0
        %v4079 = vpop.f32.mrf.mxu0
        %v4080 = vadd.f32 0.0, %v4079
        %v4081 = vpop.f32.mrf.mxu0
        %4082 = vmatprep.mubr.bf16.mxu0 0
        %4083 = vmatmul.mubr.bf16.gmra.mxu0 %v3967
        %v4084 = vpop.f32.mrf.mxu0
        %v4085 = vadd.f32 0.0, %v4084
        %v4086 = vpop.f32.mrf.mxu0
        %v4087 = vpop.f32.mrf.mxu0
        %v4088 = vadd.f32 0.0, %v4087
        %v4089 = vpop.f32.mrf.mxu0
        %4090 = vmatprep.mubr.bf16.mxu0 0
        %4091 = vmatmul.mubr.bf16.gmra.mxu0 %v3970
        %v4092 = vpop.f32.mrf.mxu0
        %v4093 = vadd.f32 0.0, %v4092
        %v4094 = vpop.f32.mrf.mxu0
        %v4095 = vpop.f32.mrf.mxu0
        %v4096 = vadd.f32 0.0, %v4095
        %v4097 = vpop.f32.mrf.mxu0
        %4098 = vmatprep.mubr.bf16.mxu0 0
        %4099 = vmatmul.mubr.bf16.gmra.mxu0 %v3973
        %v4100 = vpop.f32.mrf.mxu0
        %v4101 = vadd.f32 0.0, %v4100
        %v4102 = vpop.f32.mrf.mxu0
        %v4103 = vpop.f32.mrf.mxu0
        %v4104 = vadd.f32 0.0, %v4103
        %v4105 = vpop.f32.mrf.mxu0
        %4106 = vdwg.mxu0
        %v4107 = vadd.f32 %v3516, %v4013
        %v4108 = vadd.f32 %v3517, %v4016
        %v4109 = vadd.f32 %v3518, %v4021
        %v4110 = vadd.f32 %v3519, %v4024
        %v4111 = vadd.f32 %v3520, %v4029
        %v4112 = vadd.f32 %v3521, %v4032
        %v4113 = vadd.f32 %v3522, %v4037
        %v4114 = vadd.f32 %v3523, %v4040
        %v4115 = vadd.f32 %v3524, %v4045
        %v4116 = vadd.f32 %v3525, %v4048
        %v4117 = vadd.f32 %v3526, %v4053
        %v4118 = vadd.f32 %v3527, %v4056
        %v4119 = vadd.f32 %v3528, %v4061
        %v4120 = vadd.f32 %v3529, %v4064
        %v4121 = vadd.f32 %v3530, %v4069
        %v4122 = vadd.f32 %v3531, %v4072
        %v4123 = vadd.f32 %v3532, %v4077
        %v4124 = vadd.f32 %v3533, %v4080
        %v4125 = vadd.f32 %v3534, %v4085
        %v4126 = vadd.f32 %v3535, %v4088
        %v4127 = vadd.f32 %v3536, %v4093
        %v4128 = vadd.f32 %v3537, %v4096
        %v4129 = vadd.f32 %v3538, %v4101
        %v4130 = vadd.f32 %v3539, %v4104
        %s4131 = scalar_lea.vmem %s1, 14
        %v4132 = vld [vmem:[%s4131] sm:$0x3]
        %v4157 = vunpack.c.l.b16 %v3542
        %v4158 = vunpack.c.l.b16 %v3544
        %v4159 = vunpack.c.l.b16 %v3546
        %v4160 = vunpack.c.l.b16 %v3548
        %v4161 = vunpack.c.l.b16 %v3550
        %v4162 = vunpack.c.l.b16 %v3552
        %v4163 = vunpack.c.l.b16 %v3554
        %v4164 = vunpack.c.l.b16 %v3556
        %v4165 = vunpack.c.l.b16 %v3558
        %v4166 = vunpack.c.l.b16 %v3560
        %v4167 = vunpack.c.l.b16 %v3562
        %v4168 = vunpack.c.l.b16 %v3564
        %v4169 = vunpack.c.l.b16 %v3566
        %v4170 = vunpack.c.l.b16 %v3568
        %v4171 = vunpack.c.l.b16 %v3570
        %v4172 = vunpack.c.l.b16 %v3572
        %v4173 = vunpack.c.l.b16 %v3574
        %v4174 = vunpack.c.l.b16 %v3576
        %v4175 = vunpack.c.l.b16 %v3578
        %v4176 = vunpack.c.l.b16 %v3580
        %v4177 = vunpack.c.l.b16 %v3582
        %v4178 = vunpack.c.l.b16 %v3584
        %v4179 = vunpack.c.l.b16 %v3586
        %v4180 = vunpack.c.l.b16 %v3588
        %v4181 = vpack.c.b16 %v4158, %v4157
        %v4182 = vpack.c.b16 %v4160, %v4159
        %v4183 = vpack.c.b16 %v4162, %v4161
        %v4184 = vpack.c.b16 %v4164, %v4163
        %v4185 = vpack.c.b16 %v4166, %v4165
        %v4186 = vpack.c.b16 %v4168, %v4167
        %v4187 = vpack.c.b16 %v4170, %v4169
        %v4188 = vpack.c.b16 %v4172, %v4171
        %v4189 = vpack.c.b16 %v4174, %v4173
        %v4190 = vpack.c.b16 %v4176, %v4175
        %v4191 = vpack.c.b16 %v4178, %v4177
        %v4192 = vpack.c.b16 %v4180, %v4179
        %v4194 = vsel %vm1091, %v4181, 0
        %v4197 = vsel %vm1091, %v4182, 0
        %v4200 = vsel %vm1091, %v4183, 0
        %v4203 = vsel %vm1091, %v4184, 0
        %v4206 = vsel %vm1091, %v4185, 0
        %v4209 = vsel %vm1091, %v4186, 0
        %v4212 = vsel %vm1091, %v4187, 0
        %v4215 = vsel %vm1091, %v4188, 0
        %v4218 = vsel %vm1091, %v4189, 0
        %v4221 = vsel %vm1091, %v4190, 0
        %v4224 = vsel %vm1091, %v4191, 0
        %v4227 = vsel %vm1091, %v4192, 0
        %v4230 = vsel %vm1128, %v4132, 0
        %4232 = vmatprep.subr.bf16.mxu0 0
        %4233 = vmatpush1.bf16.msra.mxu0 0
        %4234 = vmatprep.subr.bf16.mxu0 0
        %4235 = vmatpush1.bf16.msra.mxu0 0
        %4236 = vmatprep.subr.bf16.mxu0 0
        %4237 = vmatpush1.bf16.msra.mxu0 0
        %4238 = vmatprep.subr.bf16.mxu0 0
        %4239 = vmatpush1.bf16.msra.mxu0 0
        %4240 = vmatprep.subr.bf16.mxu0 0
        %4241 = vmatpush1.bf16.msra.mxu0 0
        %4242 = vmatprep.subr.bf16.mxu0 0
        %4243 = vmatpush1.bf16.msra.mxu0 0
        %4244 = vmatprep.subr.bf16.mxu0 0
        %4245 = vmatpush1.bf16.msra.mxu0 0
        %4246 = vmatprep.subr.bf16.mxu0 0
        %4247 = vmatpush1.bf16.msra.mxu0 %v4230
        %4248 = vmatprep.subr.bf16.mxu0 0
        %4249 = vmatpush2.bf16.msra.mxu0 0
        %4250 = vmatprep.subr.bf16.mxu0 0
        %4251 = vmatpush2.bf16.msra.mxu0 0
        %4252 = vmatprep.subr.bf16.mxu0 0
        %4253 = vmatpush2.bf16.msra.mxu0 0
        %4254 = vmatprep.subr.bf16.mxu0 0
        %4255 = vmatpush2.bf16.msra.mxu0 0
        %4256 = vmatprep.subr.bf16.mxu0 0
        %4257 = vmatpush2.bf16.msra.mxu0 0
        %4258 = vmatprep.subr.bf16.mxu0 0
        %4259 = vmatpush2.bf16.msra.mxu0 0
        %4260 = vmatprep.subr.bf16.mxu0 0
        %4261 = vmatpush2.bf16.msra.mxu0 0
        %4262 = vmatprep.subr.bf16.mxu0 0
        %4263 = vmatpush2.bf16.msra.mxu0 0
        %4264 = vmatprep.mubr.bf16.mxu0 0
        %4265 = vmatmul.mubr.bf16.gmra.mxu0 %v4194
        %v4266 = vpop.f32.mrf.mxu0
        %v4267 = vadd.f32 0.0, %v4266
        %v4268 = vpop.f32.mrf.mxu0
        %v4269 = vpop.f32.mrf.mxu0
        %v4270 = vadd.f32 0.0, %v4269
        %v4271 = vpop.f32.mrf.mxu0
        %4272 = vmatprep.mubr.bf16.mxu0 0
        %4273 = vmatmul.mubr.bf16.gmra.mxu0 %v4197
        %v4274 = vpop.f32.mrf.mxu0
        %v4275 = vadd.f32 0.0, %v4274
        %v4276 = vpop.f32.mrf.mxu0
        %v4277 = vpop.f32.mrf.mxu0
        %v4278 = vadd.f32 0.0, %v4277
        %v4279 = vpop.f32.mrf.mxu0
        %4280 = vmatprep.mubr.bf16.mxu0 0
        %4281 = vmatmul.mubr.bf16.gmra.mxu0 %v4200
        %v4282 = vpop.f32.mrf.mxu0
        %v4283 = vadd.f32 0.0, %v4282
        %v4284 = vpop.f32.mrf.mxu0
        %v4285 = vpop.f32.mrf.mxu0
        %v4286 = vadd.f32 0.0, %v4285
        %v4287 = vpop.f32.mrf.mxu0
        %4288 = vmatprep.mubr.bf16.mxu0 0
        %4289 = vmatmul.mubr.bf16.gmra.mxu0 %v4203
        %v4290 = vpop.f32.mrf.mxu0
        %v4291 = vadd.f32 0.0, %v4290
        %v4292 = vpop.f32.mrf.mxu0
        %v4293 = vpop.f32.mrf.mxu0
        %v4294 = vadd.f32 0.0, %v4293
        %v4295 = vpop.f32.mrf.mxu0
        %4296 = vmatprep.mubr.bf16.mxu0 0
        %4297 = vmatmul.mubr.bf16.gmra.mxu0 %v4206
        %v4298 = vpop.f32.mrf.mxu0
        %v4299 = vadd.f32 0.0, %v4298
        %v4300 = vpop.f32.mrf.mxu0
        %v4301 = vpop.f32.mrf.mxu0
        %v4302 = vadd.f32 0.0, %v4301
        %v4303 = vpop.f32.mrf.mxu0
        %4304 = vmatprep.mubr.bf16.mxu0 0
        %4305 = vmatmul.mubr.bf16.gmra.mxu0 %v4209
        %v4306 = vpop.f32.mrf.mxu0
        %v4307 = vadd.f32 0.0, %v4306
        %v4308 = vpop.f32.mrf.mxu0
        %v4309 = vpop.f32.mrf.mxu0
        %v4310 = vadd.f32 0.0, %v4309
        %v4311 = vpop.f32.mrf.mxu0
        %4312 = vmatprep.mubr.bf16.mxu0 0
        %4313 = vmatmul.mubr.bf16.gmra.mxu0 %v4212
        %v4314 = vpop.f32.mrf.mxu0
        %v4315 = vadd.f32 0.0, %v4314
        %v4316 = vpop.f32.mrf.mxu0
        %v4317 = vpop.f32.mrf.mxu0
        %v4318 = vadd.f32 0.0, %v4317
        %v4319 = vpop.f32.mrf.mxu0
        %4320 = vmatprep.mubr.bf16.mxu0 0
        %4321 = vmatmul.mubr.bf16.gmra.mxu0 %v4215
        %v4322 = vpop.f32.mrf.mxu0
        %v4323 = vadd.f32 0.0, %v4322
        %v4324 = vpop.f32.mrf.mxu0
        %v4325 = vpop.f32.mrf.mxu0
        %v4326 = vadd.f32 0.0, %v4325
        %v4327 = vpop.f32.mrf.mxu0
        %4328 = vmatprep.mubr.bf16.mxu0 0
        %4329 = vmatmul.mubr.bf16.gmra.mxu0 %v4218
        %v4330 = vpop.f32.mrf.mxu0
        %v4331 = vadd.f32 0.0, %v4330
        %v4332 = vpop.f32.mrf.mxu0
        %v4333 = vpop.f32.mrf.mxu0
        %v4334 = vadd.f32 0.0, %v4333
        %v4335 = vpop.f32.mrf.mxu0
        %4336 = vmatprep.mubr.bf16.mxu0 0
        %4337 = vmatmul.mubr.bf16.gmra.mxu0 %v4221
        %v4338 = vpop.f32.mrf.mxu0
        %v4339 = vadd.f32 0.0, %v4338
        %v4340 = vpop.f32.mrf.mxu0
        %v4341 = vpop.f32.mrf.mxu0
        %v4342 = vadd.f32 0.0, %v4341
        %v4343 = vpop.f32.mrf.mxu0
        %4344 = vmatprep.mubr.bf16.mxu0 0
        %4345 = vmatmul.mubr.bf16.gmra.mxu0 %v4224
        %v4346 = vpop.f32.mrf.mxu0
        %v4347 = vadd.f32 0.0, %v4346
        %v4348 = vpop.f32.mrf.mxu0
        %v4349 = vpop.f32.mrf.mxu0
        %v4350 = vadd.f32 0.0, %v4349
        %v4351 = vpop.f32.mrf.mxu0
        %4352 = vmatprep.mubr.bf16.mxu0 0
        %4353 = vmatmul.mubr.bf16.gmra.mxu0 %v4227
        %v4354 = vpop.f32.mrf.mxu0
        %v4355 = vadd.f32 0.0, %v4354
        %v4356 = vpop.f32.mrf.mxu0
        %v4357 = vpop.f32.mrf.mxu0
        %v4358 = vadd.f32 0.0, %v4357
        %v4359 = vpop.f32.mrf.mxu0
        %4360 = vdwg.mxu0
        %v4361 = vadd.f32 %v4107, %v4267
        %v4362 = vadd.f32 %v4108, %v4270
        %v4363 = vadd.f32 %v4109, %v4275
        %v4364 = vadd.f32 %v4110, %v4278
        %v4365 = vadd.f32 %v4111, %v4283
        %v4366 = vadd.f32 %v4112, %v4286
        %v4367 = vadd.f32 %v4113, %v4291
        %v4368 = vadd.f32 %v4114, %v4294
        %v4369 = vadd.f32 %v4115, %v4299
        %v4370 = vadd.f32 %v4116, %v4302
        %v4371 = vadd.f32 %v4117, %v4307
        %v4372 = vadd.f32 %v4118, %v4310
        %v4373 = vadd.f32 %v4119, %v4315
        %v4374 = vadd.f32 %v4120, %v4318
        %v4375 = vadd.f32 %v4121, %v4323
        %v4376 = vadd.f32 %v4122, %v4326
        %v4377 = vadd.f32 %v4123, %v4331
        %v4378 = vadd.f32 %v4124, %v4334
        %v4379 = vadd.f32 %v4125, %v4339
        %v4380 = vadd.f32 %v4126, %v4342
        %v4381 = vadd.f32 %v4127, %v4347
        %v4382 = vadd.f32 %v4128, %v4350
        %v4383 = vadd.f32 %v4129, %v4355
        %v4384 = vadd.f32 %v4130, %v4358
        %v4385 = vld [vmem:[%s3540 + $0x4] sm:$0xf]
        %v4386 = vld [vmem:[%s3540 + $0x8] sm:$0x1]
        %v4387 = vld [vmem:[%s3540 + $0x10] sm:$0xf]
        %v4388 = vld [vmem:[%s3540 + $0x14] sm:$0x1]
        %v4389 = vld [vmem:[%s3540 + $0x1c] sm:$0xf]
        %v4390 = vld [vmem:[%s3540 + $0x20] sm:$0x1]
        %v4391 = vld [vmem:[%s3540 + $0x28] sm:$0xf]
        %v4392 = vld [vmem:[%s3540 + $0x2c] sm:$0x1]
        %v4393 = vld [vmem:[%s3540 + $0x34] sm:$0xf]
        %v4394 = vld [vmem:[%s3540 + $0x38] sm:$0x1]
        %v4395 = vld [vmem:[%s3540 + $0x40] sm:$0xf]
        %v4396 = vld [vmem:[%s3540 + $0x44] sm:$0x1]
        %v4397 = vld [vmem:[%s3540 + $0x4c] sm:$0xf]
        %v4398 = vld [vmem:[%s3540 + $0x50] sm:$0x1]
        %v4399 = vld [vmem:[%s3540 + $0x58] sm:$0xf]
        %v4400 = vld [vmem:[%s3540 + $0x5c] sm:$0x1]
        %v4401 = vld [vmem:[%s3540 + $0x7c] sm:$0xf]
        %v4402 = vld [vmem:[%s3540 + $0x80] sm:$0x1]
        %v4403 = vld [vmem:[%s3540 + $0x88] sm:$0xf]
        %v4404 = vld [vmem:[%s3540 + $0x8c] sm:$0x1]
        %v4405 = vld [vmem:[%s3540 + $0x94] sm:$0xf]
        %v4406 = vld [vmem:[%s3540 + $0x98] sm:$0x1]
        %v4407 = vld [vmem:[%s3540 + $0xa0] sm:$0xf]
        %v4408 = vld [vmem:[%s3540 + $0xa4] sm:$0x1]
        %v4409 = vld [vmem:[%s3540 + $0xac] sm:$0xf]
        %v4410 = vld [vmem:[%s3540 + $0xb0] sm:$0x1]
        %v4411 = vld [vmem:[%s3540 + $0xb8] sm:$0xf]
        %v4412 = vld [vmem:[%s3540 + $0xbc] sm:$0x1]
        %v4413 = vld [vmem:[%s3540 + $0xc4] sm:$0xf]
        %v4414 = vld [vmem:[%s3540 + $0xc8] sm:$0x1]
        %v4415 = vld [vmem:[%s3540 + $0xd0] sm:$0xf]
        %v4416 = vld [vmem:[%s3540 + $0xd4] sm:$0x1]
        %v4417 = vld [vmem:[%s3540 + $0xf4] sm:$0xf]
        %v4418 = vld [vmem:[%s3540 + $0xf8] sm:$0x1]
        %v4419 = vld [vmem:[%s3540 + $0x100] sm:$0xf]
        %v4420 = vld [vmem:[%s3540 + $0x104] sm:$0x1]
        %v4421 = vld [vmem:[%s3540 + $0x10c] sm:$0xf]
        %v4422 = vld [vmem:[%s3540 + $0x110] sm:$0x1]
        %v4423 = vld [vmem:[%s3540 + $0x118] sm:$0xf]
        %v4424 = vld [vmem:[%s3540 + $0x11c] sm:$0x1]
        %v4425 = vld [vmem:[%s3540 + $0x124] sm:$0xf]
        %v4426 = vld [vmem:[%s3540 + $0x128] sm:$0x1]
        %v4427 = vld [vmem:[%s3540 + $0x130] sm:$0xf]
        %v4428 = vld [vmem:[%s3540 + $0x134] sm:$0x1]
        %v4429 = vld [vmem:[%s3540 + $0x13c] sm:$0xf]
        %v4430 = vld [vmem:[%s3540 + $0x140] sm:$0x1]
        %v4431 = vld [vmem:[%s3540 + $0x148] sm:$0xf]
        %v4432 = vld [vmem:[%s3540 + $0x14c] sm:$0x1]
        %v4434 = vshrl.u32 %v4385, 16
        %v4436 = vrot.slane %v4434, 4
        %v4437 = vshll.u32 %v4385, 16
        %v4439 = vrot.slane %v4437, 5
        %v4440 = vor.u32 %v4436, %v4439
        %v4441 = vrot.slane %v4440, 4
        %v4443 = vshll.u32 %v4386, 16
        %v4445 = vrot.slane %v4443, 5
        %v4446 = vsel %vm1515, %v4441, %v4445
        %v4448 = vshrl.u32 %v4387, 16
        %v4450 = vrot.slane %v4448, 4
        %v4451 = vshll.u32 %v4387, 16
        %v4453 = vrot.slane %v4451, 5
        %v4454 = vor.u32 %v4450, %v4453
        %v4455 = vrot.slane %v4454, 4
        %v4457 = vshll.u32 %v4388, 16
        %v4459 = vrot.slane %v4457, 5
        %v4460 = vsel %vm1515, %v4455, %v4459
        %v4462 = vshrl.u32 %v4389, 16
        %v4464 = vrot.slane %v4462, 4
        %v4465 = vshll.u32 %v4389, 16
        %v4467 = vrot.slane %v4465, 5
        %v4468 = vor.u32 %v4464, %v4467
        %v4469 = vrot.slane %v4468, 4
        %v4471 = vshll.u32 %v4390, 16
        %v4473 = vrot.slane %v4471, 5
        %v4474 = vsel %vm1515, %v4469, %v4473
        %v4476 = vshrl.u32 %v4391, 16
        %v4478 = vrot.slane %v4476, 4
        %v4479 = vshll.u32 %v4391, 16
        %v4481 = vrot.slane %v4479, 5
        %v4482 = vor.u32 %v4478, %v4481
        %v4483 = vrot.slane %v4482, 4
        %v4485 = vshll.u32 %v4392, 16
        %v4487 = vrot.slane %v4485, 5
        %v4488 = vsel %vm1515, %v4483, %v4487
        %v4490 = vshrl.u32 %v4393, 16
        %v4492 = vrot.slane %v4490, 4
        %v4493 = vshll.u32 %v4393, 16
        %v4495 = vrot.slane %v4493, 5
        %v4496 = vor.u32 %v4492, %v4495
        %v4497 = vrot.slane %v4496, 4
        %v4499 = vshll.u32 %v4394, 16
        %v4501 = vrot.slane %v4499, 5
        %v4502 = vsel %vm1515, %v4497, %v4501
        %v4504 = vshrl.u32 %v4395, 16
        %v4506 = vrot.slane %v4504, 4
        %v4507 = vshll.u32 %v4395, 16
        %v4509 = vrot.slane %v4507, 5
        %v4510 = vor.u32 %v4506, %v4509
        %v4511 = vrot.slane %v4510, 4
        %v4513 = vshll.u32 %v4396, 16
        %v4515 = vrot.slane %v4513, 5
        %v4516 = vsel %vm1515, %v4511, %v4515
        %v4518 = vshrl.u32 %v4397, 16
        %v4520 = vrot.slane %v4518, 4
        %v4521 = vshll.u32 %v4397, 16
        %v4523 = vrot.slane %v4521, 5
        %v4524 = vor.u32 %v4520, %v4523
        %v4525 = vrot.slane %v4524, 4
        %v4527 = vshll.u32 %v4398, 16
        %v4529 = vrot.slane %v4527, 5
        %v4530 = vsel %vm1515, %v4525, %v4529
        %v4532 = vshrl.u32 %v4399, 16
        %v4534 = vrot.slane %v4532, 4
        %v4535 = vshll.u32 %v4399, 16
        %v4537 = vrot.slane %v4535, 5
        %v4538 = vor.u32 %v4534, %v4537
        %v4539 = vrot.slane %v4538, 4
        %v4541 = vshll.u32 %v4400, 16
        %v4543 = vrot.slane %v4541, 5
        %v4544 = vsel %vm1515, %v4539, %v4543
        %v4546 = vshrl.u32 %v4401, 16
        %v4548 = vrot.slane %v4546, 4
        %v4549 = vshll.u32 %v4401, 16
        %v4551 = vrot.slane %v4549, 5
        %v4552 = vor.u32 %v4548, %v4551
        %v4553 = vrot.slane %v4552, 4
        %v4555 = vshll.u32 %v4402, 16
        %v4557 = vrot.slane %v4555, 5
        %v4558 = vsel %vm1515, %v4553, %v4557
        %v4560 = vshrl.u32 %v4403, 16
        %v4562 = vrot.slane %v4560, 4
        %v4563 = vshll.u32 %v4403, 16
        %v4565 = vrot.slane %v4563, 5
        %v4566 = vor.u32 %v4562, %v4565
        %v4567 = vrot.slane %v4566, 4
        %v4569 = vshll.u32 %v4404, 16
        %v4571 = vrot.slane %v4569, 5
        %v4572 = vsel %vm1515, %v4567, %v4571
        %v4574 = vshrl.u32 %v4405, 16
        %v4576 = vrot.slane %v4574, 4
        %v4577 = vshll.u32 %v4405, 16
        %v4579 = vrot.slane %v4577, 5
        %v4580 = vor.u32 %v4576, %v4579
        %v4581 = vrot.slane %v4580, 4
        %v4583 = vshll.u32 %v4406, 16
        %v4585 = vrot.slane %v4583, 5
        %v4586 = vsel %vm1515, %v4581, %v4585
        %v4588 = vshrl.u32 %v4407, 16
        %v4590 = vrot.slane %v4588, 4
        %v4591 = vshll.u32 %v4407, 16
        %v4593 = vrot.slane %v4591, 5
        %v4594 = vor.u32 %v4590, %v4593
        %v4595 = vrot.slane %v4594, 4
        %v4597 = vshll.u32 %v4408, 16
        %v4599 = vrot.slane %v4597, 5
        %v4600 = vsel %vm1515, %v4595, %v4599
        %v4602 = vshrl.u32 %v4409, 16
        %v4604 = vrot.slane %v4602, 4
        %v4605 = vshll.u32 %v4409, 16
        %v4607 = vrot.slane %v4605, 5
        %v4608 = vor.u32 %v4604, %v4607
        %v4609 = vrot.slane %v4608, 4
        %v4611 = vshll.u32 %v4410, 16
        %v4613 = vrot.slane %v4611, 5
        %v4614 = vsel %vm1515, %v4609, %v4613
        %v4616 = vshrl.u32 %v4411, 16
        %v4618 = vrot.slane %v4616, 4
        %v4619 = vshll.u32 %v4411, 16
        %v4621 = vrot.slane %v4619, 5
        %v4622 = vor.u32 %v4618, %v4621
        %v4623 = vrot.slane %v4622, 4
        %v4625 = vshll.u32 %v4412, 16
        %v4627 = vrot.slane %v4625, 5
        %v4628 = vsel %vm1515, %v4623, %v4627
        %v4630 = vshrl.u32 %v4413, 16
        %v4632 = vrot.slane %v4630, 4
        %v4633 = vshll.u32 %v4413, 16
        %v4635 = vrot.slane %v4633, 5
        %v4636 = vor.u32 %v4632, %v4635
        %v4637 = vrot.slane %v4636, 4
        %v4639 = vshll.u32 %v4414, 16
        %v4641 = vrot.slane %v4639, 5
        %v4642 = vsel %vm1515, %v4637, %v4641
        %v4644 = vshrl.u32 %v4415, 16
        %v4646 = vrot.slane %v4644, 4
        %v4647 = vshll.u32 %v4415, 16
        %v4649 = vrot.slane %v4647, 5
        %v4650 = vor.u32 %v4646, %v4649
        %v4651 = vrot.slane %v4650, 4
        %v4653 = vshll.u32 %v4416, 16
        %v4655 = vrot.slane %v4653, 5
        %v4656 = vsel %vm1515, %v4651, %v4655
        %v4658 = vshrl.u32 %v4417, 16
        %v4660 = vrot.slane %v4658, 4
        %v4661 = vshll.u32 %v4417, 16
        %v4663 = vrot.slane %v4661, 5
        %v4664 = vor.u32 %v4660, %v4663
        %v4665 = vrot.slane %v4664, 4
        %v4667 = vshll.u32 %v4418, 16
        %v4669 = vrot.slane %v4667, 5
        %v4670 = vsel %vm1515, %v4665, %v4669
        %v4672 = vshrl.u32 %v4419, 16
        %v4674 = vrot.slane %v4672, 4
        %v4675 = vshll.u32 %v4419, 16
        %v4677 = vrot.slane %v4675, 5
        %v4678 = vor.u32 %v4674, %v4677
        %v4679 = vrot.slane %v4678, 4
        %v4681 = vshll.u32 %v4420, 16
        %v4683 = vrot.slane %v4681, 5
        %v4684 = vsel %vm1515, %v4679, %v4683
        %v4686 = vshrl.u32 %v4421, 16
        %v4688 = vrot.slane %v4686, 4
        %v4689 = vshll.u32 %v4421, 16
        %v4691 = vrot.slane %v4689, 5
        %v4692 = vor.u32 %v4688, %v4691
        %v4693 = vrot.slane %v4692, 4
        %v4695 = vshll.u32 %v4422, 16
        %v4697 = vrot.slane %v4695, 5
        %v4698 = vsel %vm1515, %v4693, %v4697
        %v4700 = vshrl.u32 %v4423, 16
        %v4702 = vrot.slane %v4700, 4
        %v4703 = vshll.u32 %v4423, 16
        %v4705 = vrot.slane %v4703, 5
        %v4706 = vor.u32 %v4702, %v4705
        %v4707 = vrot.slane %v4706, 4
        %v4709 = vshll.u32 %v4424, 16
        %v4711 = vrot.slane %v4709, 5
        %v4712 = vsel %vm1515, %v4707, %v4711
        %v4714 = vshrl.u32 %v4425, 16
        %v4716 = vrot.slane %v4714, 4
        %v4717 = vshll.u32 %v4425, 16
        %v4719 = vrot.slane %v4717, 5
        %v4720 = vor.u32 %v4716, %v4719
        %v4721 = vrot.slane %v4720, 4
        %v4723 = vshll.u32 %v4426, 16
        %v4725 = vrot.slane %v4723, 5
        %v4726 = vsel %vm1515, %v4721, %v4725
        %v4728 = vshrl.u32 %v4427, 16
        %v4730 = vrot.slane %v4728, 4
        %v4731 = vshll.u32 %v4427, 16
        %v4733 = vrot.slane %v4731, 5
        %v4734 = vor.u32 %v4730, %v4733
        %v4735 = vrot.slane %v4734, 4
        %v4737 = vshll.u32 %v4428, 16
        %v4739 = vrot.slane %v4737, 5
        %v4740 = vsel %vm1515, %v4735, %v4739
        %v4742 = vshrl.u32 %v4429, 16
        %v4744 = vrot.slane %v4742, 4
        %v4745 = vshll.u32 %v4429, 16
        %v4747 = vrot.slane %v4745, 5
        %v4748 = vor.u32 %v4744, %v4747
        %v4749 = vrot.slane %v4748, 4
        %v4751 = vshll.u32 %v4430, 16
        %v4753 = vrot.slane %v4751, 5
        %v4754 = vsel %vm1515, %v4749, %v4753
        %v4756 = vshrl.u32 %v4431, 16
        %v4758 = vrot.slane %v4756, 4
        %v4759 = vshll.u32 %v4431, 16
        %v4761 = vrot.slane %v4759, 5
        %v4762 = vor.u32 %v4758, %v4761
        %v4763 = vrot.slane %v4762, 4
        %v4765 = vshll.u32 %v4432, 16
        %v4767 = vrot.slane %v4765, 5
        %v4768 = vsel %vm1515, %v4763, %v4767
        %s4769 = scalar_lea.vmem %s1, 16
        %v4770 = vld [vmem:[%s4769] sm:$0x3]
        %v4771 = vunpack.c.l.b16 %v4446
        %v4772 = vunpack.c.l.b16 %v4460
        %v4773 = vunpack.c.l.b16 %v4474
        %v4774 = vunpack.c.l.b16 %v4488
        %v4775 = vunpack.c.l.b16 %v4502
        %v4776 = vunpack.c.l.b16 %v4516
        %v4777 = vunpack.c.l.b16 %v4530
        %v4778 = vunpack.c.l.b16 %v4544
        %v4779 = vunpack.c.l.b16 %v4558
        %v4780 = vunpack.c.l.b16 %v4572
        %v4781 = vunpack.c.l.b16 %v4586
        %v4782 = vunpack.c.l.b16 %v4600
        %v4783 = vunpack.c.l.b16 %v4614
        %v4784 = vunpack.c.l.b16 %v4628
        %v4785 = vunpack.c.l.b16 %v4642
        %v4786 = vunpack.c.l.b16 %v4656
        %v4787 = vunpack.c.l.b16 %v4670
        %v4788 = vunpack.c.l.b16 %v4684
        %v4789 = vunpack.c.l.b16 %v4698
        %v4790 = vunpack.c.l.b16 %v4712
        %v4791 = vunpack.c.l.b16 %v4726
        %v4792 = vunpack.c.l.b16 %v4740
        %v4793 = vunpack.c.l.b16 %v4754
        %v4794 = vunpack.c.l.b16 %v4768
        %v4795 = vpack.c.b16 %v4772, %v4771
        %v4796 = vpack.c.b16 %v4774, %v4773
        %v4797 = vpack.c.b16 %v4776, %v4775
        %v4798 = vpack.c.b16 %v4778, %v4777
        %v4799 = vpack.c.b16 %v4780, %v4779
        %v4800 = vpack.c.b16 %v4782, %v4781
        %v4801 = vpack.c.b16 %v4784, %v4783
        %v4802 = vpack.c.b16 %v4786, %v4785
        %v4803 = vpack.c.b16 %v4788, %v4787
        %v4804 = vpack.c.b16 %v4790, %v4789
        %v4805 = vpack.c.b16 %v4792, %v4791
        %v4806 = vpack.c.b16 %v4794, %v4793
        %v4808 = vsel %vm1091, %v4795, 0
        %v4811 = vsel %vm1091, %v4796, 0
        %v4814 = vsel %vm1091, %v4797, 0
        %v4817 = vsel %vm1091, %v4798, 0
        %v4820 = vsel %vm1091, %v4799, 0
        %v4823 = vsel %vm1091, %v4800, 0
        %v4826 = vsel %vm1091, %v4801, 0
        %v4829 = vsel %vm1091, %v4802, 0
        %v4832 = vsel %vm1091, %v4803, 0
        %v4835 = vsel %vm1091, %v4804, 0
        %v4838 = vsel %vm1091, %v4805, 0
        %v4841 = vsel %vm1091, %v4806, 0
        %v4844 = vsel %vm1128, %v4770, 0
        %4846 = vmatprep.subr.bf16.mxu0 0
        %4847 = vmatpush1.bf16.msra.mxu0 0
        %4848 = vmatprep.subr.bf16.mxu0 0
        %4849 = vmatpush1.bf16.msra.mxu0 0
        %4850 = vmatprep.subr.bf16.mxu0 0
        %4851 = vmatpush1.bf16.msra.mxu0 0
        %4852 = vmatprep.subr.bf16.mxu0 0
        %4853 = vmatpush1.bf16.msra.mxu0 0
        %4854 = vmatprep.subr.bf16.mxu0 0
        %4855 = vmatpush1.bf16.msra.mxu0 0
        %4856 = vmatprep.subr.bf16.mxu0 0
        %4857 = vmatpush1.bf16.msra.mxu0 0
        %4858 = vmatprep.subr.bf16.mxu0 0
        %4859 = vmatpush1.bf16.msra.mxu0 0
        %4860 = vmatprep.subr.bf16.mxu0 0
        %4861 = vmatpush1.bf16.msra.mxu0 %v4844
        %4862 = vmatprep.subr.bf16.mxu0 0
        %4863 = vmatpush2.bf16.msra.mxu0 0
        %4864 = vmatprep.subr.bf16.mxu0 0
        %4865 = vmatpush2.bf16.msra.mxu0 0
        %4866 = vmatprep.subr.bf16.mxu0 0
        %4867 = vmatpush2.bf16.msra.mxu0 0
        %4868 = vmatprep.subr.bf16.mxu0 0
        %4869 = vmatpush2.bf16.msra.mxu0 0
        %4870 = vmatprep.subr.bf16.mxu0 0
        %4871 = vmatpush2.bf16.msra.mxu0 0
        %4872 = vmatprep.subr.bf16.mxu0 0
        %4873 = vmatpush2.bf16.msra.mxu0 0
        %4874 = vmatprep.subr.bf16.mxu0 0
        %4875 = vmatpush2.bf16.msra.mxu0 0
        %4876 = vmatprep.subr.bf16.mxu0 0
        %4877 = vmatpush2.bf16.msra.mxu0 0
        %4878 = vmatprep.mubr.bf16.mxu0 0
        %4879 = vmatmul.mubr.bf16.gmra.mxu0 %v4808
        %v4880 = vpop.f32.mrf.mxu0
        %v4881 = vadd.f32 0.0, %v4880
        %v4882 = vpop.f32.mrf.mxu0
        %v4883 = vpop.f32.mrf.mxu0
        %v4884 = vadd.f32 0.0, %v4883
        %v4885 = vpop.f32.mrf.mxu0
        %4886 = vmatprep.mubr.bf16.mxu0 0
        %4887 = vmatmul.mubr.bf16.gmra.mxu0 %v4811
        %v4888 = vpop.f32.mrf.mxu0
        %v4889 = vadd.f32 0.0, %v4888
        %v4890 = vpop.f32.mrf.mxu0
        %v4891 = vpop.f32.mrf.mxu0
        %v4892 = vadd.f32 0.0, %v4891
        %v4893 = vpop.f32.mrf.mxu0
        %4894 = vmatprep.mubr.bf16.mxu0 0
        %4895 = vmatmul.mubr.bf16.gmra.mxu0 %v4814
        %v4896 = vpop.f32.mrf.mxu0
        %v4897 = vadd.f32 0.0, %v4896
        %v4898 = vpop.f32.mrf.mxu0
        %v4899 = vpop.f32.mrf.mxu0
        %v4900 = vadd.f32 0.0, %v4899
        %v4901 = vpop.f32.mrf.mxu0
        %4902 = vmatprep.mubr.bf16.mxu0 0
        %4903 = vmatmul.mubr.bf16.gmra.mxu0 %v4817
        %v4904 = vpop.f32.mrf.mxu0
        %v4905 = vadd.f32 0.0, %v4904
        %v4906 = vpop.f32.mrf.mxu0
        %v4907 = vpop.f32.mrf.mxu0
        %v4908 = vadd.f32 0.0, %v4907
        %v4909 = vpop.f32.mrf.mxu0
        %4910 = vmatprep.mubr.bf16.mxu0 0
        %4911 = vmatmul.mubr.bf16.gmra.mxu0 %v4820
        %v4912 = vpop.f32.mrf.mxu0
        %v4913 = vadd.f32 0.0, %v4912
        %v4914 = vpop.f32.mrf.mxu0
        %v4915 = vpop.f32.mrf.mxu0
        %v4916 = vadd.f32 0.0, %v4915
        %v4917 = vpop.f32.mrf.mxu0
        %4918 = vmatprep.mubr.bf16.mxu0 0
        %4919 = vmatmul.mubr.bf16.gmra.mxu0 %v4823
        %v4920 = vpop.f32.mrf.mxu0
        %v4921 = vadd.f32 0.0, %v4920
        %v4922 = vpop.f32.mrf.mxu0
        %v4923 = vpop.f32.mrf.mxu0
        %v4924 = vadd.f32 0.0, %v4923
        %v4925 = vpop.f32.mrf.mxu0
        %4926 = vmatprep.mubr.bf16.mxu0 0
        %4927 = vmatmul.mubr.bf16.gmra.mxu0 %v4826
        %v4928 = vpop.f32.mrf.mxu0
        %v4929 = vadd.f32 0.0, %v4928
        %v4930 = vpop.f32.mrf.mxu0
        %v4931 = vpop.f32.mrf.mxu0
        %v4932 = vadd.f32 0.0, %v4931
        %v4933 = vpop.f32.mrf.mxu0
        %4934 = vmatprep.mubr.bf16.mxu0 0
        %4935 = vmatmul.mubr.bf16.gmra.mxu0 %v4829
        %v4936 = vpop.f32.mrf.mxu0
        %v4937 = vadd.f32 0.0, %v4936
        %v4938 = vpop.f32.mrf.mxu0
        %v4939 = vpop.f32.mrf.mxu0
        %v4940 = vadd.f32 0.0, %v4939
        %v4941 = vpop.f32.mrf.mxu0
        %4942 = vmatprep.mubr.bf16.mxu0 0
        %4943 = vmatmul.mubr.bf16.gmra.mxu0 %v4832
        %v4944 = vpop.f32.mrf.mxu0
        %v4945 = vadd.f32 0.0, %v4944
        %v4946 = vpop.f32.mrf.mxu0
        %v4947 = vpop.f32.mrf.mxu0
        %v4948 = vadd.f32 0.0, %v4947
        %v4949 = vpop.f32.mrf.mxu0
        %4950 = vmatprep.mubr.bf16.mxu0 0
        %4951 = vmatmul.mubr.bf16.gmra.mxu0 %v4835
        %v4952 = vpop.f32.mrf.mxu0
        %v4953 = vadd.f32 0.0, %v4952
        %v4954 = vpop.f32.mrf.mxu0
        %v4955 = vpop.f32.mrf.mxu0
        %v4956 = vadd.f32 0.0, %v4955
        %v4957 = vpop.f32.mrf.mxu0
        %4958 = vmatprep.mubr.bf16.mxu0 0
        %4959 = vmatmul.mubr.bf16.gmra.mxu0 %v4838
        %v4960 = vpop.f32.mrf.mxu0
        %v4961 = vadd.f32 0.0, %v4960
        %v4962 = vpop.f32.mrf.mxu0
        %v4963 = vpop.f32.mrf.mxu0
        %v4964 = vadd.f32 0.0, %v4963
        %v4965 = vpop.f32.mrf.mxu0
        %4966 = vmatprep.mubr.bf16.mxu0 0
        %4967 = vmatmul.mubr.bf16.gmra.mxu0 %v4841
        %v4968 = vpop.f32.mrf.mxu0
        %v4969 = vadd.f32 0.0, %v4968
        %v4970 = vpop.f32.mrf.mxu0
        %v4971 = vpop.f32.mrf.mxu0
        %v4972 = vadd.f32 0.0, %v4971
        %v4973 = vpop.f32.mrf.mxu0
        %4974 = vdwg.mxu0
        %v4975 = vadd.f32 %v4361, %v4881
        %v4976 = vadd.f32 %v4362, %v4884
        %v4977 = vadd.f32 %v4363, %v4889
        %v4978 = vadd.f32 %v4364, %v4892
        %v4979 = vadd.f32 %v4365, %v4897
        %v4980 = vadd.f32 %v4366, %v4900
        %v4981 = vadd.f32 %v4367, %v4905
        %v4982 = vadd.f32 %v4368, %v4908
        %v4983 = vadd.f32 %v4369, %v4913
        %v4984 = vadd.f32 %v4370, %v4916
        %v4985 = vadd.f32 %v4371, %v4921
        %v4986 = vadd.f32 %v4372, %v4924
        %v4987 = vadd.f32 %v4373, %v4929
        %v4988 = vadd.f32 %v4374, %v4932
        %v4989 = vadd.f32 %v4375, %v4937
        %v4990 = vadd.f32 %v4376, %v4940
        %v4991 = vadd.f32 %v4377, %v4945
        %v4992 = vadd.f32 %v4378, %v4948
        %v4993 = vadd.f32 %v4379, %v4953
        %v4994 = vadd.f32 %v4380, %v4956
        %v4995 = vadd.f32 %v4381, %v4961
        %v4996 = vadd.f32 %v4382, %v4964
        %v4997 = vadd.f32 %v4383, %v4969
        %v4998 = vadd.f32 %v4384, %v4972
        %v4999 = vld [vmem:[%s2] sm:$0x1]
        %v5001 = vlaneseq
        %v5002 = vshrl.u32 %v5001, 7
        %v5003 = vsub.s32 0, %v5002
        %v5004 = vrot.slane %v4999, %v5003
        %v5006 = vadd.f32 %v4975, %v5004
        %v5007 = vadd.f32 %v4976, %v5004
        %v5008 = vadd.f32 %v4977, %v5004
        %v5009 = vadd.f32 %v4978, %v5004
        %v5010 = vadd.f32 %v4979, %v5004
        %v5011 = vadd.f32 %v4980, %v5004
        %v5012 = vadd.f32 %v4981, %v5004
        %v5013 = vadd.f32 %v4982, %v5004
        %v5014 = vadd.f32 %v4983, %v5004
        %v5015 = vadd.f32 %v4984, %v5004
        %v5016 = vadd.f32 %v4985, %v5004
        %v5017 = vadd.f32 %v4986, %v5004
        %v5018 = vadd.f32 %v4987, %v5004
        %v5019 = vadd.f32 %v4988, %v5004
        %v5020 = vadd.f32 %v4989, %v5004
        %v5021 = vadd.f32 %v4990, %v5004
        %v5022 = vadd.f32 %v4991, %v5004
        %v5023 = vadd.f32 %v4992, %v5004
        %v5024 = vadd.f32 %v4993, %v5004
        %v5025 = vadd.f32 %v4994, %v5004
        %v5026 = vadd.f32 %v4995, %v5004
        %v5027 = vadd.f32 %v4996, %v5004
        %v5028 = vadd.f32 %v4997, %v5004
        %v5029 = vadd.f32 %v4998, %v5004
        %v5030 = vmax.f32 %v5006, 0.0
        %v5031 = vmax.f32 %v5007, 0.0
        %v5032 = vmax.f32 %v5008, 0.0
        %v5033 = vmax.f32 %v5009, 0.0
        %v5034 = vmax.f32 %v5010, 0.0
        %v5035 = vmax.f32 %v5011, 0.0
        %v5036 = vmax.f32 %v5012, 0.0
        %v5037 = vmax.f32 %v5013, 0.0
        %v5038 = vmax.f32 %v5014, 0.0
        %v5039 = vmax.f32 %v5015, 0.0
        %v5040 = vmax.f32 %v5016, 0.0
        %v5041 = vmax.f32 %v5017, 0.0
        %v5042 = vmax.f32 %v5018, 0.0
        %v5043 = vmax.f32 %v5019, 0.0
        %v5044 = vmax.f32 %v5020, 0.0
        %v5045 = vmax.f32 %v5021, 0.0
        %v5046 = vmax.f32 %v5022, 0.0
        %v5047 = vmax.f32 %v5023, 0.0
        %v5048 = vmax.f32 %v5024, 0.0
        %v5049 = vmax.f32 %v5025, 0.0
        %v5050 = vmax.f32 %v5026, 0.0
        %v5051 = vmax.f32 %v5027, 0.0
        %v5052 = vmax.f32 %v5028, 0.0
        %v5053 = vmax.f32 %v5029, 0.0
        %v5054 = vpack.c.bf16 %v5031, %v5030
        %v5055 = vpack.c.bf16 %v5033, %v5032
        %v5056 = vpack.c.bf16 %v5035, %v5034
        %v5057 = vpack.c.bf16 %v5037, %v5036
        %v5058 = vpack.c.bf16 %v5039, %v5038
        %v5059 = vpack.c.bf16 %v5041, %v5040
        %v5060 = vpack.c.bf16 %v5043, %v5042
        %v5061 = vpack.c.bf16 %v5045, %v5044
        %v5062 = vpack.c.bf16 %v5047, %v5046
        %v5063 = vpack.c.bf16 %v5049, %v5048
        %v5064 = vpack.c.bf16 %v5051, %v5050
        %v5065 = vpack.c.bf16 %v5053, %v5052
        %v5078 = vunpack.c.l.b16 %v5054
        %v5079 = vunpack.c.h.b16 %v5054
        %v5080 = vunpack.c.l.b16 %v5055
        %v5081 = vunpack.c.h.b16 %v5055
        %v5082 = vunpack.c.l.b16 %v5056
        %v5083 = vunpack.c.h.b16 %v5056
        %v5084 = vunpack.c.l.b16 %v5057
        %v5085 = vunpack.c.h.b16 %v5057
        %v5086 = vunpack.c.l.b16 %v5058
        %v5087 = vunpack.c.h.b16 %v5058
        %v5088 = vunpack.c.l.b16 %v5059
        %v5089 = vunpack.c.h.b16 %v5059
        %v5090 = vunpack.c.l.b16 %v5060
        %v5091 = vunpack.c.h.b16 %v5060
        %v5092 = vunpack.c.l.b16 %v5061
        %v5093 = vunpack.c.h.b16 %v5061
        %v5094 = vunpack.c.l.b16 %v5062
        %v5095 = vunpack.c.h.b16 %v5062
        %v5096 = vunpack.c.l.b16 %v5063
        %v5097 = vunpack.c.h.b16 %v5063
        %v5098 = vunpack.c.l.b16 %v5064
        %v5099 = vunpack.c.h.b16 %v5064
        %v5100 = vunpack.c.l.b16 %v5065
        %v5101 = vunpack.c.h.b16 %v5065
        %v5102 = vpack.c.b16 %v5078, %v5078
        %v5103 = vpack.c.b16 %v5079, %v5079
        %v5104 = vpack.c.b16 %v5080, %v5080
        %v5105 = vpack.c.b16 %v5081, %v5081
        %v5106 = vpack.c.b16 %v5082, %v5082
        %v5107 = vpack.c.b16 %v5083, %v5083
        %v5108 = vpack.c.b16 %v5084, %v5084
        %v5109 = vpack.c.b16 %v5085, %v5085
        %v5110 = vpack.c.b16 %v5086, %v5086
        %v5111 = vpack.c.b16 %v5087, %v5087
        %v5112 = vpack.c.b16 %v5088, %v5088
        %v5113 = vpack.c.b16 %v5089, %v5089
        %v5114 = vpack.c.b16 %v5090, %v5090
        %v5115 = vpack.c.b16 %v5091, %v5091
        %v5116 = vpack.c.b16 %v5092, %v5092
        %v5117 = vpack.c.b16 %v5093, %v5093
        %v5118 = vpack.c.b16 %v5094, %v5094
        %v5119 = vpack.c.b16 %v5095, %v5095
        %v5120 = vpack.c.b16 %v5096, %v5096
        %v5121 = vpack.c.b16 %v5097, %v5097
        %v5122 = vpack.c.b16 %v5098, %v5098
        %v5123 = vpack.c.b16 %v5099, %v5099
        %v5124 = vpack.c.b16 %v5100, %v5100
        %v5125 = vpack.c.b16 %v5101, %v5101
        %5150 = vst.msk [vmem:[%s473 + $0x4] sm:$0xf] %vm430, %v5102
        %5151 = vst.msk [vmem:[%s473 + $0x10] sm:$0xf] %vm430, %v5103
        %5152 = vst.msk [vmem:[%s473 + $0x1c] sm:$0xf] %vm430, %v5104
        %5153 = vst.msk [vmem:[%s473 + $0x28] sm:$0xf] %vm430, %v5105
        %5154 = vst.msk [vmem:[%s473 + $0x34] sm:$0xf] %vm430, %v5106
        %5155 = vst.msk [vmem:[%s473 + $0x40] sm:$0xf] %vm430, %v5107
        %5156 = vst.msk [vmem:[%s473 + $0x4c] sm:$0xf] %vm430, %v5108
        %5157 = vst.msk [vmem:[%s473 + $0x58] sm:$0xf] %vm430, %v5109
        %5158 = vst.msk [vmem:[%s473 + $0x7c] sm:$0xf] %vm430, %v5110
        %5159 = vst.msk [vmem:[%s473 + $0x88] sm:$0xf] %vm430, %v5111
        %5160 = vst.msk [vmem:[%s473 + $0x94] sm:$0xf] %vm430, %v5112
        %5161 = vst.msk [vmem:[%s473 + $0xa0] sm:$0xf] %vm430, %v5113
        %5162 = vst.msk [vmem:[%s473 + $0xac] sm:$0xf] %vm430, %v5114
        %5163 = vst.msk [vmem:[%s473 + $0xb8] sm:$0xf] %vm430, %v5115
        %5164 = vst.msk [vmem:[%s473 + $0xc4] sm:$0xf] %vm430, %v5116
        %5165 = vst.msk [vmem:[%s473 + $0xd0] sm:$0xf] %vm430, %v5117
        %5166 = vst.msk [vmem:[%s473 + $0xf4] sm:$0xf] %vm430, %v5118
        %5167 = vst.msk [vmem:[%s473 + $0x100] sm:$0xf] %vm430, %v5119
        %5168 = vst.msk [vmem:[%s473 + $0x10c] sm:$0xf] %vm430, %v5120
        %5169 = vst.msk [vmem:[%s473 + $0x118] sm:$0xf] %vm430, %v5121
        %5170 = vst.msk [vmem:[%s473 + $0x124] sm:$0xf] %vm430, %v5122
        %5171 = vst.msk [vmem:[%s473 + $0x130] sm:$0xf] %vm430, %v5123
        %5172 = vst.msk [vmem:[%s473 + $0x13c] sm:$0xf] %vm430, %v5124
        %5173 = vst.msk [vmem:[%s473 + $0x148] sm:$0xf] %vm430, %v5125
        %v5174 = vld [vmem:[#allocation3] sm:$0x8]
        %v5175 = vld [vmem:[#allocation3 + $0x4] sm:$0xf]
        %v5176 = vld [vmem:[#allocation3 + $0xc] sm:$0x8]
        %v5177 = vld [vmem:[#allocation3 + $0x10] sm:$0xf]
        %v5178 = vld [vmem:[#allocation3 + $0x18] sm:$0x8]
        %v5179 = vld [vmem:[#allocation3 + $0x1c] sm:$0xf]
        %v5180 = vld [vmem:[#allocation3 + $0x24] sm:$0x8]
        %v5181 = vld [vmem:[#allocation3 + $0x28] sm:$0xf]
        %v5182 = vld [vmem:[#allocation3 + $0x30] sm:$0x8]
        %v5183 = vld [vmem:[#allocation3 + $0x34] sm:$0xf]
        %v5184 = vld [vmem:[#allocation3 + $0x3c] sm:$0x8]
        %v5185 = vld [vmem:[#allocation3 + $0x40] sm:$0xf]
        %v5186 = vld [vmem:[#allocation3 + $0x48] sm:$0x8]
        %v5187 = vld [vmem:[#allocation3 + $0x4c] sm:$0xf]
        %v5188 = vld [vmem:[#allocation3 + $0x54] sm:$0x8]
        %v5189 = vld [vmem:[#allocation3 + $0x58] sm:$0xf]
        %v5190 = vld [vmem:[#allocation3 + $0x78] sm:$0x8]
        %v5191 = vld [vmem:[#allocation3 + $0x7c] sm:$0xf]
        %v5192 = vld [vmem:[#allocation3 + $0x84] sm:$0x8]
        %v5193 = vld [vmem:[#allocation3 + $0x88] sm:$0xf]
        %v5194 = vld [vmem:[#allocation3 + $0x90] sm:$0x8]
        %v5195 = vld [vmem:[#allocation3 + $0x94] sm:$0xf]
        %v5196 = vld [vmem:[#allocation3 + $0x9c] sm:$0x8]
        %v5197 = vld [vmem:[#allocation3 + $0xa0] sm:$0xf]
        %v5198 = vld [vmem:[#allocation3 + $0xa8] sm:$0x8]
        %v5199 = vld [vmem:[#allocation3 + $0xac] sm:$0xf]
        %v5200 = vld [vmem:[#allocation3 + $0xb4] sm:$0x8]
        %v5201 = vld [vmem:[#allocation3 + $0xb8] sm:$0xf]
        %v5202 = vld [vmem:[#allocation3 + $0xc0] sm:$0x8]
        %v5203 = vld [vmem:[#allocation3 + $0xc4] sm:$0xf]
        %v5204 = vld [vmem:[#allocation3 + $0xcc] sm:$0x8]
        %v5205 = vld [vmem:[#allocation3 + $0xd0] sm:$0xf]
        %v5206 = vld [vmem:[#allocation3 + $0xf0] sm:$0x8]
        %v5207 = vld [vmem:[#allocation3 + $0xf4] sm:$0xf]
        %v5208 = vld [vmem:[#allocation3 + $0xfc] sm:$0x8]
        %v5209 = vld [vmem:[#allocation3 + $0x100] sm:$0xf]
        %v5210 = vld [vmem:[#allocation3 + $0x108] sm:$0x8]
        %v5211 = vld [vmem:[#allocation3 + $0x10c] sm:$0xf]
        %v5212 = vld [vmem:[#allocation3 + $0x114] sm:$0x8]
        %v5213 = vld [vmem:[#allocation3 + $0x118] sm:$0xf]
        %v5214 = vld [vmem:[#allocation3 + $0x120] sm:$0x8]
        %v5215 = vld [vmem:[#allocation3 + $0x124] sm:$0xf]
        %v5216 = vld [vmem:[#allocation3 + $0x12c] sm:$0x8]
        %v5217 = vld [vmem:[#allocation3 + $0x130] sm:$0xf]
        %v5218 = vld [vmem:[#allocation3 + $0x138] sm:$0x8]
        %v5219 = vld [vmem:[#allocation3 + $0x13c] sm:$0xf]
        %v5220 = vld [vmem:[#allocation3 + $0x144] sm:$0x8]
        %v5221 = vld [vmem:[#allocation3 + $0x148] sm:$0xf]
        %v5223 = vshrl.u32 %v5174, 16
        %v5225 = vrot.slane %v5223, 7
        %v5226 = vrot.slane %v5225, 4
        %v5228 = vshrl.u32 %v5175, 16
        %v5230 = vrot.slane %v5228, 7
        %v5231 = vshll.u32 %v5175, 16
        %v5233 = vor.u32 %v5230, %v5231
        %v5234 = vsel %vm715, %v5226, %v5233
        %v5236 = vshrl.u32 %v5176, 16
        %v5238 = vrot.slane %v5236, 7
        %v5239 = vrot.slane %v5238, 4
        %v5241 = vshrl.u32 %v5177, 16
        %v5243 = vrot.slane %v5241, 7
        %v5244 = vshll.u32 %v5177, 16
        %v5246 = vor.u32 %v5243, %v5244
        %v5247 = vsel %vm715, %v5239, %v5246
        %v5249 = vshrl.u32 %v5178, 16
        %v5251 = vrot.slane %v5249, 7
        %v5252 = vrot.slane %v5251, 4
        %v5254 = vshrl.u32 %v5179, 16
        %v5256 = vrot.slane %v5254, 7
        %v5257 = vshll.u32 %v5179, 16
        %v5259 = vor.u32 %v5256, %v5257
        %v5260 = vsel %vm715, %v5252, %v5259
        %v5262 = vshrl.u32 %v5180, 16
        %v5264 = vrot.slane %v5262, 7
        %v5265 = vrot.slane %v5264, 4
        %v5267 = vshrl.u32 %v5181, 16
        %v5269 = vrot.slane %v5267, 7
        %v5270 = vshll.u32 %v5181, 16
        %v5272 = vor.u32 %v5269, %v5270
        %v5273 = vsel %vm715, %v5265, %v5272
        %v5275 = vshrl.u32 %v5182, 16
        %v5277 = vrot.slane %v5275, 7
        %v5278 = vrot.slane %v5277, 4
        %v5280 = vshrl.u32 %v5183, 16
        %v5282 = vrot.slane %v5280, 7
        %v5283 = vshll.u32 %v5183, 16
        %v5285 = vor.u32 %v5282, %v5283
        %v5286 = vsel %vm715, %v5278, %v5285
        %v5288 = vshrl.u32 %v5184, 16
        %v5290 = vrot.slane %v5288, 7
        %v5291 = vrot.slane %v5290, 4
        %v5293 = vshrl.u32 %v5185, 16
        %v5295 = vrot.slane %v5293, 7
        %v5296 = vshll.u32 %v5185, 16
        %v5298 = vor.u32 %v5295, %v5296
        %v5299 = vsel %vm715, %v5291, %v5298
        %v5301 = vshrl.u32 %v5186, 16
        %v5303 = vrot.slane %v5301, 7
        %v5304 = vrot.slane %v5303, 4
        %v5306 = vshrl.u32 %v5187, 16
        %v5308 = vrot.slane %v5306, 7
        %v5309 = vshll.u32 %v5187, 16
        %v5311 = vor.u32 %v5308, %v5309
        %v5312 = vsel %vm715, %v5304, %v5311
        %v5314 = vshrl.u32 %v5188, 16
        %v5316 = vrot.slane %v5314, 7
        %v5317 = vrot.slane %v5316, 4
        %v5319 = vshrl.u32 %v5189, 16
        %v5321 = vrot.slane %v5319, 7
        %v5322 = vshll.u32 %v5189, 16
        %v5324 = vor.u32 %v5321, %v5322
        %v5325 = vsel %vm715, %v5317, %v5324
        %v5327 = vshrl.u32 %v5190, 16
        %v5329 = vrot.slane %v5327, 7
        %v5330 = vrot.slane %v5329, 4
        %v5332 = vshrl.u32 %v5191, 16
        %v5334 = vrot.slane %v5332, 7
        %v5335 = vshll.u32 %v5191, 16
        %v5337 = vor.u32 %v5334, %v5335
        %v5338 = vsel %vm715, %v5330, %v5337
        %v5340 = vshrl.u32 %v5192, 16
        %v5342 = vrot.slane %v5340, 7
        %v5343 = vrot.slane %v5342, 4
        %v5345 = vshrl.u32 %v5193, 16
        %v5347 = vrot.slane %v5345, 7
        %v5348 = vshll.u32 %v5193, 16
        %v5350 = vor.u32 %v5347, %v5348
        %v5351 = vsel %vm715, %v5343, %v5350
        %v5353 = vshrl.u32 %v5194, 16
        %v5355 = vrot.slane %v5353, 7
        %v5356 = vrot.slane %v5355, 4
        %v5358 = vshrl.u32 %v5195, 16
        %v5360 = vrot.slane %v5358, 7
        %v5361 = vshll.u32 %v5195, 16
        %v5363 = vor.u32 %v5360, %v5361
        %v5364 = vsel %vm715, %v5356, %v5363
        %v5366 = vshrl.u32 %v5196, 16
        %v5368 = vrot.slane %v5366, 7
        %v5369 = vrot.slane %v5368, 4
        %v5371 = vshrl.u32 %v5197, 16
        %v5373 = vrot.slane %v5371, 7
        %v5374 = vshll.u32 %v5197, 16
        %v5376 = vor.u32 %v5373, %v5374
        %v5377 = vsel %vm715, %v5369, %v5376
        %v5379 = vshrl.u32 %v5198, 16
        %v5381 = vrot.slane %v5379, 7
        %v5382 = vrot.slane %v5381, 4
        %v5384 = vshrl.u32 %v5199, 16
        %v5386 = vrot.slane %v5384, 7
        %v5387 = vshll.u32 %v5199, 16
        %v5389 = vor.u32 %v5386, %v5387
        %v5390 = vsel %vm715, %v5382, %v5389
        %v5392 = vshrl.u32 %v5200, 16
        %v5394 = vrot.slane %v5392, 7
        %v5395 = vrot.slane %v5394, 4
        %v5397 = vshrl.u32 %v5201, 16
        %v5399 = vrot.slane %v5397, 7
        %v5400 = vshll.u32 %v5201, 16
        %v5402 = vor.u32 %v5399, %v5400
        %v5403 = vsel %vm715, %v5395, %v5402
        %v5405 = vshrl.u32 %v5202, 16
        %v5407 = vrot.slane %v5405, 7
        %v5408 = vrot.slane %v5407, 4
        %v5410 = vshrl.u32 %v5203, 16
        %v5412 = vrot.slane %v5410, 7
        %v5413 = vshll.u32 %v5203, 16
        %v5415 = vor.u32 %v5412, %v5413
        %v5416 = vsel %vm715, %v5408, %v5415
        %v5418 = vshrl.u32 %v5204, 16
        %v5420 = vrot.slane %v5418, 7
        %v5421 = vrot.slane %v5420, 4
        %v5423 = vshrl.u32 %v5205, 16
        %v5425 = vrot.slane %v5423, 7
        %v5426 = vshll.u32 %v5205, 16
        %v5428 = vor.u32 %v5425, %v5426
        %v5429 = vsel %vm715, %v5421, %v5428
        %v5431 = vshrl.u32 %v5206, 16
        %v5433 = vrot.slane %v5431, 7
        %v5434 = vrot.slane %v5433, 4
        %v5436 = vshrl.u32 %v5207, 16
        %v5438 = vrot.slane %v5436, 7
        %v5439 = vshll.u32 %v5207, 16
        %v5441 = vor.u32 %v5438, %v5439
        %v5442 = vsel %vm715, %v5434, %v5441
        %v5444 = vshrl.u32 %v5208, 16
        %v5446 = vrot.slane %v5444, 7
        %v5447 = vrot.slane %v5446, 4
        %v5449 = vshrl.u32 %v5209, 16
        %v5451 = vrot.slane %v5449, 7
        %v5452 = vshll.u32 %v5209, 16
        %v5454 = vor.u32 %v5451, %v5452
        %v5455 = vsel %vm715, %v5447, %v5454
        %v5457 = vshrl.u32 %v5210, 16
        %v5459 = vrot.slane %v5457, 7
        %v5460 = vrot.slane %v5459, 4
        %v5462 = vshrl.u32 %v5211, 16
        %v5464 = vrot.slane %v5462, 7
        %v5465 = vshll.u32 %v5211, 16
        %v5467 = vor.u32 %v5464, %v5465
        %v5468 = vsel %vm715, %v5460, %v5467
        %v5470 = vshrl.u32 %v5212, 16
        %v5472 = vrot.slane %v5470, 7
        %v5473 = vrot.slane %v5472, 4
        %v5475 = vshrl.u32 %v5213, 16
        %v5477 = vrot.slane %v5475, 7
        %v5478 = vshll.u32 %v5213, 16
        %v5480 = vor.u32 %v5477, %v5478
        %v5481 = vsel %vm715, %v5473, %v5480
        %v5483 = vshrl.u32 %v5214, 16
        %v5485 = vrot.slane %v5483, 7
        %v5486 = vrot.slane %v5485, 4
        %v5488 = vshrl.u32 %v5215, 16
        %v5490 = vrot.slane %v5488, 7
        %v5491 = vshll.u32 %v5215, 16
        %v5493 = vor.u32 %v5490, %v5491
        %v5494 = vsel %vm715, %v5486, %v5493
        %v5496 = vshrl.u32 %v5216, 16
        %v5498 = vrot.slane %v5496, 7
        %v5499 = vrot.slane %v5498, 4
        %v5501 = vshrl.u32 %v5217, 16
        %v5503 = vrot.slane %v5501, 7
        %v5504 = vshll.u32 %v5217, 16
        %v5506 = vor.u32 %v5503, %v5504
        %v5507 = vsel %vm715, %v5499, %v5506
        %v5509 = vshrl.u32 %v5218, 16
        %v5511 = vrot.slane %v5509, 7
        %v5512 = vrot.slane %v5511, 4
        %v5514 = vshrl.u32 %v5219, 16
        %v5516 = vrot.slane %v5514, 7
        %v5517 = vshll.u32 %v5219, 16
        %v5519 = vor.u32 %v5516, %v5517
        %v5520 = vsel %vm715, %v5512, %v5519
        %v5522 = vshrl.u32 %v5220, 16
        %v5524 = vrot.slane %v5522, 7
        %v5525 = vrot.slane %v5524, 4
        %v5527 = vshrl.u32 %v5221, 16
        %v5529 = vrot.slane %v5527, 7
        %v5530 = vshll.u32 %v5221, 16
        %v5532 = vor.u32 %v5529, %v5530
        %v5533 = vsel %vm715, %v5525, %v5532
        %v5534 = vld [vmem:[%s3] sm:$0xf]
        %s5535 = scalar_lea.vmem %s3, 4
        %v5536 = vld [vmem:[%s5535] sm:$0xf]
        %v5561 = vunpack.c.l.b16 %v5175
        %v5562 = vunpack.c.l.b16 %v5177
        %v5563 = vunpack.c.l.b16 %v5179
        %v5564 = vunpack.c.l.b16 %v5181
        %v5565 = vunpack.c.l.b16 %v5183
        %v5566 = vunpack.c.l.b16 %v5185
        %v5567 = vunpack.c.l.b16 %v5187
        %v5568 = vunpack.c.l.b16 %v5189
        %v5569 = vunpack.c.l.b16 %v5191
        %v5570 = vunpack.c.l.b16 %v5193
        %v5571 = vunpack.c.l.b16 %v5195
        %v5572 = vunpack.c.l.b16 %v5197
        %v5573 = vunpack.c.l.b16 %v5199
        %v5574 = vunpack.c.l.b16 %v5201
        %v5575 = vunpack.c.l.b16 %v5203
        %v5576 = vunpack.c.l.b16 %v5205
        %v5577 = vunpack.c.l.b16 %v5207
        %v5578 = vunpack.c.l.b16 %v5209
        %v5579 = vunpack.c.l.b16 %v5211
        %v5580 = vunpack.c.l.b16 %v5213
        %v5581 = vunpack.c.l.b16 %v5215
        %v5582 = vunpack.c.l.b16 %v5217
        %v5583 = vunpack.c.l.b16 %v5219
        %v5584 = vunpack.c.l.b16 %v5221
        %v5585 = vpack.c.b16 %v5562, %v5561
        %v5586 = vpack.c.b16 %v5564, %v5563
        %v5587 = vpack.c.b16 %v5566, %v5565
        %v5588 = vpack.c.b16 %v5568, %v5567
        %v5589 = vpack.c.b16 %v5570, %v5569
        %v5590 = vpack.c.b16 %v5572, %v5571
        %v5591 = vpack.c.b16 %v5574, %v5573
        %v5592 = vpack.c.b16 %v5576, %v5575
        %v5593 = vpack.c.b16 %v5578, %v5577
        %v5594 = vpack.c.b16 %v5580, %v5579
        %v5595 = vpack.c.b16 %v5582, %v5581
        %v5596 = vpack.c.b16 %v5584, %v5583
        %vm5597 = vcmask 64512
        %v5599 = vsel %vm5597, %v5585, 0
        %v5602 = vsel %vm5597, %v5586, 0
        %v5605 = vsel %vm5597, %v5587, 0
        %v5608 = vsel %vm5597, %v5588, 0
        %v5611 = vsel %vm5597, %v5589, 0
        %v5614 = vsel %vm5597, %v5590, 0
        %v5617 = vsel %vm5597, %v5591, 0
        %v5620 = vsel %vm5597, %v5592, 0
        %v5623 = vsel %vm5597, %v5593, 0
        %v5626 = vsel %vm5597, %v5594, 0
        %v5629 = vsel %vm5597, %v5595, 0
        %v5632 = vsel %vm5597, %v5596, 0
        %vm5634 = vcmask 1043456
        %v5636 = vsel %vm5634, %v5536, 0
        %5638 = vmatprep.subr.bf16.mxu0 0
        %5639 = vmatpush1.bf16.msra.mxu0 0
        %5640 = vmatprep.subr.bf16.mxu0 0
        %5641 = vmatpush1.bf16.msra.mxu0 0
        %5642 = vmatprep.subr.bf16.mxu0 0
        %5643 = vmatpush1.bf16.msra.mxu0 0
        %5644 = vmatprep.subr.bf16.mxu0 0
        %5645 = vmatpush1.bf16.msra.mxu0 0
        %5646 = vmatprep.subr.bf16.mxu0 0
        %5647 = vmatpush1.bf16.msra.mxu0 0
        %5648 = vmatprep.subr.bf16.mxu0 0
        %5649 = vmatpush1.bf16.msra.mxu0 0
        %5650 = vmatprep.subr.bf16.mxu0 0
        %5651 = vmatpush1.bf16.msra.mxu0 0
        %5652 = vmatprep.subr.bf16.mxu0 0
        %5653 = vmatpush1.bf16.msra.mxu0 %v5636
        %5654 = vmatprep.subr.bf16.mxu0 0
        %5655 = vmatpush2.bf16.msra.mxu0 0
        %5656 = vmatprep.subr.bf16.mxu0 0
        %5657 = vmatpush2.bf16.msra.mxu0 0
        %5658 = vmatprep.subr.bf16.mxu0 0
        %5659 = vmatpush2.bf16.msra.mxu0 0
        %5660 = vmatprep.subr.bf16.mxu0 0
        %5661 = vmatpush2.bf16.msra.mxu0 0
        %5662 = vmatprep.subr.bf16.mxu0 0
        %5663 = vmatpush2.bf16.msra.mxu0 0
        %5664 = vmatprep.subr.bf16.mxu0 0
        %5665 = vmatpush2.bf16.msra.mxu0 0
        %5666 = vmatprep.subr.bf16.mxu0 0
        %5667 = vmatpush2.bf16.msra.mxu0 0
        %5668 = vmatprep.subr.bf16.mxu0 0
        %5669 = vmatpush2.bf16.msra.mxu0 0
        %5670 = vmatprep.mubr.bf16.mxu0 0
        %5671 = vmatmul.mubr.bf16.gmra.mxu0 %v5599
        %v5672 = vpop.f32.mrf.mxu0
        %v5673 = vadd.f32 0.0, %v5672
        %v5674 = vpop.f32.mrf.mxu0
        %v5675 = vpop.f32.mrf.mxu0
        %v5676 = vadd.f32 0.0, %v5675
        %v5677 = vpop.f32.mrf.mxu0
        %5678 = vmatprep.mubr.bf16.mxu0 0
        %5679 = vmatmul.mubr.bf16.gmra.mxu0 %v5602
        %v5680 = vpop.f32.mrf.mxu0
        %v5681 = vadd.f32 0.0, %v5680
        %v5682 = vpop.f32.mrf.mxu0
        %v5683 = vpop.f32.mrf.mxu0
        %v5684 = vadd.f32 0.0, %v5683
        %v5685 = vpop.f32.mrf.mxu0
        %5686 = vmatprep.mubr.bf16.mxu0 0
        %5687 = vmatmul.mubr.bf16.gmra.mxu0 %v5605
        %v5688 = vpop.f32.mrf.mxu0
        %v5689 = vadd.f32 0.0, %v5688
        %v5690 = vpop.f32.mrf.mxu0
        %v5691 = vpop.f32.mrf.mxu0
        %v5692 = vadd.f32 0.0, %v5691
        %v5693 = vpop.f32.mrf.mxu0
        %5694 = vmatprep.mubr.bf16.mxu0 0
        %5695 = vmatmul.mubr.bf16.gmra.mxu0 %v5608
        %v5696 = vpop.f32.mrf.mxu0
        %v5697 = vadd.f32 0.0, %v5696
        %v5698 = vpop.f32.mrf.mxu0
        %v5699 = vpop.f32.mrf.mxu0
        %v5700 = vadd.f32 0.0, %v5699
        %v5701 = vpop.f32.mrf.mxu0
        %5702 = vmatprep.mubr.bf16.mxu0 0
        %5703 = vmatmul.mubr.bf16.gmra.mxu0 %v5611
        %v5704 = vpop.f32.mrf.mxu0
        %v5705 = vadd.f32 0.0, %v5704
        %v5706 = vpop.f32.mrf.mxu0
        %v5707 = vpop.f32.mrf.mxu0
        %v5708 = vadd.f32 0.0, %v5707
        %v5709 = vpop.f32.mrf.mxu0
        %5710 = vmatprep.mubr.bf16.mxu0 0
        %5711 = vmatmul.mubr.bf16.gmra.mxu0 %v5614
        %v5712 = vpop.f32.mrf.mxu0
        %v5713 = vadd.f32 0.0, %v5712
        %v5714 = vpop.f32.mrf.mxu0
        %v5715 = vpop.f32.mrf.mxu0
        %v5716 = vadd.f32 0.0, %v5715
        %v5717 = vpop.f32.mrf.mxu0
        %5718 = vmatprep.mubr.bf16.mxu0 0
        %5719 = vmatmul.mubr.bf16.gmra.mxu0 %v5617
        %v5720 = vpop.f32.mrf.mxu0
        %v5721 = vadd.f32 0.0, %v5720
        %v5722 = vpop.f32.mrf.mxu0
        %v5723 = vpop.f32.mrf.mxu0
        %v5724 = vadd.f32 0.0, %v5723
        %v5725 = vpop.f32.mrf.mxu0
        %5726 = vmatprep.mubr.bf16.mxu0 0
        %5727 = vmatmul.mubr.bf16.gmra.mxu0 %v5620
        %v5728 = vpop.f32.mrf.mxu0
        %v5729 = vadd.f32 0.0, %v5728
        %v5730 = vpop.f32.mrf.mxu0
        %v5731 = vpop.f32.mrf.mxu0
        %v5732 = vadd.f32 0.0, %v5731
        %v5733 = vpop.f32.mrf.mxu0
        %5734 = vmatprep.mubr.bf16.mxu0 0
        %5735 = vmatmul.mubr.bf16.gmra.mxu0 %v5623
        %v5736 = vpop.f32.mrf.mxu0
        %v5737 = vadd.f32 0.0, %v5736
        %v5738 = vpop.f32.mrf.mxu0
        %v5739 = vpop.f32.mrf.mxu0
        %v5740 = vadd.f32 0.0, %v5739
        %v5741 = vpop.f32.mrf.mxu0
        %5742 = vmatprep.mubr.bf16.mxu0 0
        %5743 = vmatmul.mubr.bf16.gmra.mxu0 %v5626
        %v5744 = vpop.f32.mrf.mxu0
        %v5745 = vadd.f32 0.0, %v5744
        %v5746 = vpop.f32.mrf.mxu0
        %v5747 = vpop.f32.mrf.mxu0
        %v5748 = vadd.f32 0.0, %v5747
        %v5749 = vpop.f32.mrf.mxu0
        %5750 = vmatprep.mubr.bf16.mxu0 0
        %5751 = vmatmul.mubr.bf16.gmra.mxu0 %v5629
        %v5752 = vpop.f32.mrf.mxu0
        %v5753 = vadd.f32 0.0, %v5752
        %v5754 = vpop.f32.mrf.mxu0
        %v5755 = vpop.f32.mrf.mxu0
        %v5756 = vadd.f32 0.0, %v5755
        %v5757 = vpop.f32.mrf.mxu0
        %5758 = vmatprep.mubr.bf16.mxu0 0
        %5759 = vmatmul.mubr.bf16.gmra.mxu0 %v5632
        %v5760 = vpop.f32.mrf.mxu0
        %v5761 = vadd.f32 0.0, %v5760
        %v5762 = vpop.f32.mrf.mxu0
        %v5763 = vpop.f32.mrf.mxu0
        %v5764 = vadd.f32 0.0, %v5763
        %v5765 = vpop.f32.mrf.mxu0
        %5766 = vdwg.mxu0
        %v5767 = vunpack.c.l.b16 %v5234
        %v5768 = vunpack.c.l.b16 %v5247
        %v5769 = vunpack.c.l.b16 %v5260
        %v5770 = vunpack.c.l.b16 %v5273
        %v5771 = vunpack.c.l.b16 %v5286
        %v5772 = vunpack.c.l.b16 %v5299
        %v5773 = vunpack.c.l.b16 %v5312
        %v5774 = vunpack.c.l.b16 %v5325
        %v5775 = vunpack.c.l.b16 %v5338
        %v5776 = vunpack.c.l.b16 %v5351
        %v5777 = vunpack.c.l.b16 %v5364
        %v5778 = vunpack.c.l.b16 %v5377
        %v5779 = vunpack.c.l.b16 %v5390
        %v5780 = vunpack.c.l.b16 %v5403
        %v5781 = vunpack.c.l.b16 %v5416
        %v5782 = vunpack.c.l.b16 %v5429
        %v5783 = vunpack.c.l.b16 %v5442
        %v5784 = vunpack.c.l.b16 %v5455
        %v5785 = vunpack.c.l.b16 %v5468
        %v5786 = vunpack.c.l.b16 %v5481
        %v5787 = vunpack.c.l.b16 %v5494
        %v5788 = vunpack.c.l.b16 %v5507
        %v5789 = vunpack.c.l.b16 %v5520
        %v5790 = vunpack.c.l.b16 %v5533
        %v5791 = vpack.c.b16 %v5768, %v5767
        %v5792 = vpack.c.b16 %v5770, %v5769
        %v5793 = vpack.c.b16 %v5772, %v5771
        %v5794 = vpack.c.b16 %v5774, %v5773
        %v5795 = vpack.c.b16 %v5776, %v5775
        %v5796 = vpack.c.b16 %v5778, %v5777
        %v5797 = vpack.c.b16 %v5780, %v5779
        %v5798 = vpack.c.b16 %v5782, %v5781
        %v5799 = vpack.c.b16 %v5784, %v5783
        %v5800 = vpack.c.b16 %v5786, %v5785
        %v5801 = vpack.c.b16 %v5788, %v5787
        %v5802 = vpack.c.b16 %v5790, %v5789
        %v5804 = vsel %vm5597, %v5791, 0
        %v5807 = vsel %vm5597, %v5792, 0
        %v5810 = vsel %vm5597, %v5793, 0
        %v5813 = vsel %vm5597, %v5794, 0
        %v5816 = vsel %vm5597, %v5795, 0
        %v5819 = vsel %vm5597, %v5796, 0
        %v5822 = vsel %vm5597, %v5797, 0
        %v5825 = vsel %vm5597, %v5798, 0
        %v5828 = vsel %vm5597, %v5799, 0
        %v5831 = vsel %vm5597, %v5800, 0
        %v5834 = vsel %vm5597, %v5801, 0
        %v5837 = vsel %vm5597, %v5802, 0
        %v5840 = vsel %vm5634, %v5534, 0
        %5842 = vmatprep.subr.bf16.mxu0 0
        %5843 = vmatpush1.bf16.msra.mxu0 0
        %5844 = vmatprep.subr.bf16.mxu0 0
        %5845 = vmatpush1.bf16.msra.mxu0 0
        %5846 = vmatprep.subr.bf16.mxu0 0
        %5847 = vmatpush1.bf16.msra.mxu0 0
        %5848 = vmatprep.subr.bf16.mxu0 0
        %5849 = vmatpush1.bf16.msra.mxu0 0
        %5850 = vmatprep.subr.bf16.mxu0 0
        %5851 = vmatpush1.bf16.msra.mxu0 0
        %5852 = vmatprep.subr.bf16.mxu0 0
        %5853 = vmatpush1.bf16.msra.mxu0 0
        %5854 = vmatprep.subr.bf16.mxu0 0
        %5855 = vmatpush1.bf16.msra.mxu0 0
        %5856 = vmatprep.subr.bf16.mxu0 0
        %5857 = vmatpush1.bf16.msra.mxu0 %v5840
        %5858 = vmatprep.subr.bf16.mxu0 0
        %5859 = vmatpush2.bf16.msra.mxu0 0
        %5860 = vmatprep.subr.bf16.mxu0 0
        %5861 = vmatpush2.bf16.msra.mxu0 0
        %5862 = vmatprep.subr.bf16.mxu0 0
        %5863 = vmatpush2.bf16.msra.mxu0 0
        %5864 = vmatprep.subr.bf16.mxu0 0
        %5865 = vmatpush2.bf16.msra.mxu0 0
        %5866 = vmatprep.subr.bf16.mxu0 0
        %5867 = vmatpush2.bf16.msra.mxu0 0
        %5868 = vmatprep.subr.bf16.mxu0 0
        %5869 = vmatpush2.bf16.msra.mxu0 0
        %5870 = vmatprep.subr.bf16.mxu0 0
        %5871 = vmatpush2.bf16.msra.mxu0 0
        %5872 = vmatprep.subr.bf16.mxu0 0
        %5873 = vmatpush2.bf16.msra.mxu0 0
        %5874 = vmatprep.mubr.bf16.mxu0 0
        %5875 = vmatmul.mubr.bf16.gmra.mxu0 %v5804
        %v5876 = vpop.f32.mrf.mxu0
        %v5877 = vadd.f32 %v5673, %v5876
        %v5878 = vpop.f32.mrf.mxu0
        %v5879 = vpop.f32.mrf.mxu0
        %v5880 = vadd.f32 %v5676, %v5879
        %v5881 = vpop.f32.mrf.mxu0
        %5882 = vmatprep.mubr.bf16.mxu0 0
        %5883 = vmatmul.mubr.bf16.gmra.mxu0 %v5807
        %v5884 = vpop.f32.mrf.mxu0
        %v5885 = vadd.f32 %v5681, %v5884
        %v5886 = vpop.f32.mrf.mxu0
        %v5887 = vpop.f32.mrf.mxu0
        %v5888 = vadd.f32 %v5684, %v5887
        %v5889 = vpop.f32.mrf.mxu0
        %5890 = vmatprep.mubr.bf16.mxu0 0
        %5891 = vmatmul.mubr.bf16.gmra.mxu0 %v5810
        %v5892 = vpop.f32.mrf.mxu0
        %v5893 = vadd.f32 %v5689, %v5892
        %v5894 = vpop.f32.mrf.mxu0
        %v5895 = vpop.f32.mrf.mxu0
        %v5896 = vadd.f32 %v5692, %v5895
        %v5897 = vpop.f32.mrf.mxu0
        %5898 = vmatprep.mubr.bf16.mxu0 0
        %5899 = vmatmul.mubr.bf16.gmra.mxu0 %v5813
        %v5900 = vpop.f32.mrf.mxu0
        %v5901 = vadd.f32 %v5697, %v5900
        %v5902 = vpop.f32.mrf.mxu0
        %v5903 = vpop.f32.mrf.mxu0
        %v5904 = vadd.f32 %v5700, %v5903
        %v5905 = vpop.f32.mrf.mxu0
        %5906 = vmatprep.mubr.bf16.mxu0 0
        %5907 = vmatmul.mubr.bf16.gmra.mxu0 %v5816
        %v5908 = vpop.f32.mrf.mxu0
        %v5909 = vadd.f32 %v5705, %v5908
        %v5910 = vpop.f32.mrf.mxu0
        %v5911 = vpop.f32.mrf.mxu0
        %v5912 = vadd.f32 %v5708, %v5911
        %v5913 = vpop.f32.mrf.mxu0
        %5914 = vmatprep.mubr.bf16.mxu0 0
        %5915 = vmatmul.mubr.bf16.gmra.mxu0 %v5819
        %v5916 = vpop.f32.mrf.mxu0
        %v5917 = vadd.f32 %v5713, %v5916
        %v5918 = vpop.f32.mrf.mxu0
        %v5919 = vpop.f32.mrf.mxu0
        %v5920 = vadd.f32 %v5716, %v5919
        %v5921 = vpop.f32.mrf.mxu0
        %5922 = vmatprep.mubr.bf16.mxu0 0
        %5923 = vmatmul.mubr.bf16.gmra.mxu0 %v5822
        %v5924 = vpop.f32.mrf.mxu0
        %v5925 = vadd.f32 %v5721, %v5924
        %v5926 = vpop.f32.mrf.mxu0
        %v5927 = vpop.f32.mrf.mxu0
        %v5928 = vadd.f32 %v5724, %v5927
        %v5929 = vpop.f32.mrf.mxu0
        %5930 = vmatprep.mubr.bf16.mxu0 0
        %5931 = vmatmul.mubr.bf16.gmra.mxu0 %v5825
        %v5932 = vpop.f32.mrf.mxu0
        %v5933 = vadd.f32 %v5729, %v5932
        %v5934 = vpop.f32.mrf.mxu0
        %v5935 = vpop.f32.mrf.mxu0
        %v5936 = vadd.f32 %v5732, %v5935
        %v5937 = vpop.f32.mrf.mxu0
        %5938 = vmatprep.mubr.bf16.mxu0 0
        %5939 = vmatmul.mubr.bf16.gmra.mxu0 %v5828
        %v5940 = vpop.f32.mrf.mxu0
        %v5941 = vadd.f32 %v5737, %v5940
        %v5942 = vpop.f32.mrf.mxu0
        %v5943 = vpop.f32.mrf.mxu0
        %v5944 = vadd.f32 %v5740, %v5943
        %v5945 = vpop.f32.mrf.mxu0
        %5946 = vmatprep.mubr.bf16.mxu0 0
        %5947 = vmatmul.mubr.bf16.gmra.mxu0 %v5831
        %v5948 = vpop.f32.mrf.mxu0
        %v5949 = vadd.f32 %v5745, %v5948
        %v5950 = vpop.f32.mrf.mxu0
        %v5951 = vpop.f32.mrf.mxu0
        %v5952 = vadd.f32 %v5748, %v5951
        %v5953 = vpop.f32.mrf.mxu0
        %5954 = vmatprep.mubr.bf16.mxu0 0
        %5955 = vmatmul.mubr.bf16.gmra.mxu0 %v5834
        %v5956 = vpop.f32.mrf.mxu0
        %v5957 = vadd.f32 %v5753, %v5956
        %v5958 = vpop.f32.mrf.mxu0
        %v5959 = vpop.f32.mrf.mxu0
        %v5960 = vadd.f32 %v5756, %v5959
        %v5961 = vpop.f32.mrf.mxu0
        %5962 = vmatprep.mubr.bf16.mxu0 0
        %5963 = vmatmul.mubr.bf16.gmra.mxu0 %v5837
        %v5964 = vpop.f32.mrf.mxu0
        %v5965 = vadd.f32 %v5761, %v5964
        %v5966 = vpop.f32.mrf.mxu0
        %v5967 = vpop.f32.mrf.mxu0
        %v5968 = vadd.f32 %v5764, %v5967
        %v5969 = vpop.f32.mrf.mxu0
        %5970 = vdwg.mxu0
        %v5971 = vld [vmem:[#allocation3 + $0x4] sm:$0xf]
        %v5972 = vld [vmem:[#allocation3 + $0x8] sm:$0x1]
        %v5973 = vld [vmem:[#allocation3 + $0x10] sm:$0xf]
        %v5974 = vld [vmem:[#allocation3 + $0x14] sm:$0x1]
        %v5975 = vld [vmem:[#allocation3 + $0x1c] sm:$0xf]
        %v5976 = vld [vmem:[#allocation3 + $0x20] sm:$0x1]
        %v5977 = vld [vmem:[#allocation3 + $0x28] sm:$0xf]
        %v5978 = vld [vmem:[#allocation3 + $0x2c] sm:$0x1]
        %v5979 = vld [vmem:[#allocation3 + $0x34] sm:$0xf]
        %v5980 = vld [vmem:[#allocation3 + $0x38] sm:$0x1]
        %v5981 = vld [vmem:[#allocation3 + $0x40] sm:$0xf]
        %v5982 = vld [vmem:[#allocation3 + $0x44] sm:$0x1]
        %v5983 = vld [vmem:[#allocation3 + $0x4c] sm:$0xf]
        %v5984 = vld [vmem:[#allocation3 + $0x50] sm:$0x1]
        %v5985 = vld [vmem:[#allocation3 + $0x58] sm:$0xf]
        %v5986 = vld [vmem:[#allocation3 + $0x5c] sm:$0x1]
        %v5987 = vld [vmem:[#allocation3 + $0x7c] sm:$0xf]
        %v5988 = vld [vmem:[#allocation3 + $0x80] sm:$0x1]
        %v5989 = vld [vmem:[#allocation3 + $0x88] sm:$0xf]
        %v5990 = vld [vmem:[#allocation3 + $0x8c] sm:$0x1]
        %v5991 = vld [vmem:[#allocation3 + $0x94] sm:$0xf]
        %v5992 = vld [vmem:[#allocation3 + $0x98] sm:$0x1]
        %v5993 = vld [vmem:[#allocation3 + $0xa0] sm:$0xf]
        %v5994 = vld [vmem:[#allocation3 + $0xa4] sm:$0x1]
        %v5995 = vld [vmem:[#allocation3 + $0xac] sm:$0xf]
        %v5996 = vld [vmem:[#allocation3 + $0xb0] sm:$0x1]
        %v5997 = vld [vmem:[#allocation3 + $0xb8] sm:$0xf]
        %v5998 = vld [vmem:[#allocation3 + $0xbc] sm:$0x1]
        %v5999 = vld [vmem:[#allocation3 + $0xc4] sm:$0xf]
        %v6000 = vld [vmem:[#allocation3 + $0xc8] sm:$0x1]
        %v6001 = vld [vmem:[#allocation3 + $0xd0] sm:$0xf]
        %v6002 = vld [vmem:[#allocation3 + $0xd4] sm:$0x1]
        %v6003 = vld [vmem:[#allocation3 + $0xf4] sm:$0xf]
        %v6004 = vld [vmem:[#allocation3 + $0xf8] sm:$0x1]
        %v6005 = vld [vmem:[#allocation3 + $0x100] sm:$0xf]
        %v6006 = vld [vmem:[#allocation3 + $0x104] sm:$0x1]
        %v6007 = vld [vmem:[#allocation3 + $0x10c] sm:$0xf]
        %v6008 = vld [vmem:[#allocation3 + $0x110] sm:$0x1]
        %v6009 = vld [vmem:[#allocation3 + $0x118] sm:$0xf]
        %v6010 = vld [vmem:[#allocation3 + $0x11c] sm:$0x1]
        %v6011 = vld [vmem:[#allocation3 + $0x124] sm:$0xf]
        %v6012 = vld [vmem:[#allocation3 + $0x128] sm:$0x1]
        %v6013 = vld [vmem:[#allocation3 + $0x130] sm:$0xf]
        %v6014 = vld [vmem:[#allocation3 + $0x134] sm:$0x1]
        %v6015 = vld [vmem:[#allocation3 + $0x13c] sm:$0xf]
        %v6016 = vld [vmem:[#allocation3 + $0x140] sm:$0x1]
        %v6017 = vld [vmem:[#allocation3 + $0x148] sm:$0xf]
        %v6018 = vld [vmem:[#allocation3 + $0x14c] sm:$0x1]
        %v6020 = vshrl.u32 %v5971, 16
        %v6022 = vrot.slane %v6020, 4
        %v6023 = vshll.u32 %v5971, 16
        %v6025 = vrot.slane %v6023, 5
        %v6026 = vor.u32 %v6022, %v6025
        %v6027 = vrot.slane %v6026, 4
        %v6029 = vshll.u32 %v5972, 16
        %v6031 = vrot.slane %v6029, 5
        %v6032 = vsel %vm1515, %v6027, %v6031
        %v6034 = vshrl.u32 %v5973, 16
        %v6036 = vrot.slane %v6034, 4
        %v6037 = vshll.u32 %v5973, 16
        %v6039 = vrot.slane %v6037, 5
        %v6040 = vor.u32 %v6036, %v6039
        %v6041 = vrot.slane %v6040, 4
        %v6043 = vshll.u32 %v5974, 16
        %v6045 = vrot.slane %v6043, 5
        %v6046 = vsel %vm1515, %v6041, %v6045
        %v6048 = vshrl.u32 %v5975, 16
        %v6050 = vrot.slane %v6048, 4
        %v6051 = vshll.u32 %v5975, 16
        %v6053 = vrot.slane %v6051, 5
        %v6054 = vor.u32 %v6050, %v6053
        %v6055 = vrot.slane %v6054, 4
        %v6057 = vshll.u32 %v5976, 16
        %v6059 = vrot.slane %v6057, 5
        %v6060 = vsel %vm1515, %v6055, %v6059
        %v6062 = vshrl.u32 %v5977, 16
        %v6064 = vrot.slane %v6062, 4
        %v6065 = vshll.u32 %v5977, 16
        %v6067 = vrot.slane %v6065, 5
        %v6068 = vor.u32 %v6064, %v6067
        %v6069 = vrot.slane %v6068, 4
        %v6071 = vshll.u32 %v5978, 16
        %v6073 = vrot.slane %v6071, 5
        %v6074 = vsel %vm1515, %v6069, %v6073
        %v6076 = vshrl.u32 %v5979, 16
        %v6078 = vrot.slane %v6076, 4
        %v6079 = vshll.u32 %v5979, 16
        %v6081 = vrot.slane %v6079, 5
        %v6082 = vor.u32 %v6078, %v6081
        %v6083 = vrot.slane %v6082, 4
        %v6085 = vshll.u32 %v5980, 16
        %v6087 = vrot.slane %v6085, 5
        %v6088 = vsel %vm1515, %v6083, %v6087
        %v6090 = vshrl.u32 %v5981, 16
        %v6092 = vrot.slane %v6090, 4
        %v6093 = vshll.u32 %v5981, 16
        %v6095 = vrot.slane %v6093, 5
        %v6096 = vor.u32 %v6092, %v6095
        %v6097 = vrot.slane %v6096, 4
        %v6099 = vshll.u32 %v5982, 16
        %v6101 = vrot.slane %v6099, 5
        %v6102 = vsel %vm1515, %v6097, %v6101
        %v6104 = vshrl.u32 %v5983, 16
        %v6106 = vrot.slane %v6104, 4
        %v6107 = vshll.u32 %v5983, 16
        %v6109 = vrot.slane %v6107, 5
        %v6110 = vor.u32 %v6106, %v6109
        %v6111 = vrot.slane %v6110, 4
        %v6113 = vshll.u32 %v5984, 16
        %v6115 = vrot.slane %v6113, 5
        %v6116 = vsel %vm1515, %v6111, %v6115
        %v6118 = vshrl.u32 %v5985, 16
        %v6120 = vrot.slane %v6118, 4
        %v6121 = vshll.u32 %v5985, 16
        %v6123 = vrot.slane %v6121, 5
        %v6124 = vor.u32 %v6120, %v6123
        %v6125 = vrot.slane %v6124, 4
        %v6127 = vshll.u32 %v5986, 16
        %v6129 = vrot.slane %v6127, 5
        %v6130 = vsel %vm1515, %v6125, %v6129
        %v6132 = vshrl.u32 %v5987, 16
        %v6134 = vrot.slane %v6132, 4
        %v6135 = vshll.u32 %v5987, 16
        %v6137 = vrot.slane %v6135, 5
        %v6138 = vor.u32 %v6134, %v6137
        %v6139 = vrot.slane %v6138, 4
        %v6141 = vshll.u32 %v5988, 16
        %v6143 = vrot.slane %v6141, 5
        %v6144 = vsel %vm1515, %v6139, %v6143
        %v6146 = vshrl.u32 %v5989, 16
        %v6148 = vrot.slane %v6146, 4
        %v6149 = vshll.u32 %v5989, 16
        %v6151 = vrot.slane %v6149, 5
        %v6152 = vor.u32 %v6148, %v6151
        %v6153 = vrot.slane %v6152, 4
        %v6155 = vshll.u32 %v5990, 16
        %v6157 = vrot.slane %v6155, 5
        %v6158 = vsel %vm1515, %v6153, %v6157
        %v6160 = vshrl.u32 %v5991, 16
        %v6162 = vrot.slane %v6160, 4
        %v6163 = vshll.u32 %v5991, 16
        %v6165 = vrot.slane %v6163, 5
        %v6166 = vor.u32 %v6162, %v6165
        %v6167 = vrot.slane %v6166, 4
        %v6169 = vshll.u32 %v5992, 16
        %v6171 = vrot.slane %v6169, 5
        %v6172 = vsel %vm1515, %v6167, %v6171
        %v6174 = vshrl.u32 %v5993, 16
        %v6176 = vrot.slane %v6174, 4
        %v6177 = vshll.u32 %v5993, 16
        %v6179 = vrot.slane %v6177, 5
        %v6180 = vor.u32 %v6176, %v6179
        %v6181 = vrot.slane %v6180, 4
        %v6183 = vshll.u32 %v5994, 16
        %v6185 = vrot.slane %v6183, 5
        %v6186 = vsel %vm1515, %v6181, %v6185
        %v6188 = vshrl.u32 %v5995, 16
        %v6190 = vrot.slane %v6188, 4
        %v6191 = vshll.u32 %v5995, 16
        %v6193 = vrot.slane %v6191, 5
        %v6194 = vor.u32 %v6190, %v6193
        %v6195 = vrot.slane %v6194, 4
        %v6197 = vshll.u32 %v5996, 16
        %v6199 = vrot.slane %v6197, 5
        %v6200 = vsel %vm1515, %v6195, %v6199
        %v6202 = vshrl.u32 %v5997, 16
        %v6204 = vrot.slane %v6202, 4
        %v6205 = vshll.u32 %v5997, 16
        %v6207 = vrot.slane %v6205, 5
        %v6208 = vor.u32 %v6204, %v6207
        %v6209 = vrot.slane %v6208, 4
        %v6211 = vshll.u32 %v5998, 16
        %v6213 = vrot.slane %v6211, 5
        %v6214 = vsel %vm1515, %v6209, %v6213
        %v6216 = vshrl.u32 %v5999, 16
        %v6218 = vrot.slane %v6216, 4
        %v6219 = vshll.u32 %v5999, 16
        %v6221 = vrot.slane %v6219, 5
        %v6222 = vor.u32 %v6218, %v6221
        %v6223 = vrot.slane %v6222, 4
        %v6225 = vshll.u32 %v6000, 16
        %v6227 = vrot.slane %v6225, 5
        %v6228 = vsel %vm1515, %v6223, %v6227
        %v6230 = vshrl.u32 %v6001, 16
        %v6232 = vrot.slane %v6230, 4
        %v6233 = vshll.u32 %v6001, 16
        %v6235 = vrot.slane %v6233, 5
        %v6236 = vor.u32 %v6232, %v6235
        %v6237 = vrot.slane %v6236, 4
        %v6239 = vshll.u32 %v6002, 16
        %v6241 = vrot.slane %v6239, 5
        %v6242 = vsel %vm1515, %v6237, %v6241
        %v6244 = vshrl.u32 %v6003, 16
        %v6246 = vrot.slane %v6244, 4
        %v6247 = vshll.u32 %v6003, 16
        %v6249 = vrot.slane %v6247, 5
        %v6250 = vor.u32 %v6246, %v6249
        %v6251 = vrot.slane %v6250, 4
        %v6253 = vshll.u32 %v6004, 16
        %v6255 = vrot.slane %v6253, 5
        %v6256 = vsel %vm1515, %v6251, %v6255
        %v6258 = vshrl.u32 %v6005, 16
        %v6260 = vrot.slane %v6258, 4
        %v6261 = vshll.u32 %v6005, 16
        %v6263 = vrot.slane %v6261, 5
        %v6264 = vor.u32 %v6260, %v6263
        %v6265 = vrot.slane %v6264, 4
        %v6267 = vshll.u32 %v6006, 16
        %v6269 = vrot.slane %v6267, 5
        %v6270 = vsel %vm1515, %v6265, %v6269
        %v6272 = vshrl.u32 %v6007, 16
        %v6274 = vrot.slane %v6272, 4
        %v6275 = vshll.u32 %v6007, 16
        %v6277 = vrot.slane %v6275, 5
        %v6278 = vor.u32 %v6274, %v6277
        %v6279 = vrot.slane %v6278, 4
        %v6281 = vshll.u32 %v6008, 16
        %v6283 = vrot.slane %v6281, 5
        %v6284 = vsel %vm1515, %v6279, %v6283
        %v6286 = vshrl.u32 %v6009, 16
        %v6288 = vrot.slane %v6286, 4
        %v6289 = vshll.u32 %v6009, 16
        %v6291 = vrot.slane %v6289, 5
        %v6292 = vor.u32 %v6288, %v6291
        %v6293 = vrot.slane %v6292, 4
        %v6295 = vshll.u32 %v6010, 16
        %v6297 = vrot.slane %v6295, 5
        %v6298 = vsel %vm1515, %v6293, %v6297
        %v6300 = vshrl.u32 %v6011, 16
        %v6302 = vrot.slane %v6300, 4
        %v6303 = vshll.u32 %v6011, 16
        %v6305 = vrot.slane %v6303, 5
        %v6306 = vor.u32 %v6302, %v6305
        %v6307 = vrot.slane %v6306, 4
        %v6309 = vshll.u32 %v6012, 16
        %v6311 = vrot.slane %v6309, 5
        %v6312 = vsel %vm1515, %v6307, %v6311
        %v6314 = vshrl.u32 %v6013, 16
        %v6316 = vrot.slane %v6314, 4
        %v6317 = vshll.u32 %v6013, 16
        %v6319 = vrot.slane %v6317, 5
        %v6320 = vor.u32 %v6316, %v6319
        %v6321 = vrot.slane %v6320, 4
        %v6323 = vshll.u32 %v6014, 16
        %v6325 = vrot.slane %v6323, 5
        %v6326 = vsel %vm1515, %v6321, %v6325
        %v6328 = vshrl.u32 %v6015, 16
        %v6330 = vrot.slane %v6328, 4
        %v6331 = vshll.u32 %v6015, 16
        %v6333 = vrot.slane %v6331, 5
        %v6334 = vor.u32 %v6330, %v6333
        %v6335 = vrot.slane %v6334, 4
        %v6337 = vshll.u32 %v6016, 16
        %v6339 = vrot.slane %v6337, 5
        %v6340 = vsel %vm1515, %v6335, %v6339
        %v6342 = vshrl.u32 %v6017, 16
        %v6344 = vrot.slane %v6342, 4
        %v6345 = vshll.u32 %v6017, 16
        %v6347 = vrot.slane %v6345, 5
        %v6348 = vor.u32 %v6344, %v6347
        %v6349 = vrot.slane %v6348, 4
        %v6351 = vshll.u32 %v6018, 16
        %v6353 = vrot.slane %v6351, 5
        %v6354 = vsel %vm1515, %v6349, %v6353
        %s6355 = scalar_lea.vmem %s3, 8
        %v6356 = vld [vmem:[%s6355] sm:$0xf]
        %v6357 = vunpack.c.l.b16 %v6032
        %v6358 = vunpack.c.l.b16 %v6046
        %v6359 = vunpack.c.l.b16 %v6060
        %v6360 = vunpack.c.l.b16 %v6074
        %v6361 = vunpack.c.l.b16 %v6088
        %v6362 = vunpack.c.l.b16 %v6102
        %v6363 = vunpack.c.l.b16 %v6116
        %v6364 = vunpack.c.l.b16 %v6130
        %v6365 = vunpack.c.l.b16 %v6144
        %v6366 = vunpack.c.l.b16 %v6158
        %v6367 = vunpack.c.l.b16 %v6172
        %v6368 = vunpack.c.l.b16 %v6186
        %v6369 = vunpack.c.l.b16 %v6200
        %v6370 = vunpack.c.l.b16 %v6214
        %v6371 = vunpack.c.l.b16 %v6228
        %v6372 = vunpack.c.l.b16 %v6242
        %v6373 = vunpack.c.l.b16 %v6256
        %v6374 = vunpack.c.l.b16 %v6270
        %v6375 = vunpack.c.l.b16 %v6284
        %v6376 = vunpack.c.l.b16 %v6298
        %v6377 = vunpack.c.l.b16 %v6312
        %v6378 = vunpack.c.l.b16 %v6326
        %v6379 = vunpack.c.l.b16 %v6340
        %v6380 = vunpack.c.l.b16 %v6354
        %v6381 = vpack.c.b16 %v6358, %v6357
        %v6382 = vpack.c.b16 %v6360, %v6359
        %v6383 = vpack.c.b16 %v6362, %v6361
        %v6384 = vpack.c.b16 %v6364, %v6363
        %v6385 = vpack.c.b16 %v6366, %v6365
        %v6386 = vpack.c.b16 %v6368, %v6367
        %v6387 = vpack.c.b16 %v6370, %v6369
        %v6388 = vpack.c.b16 %v6372, %v6371
        %v6389 = vpack.c.b16 %v6374, %v6373
        %v6390 = vpack.c.b16 %v6376, %v6375
        %v6391 = vpack.c.b16 %v6378, %v6377
        %v6392 = vpack.c.b16 %v6380, %v6379
        %v6394 = vsel %vm5597, %v6381, 0
        %v6397 = vsel %vm5597, %v6382, 0
        %v6400 = vsel %vm5597, %v6383, 0
        %v6403 = vsel %vm5597, %v6384, 0
        %v6406 = vsel %vm5597, %v6385, 0
        %v6409 = vsel %vm5597, %v6386, 0
        %v6412 = vsel %vm5597, %v6387, 0
        %v6415 = vsel %vm5597, %v6388, 0
        %v6418 = vsel %vm5597, %v6389, 0
        %v6421 = vsel %vm5597, %v6390, 0
        %v6424 = vsel %vm5597, %v6391, 0
        %v6427 = vsel %vm5597, %v6392, 0
        %v6430 = vsel %vm5634, %v6356, 0
        %6432 = vmatprep.subr.bf16.mxu0 0
        %6433 = vmatpush1.bf16.msra.mxu0 0
        %6434 = vmatprep.subr.bf16.mxu0 0
        %6435 = vmatpush1.bf16.msra.mxu0 0
        %6436 = vmatprep.subr.bf16.mxu0 0
        %6437 = vmatpush1.bf16.msra.mxu0 0
        %6438 = vmatprep.subr.bf16.mxu0 0
        %6439 = vmatpush1.bf16.msra.mxu0 0
        %6440 = vmatprep.subr.bf16.mxu0 0
        %6441 = vmatpush1.bf16.msra.mxu0 0
        %6442 = vmatprep.subr.bf16.mxu0 0
        %6443 = vmatpush1.bf16.msra.mxu0 0
        %6444 = vmatprep.subr.bf16.mxu0 0
        %6445 = vmatpush1.bf16.msra.mxu0 0
        %6446 = vmatprep.subr.bf16.mxu0 0
        %6447 = vmatpush1.bf16.msra.mxu0 %v6430
        %6448 = vmatprep.subr.bf16.mxu0 0
        %6449 = vmatpush2.bf16.msra.mxu0 0
        %6450 = vmatprep.subr.bf16.mxu0 0
        %6451 = vmatpush2.bf16.msra.mxu0 0
        %6452 = vmatprep.subr.bf16.mxu0 0
        %6453 = vmatpush2.bf16.msra.mxu0 0
        %6454 = vmatprep.subr.bf16.mxu0 0
        %6455 = vmatpush2.bf16.msra.mxu0 0
        %6456 = vmatprep.subr.bf16.mxu0 0
        %6457 = vmatpush2.bf16.msra.mxu0 0
        %6458 = vmatprep.subr.bf16.mxu0 0
        %6459 = vmatpush2.bf16.msra.mxu0 0
        %6460 = vmatprep.subr.bf16.mxu0 0
        %6461 = vmatpush2.bf16.msra.mxu0 0
        %6462 = vmatprep.subr.bf16.mxu0 0
        %6463 = vmatpush2.bf16.msra.mxu0 0
        %6464 = vmatprep.mubr.bf16.mxu0 0
        %6465 = vmatmul.mubr.bf16.gmra.mxu0 %v6394
        %v6466 = vpop.f32.mrf.mxu0
        %v6467 = vadd.f32 0.0, %v6466
        %v6468 = vpop.f32.mrf.mxu0
        %v6469 = vpop.f32.mrf.mxu0
        %v6470 = vadd.f32 0.0, %v6469
        %v6471 = vpop.f32.mrf.mxu0
        %6472 = vmatprep.mubr.bf16.mxu0 0
        %6473 = vmatmul.mubr.bf16.gmra.mxu0 %v6397
        %v6474 = vpop.f32.mrf.mxu0
        %v6475 = vadd.f32 0.0, %v6474
        %v6476 = vpop.f32.mrf.mxu0
        %v6477 = vpop.f32.mrf.mxu0
        %v6478 = vadd.f32 0.0, %v6477
        %v6479 = vpop.f32.mrf.mxu0
        %6480 = vmatprep.mubr.bf16.mxu0 0
        %6481 = vmatmul.mubr.bf16.gmra.mxu0 %v6400
        %v6482 = vpop.f32.mrf.mxu0
        %v6483 = vadd.f32 0.0, %v6482
        %v6484 = vpop.f32.mrf.mxu0
        %v6485 = vpop.f32.mrf.mxu0
        %v6486 = vadd.f32 0.0, %v6485
        %v6487 = vpop.f32.mrf.mxu0
        %6488 = vmatprep.mubr.bf16.mxu0 0
        %6489 = vmatmul.mubr.bf16.gmra.mxu0 %v6403
        %v6490 = vpop.f32.mrf.mxu0
        %v6491 = vadd.f32 0.0, %v6490
        %v6492 = vpop.f32.mrf.mxu0
        %v6493 = vpop.f32.mrf.mxu0
        %v6494 = vadd.f32 0.0, %v6493
        %v6495 = vpop.f32.mrf.mxu0
        %6496 = vmatprep.mubr.bf16.mxu0 0
        %6497 = vmatmul.mubr.bf16.gmra.mxu0 %v6406
        %v6498 = vpop.f32.mrf.mxu0
        %v6499 = vadd.f32 0.0, %v6498
        %v6500 = vpop.f32.mrf.mxu0
        %v6501 = vpop.f32.mrf.mxu0
        %v6502 = vadd.f32 0.0, %v6501
        %v6503 = vpop.f32.mrf.mxu0
        %6504 = vmatprep.mubr.bf16.mxu0 0
        %6505 = vmatmul.mubr.bf16.gmra.mxu0 %v6409
        %v6506 = vpop.f32.mrf.mxu0
        %v6507 = vadd.f32 0.0, %v6506
        %v6508 = vpop.f32.mrf.mxu0
        %v6509 = vpop.f32.mrf.mxu0
        %v6510 = vadd.f32 0.0, %v6509
        %v6511 = vpop.f32.mrf.mxu0
        %6512 = vmatprep.mubr.bf16.mxu0 0
        %6513 = vmatmul.mubr.bf16.gmra.mxu0 %v6412
        %v6514 = vpop.f32.mrf.mxu0
        %v6515 = vadd.f32 0.0, %v6514
        %v6516 = vpop.f32.mrf.mxu0
        %v6517 = vpop.f32.mrf.mxu0
        %v6518 = vadd.f32 0.0, %v6517
        %v6519 = vpop.f32.mrf.mxu0
        %6520 = vmatprep.mubr.bf16.mxu0 0
        %6521 = vmatmul.mubr.bf16.gmra.mxu0 %v6415
        %v6522 = vpop.f32.mrf.mxu0
        %v6523 = vadd.f32 0.0, %v6522
        %v6524 = vpop.f32.mrf.mxu0
        %v6525 = vpop.f32.mrf.mxu0
        %v6526 = vadd.f32 0.0, %v6525
        %v6527 = vpop.f32.mrf.mxu0
        %6528 = vmatprep.mubr.bf16.mxu0 0
        %6529 = vmatmul.mubr.bf16.gmra.mxu0 %v6418
        %v6530 = vpop.f32.mrf.mxu0
        %v6531 = vadd.f32 0.0, %v6530
        %v6532 = vpop.f32.mrf.mxu0
        %v6533 = vpop.f32.mrf.mxu0
        %v6534 = vadd.f32 0.0, %v6533
        %v6535 = vpop.f32.mrf.mxu0
        %6536 = vmatprep.mubr.bf16.mxu0 0
        %6537 = vmatmul.mubr.bf16.gmra.mxu0 %v6421
        %v6538 = vpop.f32.mrf.mxu0
        %v6539 = vadd.f32 0.0, %v6538
        %v6540 = vpop.f32.mrf.mxu0
        %v6541 = vpop.f32.mrf.mxu0
        %v6542 = vadd.f32 0.0, %v6541
        %v6543 = vpop.f32.mrf.mxu0
        %6544 = vmatprep.mubr.bf16.mxu0 0
        %6545 = vmatmul.mubr.bf16.gmra.mxu0 %v6424
        %v6546 = vpop.f32.mrf.mxu0
        %v6547 = vadd.f32 0.0, %v6546
        %v6548 = vpop.f32.mrf.mxu0
        %v6549 = vpop.f32.mrf.mxu0
        %v6550 = vadd.f32 0.0, %v6549
        %v6551 = vpop.f32.mrf.mxu0
        %6552 = vmatprep.mubr.bf16.mxu0 0
        %6553 = vmatmul.mubr.bf16.gmra.mxu0 %v6427
        %v6554 = vpop.f32.mrf.mxu0
        %v6555 = vadd.f32 0.0, %v6554
        %v6556 = vpop.f32.mrf.mxu0
        %v6557 = vpop.f32.mrf.mxu0
        %v6558 = vadd.f32 0.0, %v6557
        %v6559 = vpop.f32.mrf.mxu0
        %6560 = vdwg.mxu0
        %v6561 = vadd.f32 %v5877, %v6467
        %v6562 = vadd.f32 %v5880, %v6470
        %v6563 = vadd.f32 %v5885, %v6475
        %v6564 = vadd.f32 %v5888, %v6478
        %v6565 = vadd.f32 %v5893, %v6483
        %v6566 = vadd.f32 %v5896, %v6486
        %v6567 = vadd.f32 %v5901, %v6491
        %v6568 = vadd.f32 %v5904, %v6494
        %v6569 = vadd.f32 %v5909, %v6499
        %v6570 = vadd.f32 %v5912, %v6502
        %v6571 = vadd.f32 %v5917, %v6507
        %v6572 = vadd.f32 %v5920, %v6510
        %v6573 = vadd.f32 %v5925, %v6515
        %v6574 = vadd.f32 %v5928, %v6518
        %v6575 = vadd.f32 %v5933, %v6523
        %v6576 = vadd.f32 %v5936, %v6526
        %v6577 = vadd.f32 %v5941, %v6531
        %v6578 = vadd.f32 %v5944, %v6534
        %v6579 = vadd.f32 %v5949, %v6539
        %v6580 = vadd.f32 %v5952, %v6542
        %v6581 = vadd.f32 %v5957, %v6547
        %v6582 = vadd.f32 %v5960, %v6550
        %v6583 = vadd.f32 %v5965, %v6555
        %v6584 = vadd.f32 %v5968, %v6558
        %v6585 = vld [vmem:[%s473] sm:$0x8]
        %v6586 = vld [vmem:[%s473 + $0x4] sm:$0xf]
        %v6587 = vld [vmem:[%s473 + $0xc] sm:$0x8]
        %v6588 = vld [vmem:[%s473 + $0x10] sm:$0xf]
        %v6589 = vld [vmem:[%s473 + $0x18] sm:$0x8]
        %v6590 = vld [vmem:[%s473 + $0x1c] sm:$0xf]
        %v6591 = vld [vmem:[%s473 + $0x24] sm:$0x8]
        %v6592 = vld [vmem:[%s473 + $0x28] sm:$0xf]
        %v6593 = vld [vmem:[%s473 + $0x30] sm:$0x8]
        %v6594 = vld [vmem:[%s473 + $0x34] sm:$0xf]
        %v6595 = vld [vmem:[%s473 + $0x3c] sm:$0x8]
        %v6596 = vld [vmem:[%s473 + $0x40] sm:$0xf]
        %v6597 = vld [vmem:[%s473 + $0x48] sm:$0x8]
        %v6598 = vld [vmem:[%s473 + $0x4c] sm:$0xf]
        %v6599 = vld [vmem:[%s473 + $0x54] sm:$0x8]
        %v6600 = vld [vmem:[%s473 + $0x58] sm:$0xf]
        %v6601 = vld [vmem:[%s473 + $0x78] sm:$0x8]
        %v6602 = vld [vmem:[%s473 + $0x7c] sm:$0xf]
        %v6603 = vld [vmem:[%s473 + $0x84] sm:$0x8]
        %v6604 = vld [vmem:[%s473 + $0x88] sm:$0xf]
        %v6605 = vld [vmem:[%s473 + $0x90] sm:$0x8]
        %v6606 = vld [vmem:[%s473 + $0x94] sm:$0xf]
        %v6607 = vld [vmem:[%s473 + $0x9c] sm:$0x8]
        %v6608 = vld [vmem:[%s473 + $0xa0] sm:$0xf]
        %v6609 = vld [vmem:[%s473 + $0xa8] sm:$0x8]
        %v6610 = vld [vmem:[%s473 + $0xac] sm:$0xf]
        %v6611 = vld [vmem:[%s473 + $0xb4] sm:$0x8]
        %v6612 = vld [vmem:[%s473 + $0xb8] sm:$0xf]
        %v6613 = vld [vmem:[%s473 + $0xc0] sm:$0x8]
        %v6614 = vld [vmem:[%s473 + $0xc4] sm:$0xf]
        %v6615 = vld [vmem:[%s473 + $0xcc] sm:$0x8]
        %v6616 = vld [vmem:[%s473 + $0xd0] sm:$0xf]
        %v6617 = vld [vmem:[%s473 + $0xf0] sm:$0x8]
        %v6618 = vld [vmem:[%s473 + $0xf4] sm:$0xf]
        %v6619 = vld [vmem:[%s473 + $0xfc] sm:$0x8]
        %v6620 = vld [vmem:[%s473 + $0x100] sm:$0xf]
        %v6621 = vld [vmem:[%s473 + $0x108] sm:$0x8]
        %v6622 = vld [vmem:[%s473 + $0x10c] sm:$0xf]
        %v6623 = vld [vmem:[%s473 + $0x114] sm:$0x8]
        %v6624 = vld [vmem:[%s473 + $0x118] sm:$0xf]
        %v6625 = vld [vmem:[%s473 + $0x120] sm:$0x8]
        %v6626 = vld [vmem:[%s473 + $0x124] sm:$0xf]
        %v6627 = vld [vmem:[%s473 + $0x12c] sm:$0x8]
        %v6628 = vld [vmem:[%s473 + $0x130] sm:$0xf]
        %v6629 = vld [vmem:[%s473 + $0x138] sm:$0x8]
        %v6630 = vld [vmem:[%s473 + $0x13c] sm:$0xf]
        %v6631 = vld [vmem:[%s473 + $0x144] sm:$0x8]
        %v6632 = vld [vmem:[%s473 + $0x148] sm:$0xf]
        %v6634 = vshrl.u32 %v6585, 16
        %v6636 = vrot.slane %v6634, 7
        %v6637 = vrot.slane %v6636, 4
        %v6639 = vshrl.u32 %v6586, 16
        %v6641 = vrot.slane %v6639, 7
        %v6642 = vshll.u32 %v6586, 16
        %v6644 = vor.u32 %v6641, %v6642
        %v6645 = vsel %vm715, %v6637, %v6644
        %v6647 = vshrl.u32 %v6587, 16
        %v6649 = vrot.slane %v6647, 7
        %v6650 = vrot.slane %v6649, 4
        %v6652 = vshrl.u32 %v6588, 16
        %v6654 = vrot.slane %v6652, 7
        %v6655 = vshll.u32 %v6588, 16
        %v6657 = vor.u32 %v6654, %v6655
        %v6658 = vsel %vm715, %v6650, %v6657
        %v6660 = vshrl.u32 %v6589, 16
        %v6662 = vrot.slane %v6660, 7
        %v6663 = vrot.slane %v6662, 4
        %v6665 = vshrl.u32 %v6590, 16
        %v6667 = vrot.slane %v6665, 7
        %v6668 = vshll.u32 %v6590, 16
        %v6670 = vor.u32 %v6667, %v6668
        %v6671 = vsel %vm715, %v6663, %v6670
        %v6673 = vshrl.u32 %v6591, 16
        %v6675 = vrot.slane %v6673, 7
        %v6676 = vrot.slane %v6675, 4
        %v6678 = vshrl.u32 %v6592, 16
        %v6680 = vrot.slane %v6678, 7
        %v6681 = vshll.u32 %v6592, 16
        %v6683 = vor.u32 %v6680, %v6681
        %v6684 = vsel %vm715, %v6676, %v6683
        %v6686 = vshrl.u32 %v6593, 16
        %v6688 = vrot.slane %v6686, 7
        %v6689 = vrot.slane %v6688, 4
        %v6691 = vshrl.u32 %v6594, 16
        %v6693 = vrot.slane %v6691, 7
        %v6694 = vshll.u32 %v6594, 16
        %v6696 = vor.u32 %v6693, %v6694
        %v6697 = vsel %vm715, %v6689, %v6696
        %v6699 = vshrl.u32 %v6595, 16
        %v6701 = vrot.slane %v6699, 7
        %v6702 = vrot.slane %v6701, 4
        %v6704 = vshrl.u32 %v6596, 16
        %v6706 = vrot.slane %v6704, 7
        %v6707 = vshll.u32 %v6596, 16
        %v6709 = vor.u32 %v6706, %v6707
        %v6710 = vsel %vm715, %v6702, %v6709
        %v6712 = vshrl.u32 %v6597, 16
        %v6714 = vrot.slane %v6712, 7
        %v6715 = vrot.slane %v6714, 4
        %v6717 = vshrl.u32 %v6598, 16
        %v6719 = vrot.slane %v6717, 7
        %v6720 = vshll.u32 %v6598, 16
        %v6722 = vor.u32 %v6719, %v6720
        %v6723 = vsel %vm715, %v6715, %v6722
        %v6725 = vshrl.u32 %v6599, 16
        %v6727 = vrot.slane %v6725, 7
        %v6728 = vrot.slane %v6727, 4
        %v6730 = vshrl.u32 %v6600, 16
        %v6732 = vrot.slane %v6730, 7
        %v6733 = vshll.u32 %v6600, 16
        %v6735 = vor.u32 %v6732, %v6733
        %v6736 = vsel %vm715, %v6728, %v6735
        %v6738 = vshrl.u32 %v6601, 16
        %v6740 = vrot.slane %v6738, 7
        %v6741 = vrot.slane %v6740, 4
        %v6743 = vshrl.u32 %v6602, 16
        %v6745 = vrot.slane %v6743, 7
        %v6746 = vshll.u32 %v6602, 16
        %v6748 = vor.u32 %v6745, %v6746
        %v6749 = vsel %vm715, %v6741, %v6748
        %v6751 = vshrl.u32 %v6603, 16
        %v6753 = vrot.slane %v6751, 7
        %v6754 = vrot.slane %v6753, 4
        %v6756 = vshrl.u32 %v6604, 16
        %v6758 = vrot.slane %v6756, 7
        %v6759 = vshll.u32 %v6604, 16
        %v6761 = vor.u32 %v6758, %v6759
        %v6762 = vsel %vm715, %v6754, %v6761
        %v6764 = vshrl.u32 %v6605, 16
        %v6766 = vrot.slane %v6764, 7
        %v6767 = vrot.slane %v6766, 4
        %v6769 = vshrl.u32 %v6606, 16
        %v6771 = vrot.slane %v6769, 7
        %v6772 = vshll.u32 %v6606, 16
        %v6774 = vor.u32 %v6771, %v6772
        %v6775 = vsel %vm715, %v6767, %v6774
        %v6777 = vshrl.u32 %v6607, 16
        %v6779 = vrot.slane %v6777, 7
        %v6780 = vrot.slane %v6779, 4
        %v6782 = vshrl.u32 %v6608, 16
        %v6784 = vrot.slane %v6782, 7
        %v6785 = vshll.u32 %v6608, 16
        %v6787 = vor.u32 %v6784, %v6785
        %v6788 = vsel %vm715, %v6780, %v6787
        %v6790 = vshrl.u32 %v6609, 16
        %v6792 = vrot.slane %v6790, 7
        %v6793 = vrot.slane %v6792, 4
        %v6795 = vshrl.u32 %v6610, 16
        %v6797 = vrot.slane %v6795, 7
        %v6798 = vshll.u32 %v6610, 16
        %v6800 = vor.u32 %v6797, %v6798
        %v6801 = vsel %vm715, %v6793, %v6800
        %v6803 = vshrl.u32 %v6611, 16
        %v6805 = vrot.slane %v6803, 7
        %v6806 = vrot.slane %v6805, 4
        %v6808 = vshrl.u32 %v6612, 16
        %v6810 = vrot.slane %v6808, 7
        %v6811 = vshll.u32 %v6612, 16
        %v6813 = vor.u32 %v6810, %v6811
        %v6814 = vsel %vm715, %v6806, %v6813
        %v6816 = vshrl.u32 %v6613, 16
        %v6818 = vrot.slane %v6816, 7
        %v6819 = vrot.slane %v6818, 4
        %v6821 = vshrl.u32 %v6614, 16
        %v6823 = vrot.slane %v6821, 7
        %v6824 = vshll.u32 %v6614, 16
        %v6826 = vor.u32 %v6823, %v6824
        %v6827 = vsel %vm715, %v6819, %v6826
        %v6829 = vshrl.u32 %v6615, 16
        %v6831 = vrot.slane %v6829, 7
        %v6832 = vrot.slane %v6831, 4
        %v6834 = vshrl.u32 %v6616, 16
        %v6836 = vrot.slane %v6834, 7
        %v6837 = vshll.u32 %v6616, 16
        %v6839 = vor.u32 %v6836, %v6837
        %v6840 = vsel %vm715, %v6832, %v6839
        %v6842 = vshrl.u32 %v6617, 16
        %v6844 = vrot.slane %v6842, 7
        %v6845 = vrot.slane %v6844, 4
        %v6847 = vshrl.u32 %v6618, 16
        %v6849 = vrot.slane %v6847, 7
        %v6850 = vshll.u32 %v6618, 16
        %v6852 = vor.u32 %v6849, %v6850
        %v6853 = vsel %vm715, %v6845, %v6852
        %v6855 = vshrl.u32 %v6619, 16
        %v6857 = vrot.slane %v6855, 7
        %v6858 = vrot.slane %v6857, 4
        %v6860 = vshrl.u32 %v6620, 16
        %v6862 = vrot.slane %v6860, 7
        %v6863 = vshll.u32 %v6620, 16
        %v6865 = vor.u32 %v6862, %v6863
        %v6866 = vsel %vm715, %v6858, %v6865
        %v6868 = vshrl.u32 %v6621, 16
        %v6870 = vrot.slane %v6868, 7
        %v6871 = vrot.slane %v6870, 4
        %v6873 = vshrl.u32 %v6622, 16
        %v6875 = vrot.slane %v6873, 7
        %v6876 = vshll.u32 %v6622, 16
        %v6878 = vor.u32 %v6875, %v6876
        %v6879 = vsel %vm715, %v6871, %v6878
        %v6881 = vshrl.u32 %v6623, 16
        %v6883 = vrot.slane %v6881, 7
        %v6884 = vrot.slane %v6883, 4
        %v6886 = vshrl.u32 %v6624, 16
        %v6888 = vrot.slane %v6886, 7
        %v6889 = vshll.u32 %v6624, 16
        %v6891 = vor.u32 %v6888, %v6889
        %v6892 = vsel %vm715, %v6884, %v6891
        %v6894 = vshrl.u32 %v6625, 16
        %v6896 = vrot.slane %v6894, 7
        %v6897 = vrot.slane %v6896, 4
        %v6899 = vshrl.u32 %v6626, 16
        %v6901 = vrot.slane %v6899, 7
        %v6902 = vshll.u32 %v6626, 16
        %v6904 = vor.u32 %v6901, %v6902
        %v6905 = vsel %vm715, %v6897, %v6904
        %v6907 = vshrl.u32 %v6627, 16
        %v6909 = vrot.slane %v6907, 7
        %v6910 = vrot.slane %v6909, 4
        %v6912 = vshrl.u32 %v6628, 16
        %v6914 = vrot.slane %v6912, 7
        %v6915 = vshll.u32 %v6628, 16
        %v6917 = vor.u32 %v6914, %v6915
        %v6918 = vsel %vm715, %v6910, %v6917
        %v6920 = vshrl.u32 %v6629, 16
        %v6922 = vrot.slane %v6920, 7
        %v6923 = vrot.slane %v6922, 4
        %v6925 = vshrl.u32 %v6630, 16
        %v6927 = vrot.slane %v6925, 7
        %v6928 = vshll.u32 %v6630, 16
        %v6930 = vor.u32 %v6927, %v6928
        %v6931 = vsel %vm715, %v6923, %v6930
        %v6933 = vshrl.u32 %v6631, 16
        %v6935 = vrot.slane %v6933, 7
        %v6936 = vrot.slane %v6935, 4
        %v6938 = vshrl.u32 %v6632, 16
        %v6940 = vrot.slane %v6938, 7
        %v6941 = vshll.u32 %v6632, 16
        %v6943 = vor.u32 %v6940, %v6941
        %v6944 = vsel %vm715, %v6936, %v6943
        %s6945 = scalar_lea.vmem %s3, 12
        %v6946 = vld [vmem:[%s6945] sm:$0xf]
        %v6947 = vunpack.c.l.b16 %v6645
        %v6948 = vunpack.c.l.b16 %v6658
        %v6949 = vunpack.c.l.b16 %v6671
        %v6950 = vunpack.c.l.b16 %v6684
        %v6951 = vunpack.c.l.b16 %v6697
        %v6952 = vunpack.c.l.b16 %v6710
        %v6953 = vunpack.c.l.b16 %v6723
        %v6954 = vunpack.c.l.b16 %v6736
        %v6955 = vunpack.c.l.b16 %v6749
        %v6956 = vunpack.c.l.b16 %v6762
        %v6957 = vunpack.c.l.b16 %v6775
        %v6958 = vunpack.c.l.b16 %v6788
        %v6959 = vunpack.c.l.b16 %v6801
        %v6960 = vunpack.c.l.b16 %v6814
        %v6961 = vunpack.c.l.b16 %v6827
        %v6962 = vunpack.c.l.b16 %v6840
        %v6963 = vunpack.c.l.b16 %v6853
        %v6964 = vunpack.c.l.b16 %v6866
        %v6965 = vunpack.c.l.b16 %v6879
        %v6966 = vunpack.c.l.b16 %v6892
        %v6967 = vunpack.c.l.b16 %v6905
        %v6968 = vunpack.c.l.b16 %v6918
        %v6969 = vunpack.c.l.b16 %v6931
        %v6970 = vunpack.c.l.b16 %v6944
        %v6971 = vpack.c.b16 %v6948, %v6947
        %v6972 = vpack.c.b16 %v6950, %v6949
        %v6973 = vpack.c.b16 %v6952, %v6951
        %v6974 = vpack.c.b16 %v6954, %v6953
        %v6975 = vpack.c.b16 %v6956, %v6955
        %v6976 = vpack.c.b16 %v6958, %v6957
        %v6977 = vpack.c.b16 %v6960, %v6959
        %v6978 = vpack.c.b16 %v6962, %v6961
        %v6979 = vpack.c.b16 %v6964, %v6963
        %v6980 = vpack.c.b16 %v6966, %v6965
        %v6981 = vpack.c.b16 %v6968, %v6967
        %v6982 = vpack.c.b16 %v6970, %v6969
        %v6984 = vsel %vm5597, %v6971, 0
        %v6987 = vsel %vm5597, %v6972, 0
        %v6990 = vsel %vm5597, %v6973, 0
        %v6993 = vsel %vm5597, %v6974, 0
        %v6996 = vsel %vm5597, %v6975, 0
        %v6999 = vsel %vm5597, %v6976, 0
        %v7002 = vsel %vm5597, %v6977, 0
        %v7005 = vsel %vm5597, %v6978, 0
        %v7008 = vsel %vm5597, %v6979, 0
        %v7011 = vsel %vm5597, %v6980, 0
        %v7014 = vsel %vm5597, %v6981, 0
        %v7017 = vsel %vm5597, %v6982, 0
        %v7020 = vsel %vm5634, %v6946, 0
        %7022 = vmatprep.subr.bf16.mxu0 0
        %7023 = vmatpush1.bf16.msra.mxu0 0
        %7024 = vmatprep.subr.bf16.mxu0 0
        %7025 = vmatpush1.bf16.msra.mxu0 0
        %7026 = vmatprep.subr.bf16.mxu0 0
        %7027 = vmatpush1.bf16.msra.mxu0 0
        %7028 = vmatprep.subr.bf16.mxu0 0
        %7029 = vmatpush1.bf16.msra.mxu0 0
        %7030 = vmatprep.subr.bf16.mxu0 0
        %7031 = vmatpush1.bf16.msra.mxu0 0
        %7032 = vmatprep.subr.bf16.mxu0 0
        %7033 = vmatpush1.bf16.msra.mxu0 0
        %7034 = vmatprep.subr.bf16.mxu0 0
        %7035 = vmatpush1.bf16.msra.mxu0 0
        %7036 = vmatprep.subr.bf16.mxu0 0
        %7037 = vmatpush1.bf16.msra.mxu0 %v7020
        %7038 = vmatprep.subr.bf16.mxu0 0
        %7039 = vmatpush2.bf16.msra.mxu0 0
        %7040 = vmatprep.subr.bf16.mxu0 0
        %7041 = vmatpush2.bf16.msra.mxu0 0
        %7042 = vmatprep.subr.bf16.mxu0 0
        %7043 = vmatpush2.bf16.msra.mxu0 0
        %7044 = vmatprep.subr.bf16.mxu0 0
        %7045 = vmatpush2.bf16.msra.mxu0 0
        %7046 = vmatprep.subr.bf16.mxu0 0
        %7047 = vmatpush2.bf16.msra.mxu0 0
        %7048 = vmatprep.subr.bf16.mxu0 0
        %7049 = vmatpush2.bf16.msra.mxu0 0
        %7050 = vmatprep.subr.bf16.mxu0 0
        %7051 = vmatpush2.bf16.msra.mxu0 0
        %7052 = vmatprep.subr.bf16.mxu0 0
        %7053 = vmatpush2.bf16.msra.mxu0 0
        %7054 = vmatprep.mubr.bf16.mxu0 0
        %7055 = vmatmul.mubr.bf16.gmra.mxu0 %v6984
        %v7056 = vpop.f32.mrf.mxu0
        %v7057 = vadd.f32 0.0, %v7056
        %v7058 = vpop.f32.mrf.mxu0
        %v7059 = vpop.f32.mrf.mxu0
        %v7060 = vadd.f32 0.0, %v7059
        %v7061 = vpop.f32.mrf.mxu0
        %7062 = vmatprep.mubr.bf16.mxu0 0
        %7063 = vmatmul.mubr.bf16.gmra.mxu0 %v6987
        %v7064 = vpop.f32.mrf.mxu0
        %v7065 = vadd.f32 0.0, %v7064
        %v7066 = vpop.f32.mrf.mxu0
        %v7067 = vpop.f32.mrf.mxu0
        %v7068 = vadd.f32 0.0, %v7067
        %v7069 = vpop.f32.mrf.mxu0
        %7070 = vmatprep.mubr.bf16.mxu0 0
        %7071 = vmatmul.mubr.bf16.gmra.mxu0 %v6990
        %v7072 = vpop.f32.mrf.mxu0
        %v7073 = vadd.f32 0.0, %v7072
        %v7074 = vpop.f32.mrf.mxu0
        %v7075 = vpop.f32.mrf.mxu0
        %v7076 = vadd.f32 0.0, %v7075
        %v7077 = vpop.f32.mrf.mxu0
        %7078 = vmatprep.mubr.bf16.mxu0 0
        %7079 = vmatmul.mubr.bf16.gmra.mxu0 %v6993
        %v7080 = vpop.f32.mrf.mxu0
        %v7081 = vadd.f32 0.0, %v7080
        %v7082 = vpop.f32.mrf.mxu0
        %v7083 = vpop.f32.mrf.mxu0
        %v7084 = vadd.f32 0.0, %v7083
        %v7085 = vpop.f32.mrf.mxu0
        %7086 = vmatprep.mubr.bf16.mxu0 0
        %7087 = vmatmul.mubr.bf16.gmra.mxu0 %v6996
        %v7088 = vpop.f32.mrf.mxu0
        %v7089 = vadd.f32 0.0, %v7088
        %v7090 = vpop.f32.mrf.mxu0
        %v7091 = vpop.f32.mrf.mxu0
        %v7092 = vadd.f32 0.0, %v7091
        %v7093 = vpop.f32.mrf.mxu0
        %7094 = vmatprep.mubr.bf16.mxu0 0
        %7095 = vmatmul.mubr.bf16.gmra.mxu0 %v6999
        %v7096 = vpop.f32.mrf.mxu0
        %v7097 = vadd.f32 0.0, %v7096
        %v7098 = vpop.f32.mrf.mxu0
        %v7099 = vpop.f32.mrf.mxu0
        %v7100 = vadd.f32 0.0, %v7099
        %v7101 = vpop.f32.mrf.mxu0
        %7102 = vmatprep.mubr.bf16.mxu0 0
        %7103 = vmatmul.mubr.bf16.gmra.mxu0 %v7002
        %v7104 = vpop.f32.mrf.mxu0
        %v7105 = vadd.f32 0.0, %v7104
        %v7106 = vpop.f32.mrf.mxu0
        %v7107 = vpop.f32.mrf.mxu0
        %v7108 = vadd.f32 0.0, %v7107
        %v7109 = vpop.f32.mrf.mxu0
        %7110 = vmatprep.mubr.bf16.mxu0 0
        %7111 = vmatmul.mubr.bf16.gmra.mxu0 %v7005
        %v7112 = vpop.f32.mrf.mxu0
        %v7113 = vadd.f32 0.0, %v7112
        %v7114 = vpop.f32.mrf.mxu0
        %v7115 = vpop.f32.mrf.mxu0
        %v7116 = vadd.f32 0.0, %v7115
        %v7117 = vpop.f32.mrf.mxu0
        %7118 = vmatprep.mubr.bf16.mxu0 0
        %7119 = vmatmul.mubr.bf16.gmra.mxu0 %v7008
        %v7120 = vpop.f32.mrf.mxu0
        %v7121 = vadd.f32 0.0, %v7120
        %v7122 = vpop.f32.mrf.mxu0
        %v7123 = vpop.f32.mrf.mxu0
        %v7124 = vadd.f32 0.0, %v7123
        %v7125 = vpop.f32.mrf.mxu0
        %7126 = vmatprep.mubr.bf16.mxu0 0
        %7127 = vmatmul.mubr.bf16.gmra.mxu0 %v7011
        %v7128 = vpop.f32.mrf.mxu0
        %v7129 = vadd.f32 0.0, %v7128
        %v7130 = vpop.f32.mrf.mxu0
        %v7131 = vpop.f32.mrf.mxu0
        %v7132 = vadd.f32 0.0, %v7131
        %v7133 = vpop.f32.mrf.mxu0
        %7134 = vmatprep.mubr.bf16.mxu0 0
        %7135 = vmatmul.mubr.bf16.gmra.mxu0 %v7014
        %v7136 = vpop.f32.mrf.mxu0
        %v7137 = vadd.f32 0.0, %v7136
        %v7138 = vpop.f32.mrf.mxu0
        %v7139 = vpop.f32.mrf.mxu0
        %v7140 = vadd.f32 0.0, %v7139
        %v7141 = vpop.f32.mrf.mxu0
        %7142 = vmatprep.mubr.bf16.mxu0 0
        %7143 = vmatmul.mubr.bf16.gmra.mxu0 %v7017
        %v7144 = vpop.f32.mrf.mxu0
        %v7145 = vadd.f32 0.0, %v7144
        %v7146 = vpop.f32.mrf.mxu0
        %v7147 = vpop.f32.mrf.mxu0
        %v7148 = vadd.f32 0.0, %v7147
        %v7149 = vpop.f32.mrf.mxu0
        %7150 = vdwg.mxu0
        %v7151 = vadd.f32 %v6561, %v7057
        %v7152 = vadd.f32 %v6562, %v7060
        %v7153 = vadd.f32 %v6563, %v7065
        %v7154 = vadd.f32 %v6564, %v7068
        %v7155 = vadd.f32 %v6565, %v7073
        %v7156 = vadd.f32 %v6566, %v7076
        %v7157 = vadd.f32 %v6567, %v7081
        %v7158 = vadd.f32 %v6568, %v7084
        %v7159 = vadd.f32 %v6569, %v7089
        %v7160 = vadd.f32 %v6570, %v7092
        %v7161 = vadd.f32 %v6571, %v7097
        %v7162 = vadd.f32 %v6572, %v7100
        %v7163 = vadd.f32 %v6573, %v7105
        %v7164 = vadd.f32 %v6574, %v7108
        %v7165 = vadd.f32 %v6575, %v7113
        %v7166 = vadd.f32 %v6576, %v7116
        %v7167 = vadd.f32 %v6577, %v7121
        %v7168 = vadd.f32 %v6578, %v7124
        %v7169 = vadd.f32 %v6579, %v7129
        %v7170 = vadd.f32 %v6580, %v7132
        %v7171 = vadd.f32 %v6581, %v7137
        %v7172 = vadd.f32 %v6582, %v7140
        %v7173 = vadd.f32 %v6583, %v7145
        %v7174 = vadd.f32 %v6584, %v7148
        %s7175 = scalar_lea.vmem %s3, 16
        %v7176 = vld [vmem:[%s7175] sm:$0xf]
        %v7201 = vunpack.c.l.b16 %v6586
        %v7202 = vunpack.c.l.b16 %v6588
        %v7203 = vunpack.c.l.b16 %v6590
        %v7204 = vunpack.c.l.b16 %v6592
        %v7205 = vunpack.c.l.b16 %v6594
        %v7206 = vunpack.c.l.b16 %v6596
        %v7207 = vunpack.c.l.b16 %v6598
        %v7208 = vunpack.c.l.b16 %v6600
        %v7209 = vunpack.c.l.b16 %v6602
        %v7210 = vunpack.c.l.b16 %v6604
        %v7211 = vunpack.c.l.b16 %v6606
        %v7212 = vunpack.c.l.b16 %v6608
        %v7213 = vunpack.c.l.b16 %v6610
        %v7214 = vunpack.c.l.b16 %v6612
        %v7215 = vunpack.c.l.b16 %v6614
        %v7216 = vunpack.c.l.b16 %v6616
        %v7217 = vunpack.c.l.b16 %v6618
        %v7218 = vunpack.c.l.b16 %v6620
        %v7219 = vunpack.c.l.b16 %v6622
        %v7220 = vunpack.c.l.b16 %v6624
        %v7221 = vunpack.c.l.b16 %v6626
        %v7222 = vunpack.c.l.b16 %v6628
        %v7223 = vunpack.c.l.b16 %v6630
        %v7224 = vunpack.c.l.b16 %v6632
        %v7225 = vpack.c.b16 %v7202, %v7201
        %v7226 = vpack.c.b16 %v7204, %v7203
        %v7227 = vpack.c.b16 %v7206, %v7205
        %v7228 = vpack.c.b16 %v7208, %v7207
        %v7229 = vpack.c.b16 %v7210, %v7209
        %v7230 = vpack.c.b16 %v7212, %v7211
        %v7231 = vpack.c.b16 %v7214, %v7213
        %v7232 = vpack.c.b16 %v7216, %v7215
        %v7233 = vpack.c.b16 %v7218, %v7217
        %v7234 = vpack.c.b16 %v7220, %v7219
        %v7235 = vpack.c.b16 %v7222, %v7221
        %v7236 = vpack.c.b16 %v7224, %v7223
        %v7238 = vsel %vm5597, %v7225, 0
        %v7241 = vsel %vm5597, %v7226, 0
        %v7244 = vsel %vm5597, %v7227, 0
        %v7247 = vsel %vm5597, %v7228, 0
        %v7250 = vsel %vm5597, %v7229, 0
        %v7253 = vsel %vm5597, %v7230, 0
        %v7256 = vsel %vm5597, %v7231, 0
        %v7259 = vsel %vm5597, %v7232, 0
        %v7262 = vsel %vm5597, %v7233, 0
        %v7265 = vsel %vm5597, %v7234, 0
        %v7268 = vsel %vm5597, %v7235, 0
        %v7271 = vsel %vm5597, %v7236, 0
        %v7274 = vsel %vm5634, %v7176, 0
        %7276 = vmatprep.subr.bf16.mxu0 0
        %7277 = vmatpush1.bf16.msra.mxu0 0
        %7278 = vmatprep.subr.bf16.mxu0 0
        %7279 = vmatpush1.bf16.msra.mxu0 0
        %7280 = vmatprep.subr.bf16.mxu0 0
        %7281 = vmatpush1.bf16.msra.mxu0 0
        %7282 = vmatprep.subr.bf16.mxu0 0
        %7283 = vmatpush1.bf16.msra.mxu0 0
        %7284 = vmatprep.subr.bf16.mxu0 0
        %7285 = vmatpush1.bf16.msra.mxu0 0
        %7286 = vmatprep.subr.bf16.mxu0 0
        %7287 = vmatpush1.bf16.msra.mxu0 0
        %7288 = vmatprep.subr.bf16.mxu0 0
        %7289 = vmatpush1.bf16.msra.mxu0 0
        %7290 = vmatprep.subr.bf16.mxu0 0
        %7291 = vmatpush1.bf16.msra.mxu0 %v7274
        %7292 = vmatprep.subr.bf16.mxu0 0
        %7293 = vmatpush2.bf16.msra.mxu0 0
        %7294 = vmatprep.subr.bf16.mxu0 0
        %7295 = vmatpush2.bf16.msra.mxu0 0
        %7296 = vmatprep.subr.bf16.mxu0 0
        %7297 = vmatpush2.bf16.msra.mxu0 0
        %7298 = vmatprep.subr.bf16.mxu0 0
        %7299 = vmatpush2.bf16.msra.mxu0 0
        %7300 = vmatprep.subr.bf16.mxu0 0
        %7301 = vmatpush2.bf16.msra.mxu0 0
        %7302 = vmatprep.subr.bf16.mxu0 0
        %7303 = vmatpush2.bf16.msra.mxu0 0
        %7304 = vmatprep.subr.bf16.mxu0 0
        %7305 = vmatpush2.bf16.msra.mxu0 0
        %7306 = vmatprep.subr.bf16.mxu0 0
        %7307 = vmatpush2.bf16.msra.mxu0 0
        %7308 = vmatprep.mubr.bf16.mxu0 0
        %7309 = vmatmul.mubr.bf16.gmra.mxu0 %v7238
        %v7310 = vpop.f32.mrf.mxu0
        %v7311 = vadd.f32 0.0, %v7310
        %v7312 = vpop.f32.mrf.mxu0
        %v7313 = vpop.f32.mrf.mxu0
        %v7314 = vadd.f32 0.0, %v7313
        %v7315 = vpop.f32.mrf.mxu0
        %7316 = vmatprep.mubr.bf16.mxu0 0
        %7317 = vmatmul.mubr.bf16.gmra.mxu0 %v7241
        %v7318 = vpop.f32.mrf.mxu0
        %v7319 = vadd.f32 0.0, %v7318
        %v7320 = vpop.f32.mrf.mxu0
        %v7321 = vpop.f32.mrf.mxu0
        %v7322 = vadd.f32 0.0, %v7321
        %v7323 = vpop.f32.mrf.mxu0
        %7324 = vmatprep.mubr.bf16.mxu0 0
        %7325 = vmatmul.mubr.bf16.gmra.mxu0 %v7244
        %v7326 = vpop.f32.mrf.mxu0
        %v7327 = vadd.f32 0.0, %v7326
        %v7328 = vpop.f32.mrf.mxu0
        %v7329 = vpop.f32.mrf.mxu0
        %v7330 = vadd.f32 0.0, %v7329
        %v7331 = vpop.f32.mrf.mxu0
        %7332 = vmatprep.mubr.bf16.mxu0 0
        %7333 = vmatmul.mubr.bf16.gmra.mxu0 %v7247
        %v7334 = vpop.f32.mrf.mxu0
        %v7335 = vadd.f32 0.0, %v7334
        %v7336 = vpop.f32.mrf.mxu0
        %v7337 = vpop.f32.mrf.mxu0
        %v7338 = vadd.f32 0.0, %v7337
        %v7339 = vpop.f32.mrf.mxu0
        %7340 = vmatprep.mubr.bf16.mxu0 0
        %7341 = vmatmul.mubr.bf16.gmra.mxu0 %v7250
        %v7342 = vpop.f32.mrf.mxu0
        %v7343 = vadd.f32 0.0, %v7342
        %v7344 = vpop.f32.mrf.mxu0
        %v7345 = vpop.f32.mrf.mxu0
        %v7346 = vadd.f32 0.0, %v7345
        %v7347 = vpop.f32.mrf.mxu0
        %7348 = vmatprep.mubr.bf16.mxu0 0
        %7349 = vmatmul.mubr.bf16.gmra.mxu0 %v7253
        %v7350 = vpop.f32.mrf.mxu0
        %v7351 = vadd.f32 0.0, %v7350
        %v7352 = vpop.f32.mrf.mxu0
        %v7353 = vpop.f32.mrf.mxu0
        %v7354 = vadd.f32 0.0, %v7353
        %v7355 = vpop.f32.mrf.mxu0
        %7356 = vmatprep.mubr.bf16.mxu0 0
        %7357 = vmatmul.mubr.bf16.gmra.mxu0 %v7256
        %v7358 = vpop.f32.mrf.mxu0
        %v7359 = vadd.f32 0.0, %v7358
        %v7360 = vpop.f32.mrf.mxu0
        %v7361 = vpop.f32.mrf.mxu0
        %v7362 = vadd.f32 0.0, %v7361
        %v7363 = vpop.f32.mrf.mxu0
        %7364 = vmatprep.mubr.bf16.mxu0 0
        %7365 = vmatmul.mubr.bf16.gmra.mxu0 %v7259
        %v7366 = vpop.f32.mrf.mxu0
        %v7367 = vadd.f32 0.0, %v7366
        %v7368 = vpop.f32.mrf.mxu0
        %v7369 = vpop.f32.mrf.mxu0
        %v7370 = vadd.f32 0.0, %v7369
        %v7371 = vpop.f32.mrf.mxu0
        %7372 = vmatprep.mubr.bf16.mxu0 0
        %7373 = vmatmul.mubr.bf16.gmra.mxu0 %v7262
        %v7374 = vpop.f32.mrf.mxu0
        %v7375 = vadd.f32 0.0, %v7374
        %v7376 = vpop.f32.mrf.mxu0
        %v7377 = vpop.f32.mrf.mxu0
        %v7378 = vadd.f32 0.0, %v7377
        %v7379 = vpop.f32.mrf.mxu0
        %7380 = vmatprep.mubr.bf16.mxu0 0
        %7381 = vmatmul.mubr.bf16.gmra.mxu0 %v7265
        %v7382 = vpop.f32.mrf.mxu0
        %v7383 = vadd.f32 0.0, %v7382
        %v7384 = vpop.f32.mrf.mxu0
        %v7385 = vpop.f32.mrf.mxu0
        %v7386 = vadd.f32 0.0, %v7385
        %v7387 = vpop.f32.mrf.mxu0
        %7388 = vmatprep.mubr.bf16.mxu0 0
        %7389 = vmatmul.mubr.bf16.gmra.mxu0 %v7268
        %v7390 = vpop.f32.mrf.mxu0
        %v7391 = vadd.f32 0.0, %v7390
        %v7392 = vpop.f32.mrf.mxu0
        %v7393 = vpop.f32.mrf.mxu0
        %v7394 = vadd.f32 0.0, %v7393
        %v7395 = vpop.f32.mrf.mxu0
        %7396 = vmatprep.mubr.bf16.mxu0 0
        %7397 = vmatmul.mubr.bf16.gmra.mxu0 %v7271
        %v7398 = vpop.f32.mrf.mxu0
        %v7399 = vadd.f32 0.0, %v7398
        %v7400 = vpop.f32.mrf.mxu0
        %v7401 = vpop.f32.mrf.mxu0
        %v7402 = vadd.f32 0.0, %v7401
        %v7403 = vpop.f32.mrf.mxu0
        %7404 = vdwg.mxu0
        %v7405 = vadd.f32 %v7151, %v7311
        %v7406 = vadd.f32 %v7152, %v7314
        %v7407 = vadd.f32 %v7153, %v7319
        %v7408 = vadd.f32 %v7154, %v7322
        %v7409 = vadd.f32 %v7155, %v7327
        %v7410 = vadd.f32 %v7156, %v7330
        %v7411 = vadd.f32 %v7157, %v7335
        %v7412 = vadd.f32 %v7158, %v7338
        %v7413 = vadd.f32 %v7159, %v7343
        %v7414 = vadd.f32 %v7160, %v7346
        %v7415 = vadd.f32 %v7161, %v7351
        %v7416 = vadd.f32 %v7162, %v7354
        %v7417 = vadd.f32 %v7163, %v7359
        %v7418 = vadd.f32 %v7164, %v7362
        %v7419 = vadd.f32 %v7165, %v7367
        %v7420 = vadd.f32 %v7166, %v7370
        %v7421 = vadd.f32 %v7167, %v7375
        %v7422 = vadd.f32 %v7168, %v7378
        %v7423 = vadd.f32 %v7169, %v7383
        %v7424 = vadd.f32 %v7170, %v7386
        %v7425 = vadd.f32 %v7171, %v7391
        %v7426 = vadd.f32 %v7172, %v7394
        %v7427 = vadd.f32 %v7173, %v7399
        %v7428 = vadd.f32 %v7174, %v7402
        %v7429 = vld [vmem:[%s473 + $0x4] sm:$0xf]
        %v7430 = vld [vmem:[%s473 + $0x8] sm:$0x1]
        %v7431 = vld [vmem:[%s473 + $0x10] sm:$0xf]
        %v7432 = vld [vmem:[%s473 + $0x14] sm:$0x1]
        %v7433 = vld [vmem:[%s473 + $0x1c] sm:$0xf]
        %v7434 = vld [vmem:[%s473 + $0x20] sm:$0x1]
        %v7435 = vld [vmem:[%s473 + $0x28] sm:$0xf]
        %v7436 = vld [vmem:[%s473 + $0x2c] sm:$0x1]
        %v7437 = vld [vmem:[%s473 + $0x34] sm:$0xf]
        %v7438 = vld [vmem:[%s473 + $0x38] sm:$0x1]
        %v7439 = vld [vmem:[%s473 + $0x40] sm:$0xf]
        %v7440 = vld [vmem:[%s473 + $0x44] sm:$0x1]
        %v7441 = vld [vmem:[%s473 + $0x4c] sm:$0xf]
        %v7442 = vld [vmem:[%s473 + $0x50] sm:$0x1]
        %v7443 = vld [vmem:[%s473 + $0x58] sm:$0xf]
        %v7444 = vld [vmem:[%s473 + $0x5c] sm:$0x1]
        %v7445 = vld [vmem:[%s473 + $0x7c] sm:$0xf]
        %v7446 = vld [vmem:[%s473 + $0x80] sm:$0x1]
        %v7447 = vld [vmem:[%s473 + $0x88] sm:$0xf]
        %v7448 = vld [vmem:[%s473 + $0x8c] sm:$0x1]
        %v7449 = vld [vmem:[%s473 + $0x94] sm:$0xf]
        %v7450 = vld [vmem:[%s473 + $0x98] sm:$0x1]
        %v7451 = vld [vmem:[%s473 + $0xa0] sm:$0xf]
        %v7452 = vld [vmem:[%s473 + $0xa4] sm:$0x1]
        %v7453 = vld [vmem:[%s473 + $0xac] sm:$0xf]
        %v7454 = vld [vmem:[%s473 + $0xb0] sm:$0x1]
        %v7455 = vld [vmem:[%s473 + $0xb8] sm:$0xf]
        %v7456 = vld [vmem:[%s473 + $0xbc] sm:$0x1]
        %v7457 = vld [vmem:[%s473 + $0xc4] sm:$0xf]
        %v7458 = vld [vmem:[%s473 + $0xc8] sm:$0x1]
        %v7459 = vld [vmem:[%s473 + $0xd0] sm:$0xf]
        %v7460 = vld [vmem:[%s473 + $0xd4] sm:$0x1]
        %v7461 = vld [vmem:[%s473 + $0xf4] sm:$0xf]
        %v7462 = vld [vmem:[%s473 + $0xf8] sm:$0x1]
        %v7463 = vld [vmem:[%s473 + $0x100] sm:$0xf]
        %v7464 = vld [vmem:[%s473 + $0x104] sm:$0x1]
        %v7465 = vld [vmem:[%s473 + $0x10c] sm:$0xf]
        %v7466 = vld [vmem:[%s473 + $0x110] sm:$0x1]
        %v7467 = vld [vmem:[%s473 + $0x118] sm:$0xf]
        %v7468 = vld [vmem:[%s473 + $0x11c] sm:$0x1]
        %v7469 = vld [vmem:[%s473 + $0x124] sm:$0xf]
        %v7470 = vld [vmem:[%s473 + $0x128] sm:$0x1]
        %v7471 = vld [vmem:[%s473 + $0x130] sm:$0xf]
        %v7472 = vld [vmem:[%s473 + $0x134] sm:$0x1]
        %v7473 = vld [vmem:[%s473 + $0x13c] sm:$0xf]
        %v7474 = vld [vmem:[%s473 + $0x140] sm:$0x1]
        %v7475 = vld [vmem:[%s473 + $0x148] sm:$0xf]
        %v7476 = vld [vmem:[%s473 + $0x14c] sm:$0x1]
        %v7478 = vshrl.u32 %v7429, 16
        %v7480 = vrot.slane %v7478, 4
        %v7481 = vshll.u32 %v7429, 16
        %v7483 = vrot.slane %v7481, 5
        %v7484 = vor.u32 %v7480, %v7483
        %v7485 = vrot.slane %v7484, 4
        %v7487 = vshll.u32 %v7430, 16
        %v7489 = vrot.slane %v7487, 5
        %v7490 = vsel %vm1515, %v7485, %v7489
        %v7492 = vshrl.u32 %v7431, 16
        %v7494 = vrot.slane %v7492, 4
        %v7495 = vshll.u32 %v7431, 16
        %v7497 = vrot.slane %v7495, 5
        %v7498 = vor.u32 %v7494, %v7497
        %v7499 = vrot.slane %v7498, 4
        %v7501 = vshll.u32 %v7432, 16
        %v7503 = vrot.slane %v7501, 5
        %v7504 = vsel %vm1515, %v7499, %v7503
        %v7506 = vshrl.u32 %v7433, 16
        %v7508 = vrot.slane %v7506, 4
        %v7509 = vshll.u32 %v7433, 16
        %v7511 = vrot.slane %v7509, 5
        %v7512 = vor.u32 %v7508, %v7511
        %v7513 = vrot.slane %v7512, 4
        %v7515 = vshll.u32 %v7434, 16
        %v7517 = vrot.slane %v7515, 5
        %v7518 = vsel %vm1515, %v7513, %v7517
        %v7520 = vshrl.u32 %v7435, 16
        %v7522 = vrot.slane %v7520, 4
        %v7523 = vshll.u32 %v7435, 16
        %v7525 = vrot.slane %v7523, 5
        %v7526 = vor.u32 %v7522, %v7525
        %v7527 = vrot.slane %v7526, 4
        %v7529 = vshll.u32 %v7436, 16
        %v7531 = vrot.slane %v7529, 5
        %v7532 = vsel %vm1515, %v7527, %v7531
        %v7534 = vshrl.u32 %v7437, 16
        %v7536 = vrot.slane %v7534, 4
        %v7537 = vshll.u32 %v7437, 16
        %v7539 = vrot.slane %v7537, 5
        %v7540 = vor.u32 %v7536, %v7539
        %v7541 = vrot.slane %v7540, 4
        %v7543 = vshll.u32 %v7438, 16
        %v7545 = vrot.slane %v7543, 5
        %v7546 = vsel %vm1515, %v7541, %v7545
        %v7548 = vshrl.u32 %v7439, 16
        %v7550 = vrot.slane %v7548, 4
        %v7551 = vshll.u32 %v7439, 16
        %v7553 = vrot.slane %v7551, 5
        %v7554 = vor.u32 %v7550, %v7553
        %v7555 = vrot.slane %v7554, 4
        %v7557 = vshll.u32 %v7440, 16
        %v7559 = vrot.slane %v7557, 5
        %v7560 = vsel %vm1515, %v7555, %v7559
        %v7562 = vshrl.u32 %v7441, 16
        %v7564 = vrot.slane %v7562, 4
        %v7565 = vshll.u32 %v7441, 16
        %v7567 = vrot.slane %v7565, 5
        %v7568 = vor.u32 %v7564, %v7567
        %v7569 = vrot.slane %v7568, 4
        %v7571 = vshll.u32 %v7442, 16
        %v7573 = vrot.slane %v7571, 5
        %v7574 = vsel %vm1515, %v7569, %v7573
        %v7576 = vshrl.u32 %v7443, 16
        %v7578 = vrot.slane %v7576, 4
        %v7579 = vshll.u32 %v7443, 16
        %v7581 = vrot.slane %v7579, 5
        %v7582 = vor.u32 %v7578, %v7581
        %v7583 = vrot.slane %v7582, 4
        %v7585 = vshll.u32 %v7444, 16
        %v7587 = vrot.slane %v7585, 5
        %v7588 = vsel %vm1515, %v7583, %v7587
        %v7590 = vshrl.u32 %v7445, 16
        %v7592 = vrot.slane %v7590, 4
        %v7593 = vshll.u32 %v7445, 16
        %v7595 = vrot.slane %v7593, 5
        %v7596 = vor.u32 %v7592, %v7595
        %v7597 = vrot.slane %v7596, 4
        %v7599 = vshll.u32 %v7446, 16
        %v7601 = vrot.slane %v7599, 5
        %v7602 = vsel %vm1515, %v7597, %v7601
        %v7604 = vshrl.u32 %v7447, 16
        %v7606 = vrot.slane %v7604, 4
        %v7607 = vshll.u32 %v7447, 16
        %v7609 = vrot.slane %v7607, 5
        %v7610 = vor.u32 %v7606, %v7609
        %v7611 = vrot.slane %v7610, 4
        %v7613 = vshll.u32 %v7448, 16
        %v7615 = vrot.slane %v7613, 5
        %v7616 = vsel %vm1515, %v7611, %v7615
        %v7618 = vshrl.u32 %v7449, 16
        %v7620 = vrot.slane %v7618, 4
        %v7621 = vshll.u32 %v7449, 16
        %v7623 = vrot.slane %v7621, 5
        %v7624 = vor.u32 %v7620, %v7623
        %v7625 = vrot.slane %v7624, 4
        %v7627 = vshll.u32 %v7450, 16
        %v7629 = vrot.slane %v7627, 5
        %v7630 = vsel %vm1515, %v7625, %v7629
        %v7632 = vshrl.u32 %v7451, 16
        %v7634 = vrot.slane %v7632, 4
        %v7635 = vshll.u32 %v7451, 16
        %v7637 = vrot.slane %v7635, 5
        %v7638 = vor.u32 %v7634, %v7637
        %v7639 = vrot.slane %v7638, 4
        %v7641 = vshll.u32 %v7452, 16
        %v7643 = vrot.slane %v7641, 5
        %v7644 = vsel %vm1515, %v7639, %v7643
        %v7646 = vshrl.u32 %v7453, 16
        %v7648 = vrot.slane %v7646, 4
        %v7649 = vshll.u32 %v7453, 16
        %v7651 = vrot.slane %v7649, 5
        %v7652 = vor.u32 %v7648, %v7651
        %v7653 = vrot.slane %v7652, 4
        %v7655 = vshll.u32 %v7454, 16
        %v7657 = vrot.slane %v7655, 5
        %v7658 = vsel %vm1515, %v7653, %v7657
        %v7660 = vshrl.u32 %v7455, 16
        %v7662 = vrot.slane %v7660, 4
        %v7663 = vshll.u32 %v7455, 16
        %v7665 = vrot.slane %v7663, 5
        %v7666 = vor.u32 %v7662, %v7665
        %v7667 = vrot.slane %v7666, 4
        %v7669 = vshll.u32 %v7456, 16
        %v7671 = vrot.slane %v7669, 5
        %v7672 = vsel %vm1515, %v7667, %v7671
        %v7674 = vshrl.u32 %v7457, 16
        %v7676 = vrot.slane %v7674, 4
        %v7677 = vshll.u32 %v7457, 16
        %v7679 = vrot.slane %v7677, 5
        %v7680 = vor.u32 %v7676, %v7679
        %v7681 = vrot.slane %v7680, 4
        %v7683 = vshll.u32 %v7458, 16
        %v7685 = vrot.slane %v7683, 5
        %v7686 = vsel %vm1515, %v7681, %v7685
        %v7688 = vshrl.u32 %v7459, 16
        %v7690 = vrot.slane %v7688, 4
        %v7691 = vshll.u32 %v7459, 16
        %v7693 = vrot.slane %v7691, 5
        %v7694 = vor.u32 %v7690, %v7693
        %v7695 = vrot.slane %v7694, 4
        %v7697 = vshll.u32 %v7460, 16
        %v7699 = vrot.slane %v7697, 5
        %v7700 = vsel %vm1515, %v7695, %v7699
        %v7702 = vshrl.u32 %v7461, 16
        %v7704 = vrot.slane %v7702, 4
        %v7705 = vshll.u32 %v7461, 16
        %v7707 = vrot.slane %v7705, 5
        %v7708 = vor.u32 %v7704, %v7707
        %v7709 = vrot.slane %v7708, 4
        %v7711 = vshll.u32 %v7462, 16
        %v7713 = vrot.slane %v7711, 5
        %v7714 = vsel %vm1515, %v7709, %v7713
        %v7716 = vshrl.u32 %v7463, 16
        %v7718 = vrot.slane %v7716, 4
        %v7719 = vshll.u32 %v7463, 16
        %v7721 = vrot.slane %v7719, 5
        %v7722 = vor.u32 %v7718, %v7721
        %v7723 = vrot.slane %v7722, 4
        %v7725 = vshll.u32 %v7464, 16
        %v7727 = vrot.slane %v7725, 5
        %v7728 = vsel %vm1515, %v7723, %v7727
        %v7730 = vshrl.u32 %v7465, 16
        %v7732 = vrot.slane %v7730, 4
        %v7733 = vshll.u32 %v7465, 16
        %v7735 = vrot.slane %v7733, 5
        %v7736 = vor.u32 %v7732, %v7735
        %v7737 = vrot.slane %v7736, 4
        %v7739 = vshll.u32 %v7466, 16
        %v7741 = vrot.slane %v7739, 5
        %v7742 = vsel %vm1515, %v7737, %v7741
        %v7744 = vshrl.u32 %v7467, 16
        %v7746 = vrot.slane %v7744, 4
        %v7747 = vshll.u32 %v7467, 16
        %v7749 = vrot.slane %v7747, 5
        %v7750 = vor.u32 %v7746, %v7749
        %v7751 = vrot.slane %v7750, 4
        %v7753 = vshll.u32 %v7468, 16
        %v7755 = vrot.slane %v7753, 5
        %v7756 = vsel %vm1515, %v7751, %v7755
        %v7758 = vshrl.u32 %v7469, 16
        %v7760 = vrot.slane %v7758, 4
        %v7761 = vshll.u32 %v7469, 16
        %v7763 = vrot.slane %v7761, 5
        %v7764 = vor.u32 %v7760, %v7763
        %v7765 = vrot.slane %v7764, 4
        %v7767 = vshll.u32 %v7470, 16
        %v7769 = vrot.slane %v7767, 5
        %v7770 = vsel %vm1515, %v7765, %v7769
        %v7772 = vshrl.u32 %v7471, 16
        %v7774 = vrot.slane %v7772, 4
        %v7775 = vshll.u32 %v7471, 16
        %v7777 = vrot.slane %v7775, 5
        %v7778 = vor.u32 %v7774, %v7777
        %v7779 = vrot.slane %v7778, 4
        %v7781 = vshll.u32 %v7472, 16
        %v7783 = vrot.slane %v7781, 5
        %v7784 = vsel %vm1515, %v7779, %v7783
        %v7786 = vshrl.u32 %v7473, 16
        %v7788 = vrot.slane %v7786, 4
        %v7789 = vshll.u32 %v7473, 16
        %v7791 = vrot.slane %v7789, 5
        %v7792 = vor.u32 %v7788, %v7791
        %v7793 = vrot.slane %v7792, 4
        %v7795 = vshll.u32 %v7474, 16
        %v7797 = vrot.slane %v7795, 5
        %v7798 = vsel %vm1515, %v7793, %v7797
        %v7800 = vshrl.u32 %v7475, 16
        %v7802 = vrot.slane %v7800, 4
        %v7803 = vshll.u32 %v7475, 16
        %v7805 = vrot.slane %v7803, 5
        %v7806 = vor.u32 %v7802, %v7805
        %v7807 = vrot.slane %v7806, 4
        %v7809 = vshll.u32 %v7476, 16
        %v7811 = vrot.slane %v7809, 5
        %v7812 = vsel %vm1515, %v7807, %v7811
        %s7813 = scalar_lea.vmem %s3, 20
        %v7814 = vld [vmem:[%s7813] sm:$0xf]
        %v7815 = vunpack.c.l.b16 %v7490
        %v7816 = vunpack.c.l.b16 %v7504
        %v7817 = vunpack.c.l.b16 %v7518
        %v7818 = vunpack.c.l.b16 %v7532
        %v7819 = vunpack.c.l.b16 %v7546
        %v7820 = vunpack.c.l.b16 %v7560
        %v7821 = vunpack.c.l.b16 %v7574
        %v7822 = vunpack.c.l.b16 %v7588
        %v7823 = vunpack.c.l.b16 %v7602
        %v7824 = vunpack.c.l.b16 %v7616
        %v7825 = vunpack.c.l.b16 %v7630
        %v7826 = vunpack.c.l.b16 %v7644
        %v7827 = vunpack.c.l.b16 %v7658
        %v7828 = vunpack.c.l.b16 %v7672
        %v7829 = vunpack.c.l.b16 %v7686
        %v7830 = vunpack.c.l.b16 %v7700
        %v7831 = vunpack.c.l.b16 %v7714
        %v7832 = vunpack.c.l.b16 %v7728
        %v7833 = vunpack.c.l.b16 %v7742
        %v7834 = vunpack.c.l.b16 %v7756
        %v7835 = vunpack.c.l.b16 %v7770
        %v7836 = vunpack.c.l.b16 %v7784
        %v7837 = vunpack.c.l.b16 %v7798
        %v7838 = vunpack.c.l.b16 %v7812
        %v7839 = vpack.c.b16 %v7816, %v7815
        %v7840 = vpack.c.b16 %v7818, %v7817
        %v7841 = vpack.c.b16 %v7820, %v7819
        %v7842 = vpack.c.b16 %v7822, %v7821
        %v7843 = vpack.c.b16 %v7824, %v7823
        %v7844 = vpack.c.b16 %v7826, %v7825
        %v7845 = vpack.c.b16 %v7828, %v7827
        %v7846 = vpack.c.b16 %v7830, %v7829
        %v7847 = vpack.c.b16 %v7832, %v7831
        %v7848 = vpack.c.b16 %v7834, %v7833
        %v7849 = vpack.c.b16 %v7836, %v7835
        %v7850 = vpack.c.b16 %v7838, %v7837
        %v7852 = vsel %vm5597, %v7839, 0
        %v7855 = vsel %vm5597, %v7840, 0
        %v7858 = vsel %vm5597, %v7841, 0
        %v7861 = vsel %vm5597, %v7842, 0
        %v7864 = vsel %vm5597, %v7843, 0
        %v7867 = vsel %vm5597, %v7844, 0
        %v7870 = vsel %vm5597, %v7845, 0
        %v7873 = vsel %vm5597, %v7846, 0
        %v7876 = vsel %vm5597, %v7847, 0
        %v7879 = vsel %vm5597, %v7848, 0
        %v7882 = vsel %vm5597, %v7849, 0
        %v7885 = vsel %vm5597, %v7850, 0
        %v7888 = vsel %vm5634, %v7814, 0
        %7890 = vmatprep.subr.bf16.mxu0 0
        %7891 = vmatpush1.bf16.msra.mxu0 0
        %7892 = vmatprep.subr.bf16.mxu0 0
        %7893 = vmatpush1.bf16.msra.mxu0 0
        %7894 = vmatprep.subr.bf16.mxu0 0
        %7895 = vmatpush1.bf16.msra.mxu0 0
        %7896 = vmatprep.subr.bf16.mxu0 0
        %7897 = vmatpush1.bf16.msra.mxu0 0
        %7898 = vmatprep.subr.bf16.mxu0 0
        %7899 = vmatpush1.bf16.msra.mxu0 0
        %7900 = vmatprep.subr.bf16.mxu0 0
        %7901 = vmatpush1.bf16.msra.mxu0 0
        %7902 = vmatprep.subr.bf16.mxu0 0
        %7903 = vmatpush1.bf16.msra.mxu0 0
        %7904 = vmatprep.subr.bf16.mxu0 0
        %7905 = vmatpush1.bf16.msra.mxu0 %v7888
        %7906 = vmatprep.subr.bf16.mxu0 0
        %7907 = vmatpush2.bf16.msra.mxu0 0
        %7908 = vmatprep.subr.bf16.mxu0 0
        %7909 = vmatpush2.bf16.msra.mxu0 0
        %7910 = vmatprep.subr.bf16.mxu0 0
        %7911 = vmatpush2.bf16.msra.mxu0 0
        %7912 = vmatprep.subr.bf16.mxu0 0
        %7913 = vmatpush2.bf16.msra.mxu0 0
        %7914 = vmatprep.subr.bf16.mxu0 0
        %7915 = vmatpush2.bf16.msra.mxu0 0
        %7916 = vmatprep.subr.bf16.mxu0 0
        %7917 = vmatpush2.bf16.msra.mxu0 0
        %7918 = vmatprep.subr.bf16.mxu0 0
        %7919 = vmatpush2.bf16.msra.mxu0 0
        %7920 = vmatprep.subr.bf16.mxu0 0
        %7921 = vmatpush2.bf16.msra.mxu0 0
        %7922 = vmatprep.mubr.bf16.mxu0 0
        %7923 = vmatmul.mubr.bf16.gmra.mxu0 %v7852
        %v7924 = vpop.f32.mrf.mxu0
        %v7925 = vadd.f32 0.0, %v7924
        %v7926 = vpop.f32.mrf.mxu0
        %v7927 = vpop.f32.mrf.mxu0
        %v7928 = vadd.f32 0.0, %v7927
        %v7929 = vpop.f32.mrf.mxu0
        %7930 = vmatprep.mubr.bf16.mxu0 0
        %7931 = vmatmul.mubr.bf16.gmra.mxu0 %v7855
        %v7932 = vpop.f32.mrf.mxu0
        %v7933 = vadd.f32 0.0, %v7932
        %v7934 = vpop.f32.mrf.mxu0
        %v7935 = vpop.f32.mrf.mxu0
        %v7936 = vadd.f32 0.0, %v7935
        %v7937 = vpop.f32.mrf.mxu0
        %7938 = vmatprep.mubr.bf16.mxu0 0
        %7939 = vmatmul.mubr.bf16.gmra.mxu0 %v7858
        %v7940 = vpop.f32.mrf.mxu0
        %v7941 = vadd.f32 0.0, %v7940
        %v7942 = vpop.f32.mrf.mxu0
        %v7943 = vpop.f32.mrf.mxu0
        %v7944 = vadd.f32 0.0, %v7943
        %v7945 = vpop.f32.mrf.mxu0
        %7946 = vmatprep.mubr.bf16.mxu0 0
        %7947 = vmatmul.mubr.bf16.gmra.mxu0 %v7861
        %v7948 = vpop.f32.mrf.mxu0
        %v7949 = vadd.f32 0.0, %v7948
        %v7950 = vpop.f32.mrf.mxu0
        %v7951 = vpop.f32.mrf.mxu0
        %v7952 = vadd.f32 0.0, %v7951
        %v7953 = vpop.f32.mrf.mxu0
        %7954 = vmatprep.mubr.bf16.mxu0 0
        %7955 = vmatmul.mubr.bf16.gmra.mxu0 %v7864
        %v7956 = vpop.f32.mrf.mxu0
        %v7957 = vadd.f32 0.0, %v7956
        %v7958 = vpop.f32.mrf.mxu0
        %v7959 = vpop.f32.mrf.mxu0
        %v7960 = vadd.f32 0.0, %v7959
        %v7961 = vpop.f32.mrf.mxu0
        %7962 = vmatprep.mubr.bf16.mxu0 0
        %7963 = vmatmul.mubr.bf16.gmra.mxu0 %v7867
        %v7964 = vpop.f32.mrf.mxu0
        %v7965 = vadd.f32 0.0, %v7964
        %v7966 = vpop.f32.mrf.mxu0
        %v7967 = vpop.f32.mrf.mxu0
        %v7968 = vadd.f32 0.0, %v7967
        %v7969 = vpop.f32.mrf.mxu0
        %7970 = vmatprep.mubr.bf16.mxu0 0
        %7971 = vmatmul.mubr.bf16.gmra.mxu0 %v7870
        %v7972 = vpop.f32.mrf.mxu0
        %v7973 = vadd.f32 0.0, %v7972
        %v7974 = vpop.f32.mrf.mxu0
        %v7975 = vpop.f32.mrf.mxu0
        %v7976 = vadd.f32 0.0, %v7975
        %v7977 = vpop.f32.mrf.mxu0
        %7978 = vmatprep.mubr.bf16.mxu0 0
        %7979 = vmatmul.mubr.bf16.gmra.mxu0 %v7873
        %v7980 = vpop.f32.mrf.mxu0
        %v7981 = vadd.f32 0.0, %v7980
        %v7982 = vpop.f32.mrf.mxu0
        %v7983 = vpop.f32.mrf.mxu0
        %v7984 = vadd.f32 0.0, %v7983
        %v7985 = vpop.f32.mrf.mxu0
        %7986 = vmatprep.mubr.bf16.mxu0 0
        %7987 = vmatmul.mubr.bf16.gmra.mxu0 %v7876
        %v7988 = vpop.f32.mrf.mxu0
        %v7989 = vadd.f32 0.0, %v7988
        %v7990 = vpop.f32.mrf.mxu0
        %v7991 = vpop.f32.mrf.mxu0
        %v7992 = vadd.f32 0.0, %v7991
        %v7993 = vpop.f32.mrf.mxu0
        %7994 = vmatprep.mubr.bf16.mxu0 0
        %7995 = vmatmul.mubr.bf16.gmra.mxu0 %v7879
        %v7996 = vpop.f32.mrf.mxu0
        %v7997 = vadd.f32 0.0, %v7996
        %v7998 = vpop.f32.mrf.mxu0
        %v7999 = vpop.f32.mrf.mxu0
        %v8000 = vadd.f32 0.0, %v7999
        %v8001 = vpop.f32.mrf.mxu0
        %8002 = vmatprep.mubr.bf16.mxu0 0
        %8003 = vmatmul.mubr.bf16.gmra.mxu0 %v7882
        %v8004 = vpop.f32.mrf.mxu0
        %v8005 = vadd.f32 0.0, %v8004
        %v8006 = vpop.f32.mrf.mxu0
        %v8007 = vpop.f32.mrf.mxu0
        %v8008 = vadd.f32 0.0, %v8007
        %v8009 = vpop.f32.mrf.mxu0
        %8010 = vmatprep.mubr.bf16.mxu0 0
        %8011 = vmatmul.mubr.bf16.gmra.mxu0 %v7885
        %v8012 = vpop.f32.mrf.mxu0
        %v8013 = vadd.f32 0.0, %v8012
        %v8014 = vpop.f32.mrf.mxu0
        %v8015 = vpop.f32.mrf.mxu0
        %v8016 = vadd.f32 0.0, %v8015
        %v8017 = vpop.f32.mrf.mxu0
        %8018 = vdwg.mxu0
        %v8019 = vadd.f32 %v7405, %v7925
        %v8020 = vadd.f32 %v7406, %v7928
        %v8021 = vadd.f32 %v7407, %v7933
        %v8022 = vadd.f32 %v7408, %v7936
        %v8023 = vadd.f32 %v7409, %v7941
        %v8024 = vadd.f32 %v7410, %v7944
        %v8025 = vadd.f32 %v7411, %v7949
        %v8026 = vadd.f32 %v7412, %v7952
        %v8027 = vadd.f32 %v7413, %v7957
        %v8028 = vadd.f32 %v7414, %v7960
        %v8029 = vadd.f32 %v7415, %v7965
        %v8030 = vadd.f32 %v7416, %v7968
        %v8031 = vadd.f32 %v7417, %v7973
        %v8032 = vadd.f32 %v7418, %v7976
        %v8033 = vadd.f32 %v7419, %v7981
        %v8034 = vadd.f32 %v7420, %v7984
        %v8035 = vadd.f32 %v7421, %v7989
        %v8036 = vadd.f32 %v7422, %v7992
        %v8037 = vadd.f32 %v7423, %v7997
        %v8038 = vadd.f32 %v7424, %v8000
        %v8039 = vadd.f32 %v7425, %v8005
        %v8040 = vadd.f32 %v7426, %v8008
        %v8041 = vadd.f32 %v7427, %v8013
        %v8042 = vadd.f32 %v7428, %v8016
        %s8043 = scalar_lea.vmem [#allocation3], 24
        %v8044 = vld [vmem:[%s8043] sm:$0x8]
        %v8045 = vld [vmem:[%s8043 + $0x4] sm:$0xf]
        %v8046 = vld [vmem:[%s8043 + $0xc] sm:$0x8]
        %v8047 = vld [vmem:[%s8043 + $0x10] sm:$0xf]
        %v8048 = vld [vmem:[%s8043 + $0x18] sm:$0x8]
        %v8049 = vld [vmem:[%s8043 + $0x1c] sm:$0xf]
        %v8050 = vld [vmem:[%s8043 + $0x24] sm:$0x8]
        %v8051 = vld [vmem:[%s8043 + $0x28] sm:$0xf]
        %v8052 = vld [vmem:[%s8043 + $0x30] sm:$0x8]
        %v8053 = vld [vmem:[%s8043 + $0x34] sm:$0xf]
        %v8054 = vld [vmem:[%s8043 + $0x3c] sm:$0x8]
        %v8055 = vld [vmem:[%s8043 + $0x40] sm:$0xf]
        %v8056 = vld [vmem:[%s8043 + $0x48] sm:$0x8]
        %v8057 = vld [vmem:[%s8043 + $0x4c] sm:$0xf]
        %v8058 = vld [vmem:[%s8043 + $0x54] sm:$0x8]
        %v8059 = vld [vmem:[%s8043 + $0x58] sm:$0xf]
        %v8060 = vld [vmem:[%s8043 + $0x78] sm:$0x8]
        %v8061 = vld [vmem:[%s8043 + $0x7c] sm:$0xf]
        %v8062 = vld [vmem:[%s8043 + $0x84] sm:$0x8]
        %v8063 = vld [vmem:[%s8043 + $0x88] sm:$0xf]
        %v8064 = vld [vmem:[%s8043 + $0x90] sm:$0x8]
        %v8065 = vld [vmem:[%s8043 + $0x94] sm:$0xf]
        %v8066 = vld [vmem:[%s8043 + $0x9c] sm:$0x8]
        %v8067 = vld [vmem:[%s8043 + $0xa0] sm:$0xf]
        %v8068 = vld [vmem:[%s8043 + $0xa8] sm:$0x8]
        %v8069 = vld [vmem:[%s8043 + $0xac] sm:$0xf]
        %v8070 = vld [vmem:[%s8043 + $0xb4] sm:$0x8]
        %v8071 = vld [vmem:[%s8043 + $0xb8] sm:$0xf]
        %v8072 = vld [vmem:[%s8043 + $0xc0] sm:$0x8]
        %v8073 = vld [vmem:[%s8043 + $0xc4] sm:$0xf]
        %v8074 = vld [vmem:[%s8043 + $0xcc] sm:$0x8]
        %v8075 = vld [vmem:[%s8043 + $0xd0] sm:$0xf]
        %v8076 = vld [vmem:[%s8043 + $0xf0] sm:$0x8]
        %v8077 = vld [vmem:[%s8043 + $0xf4] sm:$0xf]
        %v8078 = vld [vmem:[%s8043 + $0xfc] sm:$0x8]
        %v8079 = vld [vmem:[%s8043 + $0x100] sm:$0xf]
        %v8080 = vld [vmem:[%s8043 + $0x108] sm:$0x8]
        %v8081 = vld [vmem:[%s8043 + $0x10c] sm:$0xf]
        %v8082 = vld [vmem:[%s8043 + $0x114] sm:$0x8]
        %v8083 = vld [vmem:[%s8043 + $0x118] sm:$0xf]
        %v8084 = vld [vmem:[%s8043 + $0x120] sm:$0x8]
        %v8085 = vld [vmem:[%s8043 + $0x124] sm:$0xf]
        %v8086 = vld [vmem:[%s8043 + $0x12c] sm:$0x8]
        %v8087 = vld [vmem:[%s8043 + $0x130] sm:$0xf]
        %v8088 = vld [vmem:[%s8043 + $0x138] sm:$0x8]
        %v8089 = vld [vmem:[%s8043 + $0x13c] sm:$0xf]
        %v8090 = vld [vmem:[%s8043 + $0x144] sm:$0x8]
        %v8091 = vld [vmem:[%s8043 + $0x148] sm:$0xf]
        %v8093 = vshrl.u32 %v8044, 16
        %v8095 = vrot.slane %v8093, 7
        %v8096 = vrot.slane %v8095, 4
        %v8098 = vshrl.u32 %v8045, 16
        %v8100 = vrot.slane %v8098, 7
        %v8101 = vshll.u32 %v8045, 16
        %v8103 = vor.u32 %v8100, %v8101
        %v8104 = vsel %vm715, %v8096, %v8103
        %v8106 = vshrl.u32 %v8046, 16
        %v8108 = vrot.slane %v8106, 7
        %v8109 = vrot.slane %v8108, 4
        %v8111 = vshrl.u32 %v8047, 16
        %v8113 = vrot.slane %v8111, 7
        %v8114 = vshll.u32 %v8047, 16
        %v8116 = vor.u32 %v8113, %v8114
        %v8117 = vsel %vm715, %v8109, %v8116
        %v8119 = vshrl.u32 %v8048, 16
        %v8121 = vrot.slane %v8119, 7
        %v8122 = vrot.slane %v8121, 4
        %v8124 = vshrl.u32 %v8049, 16
        %v8126 = vrot.slane %v8124, 7
        %v8127 = vshll.u32 %v8049, 16
        %v8129 = vor.u32 %v8126, %v8127
        %v8130 = vsel %vm715, %v8122, %v8129
        %v8132 = vshrl.u32 %v8050, 16
        %v8134 = vrot.slane %v8132, 7
        %v8135 = vrot.slane %v8134, 4
        %v8137 = vshrl.u32 %v8051, 16
        %v8139 = vrot.slane %v8137, 7
        %v8140 = vshll.u32 %v8051, 16
        %v8142 = vor.u32 %v8139, %v8140
        %v8143 = vsel %vm715, %v8135, %v8142
        %v8145 = vshrl.u32 %v8052, 16
        %v8147 = vrot.slane %v8145, 7
        %v8148 = vrot.slane %v8147, 4
        %v8150 = vshrl.u32 %v8053, 16
        %v8152 = vrot.slane %v8150, 7
        %v8153 = vshll.u32 %v8053, 16
        %v8155 = vor.u32 %v8152, %v8153
        %v8156 = vsel %vm715, %v8148, %v8155
        %v8158 = vshrl.u32 %v8054, 16
        %v8160 = vrot.slane %v8158, 7
        %v8161 = vrot.slane %v8160, 4
        %v8163 = vshrl.u32 %v8055, 16
        %v8165 = vrot.slane %v8163, 7
        %v8166 = vshll.u32 %v8055, 16
        %v8168 = vor.u32 %v8165, %v8166
        %v8169 = vsel %vm715, %v8161, %v8168
        %v8171 = vshrl.u32 %v8056, 16
        %v8173 = vrot.slane %v8171, 7
        %v8174 = vrot.slane %v8173, 4
        %v8176 = vshrl.u32 %v8057, 16
        %v8178 = vrot.slane %v8176, 7
        %v8179 = vshll.u32 %v8057, 16
        %v8181 = vor.u32 %v8178, %v8179
        %v8182 = vsel %vm715, %v8174, %v8181
        %v8184 = vshrl.u32 %v8058, 16
        %v8186 = vrot.slane %v8184, 7
        %v8187 = vrot.slane %v8186, 4
        %v8189 = vshrl.u32 %v8059, 16
        %v8191 = vrot.slane %v8189, 7
        %v8192 = vshll.u32 %v8059, 16
        %v8194 = vor.u32 %v8191, %v8192
        %v8195 = vsel %vm715, %v8187, %v8194
        %v8197 = vshrl.u32 %v8060, 16
        %v8199 = vrot.slane %v8197, 7
        %v8200 = vrot.slane %v8199, 4
        %v8202 = vshrl.u32 %v8061, 16
        %v8204 = vrot.slane %v8202, 7
        %v8205 = vshll.u32 %v8061, 16
        %v8207 = vor.u32 %v8204, %v8205
        %v8208 = vsel %vm715, %v8200, %v8207
        %v8210 = vshrl.u32 %v8062, 16
        %v8212 = vrot.slane %v8210, 7
        %v8213 = vrot.slane %v8212, 4
        %v8215 = vshrl.u32 %v8063, 16
        %v8217 = vrot.slane %v8215, 7
        %v8218 = vshll.u32 %v8063, 16
        %v8220 = vor.u32 %v8217, %v8218
        %v8221 = vsel %vm715, %v8213, %v8220
        %v8223 = vshrl.u32 %v8064, 16
        %v8225 = vrot.slane %v8223, 7
        %v8226 = vrot.slane %v8225, 4
        %v8228 = vshrl.u32 %v8065, 16
        %v8230 = vrot.slane %v8228, 7
        %v8231 = vshll.u32 %v8065, 16
        %v8233 = vor.u32 %v8230, %v8231
        %v8234 = vsel %vm715, %v8226, %v8233
        %v8236 = vshrl.u32 %v8066, 16
        %v8238 = vrot.slane %v8236, 7
        %v8239 = vrot.slane %v8238, 4
        %v8241 = vshrl.u32 %v8067, 16
        %v8243 = vrot.slane %v8241, 7
        %v8244 = vshll.u32 %v8067, 16
        %v8246 = vor.u32 %v8243, %v8244
        %v8247 = vsel %vm715, %v8239, %v8246
        %v8249 = vshrl.u32 %v8068, 16
        %v8251 = vrot.slane %v8249, 7
        %v8252 = vrot.slane %v8251, 4
        %v8254 = vshrl.u32 %v8069, 16
        %v8256 = vrot.slane %v8254, 7
        %v8257 = vshll.u32 %v8069, 16
        %v8259 = vor.u32 %v8256, %v8257
        %v8260 = vsel %vm715, %v8252, %v8259
        %v8262 = vshrl.u32 %v8070, 16
        %v8264 = vrot.slane %v8262, 7
        %v8265 = vrot.slane %v8264, 4
        %v8267 = vshrl.u32 %v8071, 16
        %v8269 = vrot.slane %v8267, 7
        %v8270 = vshll.u32 %v8071, 16
        %v8272 = vor.u32 %v8269, %v8270
        %v8273 = vsel %vm715, %v8265, %v8272
        %v8275 = vshrl.u32 %v8072, 16
        %v8277 = vrot.slane %v8275, 7
        %v8278 = vrot.slane %v8277, 4
        %v8280 = vshrl.u32 %v8073, 16
        %v8282 = vrot.slane %v8280, 7
        %v8283 = vshll.u32 %v8073, 16
        %v8285 = vor.u32 %v8282, %v8283
        %v8286 = vsel %vm715, %v8278, %v8285
        %v8288 = vshrl.u32 %v8074, 16
        %v8290 = vrot.slane %v8288, 7
        %v8291 = vrot.slane %v8290, 4
        %v8293 = vshrl.u32 %v8075, 16
        %v8295 = vrot.slane %v8293, 7
        %v8296 = vshll.u32 %v8075, 16
        %v8298 = vor.u32 %v8295, %v8296
        %v8299 = vsel %vm715, %v8291, %v8298
        %v8301 = vshrl.u32 %v8076, 16
        %v8303 = vrot.slane %v8301, 7
        %v8304 = vrot.slane %v8303, 4
        %v8306 = vshrl.u32 %v8077, 16
        %v8308 = vrot.slane %v8306, 7
        %v8309 = vshll.u32 %v8077, 16
        %v8311 = vor.u32 %v8308, %v8309
        %v8312 = vsel %vm715, %v8304, %v8311
        %v8314 = vshrl.u32 %v8078, 16
        %v8316 = vrot.slane %v8314, 7
        %v8317 = vrot.slane %v8316, 4
        %v8319 = vshrl.u32 %v8079, 16
        %v8321 = vrot.slane %v8319, 7
        %v8322 = vshll.u32 %v8079, 16
        %v8324 = vor.u32 %v8321, %v8322
        %v8325 = vsel %vm715, %v8317, %v8324
        %v8327 = vshrl.u32 %v8080, 16
        %v8329 = vrot.slane %v8327, 7
        %v8330 = vrot.slane %v8329, 4
        %v8332 = vshrl.u32 %v8081, 16
        %v8334 = vrot.slane %v8332, 7
        %v8335 = vshll.u32 %v8081, 16
        %v8337 = vor.u32 %v8334, %v8335
        %v8338 = vsel %vm715, %v8330, %v8337
        %v8340 = vshrl.u32 %v8082, 16
        %v8342 = vrot.slane %v8340, 7
        %v8343 = vrot.slane %v8342, 4
        %v8345 = vshrl.u32 %v8083, 16
        %v8347 = vrot.slane %v8345, 7
        %v8348 = vshll.u32 %v8083, 16
        %v8350 = vor.u32 %v8347, %v8348
        %v8351 = vsel %vm715, %v8343, %v8350
        %v8353 = vshrl.u32 %v8084, 16
        %v8355 = vrot.slane %v8353, 7
        %v8356 = vrot.slane %v8355, 4
        %v8358 = vshrl.u32 %v8085, 16
        %v8360 = vrot.slane %v8358, 7
        %v8361 = vshll.u32 %v8085, 16
        %v8363 = vor.u32 %v8360, %v8361
        %v8364 = vsel %vm715, %v8356, %v8363
        %v8366 = vshrl.u32 %v8086, 16
        %v8368 = vrot.slane %v8366, 7
        %v8369 = vrot.slane %v8368, 4
        %v8371 = vshrl.u32 %v8087, 16
        %v8373 = vrot.slane %v8371, 7
        %v8374 = vshll.u32 %v8087, 16
        %v8376 = vor.u32 %v8373, %v8374
        %v8377 = vsel %vm715, %v8369, %v8376
        %v8379 = vshrl.u32 %v8088, 16
        %v8381 = vrot.slane %v8379, 7
        %v8382 = vrot.slane %v8381, 4
        %v8384 = vshrl.u32 %v8089, 16
        %v8386 = vrot.slane %v8384, 7
        %v8387 = vshll.u32 %v8089, 16
        %v8389 = vor.u32 %v8386, %v8387
        %v8390 = vsel %vm715, %v8382, %v8389
        %v8392 = vshrl.u32 %v8090, 16
        %v8394 = vrot.slane %v8392, 7
        %v8395 = vrot.slane %v8394, 4
        %v8397 = vshrl.u32 %v8091, 16
        %v8399 = vrot.slane %v8397, 7
        %v8400 = vshll.u32 %v8091, 16
        %v8402 = vor.u32 %v8399, %v8400
        %v8403 = vsel %vm715, %v8395, %v8402
        %s8404 = scalar_lea.vmem %s3, 24
        %v8405 = vld [vmem:[%s8404] sm:$0xf]
        %v8406 = vunpack.c.l.b16 %v8104
        %v8407 = vunpack.c.l.b16 %v8117
        %v8408 = vunpack.c.l.b16 %v8130
        %v8409 = vunpack.c.l.b16 %v8143
        %v8410 = vunpack.c.l.b16 %v8156
        %v8411 = vunpack.c.l.b16 %v8169
        %v8412 = vunpack.c.l.b16 %v8182
        %v8413 = vunpack.c.l.b16 %v8195
        %v8414 = vunpack.c.l.b16 %v8208
        %v8415 = vunpack.c.l.b16 %v8221
        %v8416 = vunpack.c.l.b16 %v8234
        %v8417 = vunpack.c.l.b16 %v8247
        %v8418 = vunpack.c.l.b16 %v8260
        %v8419 = vunpack.c.l.b16 %v8273
        %v8420 = vunpack.c.l.b16 %v8286
        %v8421 = vunpack.c.l.b16 %v8299
        %v8422 = vunpack.c.l.b16 %v8312
        %v8423 = vunpack.c.l.b16 %v8325
        %v8424 = vunpack.c.l.b16 %v8338
        %v8425 = vunpack.c.l.b16 %v8351
        %v8426 = vunpack.c.l.b16 %v8364
        %v8427 = vunpack.c.l.b16 %v8377
        %v8428 = vunpack.c.l.b16 %v8390
        %v8429 = vunpack.c.l.b16 %v8403
        %v8430 = vpack.c.b16 %v8407, %v8406
        %v8431 = vpack.c.b16 %v8409, %v8408
        %v8432 = vpack.c.b16 %v8411, %v8410
        %v8433 = vpack.c.b16 %v8413, %v8412
        %v8434 = vpack.c.b16 %v8415, %v8414
        %v8435 = vpack.c.b16 %v8417, %v8416
        %v8436 = vpack.c.b16 %v8419, %v8418
        %v8437 = vpack.c.b16 %v8421, %v8420
        %v8438 = vpack.c.b16 %v8423, %v8422
        %v8439 = vpack.c.b16 %v8425, %v8424
        %v8440 = vpack.c.b16 %v8427, %v8426
        %v8441 = vpack.c.b16 %v8429, %v8428
        %v8443 = vsel %vm5597, %v8430, 0
        %v8446 = vsel %vm5597, %v8431, 0
        %v8449 = vsel %vm5597, %v8432, 0
        %v8452 = vsel %vm5597, %v8433, 0
        %v8455 = vsel %vm5597, %v8434, 0
        %v8458 = vsel %vm5597, %v8435, 0
        %v8461 = vsel %vm5597, %v8436, 0
        %v8464 = vsel %vm5597, %v8437, 0
        %v8467 = vsel %vm5597, %v8438, 0
        %v8470 = vsel %vm5597, %v8439, 0
        %v8473 = vsel %vm5597, %v8440, 0
        %v8476 = vsel %vm5597, %v8441, 0
        %v8479 = vsel %vm5634, %v8405, 0
        %8481 = vmatprep.subr.bf16.mxu0 0
        %8482 = vmatpush1.bf16.msra.mxu0 0
        %8483 = vmatprep.subr.bf16.mxu0 0
        %8484 = vmatpush1.bf16.msra.mxu0 0
        %8485 = vmatprep.subr.bf16.mxu0 0
        %8486 = vmatpush1.bf16.msra.mxu0 0
        %8487 = vmatprep.subr.bf16.mxu0 0
        %8488 = vmatpush1.bf16.msra.mxu0 0
        %8489 = vmatprep.subr.bf16.mxu0 0
        %8490 = vmatpush1.bf16.msra.mxu0 0
        %8491 = vmatprep.subr.bf16.mxu0 0
        %8492 = vmatpush1.bf16.msra.mxu0 0
        %8493 = vmatprep.subr.bf16.mxu0 0
        %8494 = vmatpush1.bf16.msra.mxu0 0
        %8495 = vmatprep.subr.bf16.mxu0 0
        %8496 = vmatpush1.bf16.msra.mxu0 %v8479
        %8497 = vmatprep.subr.bf16.mxu0 0
        %8498 = vmatpush2.bf16.msra.mxu0 0
        %8499 = vmatprep.subr.bf16.mxu0 0
        %8500 = vmatpush2.bf16.msra.mxu0 0
        %8501 = vmatprep.subr.bf16.mxu0 0
        %8502 = vmatpush2.bf16.msra.mxu0 0
        %8503 = vmatprep.subr.bf16.mxu0 0
        %8504 = vmatpush2.bf16.msra.mxu0 0
        %8505 = vmatprep.subr.bf16.mxu0 0
        %8506 = vmatpush2.bf16.msra.mxu0 0
        %8507 = vmatprep.subr.bf16.mxu0 0
        %8508 = vmatpush2.bf16.msra.mxu0 0
        %8509 = vmatprep.subr.bf16.mxu0 0
        %8510 = vmatpush2.bf16.msra.mxu0 0
        %8511 = vmatprep.subr.bf16.mxu0 0
        %8512 = vmatpush2.bf16.msra.mxu0 0
        %8513 = vmatprep.mubr.bf16.mxu0 0
        %8514 = vmatmul.mubr.bf16.gmra.mxu0 %v8443
        %v8515 = vpop.f32.mrf.mxu0
        %v8516 = vadd.f32 0.0, %v8515
        %v8517 = vpop.f32.mrf.mxu0
        %v8518 = vpop.f32.mrf.mxu0
        %v8519 = vadd.f32 0.0, %v8518
        %v8520 = vpop.f32.mrf.mxu0
        %8521 = vmatprep.mubr.bf16.mxu0 0
        %8522 = vmatmul.mubr.bf16.gmra.mxu0 %v8446
        %v8523 = vpop.f32.mrf.mxu0
        %v8524 = vadd.f32 0.0, %v8523
        %v8525 = vpop.f32.mrf.mxu0
        %v8526 = vpop.f32.mrf.mxu0
        %v8527 = vadd.f32 0.0, %v8526
        %v8528 = vpop.f32.mrf.mxu0
        %8529 = vmatprep.mubr.bf16.mxu0 0
        %8530 = vmatmul.mubr.bf16.gmra.mxu0 %v8449
        %v8531 = vpop.f32.mrf.mxu0
        %v8532 = vadd.f32 0.0, %v8531
        %v8533 = vpop.f32.mrf.mxu0
        %v8534 = vpop.f32.mrf.mxu0
        %v8535 = vadd.f32 0.0, %v8534
        %v8536 = vpop.f32.mrf.mxu0
        %8537 = vmatprep.mubr.bf16.mxu0 0
        %8538 = vmatmul.mubr.bf16.gmra.mxu0 %v8452
        %v8539 = vpop.f32.mrf.mxu0
        %v8540 = vadd.f32 0.0, %v8539
        %v8541 = vpop.f32.mrf.mxu0
        %v8542 = vpop.f32.mrf.mxu0
        %v8543 = vadd.f32 0.0, %v8542
        %v8544 = vpop.f32.mrf.mxu0
        %8545 = vmatprep.mubr.bf16.mxu0 0
        %8546 = vmatmul.mubr.bf16.gmra.mxu0 %v8455
        %v8547 = vpop.f32.mrf.mxu0
        %v8548 = vadd.f32 0.0, %v8547
        %v8549 = vpop.f32.mrf.mxu0
        %v8550 = vpop.f32.mrf.mxu0
        %v8551 = vadd.f32 0.0, %v8550
        %v8552 = vpop.f32.mrf.mxu0
        %8553 = vmatprep.mubr.bf16.mxu0 0
        %8554 = vmatmul.mubr.bf16.gmra.mxu0 %v8458
        %v8555 = vpop.f32.mrf.mxu0
        %v8556 = vadd.f32 0.0, %v8555
        %v8557 = vpop.f32.mrf.mxu0
        %v8558 = vpop.f32.mrf.mxu0
        %v8559 = vadd.f32 0.0, %v8558
        %v8560 = vpop.f32.mrf.mxu0
        %8561 = vmatprep.mubr.bf16.mxu0 0
        %8562 = vmatmul.mubr.bf16.gmra.mxu0 %v8461
        %v8563 = vpop.f32.mrf.mxu0
        %v8564 = vadd.f32 0.0, %v8563
        %v8565 = vpop.f32.mrf.mxu0
        %v8566 = vpop.f32.mrf.mxu0
        %v8567 = vadd.f32 0.0, %v8566
        %v8568 = vpop.f32.mrf.mxu0
        %8569 = vmatprep.mubr.bf16.mxu0 0
        %8570 = vmatmul.mubr.bf16.gmra.mxu0 %v8464
        %v8571 = vpop.f32.mrf.mxu0
        %v8572 = vadd.f32 0.0, %v8571
        %v8573 = vpop.f32.mrf.mxu0
        %v8574 = vpop.f32.mrf.mxu0
        %v8575 = vadd.f32 0.0, %v8574
        %v8576 = vpop.f32.mrf.mxu0
        %8577 = vmatprep.mubr.bf16.mxu0 0
        %8578 = vmatmul.mubr.bf16.gmra.mxu0 %v8467
        %v8579 = vpop.f32.mrf.mxu0
        %v8580 = vadd.f32 0.0, %v8579
        %v8581 = vpop.f32.mrf.mxu0
        %v8582 = vpop.f32.mrf.mxu0
        %v8583 = vadd.f32 0.0, %v8582
        %v8584 = vpop.f32.mrf.mxu0
        %8585 = vmatprep.mubr.bf16.mxu0 0
        %8586 = vmatmul.mubr.bf16.gmra.mxu0 %v8470
        %v8587 = vpop.f32.mrf.mxu0
        %v8588 = vadd.f32 0.0, %v8587
        %v8589 = vpop.f32.mrf.mxu0
        %v8590 = vpop.f32.mrf.mxu0
        %v8591 = vadd.f32 0.0, %v8590
        %v8592 = vpop.f32.mrf.mxu0
        %8593 = vmatprep.mubr.bf16.mxu0 0
        %8594 = vmatmul.mubr.bf16.gmra.mxu0 %v8473
        %v8595 = vpop.f32.mrf.mxu0
        %v8596 = vadd.f32 0.0, %v8595
        %v8597 = vpop.f32.mrf.mxu0
        %v8598 = vpop.f32.mrf.mxu0
        %v8599 = vadd.f32 0.0, %v8598
        %v8600 = vpop.f32.mrf.mxu0
        %8601 = vmatprep.mubr.bf16.mxu0 0
        %8602 = vmatmul.mubr.bf16.gmra.mxu0 %v8476
        %v8603 = vpop.f32.mrf.mxu0
        %v8604 = vadd.f32 0.0, %v8603
        %v8605 = vpop.f32.mrf.mxu0
        %v8606 = vpop.f32.mrf.mxu0
        %v8607 = vadd.f32 0.0, %v8606
        %v8608 = vpop.f32.mrf.mxu0
        %8609 = vdwg.mxu0
        %v8610 = vadd.f32 %v8019, %v8516
        %v8611 = vadd.f32 %v8020, %v8519
        %v8612 = vadd.f32 %v8021, %v8524
        %v8613 = vadd.f32 %v8022, %v8527
        %v8614 = vadd.f32 %v8023, %v8532
        %v8615 = vadd.f32 %v8024, %v8535
        %v8616 = vadd.f32 %v8025, %v8540
        %v8617 = vadd.f32 %v8026, %v8543
        %v8618 = vadd.f32 %v8027, %v8548
        %v8619 = vadd.f32 %v8028, %v8551
        %v8620 = vadd.f32 %v8029, %v8556
        %v8621 = vadd.f32 %v8030, %v8559
        %v8622 = vadd.f32 %v8031, %v8564
        %v8623 = vadd.f32 %v8032, %v8567
        %v8624 = vadd.f32 %v8033, %v8572
        %v8625 = vadd.f32 %v8034, %v8575
        %v8626 = vadd.f32 %v8035, %v8580
        %v8627 = vadd.f32 %v8036, %v8583
        %v8628 = vadd.f32 %v8037, %v8588
        %v8629 = vadd.f32 %v8038, %v8591
        %v8630 = vadd.f32 %v8039, %v8596
        %v8631 = vadd.f32 %v8040, %v8599
        %v8632 = vadd.f32 %v8041, %v8604
        %v8633 = vadd.f32 %v8042, %v8607
        %s8634 = scalar_lea.vmem %s3, 28
        %v8635 = vld [vmem:[%s8634] sm:$0xf]
        %v8660 = vunpack.c.l.b16 %v8045
        %v8661 = vunpack.c.l.b16 %v8047
        %v8662 = vunpack.c.l.b16 %v8049
        %v8663 = vunpack.c.l.b16 %v8051
        %v8664 = vunpack.c.l.b16 %v8053
        %v8665 = vunpack.c.l.b16 %v8055
        %v8666 = vunpack.c.l.b16 %v8057
        %v8667 = vunpack.c.l.b16 %v8059
        %v8668 = vunpack.c.l.b16 %v8061
        %v8669 = vunpack.c.l.b16 %v8063
        %v8670 = vunpack.c.l.b16 %v8065
        %v8671 = vunpack.c.l.b16 %v8067
        %v8672 = vunpack.c.l.b16 %v8069
        %v8673 = vunpack.c.l.b16 %v8071
        %v8674 = vunpack.c.l.b16 %v8073
        %v8675 = vunpack.c.l.b16 %v8075
        %v8676 = vunpack.c.l.b16 %v8077
        %v8677 = vunpack.c.l.b16 %v8079
        %v8678 = vunpack.c.l.b16 %v8081
        %v8679 = vunpack.c.l.b16 %v8083
        %v8680 = vunpack.c.l.b16 %v8085
        %v8681 = vunpack.c.l.b16 %v8087
        %v8682 = vunpack.c.l.b16 %v8089
        %v8683 = vunpack.c.l.b16 %v8091
        %v8684 = vpack.c.b16 %v8661, %v8660
        %v8685 = vpack.c.b16 %v8663, %v8662
        %v8686 = vpack.c.b16 %v8665, %v8664
        %v8687 = vpack.c.b16 %v8667, %v8666
        %v8688 = vpack.c.b16 %v8669, %v8668
        %v8689 = vpack.c.b16 %v8671, %v8670
        %v8690 = vpack.c.b16 %v8673, %v8672
        %v8691 = vpack.c.b16 %v8675, %v8674
        %v8692 = vpack.c.b16 %v8677, %v8676
        %v8693 = vpack.c.b16 %v8679, %v8678
        %v8694 = vpack.c.b16 %v8681, %v8680
        %v8695 = vpack.c.b16 %v8683, %v8682
        %v8697 = vsel %vm5597, %v8684, 0
        %v8700 = vsel %vm5597, %v8685, 0
        %v8703 = vsel %vm5597, %v8686, 0
        %v8706 = vsel %vm5597, %v8687, 0
        %v8709 = vsel %vm5597, %v8688, 0
        %v8712 = vsel %vm5597, %v8689, 0
        %v8715 = vsel %vm5597, %v8690, 0
        %v8718 = vsel %vm5597, %v8691, 0
        %v8721 = vsel %vm5597, %v8692, 0
        %v8724 = vsel %vm5597, %v8693, 0
        %v8727 = vsel %vm5597, %v8694, 0
        %v8730 = vsel %vm5597, %v8695, 0
        %v8733 = vsel %vm5634, %v8635, 0
        %8735 = vmatprep.subr.bf16.mxu0 0
        %8736 = vmatpush1.bf16.msra.mxu0 0
        %8737 = vmatprep.subr.bf16.mxu0 0
        %8738 = vmatpush1.bf16.msra.mxu0 0
        %8739 = vmatprep.subr.bf16.mxu0 0
        %8740 = vmatpush1.bf16.msra.mxu0 0
        %8741 = vmatprep.subr.bf16.mxu0 0
        %8742 = vmatpush1.bf16.msra.mxu0 0
        %8743 = vmatprep.subr.bf16.mxu0 0
        %8744 = vmatpush1.bf16.msra.mxu0 0
        %8745 = vmatprep.subr.bf16.mxu0 0
        %8746 = vmatpush1.bf16.msra.mxu0 0
        %8747 = vmatprep.subr.bf16.mxu0 0
        %8748 = vmatpush1.bf16.msra.mxu0 0
        %8749 = vmatprep.subr.bf16.mxu0 0
        %8750 = vmatpush1.bf16.msra.mxu0 %v8733
        %8751 = vmatprep.subr.bf16.mxu0 0
        %8752 = vmatpush2.bf16.msra.mxu0 0
        %8753 = vmatprep.subr.bf16.mxu0 0
        %8754 = vmatpush2.bf16.msra.mxu0 0
        %8755 = vmatprep.subr.bf16.mxu0 0
        %8756 = vmatpush2.bf16.msra.mxu0 0
        %8757 = vmatprep.subr.bf16.mxu0 0
        %8758 = vmatpush2.bf16.msra.mxu0 0
        %8759 = vmatprep.subr.bf16.mxu0 0
        %8760 = vmatpush2.bf16.msra.mxu0 0
        %8761 = vmatprep.subr.bf16.mxu0 0
        %8762 = vmatpush2.bf16.msra.mxu0 0
        %8763 = vmatprep.subr.bf16.mxu0 0
        %8764 = vmatpush2.bf16.msra.mxu0 0
        %8765 = vmatprep.subr.bf16.mxu0 0
        %8766 = vmatpush2.bf16.msra.mxu0 0
        %8767 = vmatprep.mubr.bf16.mxu0 0
        %8768 = vmatmul.mubr.bf16.gmra.mxu0 %v8697
        %v8769 = vpop.f32.mrf.mxu0
        %v8770 = vadd.f32 0.0, %v8769
        %v8771 = vpop.f32.mrf.mxu0
        %v8772 = vpop.f32.mrf.mxu0
        %v8773 = vadd.f32 0.0, %v8772
        %v8774 = vpop.f32.mrf.mxu0
        %8775 = vmatprep.mubr.bf16.mxu0 0
        %8776 = vmatmul.mubr.bf16.gmra.mxu0 %v8700
        %v8777 = vpop.f32.mrf.mxu0
        %v8778 = vadd.f32 0.0, %v8777
        %v8779 = vpop.f32.mrf.mxu0
        %v8780 = vpop.f32.mrf.mxu0
        %v8781 = vadd.f32 0.0, %v8780
        %v8782 = vpop.f32.mrf.mxu0
        %8783 = vmatprep.mubr.bf16.mxu0 0
        %8784 = vmatmul.mubr.bf16.gmra.mxu0 %v8703
        %v8785 = vpop.f32.mrf.mxu0
        %v8786 = vadd.f32 0.0, %v8785
        %v8787 = vpop.f32.mrf.mxu0
        %v8788 = vpop.f32.mrf.mxu0
        %v8789 = vadd.f32 0.0, %v8788
        %v8790 = vpop.f32.mrf.mxu0
        %8791 = vmatprep.mubr.bf16.mxu0 0
        %8792 = vmatmul.mubr.bf16.gmra.mxu0 %v8706
        %v8793 = vpop.f32.mrf.mxu0
        %v8794 = vadd.f32 0.0, %v8793
        %v8795 = vpop.f32.mrf.mxu0
        %v8796 = vpop.f32.mrf.mxu0
        %v8797 = vadd.f32 0.0, %v8796
        %v8798 = vpop.f32.mrf.mxu0
        %8799 = vmatprep.mubr.bf16.mxu0 0
        %8800 = vmatmul.mubr.bf16.gmra.mxu0 %v8709
        %v8801 = vpop.f32.mrf.mxu0
        %v8802 = vadd.f32 0.0, %v8801
        %v8803 = vpop.f32.mrf.mxu0
        %v8804 = vpop.f32.mrf.mxu0
        %v8805 = vadd.f32 0.0, %v8804
        %v8806 = vpop.f32.mrf.mxu0
        %8807 = vmatprep.mubr.bf16.mxu0 0
        %8808 = vmatmul.mubr.bf16.gmra.mxu0 %v8712
        %v8809 = vpop.f32.mrf.mxu0
        %v8810 = vadd.f32 0.0, %v8809
        %v8811 = vpop.f32.mrf.mxu0
        %v8812 = vpop.f32.mrf.mxu0
        %v8813 = vadd.f32 0.0, %v8812
        %v8814 = vpop.f32.mrf.mxu0
        %8815 = vmatprep.mubr.bf16.mxu0 0
        %8816 = vmatmul.mubr.bf16.gmra.mxu0 %v8715
        %v8817 = vpop.f32.mrf.mxu0
        %v8818 = vadd.f32 0.0, %v8817
        %v8819 = vpop.f32.mrf.mxu0
        %v8820 = vpop.f32.mrf.mxu0
        %v8821 = vadd.f32 0.0, %v8820
        %v8822 = vpop.f32.mrf.mxu0
        %8823 = vmatprep.mubr.bf16.mxu0 0
        %8824 = vmatmul.mubr.bf16.gmra.mxu0 %v8718
        %v8825 = vpop.f32.mrf.mxu0
        %v8826 = vadd.f32 0.0, %v8825
        %v8827 = vpop.f32.mrf.mxu0
        %v8828 = vpop.f32.mrf.mxu0
        %v8829 = vadd.f32 0.0, %v8828
        %v8830 = vpop.f32.mrf.mxu0
        %8831 = vmatprep.mubr.bf16.mxu0 0
        %8832 = vmatmul.mubr.bf16.gmra.mxu0 %v8721
        %v8833 = vpop.f32.mrf.mxu0
        %v8834 = vadd.f32 0.0, %v8833
        %v8835 = vpop.f32.mrf.mxu0
        %v8836 = vpop.f32.mrf.mxu0
        %v8837 = vadd.f32 0.0, %v8836
        %v8838 = vpop.f32.mrf.mxu0
        %8839 = vmatprep.mubr.bf16.mxu0 0
        %8840 = vmatmul.mubr.bf16.gmra.mxu0 %v8724
        %v8841 = vpop.f32.mrf.mxu0
        %v8842 = vadd.f32 0.0, %v8841
        %v8843 = vpop.f32.mrf.mxu0
        %v8844 = vpop.f32.mrf.mxu0
        %v8845 = vadd.f32 0.0, %v8844
        %v8846 = vpop.f32.mrf.mxu0
        %8847 = vmatprep.mubr.bf16.mxu0 0
        %8848 = vmatmul.mubr.bf16.gmra.mxu0 %v8727
        %v8849 = vpop.f32.mrf.mxu0
        %v8850 = vadd.f32 0.0, %v8849
        %v8851 = vpop.f32.mrf.mxu0
        %v8852 = vpop.f32.mrf.mxu0
        %v8853 = vadd.f32 0.0, %v8852
        %v8854 = vpop.f32.mrf.mxu0
        %8855 = vmatprep.mubr.bf16.mxu0 0
        %8856 = vmatmul.mubr.bf16.gmra.mxu0 %v8730
        %v8857 = vpop.f32.mrf.mxu0
        %v8858 = vadd.f32 0.0, %v8857
        %v8859 = vpop.f32.mrf.mxu0
        %v8860 = vpop.f32.mrf.mxu0
        %v8861 = vadd.f32 0.0, %v8860
        %v8862 = vpop.f32.mrf.mxu0
        %8863 = vdwg.mxu0
        %v8864 = vadd.f32 %v8610, %v8770
        %v8865 = vadd.f32 %v8611, %v8773
        %v8866 = vadd.f32 %v8612, %v8778
        %v8867 = vadd.f32 %v8613, %v8781
        %v8868 = vadd.f32 %v8614, %v8786
        %v8869 = vadd.f32 %v8615, %v8789
        %v8870 = vadd.f32 %v8616, %v8794
        %v8871 = vadd.f32 %v8617, %v8797
        %v8872 = vadd.f32 %v8618, %v8802
        %v8873 = vadd.f32 %v8619, %v8805
        %v8874 = vadd.f32 %v8620, %v8810
        %v8875 = vadd.f32 %v8621, %v8813
        %v8876 = vadd.f32 %v8622, %v8818
        %v8877 = vadd.f32 %v8623, %v8821
        %v8878 = vadd.f32 %v8624, %v8826
        %v8879 = vadd.f32 %v8625, %v8829
        %v8880 = vadd.f32 %v8626, %v8834
        %v8881 = vadd.f32 %v8627, %v8837
        %v8882 = vadd.f32 %v8628, %v8842
        %v8883 = vadd.f32 %v8629, %v8845
        %v8884 = vadd.f32 %v8630, %v8850
        %v8885 = vadd.f32 %v8631, %v8853
        %v8886 = vadd.f32 %v8632, %v8858
        %v8887 = vadd.f32 %v8633, %v8861
        %v8888 = vld [vmem:[%s8043 + $0x4] sm:$0xf]
        %v8889 = vld [vmem:[%s8043 + $0x8] sm:$0x1]
        %v8890 = vld [vmem:[%s8043 + $0x10] sm:$0xf]
        %v8891 = vld [vmem:[%s8043 + $0x14] sm:$0x1]
        %v8892 = vld [vmem:[%s8043 + $0x1c] sm:$0xf]
        %v8893 = vld [vmem:[%s8043 + $0x20] sm:$0x1]
        %v8894 = vld [vmem:[%s8043 + $0x28] sm:$0xf]
        %v8895 = vld [vmem:[%s8043 + $0x2c] sm:$0x1]
        %v8896 = vld [vmem:[%s8043 + $0x34] sm:$0xf]
        %v8897 = vld [vmem:[%s8043 + $0x38] sm:$0x1]
        %v8898 = vld [vmem:[%s8043 + $0x40] sm:$0xf]
        %v8899 = vld [vmem:[%s8043 + $0x44] sm:$0x1]
        %v8900 = vld [vmem:[%s8043 + $0x4c] sm:$0xf]
        %v8901 = vld [vmem:[%s8043 + $0x50] sm:$0x1]
        %v8902 = vld [vmem:[%s8043 + $0x58] sm:$0xf]
        %v8903 = vld [vmem:[%s8043 + $0x5c] sm:$0x1]
        %v8904 = vld [vmem:[%s8043 + $0x7c] sm:$0xf]
        %v8905 = vld [vmem:[%s8043 + $0x80] sm:$0x1]
        %v8906 = vld [vmem:[%s8043 + $0x88] sm:$0xf]
        %v8907 = vld [vmem:[%s8043 + $0x8c] sm:$0x1]
        %v8908 = vld [vmem:[%s8043 + $0x94] sm:$0xf]
        %v8909 = vld [vmem:[%s8043 + $0x98] sm:$0x1]
        %v8910 = vld [vmem:[%s8043 + $0xa0] sm:$0xf]
        %v8911 = vld [vmem:[%s8043 + $0xa4] sm:$0x1]
        %v8912 = vld [vmem:[%s8043 + $0xac] sm:$0xf]
        %v8913 = vld [vmem:[%s8043 + $0xb0] sm:$0x1]
        %v8914 = vld [vmem:[%s8043 + $0xb8] sm:$0xf]
        %v8915 = vld [vmem:[%s8043 + $0xbc] sm:$0x1]
        %v8916 = vld [vmem:[%s8043 + $0xc4] sm:$0xf]
        %v8917 = vld [vmem:[%s8043 + $0xc8] sm:$0x1]
        %v8918 = vld [vmem:[%s8043 + $0xd0] sm:$0xf]
        %v8919 = vld [vmem:[%s8043 + $0xd4] sm:$0x1]
        %v8920 = vld [vmem:[%s8043 + $0xf4] sm:$0xf]
        %v8921 = vld [vmem:[%s8043 + $0xf8] sm:$0x1]
        %v8922 = vld [vmem:[%s8043 + $0x100] sm:$0xf]
        %v8923 = vld [vmem:[%s8043 + $0x104] sm:$0x1]
        %v8924 = vld [vmem:[%s8043 + $0x10c] sm:$0xf]
        %v8925 = vld [vmem:[%s8043 + $0x110] sm:$0x1]
        %v8926 = vld [vmem:[%s8043 + $0x118] sm:$0xf]
        %v8927 = vld [vmem:[%s8043 + $0x11c] sm:$0x1]
        %v8928 = vld [vmem:[%s8043 + $0x124] sm:$0xf]
        %v8929 = vld [vmem:[%s8043 + $0x128] sm:$0x1]
        %v8930 = vld [vmem:[%s8043 + $0x130] sm:$0xf]
        %v8931 = vld [vmem:[%s8043 + $0x134] sm:$0x1]
        %v8932 = vld [vmem:[%s8043 + $0x13c] sm:$0xf]
        %v8933 = vld [vmem:[%s8043 + $0x140] sm:$0x1]
        %v8934 = vld [vmem:[%s8043 + $0x148] sm:$0xf]
        %v8935 = vld [vmem:[%s8043 + $0x14c] sm:$0x1]
        %v8937 = vshrl.u32 %v8888, 16
        %v8939 = vrot.slane %v8937, 4
        %v8940 = vshll.u32 %v8888, 16
        %v8942 = vrot.slane %v8940, 5
        %v8943 = vor.u32 %v8939, %v8942
        %v8944 = vrot.slane %v8943, 4
        %v8946 = vshll.u32 %v8889, 16
        %v8948 = vrot.slane %v8946, 5
        %v8949 = vsel %vm1515, %v8944, %v8948
        %v8951 = vshrl.u32 %v8890, 16
        %v8953 = vrot.slane %v8951, 4
        %v8954 = vshll.u32 %v8890, 16
        %v8956 = vrot.slane %v8954, 5
        %v8957 = vor.u32 %v8953, %v8956
        %v8958 = vrot.slane %v8957, 4
        %v8960 = vshll.u32 %v8891, 16
        %v8962 = vrot.slane %v8960, 5
        %v8963 = vsel %vm1515, %v8958, %v8962
        %v8965 = vshrl.u32 %v8892, 16
        %v8967 = vrot.slane %v8965, 4
        %v8968 = vshll.u32 %v8892, 16
        %v8970 = vrot.slane %v8968, 5
        %v8971 = vor.u32 %v8967, %v8970
        %v8972 = vrot.slane %v8971, 4
        %v8974 = vshll.u32 %v8893, 16
        %v8976 = vrot.slane %v8974, 5
        %v8977 = vsel %vm1515, %v8972, %v8976
        %v8979 = vshrl.u32 %v8894, 16
        %v8981 = vrot.slane %v8979, 4
        %v8982 = vshll.u32 %v8894, 16
        %v8984 = vrot.slane %v8982, 5
        %v8985 = vor.u32 %v8981, %v8984
        %v8986 = vrot.slane %v8985, 4
        %v8988 = vshll.u32 %v8895, 16
        %v8990 = vrot.slane %v8988, 5
        %v8991 = vsel %vm1515, %v8986, %v8990
        %v8993 = vshrl.u32 %v8896, 16
        %v8995 = vrot.slane %v8993, 4
        %v8996 = vshll.u32 %v8896, 16
        %v8998 = vrot.slane %v8996, 5
        %v8999 = vor.u32 %v8995, %v8998
        %v9000 = vrot.slane %v8999, 4
        %v9002 = vshll.u32 %v8897, 16
        %v9004 = vrot.slane %v9002, 5
        %v9005 = vsel %vm1515, %v9000, %v9004
        %v9007 = vshrl.u32 %v8898, 16
        %v9009 = vrot.slane %v9007, 4
        %v9010 = vshll.u32 %v8898, 16
        %v9012 = vrot.slane %v9010, 5
        %v9013 = vor.u32 %v9009, %v9012
        %v9014 = vrot.slane %v9013, 4
        %v9016 = vshll.u32 %v8899, 16
        %v9018 = vrot.slane %v9016, 5
        %v9019 = vsel %vm1515, %v9014, %v9018
        %v9021 = vshrl.u32 %v8900, 16
        %v9023 = vrot.slane %v9021, 4
        %v9024 = vshll.u32 %v8900, 16
        %v9026 = vrot.slane %v9024, 5
        %v9027 = vor.u32 %v9023, %v9026
        %v9028 = vrot.slane %v9027, 4
        %v9030 = vshll.u32 %v8901, 16
        %v9032 = vrot.slane %v9030, 5
        %v9033 = vsel %vm1515, %v9028, %v9032
        %v9035 = vshrl.u32 %v8902, 16
        %v9037 = vrot.slane %v9035, 4
        %v9038 = vshll.u32 %v8902, 16
        %v9040 = vrot.slane %v9038, 5
        %v9041 = vor.u32 %v9037, %v9040
        %v9042 = vrot.slane %v9041, 4
        %v9044 = vshll.u32 %v8903, 16
        %v9046 = vrot.slane %v9044, 5
        %v9047 = vsel %vm1515, %v9042, %v9046
        %v9049 = vshrl.u32 %v8904, 16
        %v9051 = vrot.slane %v9049, 4
        %v9052 = vshll.u32 %v8904, 16
        %v9054 = vrot.slane %v9052, 5
        %v9055 = vor.u32 %v9051, %v9054
        %v9056 = vrot.slane %v9055, 4
        %v9058 = vshll.u32 %v8905, 16
        %v9060 = vrot.slane %v9058, 5
        %v9061 = vsel %vm1515, %v9056, %v9060
        %v9063 = vshrl.u32 %v8906, 16
        %v9065 = vrot.slane %v9063, 4
        %v9066 = vshll.u32 %v8906, 16
        %v9068 = vrot.slane %v9066, 5
        %v9069 = vor.u32 %v9065, %v9068
        %v9070 = vrot.slane %v9069, 4
        %v9072 = vshll.u32 %v8907, 16
        %v9074 = vrot.slane %v9072, 5
        %v9075 = vsel %vm1515, %v9070, %v9074
        %v9077 = vshrl.u32 %v8908, 16
        %v9079 = vrot.slane %v9077, 4
        %v9080 = vshll.u32 %v8908, 16
        %v9082 = vrot.slane %v9080, 5
        %v9083 = vor.u32 %v9079, %v9082
        %v9084 = vrot.slane %v9083, 4
        %v9086 = vshll.u32 %v8909, 16
        %v9088 = vrot.slane %v9086, 5
        %v9089 = vsel %vm1515, %v9084, %v9088
        %v9091 = vshrl.u32 %v8910, 16
        %v9093 = vrot.slane %v9091, 4
        %v9094 = vshll.u32 %v8910, 16
        %v9096 = vrot.slane %v9094, 5
        %v9097 = vor.u32 %v9093, %v9096
        %v9098 = vrot.slane %v9097, 4
        %v9100 = vshll.u32 %v8911, 16
        %v9102 = vrot.slane %v9100, 5
        %v9103 = vsel %vm1515, %v9098, %v9102
        %v9105 = vshrl.u32 %v8912, 16
        %v9107 = vrot.slane %v9105, 4
        %v9108 = vshll.u32 %v8912, 16
        %v9110 = vrot.slane %v9108, 5
        %v9111 = vor.u32 %v9107, %v9110
        %v9112 = vrot.slane %v9111, 4
        %v9114 = vshll.u32 %v8913, 16
        %v9116 = vrot.slane %v9114, 5
        %v9117 = vsel %vm1515, %v9112, %v9116
        %v9119 = vshrl.u32 %v8914, 16
        %v9121 = vrot.slane %v9119, 4
        %v9122 = vshll.u32 %v8914, 16
        %v9124 = vrot.slane %v9122, 5
        %v9125 = vor.u32 %v9121, %v9124
        %v9126 = vrot.slane %v9125, 4
        %v9128 = vshll.u32 %v8915, 16
        %v9130 = vrot.slane %v9128, 5
        %v9131 = vsel %vm1515, %v9126, %v9130
        %v9133 = vshrl.u32 %v8916, 16
        %v9135 = vrot.slane %v9133, 4
        %v9136 = vshll.u32 %v8916, 16
        %v9138 = vrot.slane %v9136, 5
        %v9139 = vor.u32 %v9135, %v9138
        %v9140 = vrot.slane %v9139, 4
        %v9142 = vshll.u32 %v8917, 16
        %v9144 = vrot.slane %v9142, 5
        %v9145 = vsel %vm1515, %v9140, %v9144
        %v9147 = vshrl.u32 %v8918, 16
        %v9149 = vrot.slane %v9147, 4
        %v9150 = vshll.u32 %v8918, 16
        %v9152 = vrot.slane %v9150, 5
        %v9153 = vor.u32 %v9149, %v9152
        %v9154 = vrot.slane %v9153, 4
        %v9156 = vshll.u32 %v8919, 16
        %v9158 = vrot.slane %v9156, 5
        %v9159 = vsel %vm1515, %v9154, %v9158
        %v9161 = vshrl.u32 %v8920, 16
        %v9163 = vrot.slane %v9161, 4
        %v9164 = vshll.u32 %v8920, 16
        %v9166 = vrot.slane %v9164, 5
        %v9167 = vor.u32 %v9163, %v9166
        %v9168 = vrot.slane %v9167, 4
        %v9170 = vshll.u32 %v8921, 16
        %v9172 = vrot.slane %v9170, 5
        %v9173 = vsel %vm1515, %v9168, %v9172
        %v9175 = vshrl.u32 %v8922, 16
        %v9177 = vrot.slane %v9175, 4
        %v9178 = vshll.u32 %v8922, 16
        %v9180 = vrot.slane %v9178, 5
        %v9181 = vor.u32 %v9177, %v9180
        %v9182 = vrot.slane %v9181, 4
        %v9184 = vshll.u32 %v8923, 16
        %v9186 = vrot.slane %v9184, 5
        %v9187 = vsel %vm1515, %v9182, %v9186
        %v9189 = vshrl.u32 %v8924, 16
        %v9191 = vrot.slane %v9189, 4
        %v9192 = vshll.u32 %v8924, 16
        %v9194 = vrot.slane %v9192, 5
        %v9195 = vor.u32 %v9191, %v9194
        %v9196 = vrot.slane %v9195, 4
        %v9198 = vshll.u32 %v8925, 16
        %v9200 = vrot.slane %v9198, 5
        %v9201 = vsel %vm1515, %v9196, %v9200
        %v9203 = vshrl.u32 %v8926, 16
        %v9205 = vrot.slane %v9203, 4
        %v9206 = vshll.u32 %v8926, 16
        %v9208 = vrot.slane %v9206, 5
        %v9209 = vor.u32 %v9205, %v9208
        %v9210 = vrot.slane %v9209, 4
        %v9212 = vshll.u32 %v8927, 16
        %v9214 = vrot.slane %v9212, 5
        %v9215 = vsel %vm1515, %v9210, %v9214
        %v9217 = vshrl.u32 %v8928, 16
        %v9219 = vrot.slane %v9217, 4
        %v9220 = vshll.u32 %v8928, 16
        %v9222 = vrot.slane %v9220, 5
        %v9223 = vor.u32 %v9219, %v9222
        %v9224 = vrot.slane %v9223, 4
        %v9226 = vshll.u32 %v8929, 16
        %v9228 = vrot.slane %v9226, 5
        %v9229 = vsel %vm1515, %v9224, %v9228
        %v9231 = vshrl.u32 %v8930, 16
        %v9233 = vrot.slane %v9231, 4
        %v9234 = vshll.u32 %v8930, 16
        %v9236 = vrot.slane %v9234, 5
        %v9237 = vor.u32 %v9233, %v9236
        %v9238 = vrot.slane %v9237, 4
        %v9240 = vshll.u32 %v8931, 16
        %v9242 = vrot.slane %v9240, 5
        %v9243 = vsel %vm1515, %v9238, %v9242
        %v9245 = vshrl.u32 %v8932, 16
        %v9247 = vrot.slane %v9245, 4
        %v9248 = vshll.u32 %v8932, 16
        %v9250 = vrot.slane %v9248, 5
        %v9251 = vor.u32 %v9247, %v9250
        %v9252 = vrot.slane %v9251, 4
        %v9254 = vshll.u32 %v8933, 16
        %v9256 = vrot.slane %v9254, 5
        %v9257 = vsel %vm1515, %v9252, %v9256
        %v9259 = vshrl.u32 %v8934, 16
        %v9261 = vrot.slane %v9259, 4
        %v9262 = vshll.u32 %v8934, 16
        %v9264 = vrot.slane %v9262, 5
        %v9265 = vor.u32 %v9261, %v9264
        %v9266 = vrot.slane %v9265, 4
        %v9268 = vshll.u32 %v8935, 16
        %v9270 = vrot.slane %v9268, 5
        %v9271 = vsel %vm1515, %v9266, %v9270
        %s9272 = scalar_lea.vmem %s3, 32
        %v9273 = vld [vmem:[%s9272] sm:$0xf]
        %v9274 = vunpack.c.l.b16 %v8949
        %v9275 = vunpack.c.l.b16 %v8963
        %v9276 = vunpack.c.l.b16 %v8977
        %v9277 = vunpack.c.l.b16 %v8991
        %v9278 = vunpack.c.l.b16 %v9005
        %v9279 = vunpack.c.l.b16 %v9019
        %v9280 = vunpack.c.l.b16 %v9033
        %v9281 = vunpack.c.l.b16 %v9047
        %v9282 = vunpack.c.l.b16 %v9061
        %v9283 = vunpack.c.l.b16 %v9075
        %v9284 = vunpack.c.l.b16 %v9089
        %v9285 = vunpack.c.l.b16 %v9103
        %v9286 = vunpack.c.l.b16 %v9117
        %v9287 = vunpack.c.l.b16 %v9131
        %v9288 = vunpack.c.l.b16 %v9145
        %v9289 = vunpack.c.l.b16 %v9159
        %v9290 = vunpack.c.l.b16 %v9173
        %v9291 = vunpack.c.l.b16 %v9187
        %v9292 = vunpack.c.l.b16 %v9201
        %v9293 = vunpack.c.l.b16 %v9215
        %v9294 = vunpack.c.l.b16 %v9229
        %v9295 = vunpack.c.l.b16 %v9243
        %v9296 = vunpack.c.l.b16 %v9257
        %v9297 = vunpack.c.l.b16 %v9271
        %v9298 = vpack.c.b16 %v9275, %v9274
        %v9299 = vpack.c.b16 %v9277, %v9276
        %v9300 = vpack.c.b16 %v9279, %v9278
        %v9301 = vpack.c.b16 %v9281, %v9280
        %v9302 = vpack.c.b16 %v9283, %v9282
        %v9303 = vpack.c.b16 %v9285, %v9284
        %v9304 = vpack.c.b16 %v9287, %v9286
        %v9305 = vpack.c.b16 %v9289, %v9288
        %v9306 = vpack.c.b16 %v9291, %v9290
        %v9307 = vpack.c.b16 %v9293, %v9292
        %v9308 = vpack.c.b16 %v9295, %v9294
        %v9309 = vpack.c.b16 %v9297, %v9296
        %v9311 = vsel %vm5597, %v9298, 0
        %v9314 = vsel %vm5597, %v9299, 0
        %v9317 = vsel %vm5597, %v9300, 0
        %v9320 = vsel %vm5597, %v9301, 0
        %v9323 = vsel %vm5597, %v9302, 0
        %v9326 = vsel %vm5597, %v9303, 0
        %v9329 = vsel %vm5597, %v9304, 0
        %v9332 = vsel %vm5597, %v9305, 0
        %v9335 = vsel %vm5597, %v9306, 0
        %v9338 = vsel %vm5597, %v9307, 0
        %v9341 = vsel %vm5597, %v9308, 0
        %v9344 = vsel %vm5597, %v9309, 0
        %v9347 = vsel %vm5634, %v9273, 0
        %9349 = vmatprep.subr.bf16.mxu0 0
        %9350 = vmatpush1.bf16.msra.mxu0 0
        %9351 = vmatprep.subr.bf16.mxu0 0
        %9352 = vmatpush1.bf16.msra.mxu0 0
        %9353 = vmatprep.subr.bf16.mxu0 0
        %9354 = vmatpush1.bf16.msra.mxu0 0
        %9355 = vmatprep.subr.bf16.mxu0 0
        %9356 = vmatpush1.bf16.msra.mxu0 0
        %9357 = vmatprep.subr.bf16.mxu0 0
        %9358 = vmatpush1.bf16.msra.mxu0 0
        %9359 = vmatprep.subr.bf16.mxu0 0
        %9360 = vmatpush1.bf16.msra.mxu0 0
        %9361 = vmatprep.subr.bf16.mxu0 0
        %9362 = vmatpush1.bf16.msra.mxu0 0
        %9363 = vmatprep.subr.bf16.mxu0 0
        %9364 = vmatpush1.bf16.msra.mxu0 %v9347
        %9365 = vmatprep.subr.bf16.mxu0 0
        %9366 = vmatpush2.bf16.msra.mxu0 0
        %9367 = vmatprep.subr.bf16.mxu0 0
        %9368 = vmatpush2.bf16.msra.mxu0 0
        %9369 = vmatprep.subr.bf16.mxu0 0
        %9370 = vmatpush2.bf16.msra.mxu0 0
        %9371 = vmatprep.subr.bf16.mxu0 0
        %9372 = vmatpush2.bf16.msra.mxu0 0
        %9373 = vmatprep.subr.bf16.mxu0 0
        %9374 = vmatpush2.bf16.msra.mxu0 0
        %9375 = vmatprep.subr.bf16.mxu0 0
        %9376 = vmatpush2.bf16.msra.mxu0 0
        %9377 = vmatprep.subr.bf16.mxu0 0
        %9378 = vmatpush2.bf16.msra.mxu0 0
        %9379 = vmatprep.subr.bf16.mxu0 0
        %9380 = vmatpush2.bf16.msra.mxu0 0
        %9381 = vmatprep.mubr.bf16.mxu0 0
        %9382 = vmatmul.mubr.bf16.gmra.mxu0 %v9311
        %v9383 = vpop.f32.mrf.mxu0
        %v9384 = vadd.f32 0.0, %v9383
        %v9385 = vpop.f32.mrf.mxu0
        %v9386 = vpop.f32.mrf.mxu0
        %v9387 = vadd.f32 0.0, %v9386
        %v9388 = vpop.f32.mrf.mxu0
        %9389 = vmatprep.mubr.bf16.mxu0 0
        %9390 = vmatmul.mubr.bf16.gmra.mxu0 %v9314
        %v9391 = vpop.f32.mrf.mxu0
        %v9392 = vadd.f32 0.0, %v9391
        %v9393 = vpop.f32.mrf.mxu0
        %v9394 = vpop.f32.mrf.mxu0
        %v9395 = vadd.f32 0.0, %v9394
        %v9396 = vpop.f32.mrf.mxu0
        %9397 = vmatprep.mubr.bf16.mxu0 0
        %9398 = vmatmul.mubr.bf16.gmra.mxu0 %v9317
        %v9399 = vpop.f32.mrf.mxu0
        %v9400 = vadd.f32 0.0, %v9399
        %v9401 = vpop.f32.mrf.mxu0
        %v9402 = vpop.f32.mrf.mxu0
        %v9403 = vadd.f32 0.0, %v9402
        %v9404 = vpop.f32.mrf.mxu0
        %9405 = vmatprep.mubr.bf16.mxu0 0
        %9406 = vmatmul.mubr.bf16.gmra.mxu0 %v9320
        %v9407 = vpop.f32.mrf.mxu0
        %v9408 = vadd.f32 0.0, %v9407
        %v9409 = vpop.f32.mrf.mxu0
        %v9410 = vpop.f32.mrf.mxu0
        %v9411 = vadd.f32 0.0, %v9410
        %v9412 = vpop.f32.mrf.mxu0
        %9413 = vmatprep.mubr.bf16.mxu0 0
        %9414 = vmatmul.mubr.bf16.gmra.mxu0 %v9323
        %v9415 = vpop.f32.mrf.mxu0
        %v9416 = vadd.f32 0.0, %v9415
        %v9417 = vpop.f32.mrf.mxu0
        %v9418 = vpop.f32.mrf.mxu0
        %v9419 = vadd.f32 0.0, %v9418
        %v9420 = vpop.f32.mrf.mxu0
        %9421 = vmatprep.mubr.bf16.mxu0 0
        %9422 = vmatmul.mubr.bf16.gmra.mxu0 %v9326
        %v9423 = vpop.f32.mrf.mxu0
        %v9424 = vadd.f32 0.0, %v9423
        %v9425 = vpop.f32.mrf.mxu0
        %v9426 = vpop.f32.mrf.mxu0
        %v9427 = vadd.f32 0.0, %v9426
        %v9428 = vpop.f32.mrf.mxu0
        %9429 = vmatprep.mubr.bf16.mxu0 0
        %9430 = vmatmul.mubr.bf16.gmra.mxu0 %v9329
        %v9431 = vpop.f32.mrf.mxu0
        %v9432 = vadd.f32 0.0, %v9431
        %v9433 = vpop.f32.mrf.mxu0
        %v9434 = vpop.f32.mrf.mxu0
        %v9435 = vadd.f32 0.0, %v9434
        %v9436 = vpop.f32.mrf.mxu0
        %9437 = vmatprep.mubr.bf16.mxu0 0
        %9438 = vmatmul.mubr.bf16.gmra.mxu0 %v9332
        %v9439 = vpop.f32.mrf.mxu0
        %v9440 = vadd.f32 0.0, %v9439
        %v9441 = vpop.f32.mrf.mxu0
        %v9442 = vpop.f32.mrf.mxu0
        %v9443 = vadd.f32 0.0, %v9442
        %v9444 = vpop.f32.mrf.mxu0
        %9445 = vmatprep.mubr.bf16.mxu0 0
        %9446 = vmatmul.mubr.bf16.gmra.mxu0 %v9335
        %v9447 = vpop.f32.mrf.mxu0
        %v9448 = vadd.f32 0.0, %v9447
        %v9449 = vpop.f32.mrf.mxu0
        %v9450 = vpop.f32.mrf.mxu0
        %v9451 = vadd.f32 0.0, %v9450
        %v9452 = vpop.f32.mrf.mxu0
        %9453 = vmatprep.mubr.bf16.mxu0 0
        %9454 = vmatmul.mubr.bf16.gmra.mxu0 %v9338
        %v9455 = vpop.f32.mrf.mxu0
        %v9456 = vadd.f32 0.0, %v9455
        %v9457 = vpop.f32.mrf.mxu0
        %v9458 = vpop.f32.mrf.mxu0
        %v9459 = vadd.f32 0.0, %v9458
        %v9460 = vpop.f32.mrf.mxu0
        %9461 = vmatprep.mubr.bf16.mxu0 0
        %9462 = vmatmul.mubr.bf16.gmra.mxu0 %v9341
        %v9463 = vpop.f32.mrf.mxu0
        %v9464 = vadd.f32 0.0, %v9463
        %v9465 = vpop.f32.mrf.mxu0
        %v9466 = vpop.f32.mrf.mxu0
        %v9467 = vadd.f32 0.0, %v9466
        %v9468 = vpop.f32.mrf.mxu0
        %9469 = vmatprep.mubr.bf16.mxu0 0
        %9470 = vmatmul.mubr.bf16.gmra.mxu0 %v9344
        %v9471 = vpop.f32.mrf.mxu0
        %v9472 = vadd.f32 0.0, %v9471
        %v9473 = vpop.f32.mrf.mxu0
        %v9474 = vpop.f32.mrf.mxu0
        %v9475 = vadd.f32 0.0, %v9474
        %v9476 = vpop.f32.mrf.mxu0
        %9477 = vdwg.mxu0
        %v9478 = vadd.f32 %v8864, %v9384
        %v9479 = vadd.f32 %v8865, %v9387
        %v9480 = vadd.f32 %v8866, %v9392
        %v9481 = vadd.f32 %v8867, %v9395
        %v9482 = vadd.f32 %v8868, %v9400
        %v9483 = vadd.f32 %v8869, %v9403
        %v9484 = vadd.f32 %v8870, %v9408
        %v9485 = vadd.f32 %v8871, %v9411
        %v9486 = vadd.f32 %v8872, %v9416
        %v9487 = vadd.f32 %v8873, %v9419
        %v9488 = vadd.f32 %v8874, %v9424
        %v9489 = vadd.f32 %v8875, %v9427
        %v9490 = vadd.f32 %v8876, %v9432
        %v9491 = vadd.f32 %v8877, %v9435
        %v9492 = vadd.f32 %v8878, %v9440
        %v9493 = vadd.f32 %v8879, %v9443
        %v9494 = vadd.f32 %v8880, %v9448
        %v9495 = vadd.f32 %v8881, %v9451
        %v9496 = vadd.f32 %v8882, %v9456
        %v9497 = vadd.f32 %v8883, %v9459
        %v9498 = vadd.f32 %v8884, %v9464
        %v9499 = vadd.f32 %v8885, %v9467
        %v9500 = vadd.f32 %v8886, %v9472
        %v9501 = vadd.f32 %v8887, %v9475
        %v9502 = vld [vmem:[%s4] sm:$0x1]
        %v9504 = vlaneseq
        %v9505 = vshrl.u32 %v9504, 7
        %v9506 = vsub.s32 0, %v9505
        %v9507 = vrot.slane %v9502, %v9506
        %v9509 = vadd.f32 %v9478, %v9507
        %v9510 = vadd.f32 %v9479, %v9507
        %v9511 = vadd.f32 %v9480, %v9507
        %v9512 = vadd.f32 %v9481, %v9507
        %v9513 = vadd.f32 %v9482, %v9507
        %v9514 = vadd.f32 %v9483, %v9507
        %v9515 = vadd.f32 %v9484, %v9507
        %v9516 = vadd.f32 %v9485, %v9507
        %v9517 = vadd.f32 %v9486, %v9507
        %v9518 = vadd.f32 %v9487, %v9507
        %v9519 = vadd.f32 %v9488, %v9507
        %v9520 = vadd.f32 %v9489, %v9507
        %v9521 = vadd.f32 %v9490, %v9507
        %v9522 = vadd.f32 %v9491, %v9507
        %v9523 = vadd.f32 %v9492, %v9507
        %v9524 = vadd.f32 %v9493, %v9507
        %v9525 = vadd.f32 %v9494, %v9507
        %v9526 = vadd.f32 %v9495, %v9507
        %v9527 = vadd.f32 %v9496, %v9507
        %v9528 = vadd.f32 %v9497, %v9507
        %v9529 = vadd.f32 %v9498, %v9507
        %v9530 = vadd.f32 %v9499, %v9507
        %v9531 = vadd.f32 %v9500, %v9507
        %v9532 = vadd.f32 %v9501, %v9507
        %v9533 = vmax.f32 %v9509, 0.0
        %v9534 = vmax.f32 %v9510, 0.0
        %v9535 = vmax.f32 %v9511, 0.0
        %v9536 = vmax.f32 %v9512, 0.0
        %v9537 = vmax.f32 %v9513, 0.0
        %v9538 = vmax.f32 %v9514, 0.0
        %v9539 = vmax.f32 %v9515, 0.0
        %v9540 = vmax.f32 %v9516, 0.0
        %v9541 = vmax.f32 %v9517, 0.0
        %v9542 = vmax.f32 %v9518, 0.0
        %v9543 = vmax.f32 %v9519, 0.0
        %v9544 = vmax.f32 %v9520, 0.0
        %v9545 = vmax.f32 %v9521, 0.0
        %v9546 = vmax.f32 %v9522, 0.0
        %v9547 = vmax.f32 %v9523, 0.0
        %v9548 = vmax.f32 %v9524, 0.0
        %v9549 = vmax.f32 %v9525, 0.0
        %v9550 = vmax.f32 %v9526, 0.0
        %v9551 = vmax.f32 %v9527, 0.0
        %v9552 = vmax.f32 %v9528, 0.0
        %v9553 = vmax.f32 %v9529, 0.0
        %v9554 = vmax.f32 %v9530, 0.0
        %v9555 = vmax.f32 %v9531, 0.0
        %v9556 = vmax.f32 %v9532, 0.0
        %v9557 = vpack.c.bf16 %v9534, %v9533
        %v9558 = vpack.c.bf16 %v9536, %v9535
        %v9559 = vpack.c.bf16 %v9538, %v9537
        %v9560 = vpack.c.bf16 %v9540, %v9539
        %v9561 = vpack.c.bf16 %v9542, %v9541
        %v9562 = vpack.c.bf16 %v9544, %v9543
        %v9563 = vpack.c.bf16 %v9546, %v9545
        %v9564 = vpack.c.bf16 %v9548, %v9547
        %v9565 = vpack.c.bf16 %v9550, %v9549
        %v9566 = vpack.c.bf16 %v9552, %v9551
        %v9567 = vpack.c.bf16 %v9554, %v9553
        %v9568 = vpack.c.bf16 %v9556, %v9555
        %v9581 = vunpack.c.l.b16 %v9557
        %v9582 = vunpack.c.h.b16 %v9557
        %v9583 = vunpack.c.l.b16 %v9558
        %v9584 = vunpack.c.h.b16 %v9558
        %v9585 = vunpack.c.l.b16 %v9559
        %v9586 = vunpack.c.h.b16 %v9559
        %v9587 = vunpack.c.l.b16 %v9560
        %v9588 = vunpack.c.h.b16 %v9560
        %v9589 = vunpack.c.l.b16 %v9561
        %v9590 = vunpack.c.h.b16 %v9561
        %v9591 = vunpack.c.l.b16 %v9562
        %v9592 = vunpack.c.h.b16 %v9562
        %v9593 = vunpack.c.l.b16 %v9563
        %v9594 = vunpack.c.h.b16 %v9563
        %v9595 = vunpack.c.l.b16 %v9564
        %v9596 = vunpack.c.h.b16 %v9564
        %v9597 = vunpack.c.l.b16 %v9565
        %v9598 = vunpack.c.h.b16 %v9565
        %v9599 = vunpack.c.l.b16 %v9566
        %v9600 = vunpack.c.h.b16 %v9566
        %v9601 = vunpack.c.l.b16 %v9567
        %v9602 = vunpack.c.h.b16 %v9567
        %v9603 = vunpack.c.l.b16 %v9568
        %v9604 = vunpack.c.h.b16 %v9568
        %v9605 = vpack.c.b16 %v9581, %v9581
        %v9606 = vpack.c.b16 %v9582, %v9582
        %v9607 = vpack.c.b16 %v9583, %v9583
        %v9608 = vpack.c.b16 %v9584, %v9584
        %v9609 = vpack.c.b16 %v9585, %v9585
        %v9610 = vpack.c.b16 %v9586, %v9586
        %v9611 = vpack.c.b16 %v9587, %v9587
        %v9612 = vpack.c.b16 %v9588, %v9588
        %v9613 = vpack.c.b16 %v9589, %v9589
        %v9614 = vpack.c.b16 %v9590, %v9590
        %v9615 = vpack.c.b16 %v9591, %v9591
        %v9616 = vpack.c.b16 %v9592, %v9592
        %v9617 = vpack.c.b16 %v9593, %v9593
        %v9618 = vpack.c.b16 %v9594, %v9594
        %v9619 = vpack.c.b16 %v9595, %v9595
        %v9620 = vpack.c.b16 %v9596, %v9596
        %v9621 = vpack.c.b16 %v9597, %v9597
        %v9622 = vpack.c.b16 %v9598, %v9598
        %v9623 = vpack.c.b16 %v9599, %v9599
        %v9624 = vpack.c.b16 %v9600, %v9600
        %v9625 = vpack.c.b16 %v9601, %v9601
        %v9626 = vpack.c.b16 %v9602, %v9602
        %v9627 = vpack.c.b16 %v9603, %v9603
        %v9628 = vpack.c.b16 %v9604, %v9604
        %9653 = vst.msk [vmem:[%s220] sm:$0xf] %vm430, %v9605
        %9654 = vst.msk [vmem:[%s220 + $0x4] sm:$0xf] %vm430, %v9606
        %9655 = vst.msk [vmem:[%s220 + $0x8] sm:$0xf] %vm430, %v9607
        %9656 = vst.msk [vmem:[%s220 + $0xc] sm:$0xf] %vm430, %v9608
        %9657 = vst.msk [vmem:[%s220 + $0x10] sm:$0xf] %vm430, %v9609
        %9658 = vst.msk [vmem:[%s220 + $0x14] sm:$0xf] %vm430, %v9610
        %9659 = vst.msk [vmem:[%s220 + $0x18] sm:$0xf] %vm430, %v9611
        %9660 = vst.msk [vmem:[%s220 + $0x1c] sm:$0xf] %vm430, %v9612
        %9661 = vst.msk [vmem:[%s220 + $0x20] sm:$0xf] %vm430, %v9613
        %9662 = vst.msk [vmem:[%s220 + $0x24] sm:$0xf] %vm430, %v9614
        %9663 = vst.msk [vmem:[%s220 + $0x28] sm:$0xf] %vm430, %v9615
        %9664 = vst.msk [vmem:[%s220 + $0x2c] sm:$0xf] %vm430, %v9616
        %9665 = vst.msk [vmem:[%s220 + $0x30] sm:$0xf] %vm430, %v9617
        %9666 = vst.msk [vmem:[%s220 + $0x34] sm:$0xf] %vm430, %v9618
        %9667 = vst.msk [vmem:[%s220 + $0x38] sm:$0xf] %vm430, %v9619
        %9668 = vst.msk [vmem:[%s220 + $0x3c] sm:$0xf] %vm430, %v9620
        %9669 = vst.msk [vmem:[%s220 + $0x40] sm:$0xf] %vm430, %v9621
        %9670 = vst.msk [vmem:[%s220 + $0x44] sm:$0xf] %vm430, %v9622
        %9671 = vst.msk [vmem:[%s220 + $0x48] sm:$0xf] %vm430, %v9623
        %9672 = vst.msk [vmem:[%s220 + $0x4c] sm:$0xf] %vm430, %v9624
        %9673 = vst.msk [vmem:[%s220 + $0x50] sm:$0xf] %vm430, %v9625
        %9674 = vst.msk [vmem:[%s220 + $0x54] sm:$0xf] %vm430, %v9626
        %9675 = vst.msk [vmem:[%s220 + $0x58] sm:$0xf] %vm430, %v9627
        %9676 = vst.msk [vmem:[%s220 + $0x5c] sm:$0xf] %vm430, %v9628
        %s9677 = sand.u32 %s137, 1
        %s9678 = scalar_lea.sflag [#allocation5], %s9677
        %s9679 = sand.u32 %s137, 1
        %s9680 = smul.addr %s9679, 96
        %s9681 = scalar_lea.vmem [#allocation4], %s9680
        // Predicated region
        $region41: #{tpu_custom_call.1} parent=39 // pred_check
          %p9682 = pneg %p147
        $region42: #{tpu_custom_call.1} parent=39 // pred_check_branch
          %9684 = sbr.rel (%p9682) target = $region44
        $region43: #{tpu_custom_call.1} parent=39 // pred_region
          %s9685 = smul.u32 3, %s19
          %s9687 = ssub.s32 1536, 1536
          %9688 = vsyncadd %s9678, %s9687
          %s9689 = smul.addr %s9685, 8
          %s9690 = smul.addr %s9689, 64
          %s9691 = scalar_lea.hbm %s5, %s9690
          %s9692 = sshll.u32 %s9681, 4
          %s9693 = int_to_ptr.vmem [resolvable:$true] %s9692
          %9698 = dma.vmem_to_hbm [thread:$0]  %s9693, 1536, %s9691, %s9678, 64, 64, 4
        $region44: #{tpu_custom_call.1} parent=39 // pred_fallthru
          _
      $region40: #{tpu_custom_call.1} parent=5 // pred_fallthru
        _
      %p9699 = scmp.le.s32.totalorder 2, %s14
      // Predicated region
      $region45: #{tpu_custom_call.1} parent=5 // pred_check
        %p9700 = pneg %p9699
      $region46: #{tpu_custom_call.1} parent=5 // pred_check_branch
        %9702 = sbr.rel (%p9700) target = $region48
      $region47: #{tpu_custom_call.1} parent=5 // pred_region
        %s9703 = ssub.s32 %s14, 2
        // Predicated region
        $region49: #{tpu_custom_call.1} parent=47 // pred_check
          %p9704 = pneg %p153
        $region50: #{tpu_custom_call.1} parent=47 // pred_check_branch
          %9706 = sbr.rel (%p9704) target = $region52
        $region51: #{tpu_custom_call.1} parent=47 // pred_region
          %s9707 = sand.u32 %s138, 1
          %s9708 = scalar_lea.sflag [#allocation5], %s9707
          %s9709 = sand.u32 %s138, 1
          %s9710 = smul.addr %s9709, 96
          %s9711 = scalar_lea.vmem [#allocation4], %s9710
          %9712 = dma.done %s9708, 1536
        $region52: #{tpu_custom_call.1} parent=47 // pred_fallthru
          _
      $region48: #{tpu_custom_call.1} parent=5 // pred_fallthru
        _
    $region6: #{tpu_custom_call.1} parent=1 // loop_footer
      %s18 = sadd.s32 1, %s14
    $region7: #{tpu_custom_call.1} parent=1 // loop_footer_branch
      %13 = sbr.rel target = $region3
    $region8: #{tpu_custom_call.1} parent=1 // loop_exit
      _
    %9713 = vsyncpa [#allocation5], 1
    %s9714 = scalar_lea.sflag [#allocation5], 1
    %9715 = vsyncpa %s9714, 1

</llo_original>
